<compile_context>
chip_gen: v7x
topology: tpu7x:2x2x1
jax: 0.10.0
libtpu: 0.0.40
codegen_flags: <defaults>
</compile_context>

<pallas_src>
import math

import jax
import jax.numpy as jnp
from jax.experimental import pallas as pl
from jax.experimental.pallas import tpu as pltpu


def _make_msg_gru_kernel(num_units, batch_block, off_g, off_c, mxu_dtype):
    """Build the fused-cell kernel (offsets / sizes are static Python values)."""
    U = num_units
    bb = batch_block
    f32 = jnp.float32

    def kernel(x_ref, h_ref, a_ref, w1x_ref, wg_ref, wc_ref, out_ref):
        # a_ref: (10N, N) stacked supports, 5 "i"-branch row-blocks then 5 "s"-branch.
        n = a_ref.shape[1]
        a = a_ref[...]                       # already in mxu dtype (cast in wrapper)

        def mxu(lhs, rhs):
            return jnp.dot(lhs.astype(mxu_dtype), rhs.astype(mxu_dtype),
                           preferred_element_type=f32)

        def gconv(x_proj, state, w_ref, off, O):
            """Multi-support graph conv + per-branch support attention. Returns (N, O)."""
            w1h = w_ref[off["w1h"]:off["w1h"] + U, :]        # (U, O)
            wa = w_ref[off["wa"]:off["wa"] + O, :]           # (O, O)
            wav = w_ref[off["wav"]:off["wav"] + 1, :]        # (1, O)
            wf = w_ref[off["wf"]:off["wf"] + 3 * O, :]       # (3O, O)
            bias = w_ref[off["bias"]:off["bias"] + 1, :]     # (1, O)

            # identity ("bypass") support; tiny-K matmul kept in f32
            x_bp = x_proj + jnp.dot(state, w1h, preferred_element_type=f32)   # (N, O)
            # ALL 10 diffusion supports in ONE matmul via associativity:
            # (A_k @ [x|state]) @ w1 == A_k @ x_bp
            feat = mxu(a, x_bp)                                               # (10N, O)
            # shared attention hidden layer for both branches (wa shared by shape-cache)
            h_att = jax.nn.relu(mxu(feat, wa))                                # (10N, O)
            # (O,1) logit projection as a VPU/XLU lane reduction (no 1-lane MXU result)
            logit = jnp.sum(h_att * wav, axis=-1, keepdims=True)              # (10N, 1)

            def attend(base):
                # softmax over the 5 supports of one branch, fully unrolled (f32, EUP/VPU)
                fs = [feat[(base + k) * n:(base + k + 1) * n] for k in range(5)]
                ls = [logit[(base + k) * n:(base + k + 1) * n] for k in range(5)]
                m = ls[0]
                for k in range(1, 5):
                    m = jnp.maximum(m, ls[k])
                es = [jnp.exp(l - m) for l in ls]
                den = es[0]
                for k in range(1, 5):
                    den = den + es[k]
                inv = 1.0 / den
                acc = (es[0] * inv) * fs[0]
                for k in range(1, 5):
                    acc = acc + (es[k] * inv) * fs[k]
                return acc                                                    # (N, O)

            x_i = attend(0)
            x_s = attend(5)
            # re-fused final projection: single (N,3O)@(3O,O) matmul (lane concat is
            # VPU/XLU work on an otherwise idle slot)
            cat = jnp.concatenate([x_i, x_s, x_bp], axis=-1)                  # (N, 3O)
            return mxu(cat, wf) + bias                                        # (N, O)

        w1x = w1x_ref[...]                   # (D, 3U) stacked x-projection, both passes

        # Static unroll over the batch elements of this grid step: independent
        # gate->candidate chains interleave on the MXU/EUP (ILP for single-TC chips).
        for b in range(bb):
            x = x_ref[b]                     # (N, D)
            h = h_ref[b]                     # (N, U)
            xw = jnp.dot(x, w1x, preferred_element_type=f32)                  # (N, 3U)

            # gate pass: sigmoid(gconv(inputs, hx)), bias_start = 1.0
            gate = jax.nn.sigmoid(
                gconv(xw[:, :2 * U], h, wg_ref, off_g, 2 * U))                # (N, 2U)
            r = gate[:, :U]                  # torch split order: r first, then u
            z = gate[:, U:]

            # candidate pass: tanh(gconv(inputs, r*hx)), bias_start = 0.0
            c = jnp.tanh(gconv(xw[:, 2 * U:], r * h, wc_ref, off_c, U))       # (N, U)

            # GRU update fused in-kernel: new_state = u * hx + (1 - u) * c
            out_ref[b] = (z * h + (1.0 - z) * c).astype(out_ref.dtype)

    return kernel


def _pack_rows(blocks):
    """Concatenate row blocks, each padded to a multiple of 8 sublanes (tile-aligned
    static slices in-kernel).  Returns (packed_buffer, {name: row_offset})."""
    offs, parts, r = {}, [], 0
    for name, w in blocks:
        offs[name] = r
        rows = -(-w.shape[0] // 8) * 8
        pad = rows - w.shape[0]
        if pad:
            w = jnp.concatenate([w, jnp.zeros((pad, w.shape[1]), w.dtype)], axis=0)
        parts.append(w)
        r += rows
    return jnp.concatenate(parts, axis=0), offs


def _tensorcores_per_chip():
    """2 for megacore / multi-TC chips (v7x, v4, v5p); 1 for v5e/v6e (and unknown)."""
    try:
        kind = jax.devices()[0].device_kind.lower()
    except Exception:
        return 1
    return 2 if any(t in kind for t in ("v7", "v4", "v5p")) else 1


def init_params(key, input_dim, num_units):
    """Deterministic xavier_normal weights / constant biases, mirroring LayerParams."""
    I = input_dim + num_units

    def xavier_normal(k, shape):
        fan_in, fan_out = shape
        std = math.sqrt(2.0 / (fan_in + fan_out))
        return (std * jax.random.normal(k, shape)).astype(jnp.float32)

    ks = jax.random.split(key, 8)
    params = {}
    for idx, (out_size, bias_start) in enumerate([(2 * num_units, 1.0), (num_units, 0.0)]):
        kk = ks[4 * idx: 4 * idx + 4]
        params["g%d" % (idx + 1)] = {
            "w1": xavier_normal(kk[0], (I, out_size)),          # shared weights_i/_s/_bp
            "wa": xavier_normal(kk[1], (out_size, out_size)),   # shared weights_atti/_atts
            "wa1": xavier_normal(kk[2], (out_size, 1)),         # shared weights_atti1/_atts1
            "wf": xavier_normal(kk[3], (3 * out_size, out_size)),
            "bias": jnp.full((1, out_size), bias_start, jnp.float32),
        }
    return params


def msg_gru_cell_forward(inputs, hx, adj, masks, params, num_nodes, num_units,
                         batch_block=None, mxu_dtype=jnp.bfloat16):
    """inputs: (B, N*input_dim), hx: (B, N*num_units), adj: (2, N, N), masks: (8, N, N).
    Returns new_state: (B, N*num_units)."""
    B = inputs.shape[0]
    N, U = num_nodes, num_units
    D = inputs.shape[1] // N
    x_in = inputs.reshape(B, N, D).astype(jnp.float32)
    h = hx.reshape(B, N, U).astype(jnp.float32)

    # One grid step per TensorCore: full batch fold on single-TC chips, B//cores per
    # step on multi-core chips ("parallel" grid axis shards steps across cores).
    if batch_block is None:
        cores = _tensorcores_per_chip()
        batch_block = B if cores <= 1 else max(1, -(-B // cores))
    batch_block = min(batch_block, B)
    while B % batch_block:
        batch_block -= 1

    # 10 diffusion supports, batch-independent, stacked on rows (single MXU operand).
    # Order matches torch: [adj0, m0*a0..m3*a0 | m4*a1..m7*a1, adj1].
    a_stack = jnp.concatenate(
        [adj[0][None],
         masks[0:4] * adj[0][None],
         masks[4:8] * adj[1][None],
         adj[1][None]],
        axis=0).reshape(10 * N, N).astype(jnp.float32).astype(mxu_dtype)

    g1, g2 = params["g1"], params["g2"]
    # state-independent x-projections of BOTH passes fused on output lanes: (D, 3U)
    w1x_stack = jnp.concatenate(
        [g1["w1"][:D], g2["w1"][:D]], axis=1).astype(jnp.float32)

    def pack(p, O):
        return _pack_rows([
            ("w1h", p["w1"][D:].astype(jnp.float32)),              # (U, O)
            ("wa", p["wa"].astype(jnp.float32)),                   # (O, O)
            ("wav", p["wa1"].reshape(1, O).astype(jnp.float32)),   # (1, O) row for VPU reduce
            ("wf", p["wf"].astype(jnp.float32)),                   # (3O, O)
            ("bias", p["bias"].reshape(1, O).astype(jnp.float32)),  # (1, O)
        ])

    wg, off_g = pack(g1, 2 * U)
    wc, off_c = pack(g2, U)

    kernel = _make_msg_gru_kernel(U, batch_block, off_g, off_c, mxu_dtype)
    grid = (B // batch_block,)

    def run(single_buffer_consts):
        if single_buffer_consts:
            const_kw = dict(pipeline_mode=pl.Buffered(1))   # constant blocks: 1 buffer
        else:
            const_kw = {}

        def const_spec(arr):
            nd = arr.ndim
            return pl.BlockSpec(arr.shape, lambda g, _nd=nd: (0,) * _nd, **const_kw)

        return pl.pallas_call(
            kernel,
            out_shape=jax.ShapeDtypeStruct((B, N, U), jnp.float32),
            grid=grid,
            in_specs=[
                pl.BlockSpec((batch_block, N, D), lambda g: (g, 0, 0)),   # inputs
                pl.BlockSpec((batch_block, N, U), lambda g: (g, 0, 0)),   # hx
                const_spec(a_stack),                                       # supports
                const_spec(w1x_stack),                                     # fused x-proj
                const_spec(wg),                                            # gate weights
                const_spec(wc),                                            # cand weights
            ],
            out_specs=pl.BlockSpec((batch_block, N, U), lambda g: (g, 0, 0)),
            compiler_params=pltpu.CompilerParams(
                dimension_semantics=("parallel",),
                vmem_limit_bytes=32 * 1024 * 1024),
        )(x_in, h, a_stack, w1x_stack, wg, wc)

    try:
        out = run(True)
        out = jax.block_until_ready(out)
    except Exception:
        # pipeline_mode=pl.Buffered(1) not accepted by this jax build on top-level
        # pallas_call -> fall back to default double buffering (same semantics).
        out = run(False)

    # Free row-major bitcast; HBM bytes are already in node-flattened order.
    return out.reshape(B, N * U)


if __name__ == "__main__":
    B, N, D_IN, U = 2, 16, 2, 8
    key = jax.random.PRNGKey(0)
    k_in, k_hx, k_adj, k_mask, k_par = jax.random.split(key, 5)

    inputs = jax.random.normal(k_in, (B, N * D_IN), jnp.float32)
    hx = jax.random.normal(k_hx, (B, N * U), jnp.float32)
    adj = jax.random.uniform(k_adj, (2, N, N), dtype=jnp.float32)
    masks = (jax.random.uniform(k_mask, (8, N, N)) > 0.5).astype(jnp.float32)
    params = init_params(k_par, D_IN, U)

    out = msg_gru_cell_forward(inputs, hx, adj, masks, params, N, U)
    out = jax.block_until_ready(out)

    assert out.shape == (B, N * U), out.shape
    assert bool(jnp.all(jnp.isfinite(out)))
    print("KERNEL_OK")
</pallas_src>

<mosaic_0001>
module attributes {stable_mosaic.version = 11 : i64} {
  func.func @kernel(%arg0: i32, %arg1: memref<2x16x2xf32, #tpu.memory_space<vmem>>, %arg2: memref<2x16x8xf32, #tpu.memory_space<vmem>>, %arg3: memref<160x16xbf16, #tpu.memory_space<vmem>>, %arg4: memref<2x24xf32, #tpu.memory_space<vmem>>, %arg5: memref<88x16xf32, #tpu.memory_space<vmem>>, %arg6: memref<56x8xf32, #tpu.memory_space<vmem>>, %arg7: memref<2x16x8xf32, #tpu.memory_space<vmem>>) attributes {dimension_semantics = [#tpu.dimension_semantics<parallel>], iteration_bounds = array<i64: 1>, scalar_prefetch = 0 : i64, scratch_operands = 0 : i64, tpu.core_type = #tpu.core_type<tc>, window_params = [{transform_indices = @transform_0, window_bounds = array<i64: 2, 16, 2>}, {transform_indices = @transform_1, window_bounds = array<i64: 2, 16, 8>}, {pipeline_mode = #tpu.pipeline_mode<synchronous>, transform_indices = @transform_2, window_bounds = array<i64: 160, 16>}, {pipeline_mode = #tpu.pipeline_mode<synchronous>, transform_indices = @transform_3, window_bounds = array<i64: 2, 24>}, {pipeline_mode = #tpu.pipeline_mode<synchronous>, transform_indices = @transform_4, window_bounds = array<i64: 88, 16>}, {pipeline_mode = #tpu.pipeline_mode<synchronous>, transform_indices = @transform_5, window_bounds = array<i64: 56, 8>}, {transform_indices = @transform_6, window_bounds = array<i64: 2, 16, 8>}]} {
    %c0 = arith.constant 0 : index
    %c0_0 = arith.constant 0 : index
    %0 = vector.load %arg3[%c0, %c0_0] : memref<160x16xbf16, #tpu.memory_space<vmem>>, vector<160x16xbf16>
    %c0_1 = arith.constant 0 : index
    %c0_2 = arith.constant 0 : index
    %1 = vector.load %arg4[%c0_1, %c0_2] : memref<2x24xf32, #tpu.memory_space<vmem>>, vector<2x24xf32>
    %c0_3 = arith.constant 0 : index
    %c0_4 = arith.constant 0 : index
    %c0_5 = arith.constant 0 : index
    %2 = vector.load %arg1[%c0_3, %c0_4, %c0_5] : memref<2x16x2xf32, #tpu.memory_space<vmem>>, vector<1x16x2xf32>
    %3 = vector.shape_cast %2 : vector<1x16x2xf32> to vector<16x2xf32>
    %c0_6 = arith.constant 0 : index
    %c0_7 = arith.constant 0 : index
    %c0_8 = arith.constant 0 : index
    %4 = vector.load %arg2[%c0_6, %c0_7, %c0_8] : memref<2x16x8xf32, #tpu.memory_space<vmem>>, vector<1x16x8xf32>
    %5 = vector.shape_cast %4 : vector<1x16x8xf32> to vector<16x8xf32>
    %cst = arith.constant dense<0.000000e+00> : vector<16x24xf32>
    %6 = tpu.matmul %3, %1, %cst {dimension_numbers = #tpu.dot_dimension_numbers<[1], [0], [0], [1], [0, 0, 1, 1], [], []>} : vector<16x2xf32>, vector<2x24xf32>, vector<16x24xf32> -> vector<16x24xf32>
    %7 = vector.extract_strided_slice %6 {offsets = [0, 0], sizes = [16, 16], strides = [1, 1]} : vector<16x24xf32> to vector<16x16xf32>
    %c0_9 = arith.constant 0 : index
    %c0_10 = arith.constant 0 : index
    %8 = vector.load %arg5[%c0_9, %c0_10] : memref<88x16xf32, #tpu.memory_space<vmem>>, vector<8x16xf32>
    %c8 = arith.constant 8 : index
    %c0_11 = arith.constant 0 : index
    %9 = vector.load %arg5[%c8, %c0_11] : memref<88x16xf32, #tpu.memory_space<vmem>>, vector<16x16xf32>
    %c24 = arith.constant 24 : index
    %c0_12 = arith.constant 0 : index
    %10 = vector.load %arg5[%c24, %c0_12] : memref<88x16xf32, #tpu.memory_space<vmem>>, vector<1x16xf32>
    %c32 = arith.constant 32 : index
    %c0_13 = arith.constant 0 : index
    %11 = vector.load %arg5[%c32, %c0_13] : memref<88x16xf32, #tpu.memory_space<vmem>>, vector<48x16xf32>
    %c80 = arith.constant 80 : index
    %c0_14 = arith.constant 0 : index
    %12 = vector.load %arg5[%c80, %c0_14] : memref<88x16xf32, #tpu.memory_space<vmem>>, vector<1x16xf32>
    %cst_15 = arith.constant dense<0.000000e+00> : vector<16x16xf32>
    %13 = tpu.matmul %5, %8, %cst_15 {dimension_numbers = #tpu.dot_dimension_numbers<[1], [0], [0], [1], [0, 0, 1, 1], [], []>} : vector<16x8xf32>, vector<8x16xf32>, vector<16x16xf32> -> vector<16x16xf32>
    %14 = arith.addf %7, %13 : vector<16x16xf32>
    %15 = arith.truncf %14 : vector<16x16xf32> to vector<16x16xbf16>
    %cst_16 = arith.constant dense<0.000000e+00> : vector<160x16xf32>
    %16 = tpu.matmul %0, %15, %cst_16 {dimension_numbers = #tpu.dot_dimension_numbers<[1], [0], [0], [1], [0, 0, 1, 1], [], []>} : vector<160x16xbf16>, vector<16x16xbf16>, vector<160x16xf32> -> vector<160x16xf32>
    %17 = arith.truncf %16 : vector<160x16xf32> to vector<160x16xbf16>
    %18 = arith.truncf %9 : vector<16x16xf32> to vector<16x16xbf16>
    %cst_17 = arith.constant dense<0.000000e+00> : vector<160x16xf32>
    %19 = tpu.matmul %17, %18, %cst_17 {dimension_numbers = #tpu.dot_dimension_numbers<[1], [0], [0], [1], [0, 0, 1, 1], [], []>} : vector<160x16xbf16>, vector<16x16xbf16>, vector<160x16xf32> -> vector<160x16xf32>
    %cst_18 = arith.constant 0.000000e+00 : f32
    %20 = vector.broadcast %cst_18 : f32 to vector<160x16xf32>
    %21 = arith.maximumf %19, %20 : vector<160x16xf32>
    %22 = vector.broadcast %10 : vector<1x16xf32> to vector<160x16xf32>
    %23 = arith.mulf %21, %22 : vector<160x16xf32>
    %cst_19 = arith.constant dense<0.000000e+00> : vector<160xf32>
    %24 = vector.multi_reduction <add>, %23, %cst_19 [1] : vector<160x16xf32> to vector<160xf32>
    %25 = vector.shape_cast %24 : vector<160xf32> to vector<160x1xf32>
    %26 = vector.extract_strided_slice %16 {offsets = [0, 0], sizes = [16, 16], strides = [1, 1]} : vector<160x16xf32> to vector<16x16xf32>
    %27 = vector.extract_strided_slice %16 {offsets = [16, 0], sizes = [16, 16], strides = [1, 1]} : vector<160x16xf32> to vector<16x16xf32>
    %28 = vector.extract_strided_slice %16 {offsets = [32, 0], sizes = [16, 16], strides = [1, 1]} : vector<160x16xf32> to vector<16x16xf32>
    %29 = vector.extract_strided_slice %16 {offsets = [48, 0], sizes = [16, 16], strides = [1, 1]} : vector<160x16xf32> to vector<16x16xf32>
    %30 = vector.extract_strided_slice %16 {offsets = [64, 0], sizes = [16, 16], strides = [1, 1]} : vector<160x16xf32> to vector<16x16xf32>
    %31 = vector.extract_strided_slice %25 {offsets = [0, 0], sizes = [16, 1], strides = [1, 1]} : vector<160x1xf32> to vector<16x1xf32>
    %32 = vector.extract_strided_slice %25 {offsets = [16, 0], sizes = [16, 1], strides = [1, 1]} : vector<160x1xf32> to vector<16x1xf32>
    %33 = vector.extract_strided_slice %25 {offsets = [32, 0], sizes = [16, 1], strides = [1, 1]} : vector<160x1xf32> to vector<16x1xf32>
    %34 = vector.extract_strided_slice %25 {offsets = [48, 0], sizes = [16, 1], strides = [1, 1]} : vector<160x1xf32> to vector<16x1xf32>
    %35 = vector.extract_strided_slice %25 {offsets = [64, 0], sizes = [16, 1], strides = [1, 1]} : vector<160x1xf32> to vector<16x1xf32>
    %36 = arith.maximumf %31, %32 : vector<16x1xf32>
    %37 = arith.maximumf %36, %33 : vector<16x1xf32>
    %38 = arith.maximumf %37, %34 : vector<16x1xf32>
    %39 = arith.maximumf %38, %35 : vector<16x1xf32>
    %40 = arith.subf %31, %39 : vector<16x1xf32>
    %41 = math.exp %40 : vector<16x1xf32>
    %42 = arith.subf %32, %39 : vector<16x1xf32>
    %43 = math.exp %42 : vector<16x1xf32>
    %44 = arith.subf %33, %39 : vector<16x1xf32>
    %45 = math.exp %44 : vector<16x1xf32>
    %46 = arith.subf %34, %39 : vector<16x1xf32>
    %47 = math.exp %46 : vector<16x1xf32>
    %48 = arith.subf %35, %39 : vector<16x1xf32>
    %49 = math.exp %48 : vector<16x1xf32>
    %50 = arith.addf %41, %43 : vector<16x1xf32>
    %51 = arith.addf %50, %45 : vector<16x1xf32>
    %52 = arith.addf %51, %47 : vector<16x1xf32>
    %53 = arith.addf %52, %49 : vector<16x1xf32>
    %cst_20 = arith.constant 1.000000e+00 : f32
    %54 = vector.broadcast %cst_20 : f32 to vector<16x1xf32>
    %55 = arith.divf %54, %53 : vector<16x1xf32>
    %56 = arith.mulf %41, %55 : vector<16x1xf32>
    %57 = vector.broadcast %56 : vector<16x1xf32> to vector<16x16xf32>
    %58 = arith.mulf %57, %26 : vector<16x16xf32>
    %59 = arith.mulf %43, %55 : vector<16x1xf32>
    %60 = vector.broadcast %59 : vector<16x1xf32> to vector<16x16xf32>
    %61 = arith.mulf %60, %27 : vector<16x16xf32>
    %62 = arith.addf %58, %61 : vector<16x16xf32>
    %63 = arith.mulf %45, %55 : vector<16x1xf32>
    %64 = vector.broadcast %63 : vector<16x1xf32> to vector<16x16xf32>
    %65 = arith.mulf %64, %28 : vector<16x16xf32>
    %66 = arith.addf %62, %65 : vector<16x16xf32>
    %67 = arith.mulf %47, %55 : vector<16x1xf32>
    %68 = vector.broadcast %67 : vector<16x1xf32> to vector<16x16xf32>
    %69 = arith.mulf %68, %29 : vector<16x16xf32>
    %70 = arith.addf %66, %69 : vector<16x16xf32>
    %71 = arith.mulf %49, %55 : vector<16x1xf32>
    %72 = vector.broadcast %71 : vector<16x1xf32> to vector<16x16xf32>
    %73 = arith.mulf %72, %30 : vector<16x16xf32>
    %74 = arith.addf %70, %73 : vector<16x16xf32>
    %75 = vector.extract_strided_slice %16 {offsets = [80, 0], sizes = [16, 16], strides = [1, 1]} : vector<160x16xf32> to vector<16x16xf32>
    %76 = vector.extract_strided_slice %16 {offsets = [96, 0], sizes = [16, 16], strides = [1, 1]} : vector<160x16xf32> to vector<16x16xf32>
    %77 = vector.extract_strided_slice %16 {offsets = [112, 0], sizes = [16, 16], strides = [1, 1]} : vector<160x16xf32> to vector<16x16xf32>
    %78 = vector.extract_strided_slice %16 {offsets = [128, 0], sizes = [16, 16], strides = [1, 1]} : vector<160x16xf32> to vector<16x16xf32>
    %79 = vector.extract_strided_slice %16 {offsets = [144, 0], sizes = [16, 16], strides = [1, 1]} : vector<160x16xf32> to vector<16x16xf32>
    %80 = vector.extract_strided_slice %25 {offsets = [80, 0], sizes = [16, 1], strides = [1, 1]} : vector<160x1xf32> to vector<16x1xf32>
    %81 = vector.extract_strided_slice %25 {offsets = [96, 0], sizes = [16, 1], strides = [1, 1]} : vector<160x1xf32> to vector<16x1xf32>
    %82 = vector.extract_strided_slice %25 {offsets = [112, 0], sizes = [16, 1], strides = [1, 1]} : vector<160x1xf32> to vector<16x1xf32>
    %83 = vector.extract_strided_slice %25 {offsets = [128, 0], sizes = [16, 1], strides = [1, 1]} : vector<160x1xf32> to vector<16x1xf32>
    %84 = vector.extract_strided_slice %25 {offsets = [144, 0], sizes = [16, 1], strides = [1, 1]} : vector<160x1xf32> to vector<16x1xf32>
    %85 = arith.maximumf %80, %81 : vector<16x1xf32>
    %86 = arith.maximumf %85, %82 : vector<16x1xf32>
    %87 = arith.maximumf %86, %83 : vector<16x1xf32>
    %88 = arith.maximumf %87, %84 : vector<16x1xf32>
    %89 = arith.subf %80, %88 : vector<16x1xf32>
    %90 = math.exp %89 : vector<16x1xf32>
    %91 = arith.subf %81, %88 : vector<16x1xf32>
    %92 = math.exp %91 : vector<16x1xf32>
    %93 = arith.subf %82, %88 : vector<16x1xf32>
    %94 = math.exp %93 : vector<16x1xf32>
    %95 = arith.subf %83, %88 : vector<16x1xf32>
    %96 = math.exp %95 : vector<16x1xf32>
    %97 = arith.subf %84, %88 : vector<16x1xf32>
    %98 = math.exp %97 : vector<16x1xf32>
    %99 = arith.addf %90, %92 : vector<16x1xf32>
    %100 = arith.addf %99, %94 : vector<16x1xf32>
    %101 = arith.addf %100, %96 : vector<16x1xf32>
    %102 = arith.addf %101, %98 : vector<16x1xf32>
    %cst_21 = arith.constant 1.000000e+00 : f32
    %103 = vector.broadcast %cst_21 : f32 to vector<16x1xf32>
    %104 = arith.divf %103, %102 : vector<16x1xf32>
    %105 = arith.mulf %90, %104 : vector<16x1xf32>
    %106 = vector.broadcast %105 : vector<16x1xf32> to vector<16x16xf32>
    %107 = arith.mulf %106, %75 : vector<16x16xf32>
    %108 = arith.mulf %92, %104 : vector<16x1xf32>
    %109 = vector.broadcast %108 : vector<16x1xf32> to vector<16x16xf32>
    %110 = arith.mulf %109, %76 : vector<16x16xf32>
    %111 = arith.addf %107, %110 : vector<16x16xf32>
    %112 = arith.mulf %94, %104 : vector<16x1xf32>
    %113 = vector.broadcast %112 : vector<16x1xf32> to vector<16x16xf32>
    %114 = arith.mulf %113, %77 : vector<16x16xf32>
    %115 = arith.addf %111, %114 : vector<16x16xf32>
    %116 = arith.mulf %96, %104 : vector<16x1xf32>
    %117 = vector.broadcast %116 : vector<16x1xf32> to vector<16x16xf32>
    %118 = arith.mulf %117, %78 : vector<16x16xf32>
    %119 = arith.addf %115, %118 : vector<16x16xf32>
    %120 = arith.mulf %98, %104 : vector<16x1xf32>
    %121 = vector.broadcast %120 : vector<16x1xf32> to vector<16x16xf32>
    %122 = arith.mulf %121, %79 : vector<16x16xf32>
    %123 = arith.addf %119, %122 : vector<16x16xf32>
    %124 = tpu.concatenate %74, %123, %14 in 1 : vector<16x16xf32>, vector<16x16xf32>, vector<16x16xf32> -> vector<16x48xf32>
    %125 = arith.truncf %124 : vector<16x48xf32> to vector<16x48xbf16>
    %126 = arith.truncf %11 : vector<48x16xf32> to vector<48x16xbf16>
    %cst_22 = arith.constant dense<0.000000e+00> : vector<16x16xf32>
    %127 = tpu.matmul %125, %126, %cst_22 {dimension_numbers = #tpu.dot_dimension_numbers<[1], [0], [0], [1], [0, 0, 1, 1], [], []>} : vector<16x48xbf16>, vector<48x16xbf16>, vector<16x16xf32> -> vector<16x16xf32>
    %128 = vector.broadcast %12 : vector<1x16xf32> to vector<16x16xf32>
    %129 = arith.addf %127, %128 : vector<16x16xf32>
    %130 = arith.negf %129 : vector<16x16xf32>
    %131 = math.exp %130 : vector<16x16xf32>
    %cst_23 = arith.constant 1.000000e+00 : f32
    %132 = vector.broadcast %cst_23 : f32 to vector<16x16xf32>
    %133 = arith.addf %132, %131 : vector<16x16xf32>
    %134 = arith.divf %132, %133 : vector<16x16xf32>
    %135 = vector.extract_strided_slice %134 {offsets = [0, 0], sizes = [16, 8], strides = [1, 1]} : vector<16x16xf32> to vector<16x8xf32>
    %136 = vector.extract_strided_slice %134 {offsets = [0, 8], sizes = [16, 8], strides = [1, 1]} : vector<16x16xf32> to vector<16x8xf32>
    %137 = vector.extract_strided_slice %6 {offsets = [0, 16], sizes = [16, 8], strides = [1, 1]} : vector<16x24xf32> to vector<16x8xf32>
    %138 = arith.mulf %135, %5 : vector<16x8xf32>
    %c0_24 = arith.constant 0 : index
    %c0_25 = arith.constant 0 : index
    %139 = vector.load %arg6[%c0_24, %c0_25] : memref<56x8xf32, #tpu.memory_space<vmem>>, vector<8x8xf32>
    %c8_26 = arith.constant 8 : index
    %c0_27 = arith.constant 0 : index
    %140 = vector.load %arg6[%c8_26, %c0_27] : memref<56x8xf32, #tpu.memory_space<vmem>>, vector<8x8xf32>
    %c16 = arith.constant 16 : index
    %c0_28 = arith.constant 0 : index
    %141 = vector.load %arg6[%c16, %c0_28] : memref<56x8xf32, #tpu.memory_space<vmem>>, vector<1x8xf32>
    %c24_29 = arith.constant 24 : index
    %c0_30 = arith.constant 0 : index
    %142 = vector.load %arg6[%c24_29, %c0_30] : memref<56x8xf32, #tpu.memory_space<vmem>>, vector<24x8xf32>
    %c48 = arith.constant 48 : index
    %c0_31 = arith.constant 0 : index
    %143 = vector.load %arg6[%c48, %c0_31] : memref<56x8xf32, #tpu.memory_space<vmem>>, vector<1x8xf32>
    %cst_32 = arith.constant dense<0.000000e+00> : vector<16x8xf32>
    %144 = tpu.matmul %138, %139, %cst_32 {dimension_numbers = #tpu.dot_dimension_numbers<[1], [0], [0], [1], [0, 0, 1, 1], [], []>} : vector<16x8xf32>, vector<8x8xf32>, vector<16x8xf32> -> vector<16x8xf32>
    %145 = arith.addf %137, %144 : vector<16x8xf32>
    %146 = arith.truncf %145 : vector<16x8xf32> to vector<16x8xbf16>
    %cst_33 = arith.constant dense<0.000000e+00> : vector<160x8xf32>
    %147 = tpu.matmul %0, %146, %cst_33 {dimension_numbers = #tpu.dot_dimension_numbers<[1], [0], [0], [1], [0, 0, 1, 1], [], []>} : vector<160x16xbf16>, vector<16x8xbf16>, vector<160x8xf32> -> vector<160x8xf32>
    %148 = arith.truncf %147 : vector<160x8xf32> to vector<160x8xbf16>
    %149 = arith.truncf %140 : vector<8x8xf32> to vector<8x8xbf16>
    %cst_34 = arith.constant dense<0.000000e+00> : vector<160x8xf32>
    %150 = tpu.matmul %148, %149, %cst_34 {dimension_numbers = #tpu.dot_dimension_numbers<[1], [0], [0], [1], [0, 0, 1, 1], [], []>} : vector<160x8xbf16>, vector<8x8xbf16>, vector<160x8xf32> -> vector<160x8xf32>
    %cst_35 = arith.constant 0.000000e+00 : f32
    %151 = vector.broadcast %cst_35 : f32 to vector<160x8xf32>
    %152 = arith.maximumf %150, %151 : vector<160x8xf32>
    %153 = vector.broadcast %141 : vector<1x8xf32> to vector<160x8xf32>
    %154 = arith.mulf %152, %153 : vector<160x8xf32>
    %cst_36 = arith.constant dense<0.000000e+00> : vector<160xf32>
    %155 = vector.multi_reduction <add>, %154, %cst_36 [1] : vector<160x8xf32> to vector<160xf32>
    %156 = vector.shape_cast %155 : vector<160xf32> to vector<160x1xf32>
    %157 = vector.extract_strided_slice %147 {offsets = [0, 0], sizes = [16, 8], strides = [1, 1]} : vector<160x8xf32> to vector<16x8xf32>
    %158 = vector.extract_strided_slice %147 {offsets = [16, 0], sizes = [16, 8], strides = [1, 1]} : vector<160x8xf32> to vector<16x8xf32>
    %159 = vector.extract_strided_slice %147 {offsets = [32, 0], sizes = [16, 8], strides = [1, 1]} : vector<160x8xf32> to vector<16x8xf32>
    %160 = vector.extract_strided_slice %147 {offsets = [48, 0], sizes = [16, 8], strides = [1, 1]} : vector<160x8xf32> to vector<16x8xf32>
    %161 = vector.extract_strided_slice %147 {offsets = [64, 0], sizes = [16, 8], strides = [1, 1]} : vector<160x8xf32> to vector<16x8xf32>
    %162 = vector.extract_strided_slice %156 {offsets = [0, 0], sizes = [16, 1], strides = [1, 1]} : vector<160x1xf32> to vector<16x1xf32>
    %163 = vector.extract_strided_slice %156 {offsets = [16, 0], sizes = [16, 1], strides = [1, 1]} : vector<160x1xf32> to vector<16x1xf32>
    %164 = vector.extract_strided_slice %156 {offsets = [32, 0], sizes = [16, 1], strides = [1, 1]} : vector<160x1xf32> to vector<16x1xf32>
    %165 = vector.extract_strided_slice %156 {offsets = [48, 0], sizes = [16, 1], strides = [1, 1]} : vector<160x1xf32> to vector<16x1xf32>
    %166 = vector.extract_strided_slice %156 {offsets = [64, 0], sizes = [16, 1], strides = [1, 1]} : vector<160x1xf32> to vector<16x1xf32>
    %167 = arith.maximumf %162, %163 : vector<16x1xf32>
    %168 = arith.maximumf %167, %164 : vector<16x1xf32>
    %169 = arith.maximumf %168, %165 : vector<16x1xf32>
    %170 = arith.maximumf %169, %166 : vector<16x1xf32>
    %171 = arith.subf %162, %170 : vector<16x1xf32>
    %172 = math.exp %171 : vector<16x1xf32>
    %173 = arith.subf %163, %170 : vector<16x1xf32>
    %174 = math.exp %173 : vector<16x1xf32>
    %175 = arith.subf %164, %170 : vector<16x1xf32>
    %176 = math.exp %175 : vector<16x1xf32>
    %177 = arith.subf %165, %170 : vector<16x1xf32>
    %178 = math.exp %177 : vector<16x1xf32>
    %179 = arith.subf %166, %170 : vector<16x1xf32>
    %180 = math.exp %179 : vector<16x1xf32>
    %181 = arith.addf %172, %174 : vector<16x1xf32>
    %182 = arith.addf %181, %176 : vector<16x1xf32>
    %183 = arith.addf %182, %178 : vector<16x1xf32>
    %184 = arith.addf %183, %180 : vector<16x1xf32>
    %cst_37 = arith.constant 1.000000e+00 : f32
    %185 = vector.broadcast %cst_37 : f32 to vector<16x1xf32>
    %186 = arith.divf %185, %184 : vector<16x1xf32>
    %187 = arith.mulf %172, %186 : vector<16x1xf32>
    %188 = vector.broadcast %187 : vector<16x1xf32> to vector<16x8xf32>
    %189 = arith.mulf %188, %157 : vector<16x8xf32>
    %190 = arith.mulf %174, %186 : vector<16x1xf32>
    %191 = vector.broadcast %190 : vector<16x1xf32> to vector<16x8xf32>
    %192 = arith.mulf %191, %158 : vector<16x8xf32>
    %193 = arith.addf %189, %192 : vector<16x8xf32>
    %194 = arith.mulf %176, %186 : vector<16x1xf32>
    %195 = vector.broadcast %194 : vector<16x1xf32> to vector<16x8xf32>
    %196 = arith.mulf %195, %159 : vector<16x8xf32>
    %197 = arith.addf %193, %196 : vector<16x8xf32>
    %198 = arith.mulf %178, %186 : vector<16x1xf32>
    %199 = vector.broadcast %198 : vector<16x1xf32> to vector<16x8xf32>
    %200 = arith.mulf %199, %160 : vector<16x8xf32>
    %201 = arith.addf %197, %200 : vector<16x8xf32>
    %202 = arith.mulf %180, %186 : vector<16x1xf32>
    %203 = vector.broadcast %202 : vector<16x1xf32> to vector<16x8xf32>
    %204 = arith.mulf %203, %161 : vector<16x8xf32>
    %205 = arith.addf %201, %204 : vector<16x8xf32>
    %206 = vector.extract_strided_slice %147 {offsets = [80, 0], sizes = [16, 8], strides = [1, 1]} : vector<160x8xf32> to vector<16x8xf32>
    %207 = vector.extract_strided_slice %147 {offsets = [96, 0], sizes = [16, 8], strides = [1, 1]} : vector<160x8xf32> to vector<16x8xf32>
    %208 = vector.extract_strided_slice %147 {offsets = [112, 0], sizes = [16, 8], strides = [1, 1]} : vector<160x8xf32> to vector<16x8xf32>
    %209 = vector.extract_strided_slice %147 {offsets = [128, 0], sizes = [16, 8], strides = [1, 1]} : vector<160x8xf32> to vector<16x8xf32>
    %210 = vector.extract_strided_slice %147 {offsets = [144, 0], sizes = [16, 8], strides = [1, 1]} : vector<160x8xf32> to vector<16x8xf32>
    %211 = vector.extract_strided_slice %156 {offsets = [80, 0], sizes = [16, 1], strides = [1, 1]} : vector<160x1xf32> to vector<16x1xf32>
    %212 = vector.extract_strided_slice %156 {offsets = [96, 0], sizes = [16, 1], strides = [1, 1]} : vector<160x1xf32> to vector<16x1xf32>
    %213 = vector.extract_strided_slice %156 {offsets = [112, 0], sizes = [16, 1], strides = [1, 1]} : vector<160x1xf32> to vector<16x1xf32>
    %214 = vector.extract_strided_slice %156 {offsets = [128, 0], sizes = [16, 1], strides = [1, 1]} : vector<160x1xf32> to vector<16x1xf32>
    %215 = vector.extract_strided_slice %156 {offsets = [144, 0], sizes = [16, 1], strides = [1, 1]} : vector<160x1xf32> to vector<16x1xf32>
    %216 = arith.maximumf %211, %212 : vector<16x1xf32>
    %217 = arith.maximumf %216, %213 : vector<16x1xf32>
    %218 = arith.maximumf %217, %214 : vector<16x1xf32>
    %219 = arith.maximumf %218, %215 : vector<16x1xf32>
    %220 = arith.subf %211, %219 : vector<16x1xf32>
    %221 = math.exp %220 : vector<16x1xf32>
    %222 = arith.subf %212, %219 : vector<16x1xf32>
    %223 = math.exp %222 : vector<16x1xf32>
    %224 = arith.subf %213, %219 : vector<16x1xf32>
    %225 = math.exp %224 : vector<16x1xf32>
    %226 = arith.subf %214, %219 : vector<16x1xf32>
    %227 = math.exp %226 : vector<16x1xf32>
    %228 = arith.subf %215, %219 : vector<16x1xf32>
    %229 = math.exp %228 : vector<16x1xf32>
    %230 = arith.addf %221, %223 : vector<16x1xf32>
    %231 = arith.addf %230, %225 : vector<16x1xf32>
    %232 = arith.addf %231, %227 : vector<16x1xf32>
    %233 = arith.addf %232, %229 : vector<16x1xf32>
    %cst_38 = arith.constant 1.000000e+00 : f32
    %234 = vector.broadcast %cst_38 : f32 to vector<16x1xf32>
    %235 = arith.divf %234, %233 : vector<16x1xf32>
    %236 = arith.mulf %221, %235 : vector<16x1xf32>
    %237 = vector.broadcast %236 : vector<16x1xf32> to vector<16x8xf32>
    %238 = arith.mulf %237, %206 : vector<16x8xf32>
    %239 = arith.mulf %223, %235 : vector<16x1xf32>
    %240 = vector.broadcast %239 : vector<16x1xf32> to vector<16x8xf32>
    %241 = arith.mulf %240, %207 : vector<16x8xf32>
    %242 = arith.addf %238, %241 : vector<16x8xf32>
    %243 = arith.mulf %225, %235 : vector<16x1xf32>
    %244 = vector.broadcast %243 : vector<16x1xf32> to vector<16x8xf32>
    %245 = arith.mulf %244, %208 : vector<16x8xf32>
    %246 = arith.addf %242, %245 : vector<16x8xf32>
    %247 = arith.mulf %227, %235 : vector<16x1xf32>
    %248 = vector.broadcast %247 : vector<16x1xf32> to vector<16x8xf32>
    %249 = arith.mulf %248, %209 : vector<16x8xf32>
    %250 = arith.addf %246, %249 : vector<16x8xf32>
    %251 = arith.mulf %229, %235 : vector<16x1xf32>
    %252 = vector.broadcast %251 : vector<16x1xf32> to vector<16x8xf32>
    %253 = arith.mulf %252, %210 : vector<16x8xf32>
    %254 = arith.addf %250, %253 : vector<16x8xf32>
    %255 = tpu.concatenate %205, %254, %145 in 1 : vector<16x8xf32>, vector<16x8xf32>, vector<16x8xf32> -> vector<16x24xf32>
    %256 = arith.truncf %255 : vector<16x24xf32> to vector<16x24xbf16>
    %257 = arith.truncf %142 : vector<24x8xf32> to vector<24x8xbf16>
    %cst_39 = arith.constant dense<0.000000e+00> : vector<16x8xf32>
    %258 = tpu.matmul %256, %257, %cst_39 {dimension_numbers = #tpu.dot_dimension_numbers<[1], [0], [0], [1], [0, 0, 1, 1], [], []>} : vector<16x24xbf16>, vector<24x8xbf16>, vector<16x8xf32> -> vector<16x8xf32>
    %259 = vector.broadcast %143 : vector<1x8xf32> to vector<16x8xf32>
    %260 = arith.addf %258, %259 : vector<16x8xf32>
    %261 = math.tanh %260 : vector<16x8xf32>
    %262 = arith.mulf %136, %5 : vector<16x8xf32>
    %cst_40 = arith.constant 1.000000e+00 : f32
    %263 = vector.broadcast %cst_40 : f32 to vector<16x8xf32>
    %264 = arith.subf %263, %136 : vector<16x8xf32>
    %265 = arith.mulf %264, %261 : vector<16x8xf32>
    %266 = arith.addf %262, %265 : vector<16x8xf32>
    %c0_41 = arith.constant 0 : index
    %c0_42 = arith.constant 0 : index
    %c0_43 = arith.constant 0 : index
    %267 = vector.load %arg7[%c0_41, %c0_42, %c0_43] : memref<2x16x8xf32, #tpu.memory_space<vmem>>, vector<1x16x8xf32>
    %268 = vector.shape_cast %267 : vector<1x16x8xf32> to vector<16x8xf32>
    %269 = vector.shape_cast %266 : vector<16x8xf32> to vector<1x16x8xf32>
    tpu.vector_store %arg7[%c0_41, %c0_42, %c0_43], %269 {strides = array<i32>} : memref<2x16x8xf32, #tpu.memory_space<vmem>>, vector<1x16x8xf32>,
    %c1 = arith.constant 1 : index
    %c0_44 = arith.constant 0 : index
    %c0_45 = arith.constant 0 : index
    %270 = vector.load %arg1[%c1, %c0_44, %c0_45] : memref<2x16x2xf32, #tpu.memory_space<vmem>>, vector<1x16x2xf32>
    %271 = vector.shape_cast %270 : vector<1x16x2xf32> to vector<16x2xf32>
    %c1_46 = arith.constant 1 : index
    %c0_47 = arith.constant 0 : index
    %c0_48 = arith.constant 0 : index
    %272 = vector.load %arg2[%c1_46, %c0_47, %c0_48] : memref<2x16x8xf32, #tpu.memory_space<vmem>>, vector<1x16x8xf32>
    %273 = vector.shape_cast %272 : vector<1x16x8xf32> to vector<16x8xf32>
    %cst_49 = arith.constant dense<0.000000e+00> : vector<16x24xf32>
    %274 = tpu.matmul %271, %1, %cst_49 {dimension_numbers = #tpu.dot_dimension_numbers<[1], [0], [0], [1], [0, 0, 1, 1], [], []>} : vector<16x2xf32>, vector<2x24xf32>, vector<16x24xf32> -> vector<16x24xf32>
    %275 = vector.extract_strided_slice %274 {offsets = [0, 0], sizes = [16, 16], strides = [1, 1]} : vector<16x24xf32> to vector<16x16xf32>
    %c0_50 = arith.constant 0 : index
    %c0_51 = arith.constant 0 : index
    %276 = vector.load %arg5[%c0_50, %c0_51] : memref<88x16xf32, #tpu.memory_space<vmem>>, vector<8x16xf32>
    %c8_52 = arith.constant 8 : index
    %c0_53 = arith.constant 0 : index
    %277 = vector.load %arg5[%c8_52, %c0_53] : memref<88x16xf32, #tpu.memory_space<vmem>>, vector<16x16xf32>
    %c24_54 = arith.constant 24 : index
    %c0_55 = arith.constant 0 : index
    %278 = vector.load %arg5[%c24_54, %c0_55] : memref<88x16xf32, #tpu.memory_space<vmem>>, vector<1x16xf32>
    %c32_56 = arith.constant 32 : index
    %c0_57 = arith.constant 0 : index
    %279 = vector.load %arg5[%c32_56, %c0_57] : memref<88x16xf32, #tpu.memory_space<vmem>>, vector<48x16xf32>
    %c80_58 = arith.constant 80 : index
    %c0_59 = arith.constant 0 : index
    %280 = vector.load %arg5[%c80_58, %c0_59] : memref<88x16xf32, #tpu.memory_space<vmem>>, vector<1x16xf32>
    %cst_60 = arith.constant dense<0.000000e+00> : vector<16x16xf32>
    %281 = tpu.matmul %273, %276, %cst_60 {dimension_numbers = #tpu.dot_dimension_numbers<[1], [0], [0], [1], [0, 0, 1, 1], [], []>} : vector<16x8xf32>, vector<8x16xf32>, vector<16x16xf32> -> vector<16x16xf32>
    %282 = arith.addf %275, %281 : vector<16x16xf32>
    %283 = arith.truncf %282 : vector<16x16xf32> to vector<16x16xbf16>
    %cst_61 = arith.constant dense<0.000000e+00> : vector<160x16xf32>
    %284 = tpu.matmul %0, %283, %cst_61 {dimension_numbers = #tpu.dot_dimension_numbers<[1], [0], [0], [1], [0, 0, 1, 1], [], []>} : vector<160x16xbf16>, vector<16x16xbf16>, vector<160x16xf32> -> vector<160x16xf32>
    %285 = arith.truncf %284 : vector<160x16xf32> to vector<160x16xbf16>
    %286 = arith.truncf %277 : vector<16x16xf32> to vector<16x16xbf16>
    %cst_62 = arith.constant dense<0.000000e+00> : vector<160x16xf32>
    %287 = tpu.matmul %285, %286, %cst_62 {dimension_numbers = #tpu.dot_dimension_numbers<[1], [0], [0], [1], [0, 0, 1, 1], [], []>} : vector<160x16xbf16>, vector<16x16xbf16>, vector<160x16xf32> -> vector<160x16xf32>
    %cst_63 = arith.constant 0.000000e+00 : f32
    %288 = vector.broadcast %cst_63 : f32 to vector<160x16xf32>
    %289 = arith.maximumf %287, %288 : vector<160x16xf32>
    %290 = vector.broadcast %278 : vector<1x16xf32> to vector<160x16xf32>
    %291 = arith.mulf %289, %290 : vector<160x16xf32>
    %cst_64 = arith.constant dense<0.000000e+00> : vector<160xf32>
    %292 = vector.multi_reduction <add>, %291, %cst_64 [1] : vector<160x16xf32> to vector<160xf32>
    %293 = vector.shape_cast %292 : vector<160xf32> to vector<160x1xf32>
    %294 = vector.extract_strided_slice %284 {offsets = [0, 0], sizes = [16, 16], strides = [1, 1]} : vector<160x16xf32> to vector<16x16xf32>
    %295 = vector.extract_strided_slice %284 {offsets = [16, 0], sizes = [16, 16], strides = [1, 1]} : vector<160x16xf32> to vector<16x16xf32>
    %296 = vector.extract_strided_slice %284 {offsets = [32, 0], sizes = [16, 16], strides = [1, 1]} : vector<160x16xf32> to vector<16x16xf32>
    %297 = vector.extract_strided_slice %284 {offsets = [48, 0], sizes = [16, 16], strides = [1, 1]} : vector<160x16xf32> to vector<16x16xf32>
    %298 = vector.extract_strided_slice %284 {offsets = [64, 0], sizes = [16, 16], strides = [1, 1]} : vector<160x16xf32> to vector<16x16xf32>
    %299 = vector.extract_strided_slice %293 {offsets = [0, 0], sizes = [16, 1], strides = [1, 1]} : vector<160x1xf32> to vector<16x1xf32>
    %300 = vector.extract_strided_slice %293 {offsets = [16, 0], sizes = [16, 1], strides = [1, 1]} : vector<160x1xf32> to vector<16x1xf32>
    %301 = vector.extract_strided_slice %293 {offsets = [32, 0], sizes = [16, 1], strides = [1, 1]} : vector<160x1xf32> to vector<16x1xf32>
    %302 = vector.extract_strided_slice %293 {offsets = [48, 0], sizes = [16, 1], strides = [1, 1]} : vector<160x1xf32> to vector<16x1xf32>
    %303 = vector.extract_strided_slice %293 {offsets = [64, 0], sizes = [16, 1], strides = [1, 1]} : vector<160x1xf32> to vector<16x1xf32>
    %304 = arith.maximumf %299, %300 : vector<16x1xf32>
    %305 = arith.maximumf %304, %301 : vector<16x1xf32>
    %306 = arith.maximumf %305, %302 : vector<16x1xf32>
    %307 = arith.maximumf %306, %303 : vector<16x1xf32>
    %308 = arith.subf %299, %307 : vector<16x1xf32>
    %309 = math.exp %308 : vector<16x1xf32>
    %310 = arith.subf %300, %307 : vector<16x1xf32>
    %311 = math.exp %310 : vector<16x1xf32>
    %312 = arith.subf %301, %307 : vector<16x1xf32>
    %313 = math.exp %312 : vector<16x1xf32>
    %314 = arith.subf %302, %307 : vector<16x1xf32>
    %315 = math.exp %314 : vector<16x1xf32>
    %316 = arith.subf %303, %307 : vector<16x1xf32>
    %317 = math.exp %316 : vector<16x1xf32>
    %318 = arith.addf %309, %311 : vector<16x1xf32>
    %319 = arith.addf %318, %313 : vector<16x1xf32>
    %320 = arith.addf %319, %315 : vector<16x1xf32>
    %321 = arith.addf %320, %317 : vector<16x1xf32>
    %cst_65 = arith.constant 1.000000e+00 : f32
    %322 = vector.broadcast %cst_65 : f32 to vector<16x1xf32>
    %323 = arith.divf %322, %321 : vector<16x1xf32>
    %324 = arith.mulf %309, %323 : vector<16x1xf32>
    %325 = vector.broadcast %324 : vector<16x1xf32> to vector<16x16xf32>
    %326 = arith.mulf %325, %294 : vector<16x16xf32>
    %327 = arith.mulf %311, %323 : vector<16x1xf32>
    %328 = vector.broadcast %327 : vector<16x1xf32> to vector<16x16xf32>
    %329 = arith.mulf %328, %295 : vector<16x16xf32>
    %330 = arith.addf %326, %329 : vector<16x16xf32>
    %331 = arith.mulf %313, %323 : vector<16x1xf32>
    %332 = vector.broadcast %331 : vector<16x1xf32> to vector<16x16xf32>
    %333 = arith.mulf %332, %296 : vector<16x16xf32>
    %334 = arith.addf %330, %333 : vector<16x16xf32>
    %335 = arith.mulf %315, %323 : vector<16x1xf32>
    %336 = vector.broadcast %335 : vector<16x1xf32> to vector<16x16xf32>
    %337 = arith.mulf %336, %297 : vector<16x16xf32>
    %338 = arith.addf %334, %337 : vector<16x16xf32>
    %339 = arith.mulf %317, %323 : vector<16x1xf32>
    %340 = vector.broadcast %339 : vector<16x1xf32> to vector<16x16xf32>
    %341 = arith.mulf %340, %298 : vector<16x16xf32>
    %342 = arith.addf %338, %341 : vector<16x16xf32>
    %343 = vector.extract_strided_slice %284 {offsets = [80, 0], sizes = [16, 16], strides = [1, 1]} : vector<160x16xf32> to vector<16x16xf32>
    %344 = vector.extract_strided_slice %284 {offsets = [96, 0], sizes = [16, 16], strides = [1, 1]} : vector<160x16xf32> to vector<16x16xf32>
    %345 = vector.extract_strided_slice %284 {offsets = [112, 0], sizes = [16, 16], strides = [1, 1]} : vector<160x16xf32> to vector<16x16xf32>
    %346 = vector.extract_strided_slice %284 {offsets = [128, 0], sizes = [16, 16], strides = [1, 1]} : vector<160x16xf32> to vector<16x16xf32>
    %347 = vector.extract_strided_slice %284 {offsets = [144, 0], sizes = [16, 16], strides = [1, 1]} : vector<160x16xf32> to vector<16x16xf32>
    %348 = vector.extract_strided_slice %293 {offsets = [80, 0], sizes = [16, 1], strides = [1, 1]} : vector<160x1xf32> to vector<16x1xf32>
    %349 = vector.extract_strided_slice %293 {offsets = [96, 0], sizes = [16, 1], strides = [1, 1]} : vector<160x1xf32> to vector<16x1xf32>
    %350 = vector.extract_strided_slice %293 {offsets = [112, 0], sizes = [16, 1], strides = [1, 1]} : vector<160x1xf32> to vector<16x1xf32>
    %351 = vector.extract_strided_slice %293 {offsets = [128, 0], sizes = [16, 1], strides = [1, 1]} : vector<160x1xf32> to vector<16x1xf32>
    %352 = vector.extract_strided_slice %293 {offsets = [144, 0], sizes = [16, 1], strides = [1, 1]} : vector<160x1xf32> to vector<16x1xf32>
    %353 = arith.maximumf %348, %349 : vector<16x1xf32>
    %354 = arith.maximumf %353, %350 : vector<16x1xf32>
    %355 = arith.maximumf %354, %351 : vector<16x1xf32>
    %356 = arith.maximumf %355, %352 : vector<16x1xf32>
    %357 = arith.subf %348, %356 : vector<16x1xf32>
    %358 = math.exp %357 : vector<16x1xf32>
    %359 = arith.subf %349, %356 : vector<16x1xf32>
    %360 = math.exp %359 : vector<16x1xf32>
    %361 = arith.subf %350, %356 : vector<16x1xf32>
    %362 = math.exp %361 : vector<16x1xf32>
    %363 = arith.subf %351, %356 : vector<16x1xf32>
    %364 = math.exp %363 : vector<16x1xf32>
    %365 = arith.subf %352, %356 : vector<16x1xf32>
    %366 = math.exp %365 : vector<16x1xf32>
    %367 = arith.addf %358, %360 : vector<16x1xf32>
    %368 = arith.addf %367, %362 : vector<16x1xf32>
    %369 = arith.addf %368, %364 : vector<16x1xf32>
    %370 = arith.addf %369, %366 : vector<16x1xf32>
    %cst_66 = arith.constant 1.000000e+00 : f32
    %371 = vector.broadcast %cst_66 : f32 to vector<16x1xf32>
    %372 = arith.divf %371, %370 : vector<16x1xf32>
    %373 = arith.mulf %358, %372 : vector<16x1xf32>
    %374 = vector.broadcast %373 : vector<16x1xf32> to vector<16x16xf32>
    %375 = arith.mulf %374, %343 : vector<16x16xf32>
    %376 = arith.mulf %360, %372 : vector<16x1xf32>
    %377 = vector.broadcast %376 : vector<16x1xf32> to vector<16x16xf32>
    %378 = arith.mulf %377, %344 : vector<16x16xf32>
    %379 = arith.addf %375, %378 : vector<16x16xf32>
    %380 = arith.mulf %362, %372 : vector<16x1xf32>
    %381 = vector.broadcast %380 : vector<16x1xf32> to vector<16x16xf32>
    %382 = arith.mulf %381, %345 : vector<16x16xf32>
    %383 = arith.addf %379, %382 : vector<16x16xf32>
    %384 = arith.mulf %364, %372 : vector<16x1xf32>
    %385 = vector.broadcast %384 : vector<16x1xf32> to vector<16x16xf32>
    %386 = arith.mulf %385, %346 : vector<16x16xf32>
    %387 = arith.addf %383, %386 : vector<16x16xf32>
    %388 = arith.mulf %366, %372 : vector<16x1xf32>
    %389 = vector.broadcast %388 : vector<16x1xf32> to vector<16x16xf32>
    %390 = arith.mulf %389, %347 : vector<16x16xf32>
    %391 = arith.addf %387, %390 : vector<16x16xf32>
    %392 = tpu.concatenate %342, %391, %282 in 1 : vector<16x16xf32>, vector<16x16xf32>, vector<16x16xf32> -> vector<16x48xf32>
    %393 = arith.truncf %392 : vector<16x48xf32> to vector<16x48xbf16>
    %394 = arith.truncf %279 : vector<48x16xf32> to vector<48x16xbf16>
    %cst_67 = arith.constant dense<0.000000e+00> : vector<16x16xf32>
    %395 = tpu.matmul %393, %394, %cst_67 {dimension_numbers = #tpu.dot_dimension_numbers<[1], [0], [0], [1], [0, 0, 1, 1], [], []>} : vector<16x48xbf16>, vector<48x16xbf16>, vector<16x16xf32> -> vector<16x16xf32>
    %396 = vector.broadcast %280 : vector<1x16xf32> to vector<16x16xf32>
    %397 = arith.addf %395, %396 : vector<16x16xf32>
    %398 = arith.negf %397 : vector<16x16xf32>
    %399 = math.exp %398 : vector<16x16xf32>
    %cst_68 = arith.constant 1.000000e+00 : f32
    %400 = vector.broadcast %cst_68 : f32 to vector<16x16xf32>
    %401 = arith.addf %400, %399 : vector<16x16xf32>
    %402 = arith.divf %400, %401 : vector<16x16xf32>
    %403 = vector.extract_strided_slice %402 {offsets = [0, 0], sizes = [16, 8], strides = [1, 1]} : vector<16x16xf32> to vector<16x8xf32>
    %404 = vector.extract_strided_slice %402 {offsets = [0, 8], sizes = [16, 8], strides = [1, 1]} : vector<16x16xf32> to vector<16x8xf32>
    %405 = vector.extract_strided_slice %274 {offsets = [0, 16], sizes = [16, 8], strides = [1, 1]} : vector<16x24xf32> to vector<16x8xf32>
    %406 = arith.mulf %403, %273 : vector<16x8xf32>
    %c0_69 = arith.constant 0 : index
    %c0_70 = arith.constant 0 : index
    %407 = vector.load %arg6[%c0_69, %c0_70] : memref<56x8xf32, #tpu.memory_space<vmem>>, vector<8x8xf32>
    %c8_71 = arith.constant 8 : index
    %c0_72 = arith.constant 0 : index
    %408 = vector.load %arg6[%c8_71, %c0_72] : memref<56x8xf32, #tpu.memory_space<vmem>>, vector<8x8xf32>
    %c16_73 = arith.constant 16 : index
    %c0_74 = arith.constant 0 : index
    %409 = vector.load %arg6[%c16_73, %c0_74] : memref<56x8xf32, #tpu.memory_space<vmem>>, vector<1x8xf32>
    %c24_75 = arith.constant 24 : index
    %c0_76 = arith.constant 0 : index
    %410 = vector.load %arg6[%c24_75, %c0_76] : memref<56x8xf32, #tpu.memory_space<vmem>>, vector<24x8xf32>
    %c48_77 = arith.constant 48 : index
    %c0_78 = arith.constant 0 : index
    %411 = vector.load %arg6[%c48_77, %c0_78] : memref<56x8xf32, #tpu.memory_space<vmem>>, vector<1x8xf32>
    %cst_79 = arith.constant dense<0.000000e+00> : vector<16x8xf32>
    %412 = tpu.matmul %406, %407, %cst_79 {dimension_numbers = #tpu.dot_dimension_numbers<[1], [0], [0], [1], [0, 0, 1, 1], [], []>} : vector<16x8xf32>, vector<8x8xf32>, vector<16x8xf32> -> vector<16x8xf32>
    %413 = arith.addf %405, %412 : vector<16x8xf32>
    %414 = arith.truncf %413 : vector<16x8xf32> to vector<16x8xbf16>
    %cst_80 = arith.constant dense<0.000000e+00> : vector<160x8xf32>
    %415 = tpu.matmul %0, %414, %cst_80 {dimension_numbers = #tpu.dot_dimension_numbers<[1], [0], [0], [1], [0, 0, 1, 1], [], []>} : vector<160x16xbf16>, vector<16x8xbf16>, vector<160x8xf32> -> vector<160x8xf32>
    %416 = arith.truncf %415 : vector<160x8xf32> to vector<160x8xbf16>
    %417 = arith.truncf %408 : vector<8x8xf32> to vector<8x8xbf16>
    %cst_81 = arith.constant dense<0.000000e+00> : vector<160x8xf32>
    %418 = tpu.matmul %416, %417, %cst_81 {dimension_numbers = #tpu.dot_dimension_numbers<[1], [0], [0], [1], [0, 0, 1, 1], [], []>} : vector<160x8xbf16>, vector<8x8xbf16>, vector<160x8xf32> -> vector<160x8xf32>
    %cst_82 = arith.constant 0.000000e+00 : f32
    %419 = vector.broadcast %cst_82 : f32 to vector<160x8xf32>
    %420 = arith.maximumf %418, %419 : vector<160x8xf32>
    %421 = vector.broadcast %409 : vector<1x8xf32> to vector<160x8xf32>
    %422 = arith.mulf %420, %421 : vector<160x8xf32>
    %cst_83 = arith.constant dense<0.000000e+00> : vector<160xf32>
    %423 = vector.multi_reduction <add>, %422, %cst_83 [1] : vector<160x8xf32> to vector<160xf32>
    %424 = vector.shape_cast %423 : vector<160xf32> to vector<160x1xf32>
    %425 = vector.extract_strided_slice %415 {offsets = [0, 0], sizes = [16, 8], strides = [1, 1]} : vector<160x8xf32> to vector<16x8xf32>
    %426 = vector.extract_strided_slice %415 {offsets = [16, 0], sizes = [16, 8], strides = [1, 1]} : vector<160x8xf32> to vector<16x8xf32>
    %427 = vector.extract_strided_slice %415 {offsets = [32, 0], sizes = [16, 8], strides = [1, 1]} : vector<160x8xf32> to vector<16x8xf32>
    %428 = vector.extract_strided_slice %415 {offsets = [48, 0], sizes = [16, 8], strides = [1, 1]} : vector<160x8xf32> to vector<16x8xf32>
    %429 = vector.extract_strided_slice %415 {offsets = [64, 0], sizes = [16, 8], strides = [1, 1]} : vector<160x8xf32> to vector<16x8xf32>
    %430 = vector.extract_strided_slice %424 {offsets = [0, 0], sizes = [16, 1], strides = [1, 1]} : vector<160x1xf32> to vector<16x1xf32>
    %431 = vector.extract_strided_slice %424 {offsets = [16, 0], sizes = [16, 1], strides = [1, 1]} : vector<160x1xf32> to vector<16x1xf32>
    %432 = vector.extract_strided_slice %424 {offsets = [32, 0], sizes = [16, 1], strides = [1, 1]} : vector<160x1xf32> to vector<16x1xf32>
    %433 = vector.extract_strided_slice %424 {offsets = [48, 0], sizes = [16, 1], strides = [1, 1]} : vector<160x1xf32> to vector<16x1xf32>
    %434 = vector.extract_strided_slice %424 {offsets = [64, 0], sizes = [16, 1], strides = [1, 1]} : vector<160x1xf32> to vector<16x1xf32>
    %435 = arith.maximumf %430, %431 : vector<16x1xf32>
    %436 = arith.maximumf %435, %432 : vector<16x1xf32>
    %437 = arith.maximumf %436, %433 : vector<16x1xf32>
    %438 = arith.maximumf %437, %434 : vector<16x1xf32>
    %439 = arith.subf %430, %438 : vector<16x1xf32>
    %440 = math.exp %439 : vector<16x1xf32>
    %441 = arith.subf %431, %438 : vector<16x1xf32>
    %442 = math.exp %441 : vector<16x1xf32>
    %443 = arith.subf %432, %438 : vector<16x1xf32>
    %444 = math.exp %443 : vector<16x1xf32>
    %445 = arith.subf %433, %438 : vector<16x1xf32>
    %446 = math.exp %445 : vector<16x1xf32>
    %447 = arith.subf %434, %438 : vector<16x1xf32>
    %448 = math.exp %447 : vector<16x1xf32>
    %449 = arith.addf %440, %442 : vector<16x1xf32>
    %450 = arith.addf %449, %444 : vector<16x1xf32>
    %451 = arith.addf %450, %446 : vector<16x1xf32>
    %452 = arith.addf %451, %448 : vector<16x1xf32>
    %cst_84 = arith.constant 1.000000e+00 : f32
    %453 = vector.broadcast %cst_84 : f32 to vector<16x1xf32>
    %454 = arith.divf %453, %452 : vector<16x1xf32>
    %455 = arith.mulf %440, %454 : vector<16x1xf32>
    %456 = vector.broadcast %455 : vector<16x1xf32> to vector<16x8xf32>
    %457 = arith.mulf %456, %425 : vector<16x8xf32>
    %458 = arith.mulf %442, %454 : vector<16x1xf32>
    %459 = vector.broadcast %458 : vector<16x1xf32> to vector<16x8xf32>
    %460 = arith.mulf %459, %426 : vector<16x8xf32>
    %461 = arith.addf %457, %460 : vector<16x8xf32>
    %462 = arith.mulf %444, %454 : vector<16x1xf32>
    %463 = vector.broadcast %462 : vector<16x1xf32> to vector<16x8xf32>
    %464 = arith.mulf %463, %427 : vector<16x8xf32>
    %465 = arith.addf %461, %464 : vector<16x8xf32>
    %466 = arith.mulf %446, %454 : vector<16x1xf32>
    %467 = vector.broadcast %466 : vector<16x1xf32> to vector<16x8xf32>
    %468 = arith.mulf %467, %428 : vector<16x8xf32>
    %469 = arith.addf %465, %468 : vector<16x8xf32>
    %470 = arith.mulf %448, %454 : vector<16x1xf32>
    %471 = vector.broadcast %470 : vector<16x1xf32> to vector<16x8xf32>
    %472 = arith.mulf %471, %429 : vector<16x8xf32>
    %473 = arith.addf %469, %472 : vector<16x8xf32>
    %474 = vector.extract_strided_slice %415 {offsets = [80, 0], sizes = [16, 8], strides = [1, 1]} : vector<160x8xf32> to vector<16x8xf32>
    %475 = vector.extract_strided_slice %415 {offsets = [96, 0], sizes = [16, 8], strides = [1, 1]} : vector<160x8xf32> to vector<16x8xf32>
    %476 = vector.extract_strided_slice %415 {offsets = [112, 0], sizes = [16, 8], strides = [1, 1]} : vector<160x8xf32> to vector<16x8xf32>
    %477 = vector.extract_strided_slice %415 {offsets = [128, 0], sizes = [16, 8], strides = [1, 1]} : vector<160x8xf32> to vector<16x8xf32>
    %478 = vector.extract_strided_slice %415 {offsets = [144, 0], sizes = [16, 8], strides = [1, 1]} : vector<160x8xf32> to vector<16x8xf32>
    %479 = vector.extract_strided_slice %424 {offsets = [80, 0], sizes = [16, 1], strides = [1, 1]} : vector<160x1xf32> to vector<16x1xf32>
    %480 = vector.extract_strided_slice %424 {offsets = [96, 0], sizes = [16, 1], strides = [1, 1]} : vector<160x1xf32> to vector<16x1xf32>
    %481 = vector.extract_strided_slice %424 {offsets = [112, 0], sizes = [16, 1], strides = [1, 1]} : vector<160x1xf32> to vector<16x1xf32>
    %482 = vector.extract_strided_slice %424 {offsets = [128, 0], sizes = [16, 1], strides = [1, 1]} : vector<160x1xf32> to vector<16x1xf32>
    %483 = vector.extract_strided_slice %424 {offsets = [144, 0], sizes = [16, 1], strides = [1, 1]} : vector<160x1xf32> to vector<16x1xf32>
    %484 = arith.maximumf %479, %480 : vector<16x1xf32>
    %485 = arith.maximumf %484, %481 : vector<16x1xf32>
    %486 = arith.maximumf %485, %482 : vector<16x1xf32>
    %487 = arith.maximumf %486, %483 : vector<16x1xf32>
    %488 = arith.subf %479, %487 : vector<16x1xf32>
    %489 = math.exp %488 : vector<16x1xf32>
    %490 = arith.subf %480, %487 : vector<16x1xf32>
    %491 = math.exp %490 : vector<16x1xf32>
    %492 = arith.subf %481, %487 : vector<16x1xf32>
    %493 = math.exp %492 : vector<16x1xf32>
    %494 = arith.subf %482, %487 : vector<16x1xf32>
    %495 = math.exp %494 : vector<16x1xf32>
    %496 = arith.subf %483, %487 : vector<16x1xf32>
    %497 = math.exp %496 : vector<16x1xf32>
    %498 = arith.addf %489, %491 : vector<16x1xf32>
    %499 = arith.addf %498, %493 : vector<16x1xf32>
    %500 = arith.addf %499, %495 : vector<16x1xf32>
    %501 = arith.addf %500, %497 : vector<16x1xf32>
    %cst_85 = arith.constant 1.000000e+00 : f32
    %502 = vector.broadcast %cst_85 : f32 to vector<16x1xf32>
    %503 = arith.divf %502, %501 : vector<16x1xf32>
    %504 = arith.mulf %489, %503 : vector<16x1xf32>
    %505 = vector.broadcast %504 : vector<16x1xf32> to vector<16x8xf32>
    %506 = arith.mulf %505, %474 : vector<16x8xf32>
    %507 = arith.mulf %491, %503 : vector<16x1xf32>
    %508 = vector.broadcast %507 : vector<16x1xf32> to vector<16x8xf32>
    %509 = arith.mulf %508, %475 : vector<16x8xf32>
    %510 = arith.addf %506, %509 : vector<16x8xf32>
    %511 = arith.mulf %493, %503 : vector<16x1xf32>
    %512 = vector.broadcast %511 : vector<16x1xf32> to vector<16x8xf32>
    %513 = arith.mulf %512, %476 : vector<16x8xf32>
    %514 = arith.addf %510, %513 : vector<16x8xf32>
    %515 = arith.mulf %495, %503 : vector<16x1xf32>
    %516 = vector.broadcast %515 : vector<16x1xf32> to vector<16x8xf32>
    %517 = arith.mulf %516, %477 : vector<16x8xf32>
    %518 = arith.addf %514, %517 : vector<16x8xf32>
    %519 = arith.mulf %497, %503 : vector<16x1xf32>
    %520 = vector.broadcast %519 : vector<16x1xf32> to vector<16x8xf32>
    %521 = arith.mulf %520, %478 : vector<16x8xf32>
    %522 = arith.addf %518, %521 : vector<16x8xf32>
    %523 = tpu.concatenate %473, %522, %413 in 1 : vector<16x8xf32>, vector<16x8xf32>, vector<16x8xf32> -> vector<16x24xf32>
    %524 = arith.truncf %523 : vector<16x24xf32> to vector<16x24xbf16>
    %525 = arith.truncf %410 : vector<24x8xf32> to vector<24x8xbf16>
    %cst_86 = arith.constant dense<0.000000e+00> : vector<16x8xf32>
    %526 = tpu.matmul %524, %525, %cst_86 {dimension_numbers = #tpu.dot_dimension_numbers<[1], [0], [0], [1], [0, 0, 1, 1], [], []>} : vector<16x24xbf16>, vector<24x8xbf16>, vector<16x8xf32> -> vector<16x8xf32>
    %527 = vector.broadcast %411 : vector<1x8xf32> to vector<16x8xf32>
    %528 = arith.addf %526, %527 : vector<16x8xf32>
    %529 = math.tanh %528 : vector<16x8xf32>
    %530 = arith.mulf %404, %273 : vector<16x8xf32>
    %cst_87 = arith.constant 1.000000e+00 : f32
    %531 = vector.broadcast %cst_87 : f32 to vector<16x8xf32>
    %532 = arith.subf %531, %404 : vector<16x8xf32>
    %533 = arith.mulf %532, %529 : vector<16x8xf32>
    %534 = arith.addf %530, %533 : vector<16x8xf32>
    %c1_88 = arith.constant 1 : index
    %c0_89 = arith.constant 0 : index
    %c0_90 = arith.constant 0 : index
    %535 = vector.load %arg7[%c1_88, %c0_89, %c0_90] : memref<2x16x8xf32, #tpu.memory_space<vmem>>, vector<1x16x8xf32>
    %536 = vector.shape_cast %535 : vector<1x16x8xf32> to vector<16x8xf32>
    %537 = vector.shape_cast %534 : vector<16x8xf32> to vector<1x16x8xf32>
    tpu.vector_store %arg7[%c1_88, %c0_89, %c0_90], %537 {strides = array<i32>} : memref<2x16x8xf32, #tpu.memory_space<vmem>>, vector<1x16x8xf32>,
    return
  }
  func.func @transform_0(%arg0: i32) -> (i32, i32, i32) {
    %c0_i32 = arith.constant 0 : i32
    %c0_i32_0 = arith.constant 0 : i32
    %c0_i32_1 = arith.constant 0 : i32
    return %arg0, %c0_i32, %c0_i32_0 : i32, i32, i32
  }
  func.func @transform_1(%arg0: i32) -> (i32, i32, i32) {
    %c0_i32 = arith.constant 0 : i32
    %c0_i32_0 = arith.constant 0 : i32
    %c0_i32_1 = arith.constant 0 : i32
    return %arg0, %c0_i32, %c0_i32_0 : i32, i32, i32
  }
  func.func @transform_2(%arg0: i32) -> (i32, i32) {
    %c0_i32 = arith.constant 0 : i32
    %c0_i32_0 = arith.constant 0 : i32
    %c0_i32_1 = arith.constant 0 : i32
    return %c0_i32, %c0_i32_0 : i32, i32
  }
  func.func @transform_3(%arg0: i32) -> (i32, i32) {
    %c0_i32 = arith.constant 0 : i32
    %c0_i32_0 = arith.constant 0 : i32
    %c0_i32_1 = arith.constant 0 : i32
    return %c0_i32, %c0_i32_0 : i32, i32
  }
  func.func @transform_4(%arg0: i32) -> (i32, i32) {
    %c0_i32 = arith.constant 0 : i32
    %c0_i32_0 = arith.constant 0 : i32
    %c0_i32_1 = arith.constant 0 : i32
    return %c0_i32, %c0_i32_0 : i32, i32
  }
  func.func @transform_5(%arg0: i32) -> (i32, i32) {
    %c0_i32 = arith.constant 0 : i32
    %c0_i32_0 = arith.constant 0 : i32
    %c0_i32_1 = arith.constant 0 : i32
    return %c0_i32, %c0_i32_0 : i32, i32
  }
  func.func @transform_6(%arg0: i32) -> (i32, i32, i32) {
    %c0_i32 = arith.constant 0 : i32
    %c0_i32_0 = arith.constant 0 : i32
    %c0_i32_1 = arith.constant 0 : i32
    return %arg0, %c0_i32, %c0_i32_0 : i32, i32, i32
  }
}

module attributes {stable_mosaic.version = 11 : i64} {
  func.func @kernel(%arg0: i32, %arg1: memref<2x16x2xf32, #tpu.memory_space<vmem>>, %arg2: memref<2x16x8xf32, #tpu.memory_space<vmem>>, %arg3: memref<160x16xbf16, #tpu.memory_space<vmem>>, %arg4: memref<2x24xf32, #tpu.memory_space<vmem>>, %arg5: memref<88x16xf32, #tpu.memory_space<vmem>>, %arg6: memref<56x8xf32, #tpu.memory_space<vmem>>, %arg7: memref<2x16x8xf32, #tpu.memory_space<vmem>>) attributes {dimension_semantics = [#tpu.dimension_semantics<parallel>], iteration_bounds = array<i64: 1>, scalar_prefetch = 0 : i64, scratch_operands = 0 : i64, tpu.core_type = #tpu.core_type<tc>, window_params = [{transform_indices = @transform_0, window_bounds = array<i64: 2, 16, 2>}, {transform_indices = @transform_1, window_bounds = array<i64: 2, 16, 8>}, {pipeline_mode = #tpu.pipeline_mode<synchronous>, transform_indices = @transform_2, window_bounds = array<i64: 160, 16>}, {pipeline_mode = #tpu.pipeline_mode<synchronous>, transform_indices = @transform_3, window_bounds = array<i64: 2, 24>}, {pipeline_mode = #tpu.pipeline_mode<synchronous>, transform_indices = @transform_4, window_bounds = array<i64: 88, 16>}, {pipeline_mode = #tpu.pipeline_mode<synchronous>, transform_indices = @transform_5, window_bounds = array<i64: 56, 8>}, {transform_indices = @transform_6, window_bounds = array<i64: 2, 16, 8>}]} {
    %c0 = arith.constant 0 : index
    %c0_0 = arith.constant 0 : index
    %0 = vector.load %arg3[%c0, %c0_0] : memref<160x16xbf16, #tpu.memory_space<vmem>>, vector<160x16xbf16>
    %c0_1 = arith.constant 0 : index
    %c0_2 = arith.constant 0 : index
    %1 = vector.load %arg4[%c0_1, %c0_2] : memref<2x24xf32, #tpu.memory_space<vmem>>, vector<2x24xf32>
    %c0_3 = arith.constant 0 : index
    %c0_4 = arith.constant 0 : index
    %c0_5 = arith.constant 0 : index
    %2 = vector.load %arg1[%c0_3, %c0_4, %c0_5] : memref<2x16x2xf32, #tpu.memory_space<vmem>>, vector<1x16x2xf32>
    %3 = vector.shape_cast %2 : vector<1x16x2xf32> to vector<16x2xf32>
    %c0_6 = arith.constant 0 : index
    %c0_7 = arith.constant 0 : index
    %c0_8 = arith.constant 0 : index
    %4 = vector.load %arg2[%c0_6, %c0_7, %c0_8] : memref<2x16x8xf32, #tpu.memory_space<vmem>>, vector<1x16x8xf32>
    %5 = vector.shape_cast %4 : vector<1x16x8xf32> to vector<16x8xf32>
    %cst = arith.constant dense<0.000000e+00> : vector<16x24xf32>
    %6 = tpu.matmul %3, %1, %cst {dimension_numbers = #tpu.dot_dimension_numbers<[1], [0], [0], [1], [0, 0, 1, 1], [], []>} : vector<16x2xf32>, vector<2x24xf32>, vector<16x24xf32> -> vector<16x24xf32>
    %7 = vector.extract_strided_slice %6 {offsets = [0, 0], sizes = [16, 16], strides = [1, 1]} : vector<16x24xf32> to vector<16x16xf32>
    %c0_9 = arith.constant 0 : index
    %c0_10 = arith.constant 0 : index
    %8 = vector.load %arg5[%c0_9, %c0_10] : memref<88x16xf32, #tpu.memory_space<vmem>>, vector<8x16xf32>
    %c8 = arith.constant 8 : index
    %c0_11 = arith.constant 0 : index
    %9 = vector.load %arg5[%c8, %c0_11] : memref<88x16xf32, #tpu.memory_space<vmem>>, vector<16x16xf32>
    %c24 = arith.constant 24 : index
    %c0_12 = arith.constant 0 : index
    %10 = vector.load %arg5[%c24, %c0_12] : memref<88x16xf32, #tpu.memory_space<vmem>>, vector<1x16xf32>
    %c32 = arith.constant 32 : index
    %c0_13 = arith.constant 0 : index
    %11 = vector.load %arg5[%c32, %c0_13] : memref<88x16xf32, #tpu.memory_space<vmem>>, vector<48x16xf32>
    %c80 = arith.constant 80 : index
    %c0_14 = arith.constant 0 : index
    %12 = vector.load %arg5[%c80, %c0_14] : memref<88x16xf32, #tpu.memory_space<vmem>>, vector<1x16xf32>
    %cst_15 = arith.constant dense<0.000000e+00> : vector<16x16xf32>
    %13 = tpu.matmul %5, %8, %cst_15 {dimension_numbers = #tpu.dot_dimension_numbers<[1], [0], [0], [1], [0, 0, 1, 1], [], []>} : vector<16x8xf32>, vector<8x16xf32>, vector<16x16xf32> -> vector<16x16xf32>
    %14 = arith.addf %7, %13 : vector<16x16xf32>
    %15 = arith.truncf %14 : vector<16x16xf32> to vector<16x16xbf16>
    %cst_16 = arith.constant dense<0.000000e+00> : vector<160x16xf32>
    %16 = tpu.matmul %0, %15, %cst_16 {dimension_numbers = #tpu.dot_dimension_numbers<[1], [0], [0], [1], [0, 0, 1, 1], [], []>} : vector<160x16xbf16>, vector<16x16xbf16>, vector<160x16xf32> -> vector<160x16xf32>
    %17 = arith.truncf %16 : vector<160x16xf32> to vector<160x16xbf16>
    %18 = arith.truncf %9 : vector<16x16xf32> to vector<16x16xbf16>
    %cst_17 = arith.constant dense<0.000000e+00> : vector<160x16xf32>
    %19 = tpu.matmul %17, %18, %cst_17 {dimension_numbers = #tpu.dot_dimension_numbers<[1], [0], [0], [1], [0, 0, 1, 1], [], []>} : vector<160x16xbf16>, vector<16x16xbf16>, vector<160x16xf32> -> vector<160x16xf32>
    %cst_18 = arith.constant 0.000000e+00 : f32
    %20 = vector.broadcast %cst_18 : f32 to vector<160x16xf32>
    %21 = arith.maximumf %19, %20 : vector<160x16xf32>
    %22 = vector.broadcast %10 : vector<1x16xf32> to vector<160x16xf32>
    %23 = arith.mulf %21, %22 : vector<160x16xf32>
    %cst_19 = arith.constant dense<0.000000e+00> : vector<160xf32>
    %24 = vector.multi_reduction <add>, %23, %cst_19 [1] : vector<160x16xf32> to vector<160xf32>
    %25 = vector.shape_cast %24 : vector<160xf32> to vector<160x1xf32>
    %26 = vector.extract_strided_slice %16 {offsets = [0, 0], sizes = [16, 16], strides = [1, 1]} : vector<160x16xf32> to vector<16x16xf32>
    %27 = vector.extract_strided_slice %16 {offsets = [16, 0], sizes = [16, 16], strides = [1, 1]} : vector<160x16xf32> to vector<16x16xf32>
    %28 = vector.extract_strided_slice %16 {offsets = [32, 0], sizes = [16, 16], strides = [1, 1]} : vector<160x16xf32> to vector<16x16xf32>
    %29 = vector.extract_strided_slice %16 {offsets = [48, 0], sizes = [16, 16], strides = [1, 1]} : vector<160x16xf32> to vector<16x16xf32>
    %30 = vector.extract_strided_slice %16 {offsets = [64, 0], sizes = [16, 16], strides = [1, 1]} : vector<160x16xf32> to vector<16x16xf32>
    %31 = vector.extract_strided_slice %25 {offsets = [0, 0], sizes = [16, 1], strides = [1, 1]} : vector<160x1xf32> to vector<16x1xf32>
    %32 = vector.extract_strided_slice %25 {offsets = [16, 0], sizes = [16, 1], strides = [1, 1]} : vector<160x1xf32> to vector<16x1xf32>
    %33 = vector.extract_strided_slice %25 {offsets = [32, 0], sizes = [16, 1], strides = [1, 1]} : vector<160x1xf32> to vector<16x1xf32>
    %34 = vector.extract_strided_slice %25 {offsets = [48, 0], sizes = [16, 1], strides = [1, 1]} : vector<160x1xf32> to vector<16x1xf32>
    %35 = vector.extract_strided_slice %25 {offsets = [64, 0], sizes = [16, 1], strides = [1, 1]} : vector<160x1xf32> to vector<16x1xf32>
    %36 = arith.maximumf %31, %32 : vector<16x1xf32>
    %37 = arith.maximumf %36, %33 : vector<16x1xf32>
    %38 = arith.maximumf %37, %34 : vector<16x1xf32>
    %39 = arith.maximumf %38, %35 : vector<16x1xf32>
    %40 = arith.subf %31, %39 : vector<16x1xf32>
    %41 = math.exp %40 : vector<16x1xf32>
    %42 = arith.subf %32, %39 : vector<16x1xf32>
    %43 = math.exp %42 : vector<16x1xf32>
    %44 = arith.subf %33, %39 : vector<16x1xf32>
    %45 = math.exp %44 : vector<16x1xf32>
    %46 = arith.subf %34, %39 : vector<16x1xf32>
    %47 = math.exp %46 : vector<16x1xf32>
    %48 = arith.subf %35, %39 : vector<16x1xf32>
    %49 = math.exp %48 : vector<16x1xf32>
    %50 = arith.addf %41, %43 : vector<16x1xf32>
    %51 = arith.addf %50, %45 : vector<16x1xf32>
    %52 = arith.addf %51, %47 : vector<16x1xf32>
    %53 = arith.addf %52, %49 : vector<16x1xf32>
    %cst_20 = arith.constant 1.000000e+00 : f32
    %54 = vector.broadcast %cst_20 : f32 to vector<16x1xf32>
    %55 = arith.divf %54, %53 : vector<16x1xf32>
    %56 = arith.mulf %41, %55 : vector<16x1xf32>
    %57 = vector.broadcast %56 : vector<16x1xf32> to vector<16x16xf32>
    %58 = arith.mulf %57, %26 : vector<16x16xf32>
    %59 = arith.mulf %43, %55 : vector<16x1xf32>
    %60 = vector.broadcast %59 : vector<16x1xf32> to vector<16x16xf32>
    %61 = arith.mulf %60, %27 : vector<16x16xf32>
    %62 = arith.addf %58, %61 : vector<16x16xf32>
    %63 = arith.mulf %45, %55 : vector<16x1xf32>
    %64 = vector.broadcast %63 : vector<16x1xf32> to vector<16x16xf32>
    %65 = arith.mulf %64, %28 : vector<16x16xf32>
    %66 = arith.addf %62, %65 : vector<16x16xf32>
    %67 = arith.mulf %47, %55 : vector<16x1xf32>
    %68 = vector.broadcast %67 : vector<16x1xf32> to vector<16x16xf32>
    %69 = arith.mulf %68, %29 : vector<16x16xf32>
    %70 = arith.addf %66, %69 : vector<16x16xf32>
    %71 = arith.mulf %49, %55 : vector<16x1xf32>
    %72 = vector.broadcast %71 : vector<16x1xf32> to vector<16x16xf32>
    %73 = arith.mulf %72, %30 : vector<16x16xf32>
    %74 = arith.addf %70, %73 : vector<16x16xf32>
    %75 = vector.extract_strided_slice %16 {offsets = [80, 0], sizes = [16, 16], strides = [1, 1]} : vector<160x16xf32> to vector<16x16xf32>
    %76 = vector.extract_strided_slice %16 {offsets = [96, 0], sizes = [16, 16], strides = [1, 1]} : vector<160x16xf32> to vector<16x16xf32>
    %77 = vector.extract_strided_slice %16 {offsets = [112, 0], sizes = [16, 16], strides = [1, 1]} : vector<160x16xf32> to vector<16x16xf32>
    %78 = vector.extract_strided_slice %16 {offsets = [128, 0], sizes = [16, 16], strides = [1, 1]} : vector<160x16xf32> to vector<16x16xf32>
    %79 = vector.extract_strided_slice %16 {offsets = [144, 0], sizes = [16, 16], strides = [1, 1]} : vector<160x16xf32> to vector<16x16xf32>
    %80 = vector.extract_strided_slice %25 {offsets = [80, 0], sizes = [16, 1], strides = [1, 1]} : vector<160x1xf32> to vector<16x1xf32>
    %81 = vector.extract_strided_slice %25 {offsets = [96, 0], sizes = [16, 1], strides = [1, 1]} : vector<160x1xf32> to vector<16x1xf32>
    %82 = vector.extract_strided_slice %25 {offsets = [112, 0], sizes = [16, 1], strides = [1, 1]} : vector<160x1xf32> to vector<16x1xf32>
    %83 = vector.extract_strided_slice %25 {offsets = [128, 0], sizes = [16, 1], strides = [1, 1]} : vector<160x1xf32> to vector<16x1xf32>
    %84 = vector.extract_strided_slice %25 {offsets = [144, 0], sizes = [16, 1], strides = [1, 1]} : vector<160x1xf32> to vector<16x1xf32>
    %85 = arith.maximumf %80, %81 : vector<16x1xf32>
    %86 = arith.maximumf %85, %82 : vector<16x1xf32>
    %87 = arith.maximumf %86, %83 : vector<16x1xf32>
    %88 = arith.maximumf %87, %84 : vector<16x1xf32>
    %89 = arith.subf %80, %88 : vector<16x1xf32>
    %90 = math.exp %89 : vector<16x1xf32>
    %91 = arith.subf %81, %88 : vector<16x1xf32>
    %92 = math.exp %91 : vector<16x1xf32>
    %93 = arith.subf %82, %88 : vector<16x1xf32>
    %94 = math.exp %93 : vector<16x1xf32>
    %95 = arith.subf %83, %88 : vector<16x1xf32>
    %96 = math.exp %95 : vector<16x1xf32>
    %97 = arith.subf %84, %88 : vector<16x1xf32>
    %98 = math.exp %97 : vector<16x1xf32>
    %99 = arith.addf %90, %92 : vector<16x1xf32>
    %100 = arith.addf %99, %94 : vector<16x1xf32>
    %101 = arith.addf %100, %96 : vector<16x1xf32>
    %102 = arith.addf %101, %98 : vector<16x1xf32>
    %cst_21 = arith.constant 1.000000e+00 : f32
    %103 = vector.broadcast %cst_21 : f32 to vector<16x1xf32>
    %104 = arith.divf %103, %102 : vector<16x1xf32>
    %105 = arith.mulf %90, %104 : vector<16x1xf32>
    %106 = vector.broadcast %105 : vector<16x1xf32> to vector<16x16xf32>
    %107 = arith.mulf %106, %75 : vector<16x16xf32>
    %108 = arith.mulf %92, %104 : vector<16x1xf32>
    %109 = vector.broadcast %108 : vector<16x1xf32> to vector<16x16xf32>
    %110 = arith.mulf %109, %76 : vector<16x16xf32>
    %111 = arith.addf %107, %110 : vector<16x16xf32>
    %112 = arith.mulf %94, %104 : vector<16x1xf32>
    %113 = vector.broadcast %112 : vector<16x1xf32> to vector<16x16xf32>
    %114 = arith.mulf %113, %77 : vector<16x16xf32>
    %115 = arith.addf %111, %114 : vector<16x16xf32>
    %116 = arith.mulf %96, %104 : vector<16x1xf32>
    %117 = vector.broadcast %116 : vector<16x1xf32> to vector<16x16xf32>
    %118 = arith.mulf %117, %78 : vector<16x16xf32>
    %119 = arith.addf %115, %118 : vector<16x16xf32>
    %120 = arith.mulf %98, %104 : vector<16x1xf32>
    %121 = vector.broadcast %120 : vector<16x1xf32> to vector<16x16xf32>
    %122 = arith.mulf %121, %79 : vector<16x16xf32>
    %123 = arith.addf %119, %122 : vector<16x16xf32>
    %124 = tpu.concatenate %74, %123, %14 in 1 : vector<16x16xf32>, vector<16x16xf32>, vector<16x16xf32> -> vector<16x48xf32>
    %125 = arith.truncf %124 : vector<16x48xf32> to vector<16x48xbf16>
    %126 = arith.truncf %11 : vector<48x16xf32> to vector<48x16xbf16>
    %cst_22 = arith.constant dense<0.000000e+00> : vector<16x16xf32>
    %127 = tpu.matmul %125, %126, %cst_22 {dimension_numbers = #tpu.dot_dimension_numbers<[1], [0], [0], [1], [0, 0, 1, 1], [], []>} : vector<16x48xbf16>, vector<48x16xbf16>, vector<16x16xf32> -> vector<16x16xf32>
    %128 = vector.broadcast %12 : vector<1x16xf32> to vector<16x16xf32>
    %129 = arith.addf %127, %128 : vector<16x16xf32>
    %130 = arith.negf %129 : vector<16x16xf32>
    %131 = math.exp %130 : vector<16x16xf32>
    %cst_23 = arith.constant 1.000000e+00 : f32
    %132 = vector.broadcast %cst_23 : f32 to vector<16x16xf32>
    %133 = arith.addf %132, %131 : vector<16x16xf32>
    %134 = arith.divf %132, %133 : vector<16x16xf32>
    %135 = vector.extract_strided_slice %134 {offsets = [0, 0], sizes = [16, 8], strides = [1, 1]} : vector<16x16xf32> to vector<16x8xf32>
    %136 = vector.extract_strided_slice %134 {offsets = [0, 8], sizes = [16, 8], strides = [1, 1]} : vector<16x16xf32> to vector<16x8xf32>
    %137 = vector.extract_strided_slice %6 {offsets = [0, 16], sizes = [16, 8], strides = [1, 1]} : vector<16x24xf32> to vector<16x8xf32>
    %138 = arith.mulf %135, %5 : vector<16x8xf32>
    %c0_24 = arith.constant 0 : index
    %c0_25 = arith.constant 0 : index
    %139 = vector.load %arg6[%c0_24, %c0_25] : memref<56x8xf32, #tpu.memory_space<vmem>>, vector<8x8xf32>
    %c8_26 = arith.constant 8 : index
    %c0_27 = arith.constant 0 : index
    %140 = vector.load %arg6[%c8_26, %c0_27] : memref<56x8xf32, #tpu.memory_space<vmem>>, vector<8x8xf32>
    %c16 = arith.constant 16 : index
    %c0_28 = arith.constant 0 : index
    %141 = vector.load %arg6[%c16, %c0_28] : memref<56x8xf32, #tpu.memory_space<vmem>>, vector<1x8xf32>
    %c24_29 = arith.constant 24 : index
    %c0_30 = arith.constant 0 : index
    %142 = vector.load %arg6[%c24_29, %c0_30] : memref<56x8xf32, #tpu.memory_space<vmem>>, vector<24x8xf32>
    %c48 = arith.constant 48 : index
    %c0_31 = arith.constant 0 : index
    %143 = vector.load %arg6[%c48, %c0_31] : memref<56x8xf32, #tpu.memory_space<vmem>>, vector<1x8xf32>
    %cst_32 = arith.constant dense<0.000000e+00> : vector<16x8xf32>
    %144 = tpu.matmul %138, %139, %cst_32 {dimension_numbers = #tpu.dot_dimension_numbers<[1], [0], [0], [1], [0, 0, 1, 1], [], []>} : vector<16x8xf32>, vector<8x8xf32>, vector<16x8xf32> -> vector<16x8xf32>
    %145 = arith.addf %137, %144 : vector<16x8xf32>
    %146 = arith.truncf %145 : vector<16x8xf32> to vector<16x8xbf16>
    %cst_33 = arith.constant dense<0.000000e+00> : vector<160x8xf32>
    %147 = tpu.matmul %0, %146, %cst_33 {dimension_numbers = #tpu.dot_dimension_numbers<[1], [0], [0], [1], [0, 0, 1, 1], [], []>} : vector<160x16xbf16>, vector<16x8xbf16>, vector<160x8xf32> -> vector<160x8xf32>
    %148 = arith.truncf %147 : vector<160x8xf32> to vector<160x8xbf16>
    %149 = arith.truncf %140 : vector<8x8xf32> to vector<8x8xbf16>
    %cst_34 = arith.constant dense<0.000000e+00> : vector<160x8xf32>
    %150 = tpu.matmul %148, %149, %cst_34 {dimension_numbers = #tpu.dot_dimension_numbers<[1], [0], [0], [1], [0, 0, 1, 1], [], []>} : vector<160x8xbf16>, vector<8x8xbf16>, vector<160x8xf32> -> vector<160x8xf32>
    %cst_35 = arith.constant 0.000000e+00 : f32
    %151 = vector.broadcast %cst_35 : f32 to vector<160x8xf32>
    %152 = arith.maximumf %150, %151 : vector<160x8xf32>
    %153 = vector.broadcast %141 : vector<1x8xf32> to vector<160x8xf32>
    %154 = arith.mulf %152, %153 : vector<160x8xf32>
    %cst_36 = arith.constant dense<0.000000e+00> : vector<160xf32>
    %155 = vector.multi_reduction <add>, %154, %cst_36 [1] : vector<160x8xf32> to vector<160xf32>
    %156 = vector.shape_cast %155 : vector<160xf32> to vector<160x1xf32>
    %157 = vector.extract_strided_slice %147 {offsets = [0, 0], sizes = [16, 8], strides = [1, 1]} : vector<160x8xf32> to vector<16x8xf32>
    %158 = vector.extract_strided_slice %147 {offsets = [16, 0], sizes = [16, 8], strides = [1, 1]} : vector<160x8xf32> to vector<16x8xf32>
    %159 = vector.extract_strided_slice %147 {offsets = [32, 0], sizes = [16, 8], strides = [1, 1]} : vector<160x8xf32> to vector<16x8xf32>
    %160 = vector.extract_strided_slice %147 {offsets = [48, 0], sizes = [16, 8], strides = [1, 1]} : vector<160x8xf32> to vector<16x8xf32>
    %161 = vector.extract_strided_slice %147 {offsets = [64, 0], sizes = [16, 8], strides = [1, 1]} : vector<160x8xf32> to vector<16x8xf32>
    %162 = vector.extract_strided_slice %156 {offsets = [0, 0], sizes = [16, 1], strides = [1, 1]} : vector<160x1xf32> to vector<16x1xf32>
    %163 = vector.extract_strided_slice %156 {offsets = [16, 0], sizes = [16, 1], strides = [1, 1]} : vector<160x1xf32> to vector<16x1xf32>
    %164 = vector.extract_strided_slice %156 {offsets = [32, 0], sizes = [16, 1], strides = [1, 1]} : vector<160x1xf32> to vector<16x1xf32>
    %165 = vector.extract_strided_slice %156 {offsets = [48, 0], sizes = [16, 1], strides = [1, 1]} : vector<160x1xf32> to vector<16x1xf32>
    %166 = vector.extract_strided_slice %156 {offsets = [64, 0], sizes = [16, 1], strides = [1, 1]} : vector<160x1xf32> to vector<16x1xf32>
    %167 = arith.maximumf %162, %163 : vector<16x1xf32>
    %168 = arith.maximumf %167, %164 : vector<16x1xf32>
    %169 = arith.maximumf %168, %165 : vector<16x1xf32>
    %170 = arith.maximumf %169, %166 : vector<16x1xf32>
    %171 = arith.subf %162, %170 : vector<16x1xf32>
    %172 = math.exp %171 : vector<16x1xf32>
    %173 = arith.subf %163, %170 : vector<16x1xf32>
    %174 = math.exp %173 : vector<16x1xf32>
    %175 = arith.subf %164, %170 : vector<16x1xf32>
    %176 = math.exp %175 : vector<16x1xf32>
    %177 = arith.subf %165, %170 : vector<16x1xf32>
    %178 = math.exp %177 : vector<16x1xf32>
    %179 = arith.subf %166, %170 : vector<16x1xf32>
    %180 = math.exp %179 : vector<16x1xf32>
    %181 = arith.addf %172, %174 : vector<16x1xf32>
    %182 = arith.addf %181, %176 : vector<16x1xf32>
    %183 = arith.addf %182, %178 : vector<16x1xf32>
    %184 = arith.addf %183, %180 : vector<16x1xf32>
    %cst_37 = arith.constant 1.000000e+00 : f32
    %185 = vector.broadcast %cst_37 : f32 to vector<16x1xf32>
    %186 = arith.divf %185, %184 : vector<16x1xf32>
    %187 = arith.mulf %172, %186 : vector<16x1xf32>
    %188 = vector.broadcast %187 : vector<16x1xf32> to vector<16x8xf32>
    %189 = arith.mulf %188, %157 : vector<16x8xf32>
    %190 = arith.mulf %174, %186 : vector<16x1xf32>
    %191 = vector.broadcast %190 : vector<16x1xf32> to vector<16x8xf32>
    %192 = arith.mulf %191, %158 : vector<16x8xf32>
    %193 = arith.addf %189, %192 : vector<16x8xf32>
    %194 = arith.mulf %176, %186 : vector<16x1xf32>
    %195 = vector.broadcast %194 : vector<16x1xf32> to vector<16x8xf32>
    %196 = arith.mulf %195, %159 : vector<16x8xf32>
    %197 = arith.addf %193, %196 : vector<16x8xf32>
    %198 = arith.mulf %178, %186 : vector<16x1xf32>
    %199 = vector.broadcast %198 : vector<16x1xf32> to vector<16x8xf32>
    %200 = arith.mulf %199, %160 : vector<16x8xf32>
    %201 = arith.addf %197, %200 : vector<16x8xf32>
    %202 = arith.mulf %180, %186 : vector<16x1xf32>
    %203 = vector.broadcast %202 : vector<16x1xf32> to vector<16x8xf32>
    %204 = arith.mulf %203, %161 : vector<16x8xf32>
    %205 = arith.addf %201, %204 : vector<16x8xf32>
    %206 = vector.extract_strided_slice %147 {offsets = [80, 0], sizes = [16, 8], strides = [1, 1]} : vector<160x8xf32> to vector<16x8xf32>
    %207 = vector.extract_strided_slice %147 {offsets = [96, 0], sizes = [16, 8], strides = [1, 1]} : vector<160x8xf32> to vector<16x8xf32>
    %208 = vector.extract_strided_slice %147 {offsets = [112, 0], sizes = [16, 8], strides = [1, 1]} : vector<160x8xf32> to vector<16x8xf32>
    %209 = vector.extract_strided_slice %147 {offsets = [128, 0], sizes = [16, 8], strides = [1, 1]} : vector<160x8xf32> to vector<16x8xf32>
    %210 = vector.extract_strided_slice %147 {offsets = [144, 0], sizes = [16, 8], strides = [1, 1]} : vector<160x8xf32> to vector<16x8xf32>
    %211 = vector.extract_strided_slice %156 {offsets = [80, 0], sizes = [16, 1], strides = [1, 1]} : vector<160x1xf32> to vector<16x1xf32>
    %212 = vector.extract_strided_slice %156 {offsets = [96, 0], sizes = [16, 1], strides = [1, 1]} : vector<160x1xf32> to vector<16x1xf32>
    %213 = vector.extract_strided_slice %156 {offsets = [112, 0], sizes = [16, 1], strides = [1, 1]} : vector<160x1xf32> to vector<16x1xf32>
    %214 = vector.extract_strided_slice %156 {offsets = [128, 0], sizes = [16, 1], strides = [1, 1]} : vector<160x1xf32> to vector<16x1xf32>
    %215 = vector.extract_strided_slice %156 {offsets = [144, 0], sizes = [16, 1], strides = [1, 1]} : vector<160x1xf32> to vector<16x1xf32>
    %216 = arith.maximumf %211, %212 : vector<16x1xf32>
    %217 = arith.maximumf %216, %213 : vector<16x1xf32>
    %218 = arith.maximumf %217, %214 : vector<16x1xf32>
    %219 = arith.maximumf %218, %215 : vector<16x1xf32>
    %220 = arith.subf %211, %219 : vector<16x1xf32>
    %221 = math.exp %220 : vector<16x1xf32>
    %222 = arith.subf %212, %219 : vector<16x1xf32>
    %223 = math.exp %222 : vector<16x1xf32>
    %224 = arith.subf %213, %219 : vector<16x1xf32>
    %225 = math.exp %224 : vector<16x1xf32>
    %226 = arith.subf %214, %219 : vector<16x1xf32>
    %227 = math.exp %226 : vector<16x1xf32>
    %228 = arith.subf %215, %219 : vector<16x1xf32>
    %229 = math.exp %228 : vector<16x1xf32>
    %230 = arith.addf %221, %223 : vector<16x1xf32>
    %231 = arith.addf %230, %225 : vector<16x1xf32>
    %232 = arith.addf %231, %227 : vector<16x1xf32>
    %233 = arith.addf %232, %229 : vector<16x1xf32>
    %cst_38 = arith.constant 1.000000e+00 : f32
    %234 = vector.broadcast %cst_38 : f32 to vector<16x1xf32>
    %235 = arith.divf %234, %233 : vector<16x1xf32>
    %236 = arith.mulf %221, %235 : vector<16x1xf32>
    %237 = vector.broadcast %236 : vector<16x1xf32> to vector<16x8xf32>
    %238 = arith.mulf %237, %206 : vector<16x8xf32>
    %239 = arith.mulf %223, %235 : vector<16x1xf32>
    %240 = vector.broadcast %239 : vector<16x1xf32> to vector<16x8xf32>
    %241 = arith.mulf %240, %207 : vector<16x8xf32>
    %242 = arith.addf %238, %241 : vector<16x8xf32>
    %243 = arith.mulf %225, %235 : vector<16x1xf32>
    %244 = vector.broadcast %243 : vector<16x1xf32> to vector<16x8xf32>
    %245 = arith.mulf %244, %208 : vector<16x8xf32>
    %246 = arith.addf %242, %245 : vector<16x8xf32>
    %247 = arith.mulf %227, %235 : vector<16x1xf32>
    %248 = vector.broadcast %247 : vector<16x1xf32> to vector<16x8xf32>
    %249 = arith.mulf %248, %209 : vector<16x8xf32>
    %250 = arith.addf %246, %249 : vector<16x8xf32>
    %251 = arith.mulf %229, %235 : vector<16x1xf32>
    %252 = vector.broadcast %251 : vector<16x1xf32> to vector<16x8xf32>
    %253 = arith.mulf %252, %210 : vector<16x8xf32>
    %254 = arith.addf %250, %253 : vector<16x8xf32>
    %255 = tpu.concatenate %205, %254, %145 in 1 : vector<16x8xf32>, vector<16x8xf32>, vector<16x8xf32> -> vector<16x24xf32>
    %256 = arith.truncf %255 : vector<16x24xf32> to vector<16x24xbf16>
    %257 = arith.truncf %142 : vector<24x8xf32> to vector<24x8xbf16>
    %cst_39 = arith.constant dense<0.000000e+00> : vector<16x8xf32>
    %258 = tpu.matmul %256, %257, %cst_39 {dimension_numbers = #tpu.dot_dimension_numbers<[1], [0], [0], [1], [0, 0, 1, 1], [], []>} : vector<16x24xbf16>, vector<24x8xbf16>, vector<16x8xf32> -> vector<16x8xf32>
    %259 = vector.broadcast %143 : vector<1x8xf32> to vector<16x8xf32>
    %260 = arith.addf %258, %259 : vector<16x8xf32>
    %261 = math.tanh %260 : vector<16x8xf32>
    %262 = arith.mulf %136, %5 : vector<16x8xf32>
    %cst_40 = arith.constant 1.000000e+00 : f32
    %263 = vector.broadcast %cst_40 : f32 to vector<16x8xf32>
    %264 = arith.subf %263, %136 : vector<16x8xf32>
    %265 = arith.mulf %264, %261 : vector<16x8xf32>
    %266 = arith.addf %262, %265 : vector<16x8xf32>
    %c0_41 = arith.constant 0 : index
    %c0_42 = arith.constant 0 : index
    %c0_43 = arith.constant 0 : index
    %267 = vector.load %arg7[%c0_41, %c0_42, %c0_43] : memref<2x16x8xf32, #tpu.memory_space<vmem>>, vector<1x16x8xf32>
    %268 = vector.shape_cast %267 : vector<1x16x8xf32> to vector<16x8xf32>
    %269 = vector.shape_cast %266 : vector<16x8xf32> to vector<1x16x8xf32>
    tpu.vector_store %arg7[%c0_41, %c0_42, %c0_43], %269 {strides = array<i32>} : memref<2x16x8xf32, #tpu.memory_space<vmem>>, vector<1x16x8xf32>,
    %c1 = arith.constant 1 : index
    %c0_44 = arith.constant 0 : index
    %c0_45 = arith.constant 0 : index
    %270 = vector.load %arg1[%c1, %c0_44, %c0_45] : memref<2x16x2xf32, #tpu.memory_space<vmem>>, vector<1x16x2xf32>
    %271 = vector.shape_cast %270 : vector<1x16x2xf32> to vector<16x2xf32>
    %c1_46 = arith.constant 1 : index
    %c0_47 = arith.constant 0 : index
    %c0_48 = arith.constant 0 : index
    %272 = vector.load %arg2[%c1_46, %c0_47, %c0_48] : memref<2x16x8xf32, #tpu.memory_space<vmem>>, vector<1x16x8xf32>
    %273 = vector.shape_cast %272 : vector<1x16x8xf32> to vector<16x8xf32>
    %cst_49 = arith.constant dense<0.000000e+00> : vector<16x24xf32>
    %274 = tpu.matmul %271, %1, %cst_49 {dimension_numbers = #tpu.dot_dimension_numbers<[1], [0], [0], [1], [0, 0, 1, 1], [], []>} : vector<16x2xf32>, vector<2x24xf32>, vector<16x24xf32> -> vector<16x24xf32>
    %275 = vector.extract_strided_slice %274 {offsets = [0, 0], sizes = [16, 16], strides = [1, 1]} : vector<16x24xf32> to vector<16x16xf32>
    %c0_50 = arith.constant 0 : index
    %c0_51 = arith.constant 0 : index
    %276 = vector.load %arg5[%c0_50, %c0_51] : memref<88x16xf32, #tpu.memory_space<vmem>>, vector<8x16xf32>
    %c8_52 = arith.constant 8 : index
    %c0_53 = arith.constant 0 : index
    %277 = vector.load %arg5[%c8_52, %c0_53] : memref<88x16xf32, #tpu.memory_space<vmem>>, vector<16x16xf32>
    %c24_54 = arith.constant 24 : index
    %c0_55 = arith.constant 0 : index
    %278 = vector.load %arg5[%c24_54, %c0_55] : memref<88x16xf32, #tpu.memory_space<vmem>>, vector<1x16xf32>
    %c32_56 = arith.constant 32 : index
    %c0_57 = arith.constant 0 : index
    %279 = vector.load %arg5[%c32_56, %c0_57] : memref<88x16xf32, #tpu.memory_space<vmem>>, vector<48x16xf32>
    %c80_58 = arith.constant 80 : index
    %c0_59 = arith.constant 0 : index
    %280 = vector.load %arg5[%c80_58, %c0_59] : memref<88x16xf32, #tpu.memory_space<vmem>>, vector<1x16xf32>
    %cst_60 = arith.constant dense<0.000000e+00> : vector<16x16xf32>
    %281 = tpu.matmul %273, %276, %cst_60 {dimension_numbers = #tpu.dot_dimension_numbers<[1], [0], [0], [1], [0, 0, 1, 1], [], []>} : vector<16x8xf32>, vector<8x16xf32>, vector<16x16xf32> -> vector<16x16xf32>
    %282 = arith.addf %275, %281 : vector<16x16xf32>
    %283 = arith.truncf %282 : vector<16x16xf32> to vector<16x16xbf16>
    %cst_61 = arith.constant dense<0.000000e+00> : vector<160x16xf32>
    %284 = tpu.matmul %0, %283, %cst_61 {dimension_numbers = #tpu.dot_dimension_numbers<[1], [0], [0], [1], [0, 0, 1, 1], [], []>} : vector<160x16xbf16>, vector<16x16xbf16>, vector<160x16xf32> -> vector<160x16xf32>
    %285 = arith.truncf %284 : vector<160x16xf32> to vector<160x16xbf16>
    %286 = arith.truncf %277 : vector<16x16xf32> to vector<16x16xbf16>
    %cst_62 = arith.constant dense<0.000000e+00> : vector<160x16xf32>
    %287 = tpu.matmul %285, %286, %cst_62 {dimension_numbers = #tpu.dot_dimension_numbers<[1], [0], [0], [1], [0, 0, 1, 1], [], []>} : vector<160x16xbf16>, vector<16x16xbf16>, vector<160x16xf32> -> vector<160x16xf32>
    %cst_63 = arith.constant 0.000000e+00 : f32
    %288 = vector.broadcast %cst_63 : f32 to vector<160x16xf32>
    %289 = arith.maximumf %287, %288 : vector<160x16xf32>
    %290 = vector.broadcast %278 : vector<1x16xf32> to vector<160x16xf32>
    %291 = arith.mulf %289, %290 : vector<160x16xf32>
    %cst_64 = arith.constant dense<0.000000e+00> : vector<160xf32>
    %292 = vector.multi_reduction <add>, %291, %cst_64 [1] : vector<160x16xf32> to vector<160xf32>
    %293 = vector.shape_cast %292 : vector<160xf32> to vector<160x1xf32>
    %294 = vector.extract_strided_slice %284 {offsets = [0, 0], sizes = [16, 16], strides = [1, 1]} : vector<160x16xf32> to vector<16x16xf32>
    %295 = vector.extract_strided_slice %284 {offsets = [16, 0], sizes = [16, 16], strides = [1, 1]} : vector<160x16xf32> to vector<16x16xf32>
    %296 = vector.extract_strided_slice %284 {offsets = [32, 0], sizes = [16, 16], strides = [1, 1]} : vector<160x16xf32> to vector<16x16xf32>
    %297 = vector.extract_strided_slice %284 {offsets = [48, 0], sizes = [16, 16], strides = [1, 1]} : vector<160x16xf32> to vector<16x16xf32>
    %298 = vector.extract_strided_slice %284 {offsets = [64, 0], sizes = [16, 16], strides = [1, 1]} : vector<160x16xf32> to vector<16x16xf32>
    %299 = vector.extract_strided_slice %293 {offsets = [0, 0], sizes = [16, 1], strides = [1, 1]} : vector<160x1xf32> to vector<16x1xf32>
    %300 = vector.extract_strided_slice %293 {offsets = [16, 0], sizes = [16, 1], strides = [1, 1]} : vector<160x1xf32> to vector<16x1xf32>
    %301 = vector.extract_strided_slice %293 {offsets = [32, 0], sizes = [16, 1], strides = [1, 1]} : vector<160x1xf32> to vector<16x1xf32>
    %302 = vector.extract_strided_slice %293 {offsets = [48, 0], sizes = [16, 1], strides = [1, 1]} : vector<160x1xf32> to vector<16x1xf32>
    %303 = vector.extract_strided_slice %293 {offsets = [64, 0], sizes = [16, 1], strides = [1, 1]} : vector<160x1xf32> to vector<16x1xf32>
    %304 = arith.maximumf %299, %300 : vector<16x1xf32>
    %305 = arith.maximumf %304, %301 : vector<16x1xf32>
    %306 = arith.maximumf %305, %302 : vector<16x1xf32>
    %307 = arith.maximumf %306, %303 : vector<16x1xf32>
    %308 = arith.subf %299, %307 : vector<16x1xf32>
    %309 = math.exp %308 : vector<16x1xf32>
    %310 = arith.subf %300, %307 : vector<16x1xf32>
    %311 = math.exp %310 : vector<16x1xf32>
    %312 = arith.subf %301, %307 : vector<16x1xf32>
    %313 = math.exp %312 : vector<16x1xf32>
    %314 = arith.subf %302, %307 : vector<16x1xf32>
    %315 = math.exp %314 : vector<16x1xf32>
    %316 = arith.subf %303, %307 : vector<16x1xf32>
    %317 = math.exp %316 : vector<16x1xf32>
    %318 = arith.addf %309, %311 : vector<16x1xf32>
    %319 = arith.addf %318, %313 : vector<16x1xf32>
    %320 = arith.addf %319, %315 : vector<16x1xf32>
    %321 = arith.addf %320, %317 : vector<16x1xf32>
    %cst_65 = arith.constant 1.000000e+00 : f32
    %322 = vector.broadcast %cst_65 : f32 to vector<16x1xf32>
    %323 = arith.divf %322, %321 : vector<16x1xf32>
    %324 = arith.mulf %309, %323 : vector<16x1xf32>
    %325 = vector.broadcast %324 : vector<16x1xf32> to vector<16x16xf32>
    %326 = arith.mulf %325, %294 : vector<16x16xf32>
    %327 = arith.mulf %311, %323 : vector<16x1xf32>
    %328 = vector.broadcast %327 : vector<16x1xf32> to vector<16x16xf32>
    %329 = arith.mulf %328, %295 : vector<16x16xf32>
    %330 = arith.addf %326, %329 : vector<16x16xf32>
    %331 = arith.mulf %313, %323 : vector<16x1xf32>
    %332 = vector.broadcast %331 : vector<16x1xf32> to vector<16x16xf32>
    %333 = arith.mulf %332, %296 : vector<16x16xf32>
    %334 = arith.addf %330, %333 : vector<16x16xf32>
    %335 = arith.mulf %315, %323 : vector<16x1xf32>
    %336 = vector.broadcast %335 : vector<16x1xf32> to vector<16x16xf32>
    %337 = arith.mulf %336, %297 : vector<16x16xf32>
    %338 = arith.addf %334, %337 : vector<16x16xf32>
    %339 = arith.mulf %317, %323 : vector<16x1xf32>
    %340 = vector.broadcast %339 : vector<16x1xf32> to vector<16x16xf32>
    %341 = arith.mulf %340, %298 : vector<16x16xf32>
    %342 = arith.addf %338, %341 : vector<16x16xf32>
    %343 = vector.extract_strided_slice %284 {offsets = [80, 0], sizes = [16, 16], strides = [1, 1]} : vector<160x16xf32> to vector<16x16xf32>
    %344 = vector.extract_strided_slice %284 {offsets = [96, 0], sizes = [16, 16], strides = [1, 1]} : vector<160x16xf32> to vector<16x16xf32>
    %345 = vector.extract_strided_slice %284 {offsets = [112, 0], sizes = [16, 16], strides = [1, 1]} : vector<160x16xf32> to vector<16x16xf32>
    %346 = vector.extract_strided_slice %284 {offsets = [128, 0], sizes = [16, 16], strides = [1, 1]} : vector<160x16xf32> to vector<16x16xf32>
    %347 = vector.extract_strided_slice %284 {offsets = [144, 0], sizes = [16, 16], strides = [1, 1]} : vector<160x16xf32> to vector<16x16xf32>
    %348 = vector.extract_strided_slice %293 {offsets = [80, 0], sizes = [16, 1], strides = [1, 1]} : vector<160x1xf32> to vector<16x1xf32>
    %349 = vector.extract_strided_slice %293 {offsets = [96, 0], sizes = [16, 1], strides = [1, 1]} : vector<160x1xf32> to vector<16x1xf32>
    %350 = vector.extract_strided_slice %293 {offsets = [112, 0], sizes = [16, 1], strides = [1, 1]} : vector<160x1xf32> to vector<16x1xf32>
    %351 = vector.extract_strided_slice %293 {offsets = [128, 0], sizes = [16, 1], strides = [1, 1]} : vector<160x1xf32> to vector<16x1xf32>
    %352 = vector.extract_strided_slice %293 {offsets = [144, 0], sizes = [16, 1], strides = [1, 1]} : vector<160x1xf32> to vector<16x1xf32>
    %353 = arith.maximumf %348, %349 : vector<16x1xf32>
    %354 = arith.maximumf %353, %350 : vector<16x1xf32>
    %355 = arith.maximumf %354, %351 : vector<16x1xf32>
    %356 = arith.maximumf %355, %352 : vector<16x1xf32>
    %357 = arith.subf %348, %356 : vector<16x1xf32>
    %358 = math.exp %357 : vector<16x1xf32>
    %359 = arith.subf %349, %356 : vector<16x1xf32>
    %360 = math.exp %359 : vector<16x1xf32>
    %361 = arith.subf %350, %356 : vector<16x1xf32>
    %362 = math.exp %361 : vector<16x1xf32>
    %363 = arith.subf %351, %356 : vector<16x1xf32>
    %364 = math.exp %363 : vector<16x1xf32>
    %365 = arith.subf %352, %356 : vector<16x1xf32>
    %366 = math.exp %365 : vector<16x1xf32>
    %367 = arith.addf %358, %360 : vector<16x1xf32>
    %368 = arith.addf %367, %362 : vector<16x1xf32>
    %369 = arith.addf %368, %364 : vector<16x1xf32>
    %370 = arith.addf %369, %366 : vector<16x1xf32>
    %cst_66 = arith.constant 1.000000e+00 : f32
    %371 = vector.broadcast %cst_66 : f32 to vector<16x1xf32>
    %372 = arith.divf %371, %370 : vector<16x1xf32>
    %373 = arith.mulf %358, %372 : vector<16x1xf32>
    %374 = vector.broadcast %373 : vector<16x1xf32> to vector<16x16xf32>
    %375 = arith.mulf %374, %343 : vector<16x16xf32>
    %376 = arith.mulf %360, %372 : vector<16x1xf32>
    %377 = vector.broadcast %376 : vector<16x1xf32> to vector<16x16xf32>
    %378 = arith.mulf %377, %344 : vector<16x16xf32>
    %379 = arith.addf %375, %378 : vector<16x16xf32>
    %380 = arith.mulf %362, %372 : vector<16x1xf32>
    %381 = vector.broadcast %380 : vector<16x1xf32> to vector<16x16xf32>
    %382 = arith.mulf %381, %345 : vector<16x16xf32>
    %383 = arith.addf %379, %382 : vector<16x16xf32>
    %384 = arith.mulf %364, %372 : vector<16x1xf32>
    %385 = vector.broadcast %384 : vector<16x1xf32> to vector<16x16xf32>
    %386 = arith.mulf %385, %346 : vector<16x16xf32>
    %387 = arith.addf %383, %386 : vector<16x16xf32>
    %388 = arith.mulf %366, %372 : vector<16x1xf32>
    %389 = vector.broadcast %388 : vector<16x1xf32> to vector<16x16xf32>
    %390 = arith.mulf %389, %347 : vector<16x16xf32>
    %391 = arith.addf %387, %390 : vector<16x16xf32>
    %392 = tpu.concatenate %342, %391, %282 in 1 : vector<16x16xf32>, vector<16x16xf32>, vector<16x16xf32> -> vector<16x48xf32>
    %393 = arith.truncf %392 : vector<16x48xf32> to vector<16x48xbf16>
    %394 = arith.truncf %279 : vector<48x16xf32> to vector<48x16xbf16>
    %cst_67 = arith.constant dense<0.000000e+00> : vector<16x16xf32>
    %395 = tpu.matmul %393, %394, %cst_67 {dimension_numbers = #tpu.dot_dimension_numbers<[1], [0], [0], [1], [0, 0, 1, 1], [], []>} : vector<16x48xbf16>, vector<48x16xbf16>, vector<16x16xf32> -> vector<16x16xf32>
    %396 = vector.broadcast %280 : vector<1x16xf32> to vector<16x16xf32>
    %397 = arith.addf %395, %396 : vector<16x16xf32>
    %398 = arith.negf %397 : vector<16x16xf32>
    %399 = math.exp %398 : vector<16x16xf32>
    %cst_68 = arith.constant 1.000000e+00 : f32
    %400 = vector.broadcast %cst_68 : f32 to vector<16x16xf32>
    %401 = arith.addf %400, %399 : vector<16x16xf32>
    %402 = arith.divf %400, %401 : vector<16x16xf32>
    %403 = vector.extract_strided_slice %402 {offsets = [0, 0], sizes = [16, 8], strides = [1, 1]} : vector<16x16xf32> to vector<16x8xf32>
    %404 = vector.extract_strided_slice %402 {offsets = [0, 8], sizes = [16, 8], strides = [1, 1]} : vector<16x16xf32> to vector<16x8xf32>
    %405 = vector.extract_strided_slice %274 {offsets = [0, 16], sizes = [16, 8], strides = [1, 1]} : vector<16x24xf32> to vector<16x8xf32>
    %406 = arith.mulf %403, %273 : vector<16x8xf32>
    %c0_69 = arith.constant 0 : index
    %c0_70 = arith.constant 0 : index
    %407 = vector.load %arg6[%c0_69, %c0_70] : memref<56x8xf32, #tpu.memory_space<vmem>>, vector<8x8xf32>
    %c8_71 = arith.constant 8 : index
    %c0_72 = arith.constant 0 : index
    %408 = vector.load %arg6[%c8_71, %c0_72] : memref<56x8xf32, #tpu.memory_space<vmem>>, vector<8x8xf32>
    %c16_73 = arith.constant 16 : index
    %c0_74 = arith.constant 0 : index
    %409 = vector.load %arg6[%c16_73, %c0_74] : memref<56x8xf32, #tpu.memory_space<vmem>>, vector<1x8xf32>
    %c24_75 = arith.constant 24 : index
    %c0_76 = arith.constant 0 : index
    %410 = vector.load %arg6[%c24_75, %c0_76] : memref<56x8xf32, #tpu.memory_space<vmem>>, vector<24x8xf32>
    %c48_77 = arith.constant 48 : index
    %c0_78 = arith.constant 0 : index
    %411 = vector.load %arg6[%c48_77, %c0_78] : memref<56x8xf32, #tpu.memory_space<vmem>>, vector<1x8xf32>
    %cst_79 = arith.constant dense<0.000000e+00> : vector<16x8xf32>
    %412 = tpu.matmul %406, %407, %cst_79 {dimension_numbers = #tpu.dot_dimension_numbers<[1], [0], [0], [1], [0, 0, 1, 1], [], []>} : vector<16x8xf32>, vector<8x8xf32>, vector<16x8xf32> -> vector<16x8xf32>
    %413 = arith.addf %405, %412 : vector<16x8xf32>
    %414 = arith.truncf %413 : vector<16x8xf32> to vector<16x8xbf16>
    %cst_80 = arith.constant dense<0.000000e+00> : vector<160x8xf32>
    %415 = tpu.matmul %0, %414, %cst_80 {dimension_numbers = #tpu.dot_dimension_numbers<[1], [0], [0], [1], [0, 0, 1, 1], [], []>} : vector<160x16xbf16>, vector<16x8xbf16>, vector<160x8xf32> -> vector<160x8xf32>
    %416 = arith.truncf %415 : vector<160x8xf32> to vector<160x8xbf16>
    %417 = arith.truncf %408 : vector<8x8xf32> to vector<8x8xbf16>
    %cst_81 = arith.constant dense<0.000000e+00> : vector<160x8xf32>
    %418 = tpu.matmul %416, %417, %cst_81 {dimension_numbers = #tpu.dot_dimension_numbers<[1], [0], [0], [1], [0, 0, 1, 1], [], []>} : vector<160x8xbf16>, vector<8x8xbf16>, vector<160x8xf32> -> vector<160x8xf32>
    %cst_82 = arith.constant 0.000000e+00 : f32
    %419 = vector.broadcast %cst_82 : f32 to vector<160x8xf32>
    %420 = arith.maximumf %418, %419 : vector<160x8xf32>
    %421 = vector.broadcast %409 : vector<1x8xf32> to vector<160x8xf32>
    %422 = arith.mulf %420, %421 : vector<160x8xf32>
    %cst_83 = arith.constant dense<0.000000e+00> : vector<160xf32>
    %423 = vector.multi_reduction <add>, %422, %cst_83 [1] : vector<160x8xf32> to vector<160xf32>
    %424 = vector.shape_cast %423 : vector<160xf32> to vector<160x1xf32>
    %425 = vector.extract_strided_slice %415 {offsets = [0, 0], sizes = [16, 8], strides = [1, 1]} : vector<160x8xf32> to vector<16x8xf32>
    %426 = vector.extract_strided_slice %415 {offsets = [16, 0], sizes = [16, 8], strides = [1, 1]} : vector<160x8xf32> to vector<16x8xf32>
    %427 = vector.extract_strided_slice %415 {offsets = [32, 0], sizes = [16, 8], strides = [1, 1]} : vector<160x8xf32> to vector<16x8xf32>
    %428 = vector.extract_strided_slice %415 {offsets = [48, 0], sizes = [16, 8], strides = [1, 1]} : vector<160x8xf32> to vector<16x8xf32>
    %429 = vector.extract_strided_slice %415 {offsets = [64, 0], sizes = [16, 8], strides = [1, 1]} : vector<160x8xf32> to vector<16x8xf32>
    %430 = vector.extract_strided_slice %424 {offsets = [0, 0], sizes = [16, 1], strides = [1, 1]} : vector<160x1xf32> to vector<16x1xf32>
    %431 = vector.extract_strided_slice %424 {offsets = [16, 0], sizes = [16, 1], strides = [1, 1]} : vector<160x1xf32> to vector<16x1xf32>
    %432 = vector.extract_strided_slice %424 {offsets = [32, 0], sizes = [16, 1], strides = [1, 1]} : vector<160x1xf32> to vector<16x1xf32>
    %433 = vector.extract_strided_slice %424 {offsets = [48, 0], sizes = [16, 1], strides = [1, 1]} : vector<160x1xf32> to vector<16x1xf32>
    %434 = vector.extract_strided_slice %424 {offsets = [64, 0], sizes = [16, 1], strides = [1, 1]} : vector<160x1xf32> to vector<16x1xf32>
    %435 = arith.maximumf %430, %431 : vector<16x1xf32>
    %436 = arith.maximumf %435, %432 : vector<16x1xf32>
    %437 = arith.maximumf %436, %433 : vector<16x1xf32>
    %438 = arith.maximumf %437, %434 : vector<16x1xf32>
    %439 = arith.subf %430, %438 : vector<16x1xf32>
    %440 = math.exp %439 : vector<16x1xf32>
    %441 = arith.subf %431, %438 : vector<16x1xf32>
    %442 = math.exp %441 : vector<16x1xf32>
    %443 = arith.subf %432, %438 : vector<16x1xf32>
    %444 = math.exp %443 : vector<16x1xf32>
    %445 = arith.subf %433, %438 : vector<16x1xf32>
    %446 = math.exp %445 : vector<16x1xf32>
    %447 = arith.subf %434, %438 : vector<16x1xf32>
    %448 = math.exp %447 : vector<16x1xf32>
    %449 = arith.addf %440, %442 : vector<16x1xf32>
    %450 = arith.addf %449, %444 : vector<16x1xf32>
    %451 = arith.addf %450, %446 : vector<16x1xf32>
    %452 = arith.addf %451, %448 : vector<16x1xf32>
    %cst_84 = arith.constant 1.000000e+00 : f32
    %453 = vector.broadcast %cst_84 : f32 to vector<16x1xf32>
    %454 = arith.divf %453, %452 : vector<16x1xf32>
    %455 = arith.mulf %440, %454 : vector<16x1xf32>
    %456 = vector.broadcast %455 : vector<16x1xf32> to vector<16x8xf32>
    %457 = arith.mulf %456, %425 : vector<16x8xf32>
    %458 = arith.mulf %442, %454 : vector<16x1xf32>
    %459 = vector.broadcast %458 : vector<16x1xf32> to vector<16x8xf32>
    %460 = arith.mulf %459, %426 : vector<16x8xf32>
    %461 = arith.addf %457, %460 : vector<16x8xf32>
    %462 = arith.mulf %444, %454 : vector<16x1xf32>
    %463 = vector.broadcast %462 : vector<16x1xf32> to vector<16x8xf32>
    %464 = arith.mulf %463, %427 : vector<16x8xf32>
    %465 = arith.addf %461, %464 : vector<16x8xf32>
    %466 = arith.mulf %446, %454 : vector<16x1xf32>
    %467 = vector.broadcast %466 : vector<16x1xf32> to vector<16x8xf32>
    %468 = arith.mulf %467, %428 : vector<16x8xf32>
    %469 = arith.addf %465, %468 : vector<16x8xf32>
    %470 = arith.mulf %448, %454 : vector<16x1xf32>
    %471 = vector.broadcast %470 : vector<16x1xf32> to vector<16x8xf32>
    %472 = arith.mulf %471, %429 : vector<16x8xf32>
    %473 = arith.addf %469, %472 : vector<16x8xf32>
    %474 = vector.extract_strided_slice %415 {offsets = [80, 0], sizes = [16, 8], strides = [1, 1]} : vector<160x8xf32> to vector<16x8xf32>
    %475 = vector.extract_strided_slice %415 {offsets = [96, 0], sizes = [16, 8], strides = [1, 1]} : vector<160x8xf32> to vector<16x8xf32>
    %476 = vector.extract_strided_slice %415 {offsets = [112, 0], sizes = [16, 8], strides = [1, 1]} : vector<160x8xf32> to vector<16x8xf32>
    %477 = vector.extract_strided_slice %415 {offsets = [128, 0], sizes = [16, 8], strides = [1, 1]} : vector<160x8xf32> to vector<16x8xf32>
    %478 = vector.extract_strided_slice %415 {offsets = [144, 0], sizes = [16, 8], strides = [1, 1]} : vector<160x8xf32> to vector<16x8xf32>
    %479 = vector.extract_strided_slice %424 {offsets = [80, 0], sizes = [16, 1], strides = [1, 1]} : vector<160x1xf32> to vector<16x1xf32>
    %480 = vector.extract_strided_slice %424 {offsets = [96, 0], sizes = [16, 1], strides = [1, 1]} : vector<160x1xf32> to vector<16x1xf32>
    %481 = vector.extract_strided_slice %424 {offsets = [112, 0], sizes = [16, 1], strides = [1, 1]} : vector<160x1xf32> to vector<16x1xf32>
    %482 = vector.extract_strided_slice %424 {offsets = [128, 0], sizes = [16, 1], strides = [1, 1]} : vector<160x1xf32> to vector<16x1xf32>
    %483 = vector.extract_strided_slice %424 {offsets = [144, 0], sizes = [16, 1], strides = [1, 1]} : vector<160x1xf32> to vector<16x1xf32>
    %484 = arith.maximumf %479, %480 : vector<16x1xf32>
    %485 = arith.maximumf %484, %481 : vector<16x1xf32>
    %486 = arith.maximumf %485, %482 : vector<16x1xf32>
    %487 = arith.maximumf %486, %483 : vector<16x1xf32>
    %488 = arith.subf %479, %487 : vector<16x1xf32>
    %489 = math.exp %488 : vector<16x1xf32>
    %490 = arith.subf %480, %487 : vector<16x1xf32>
    %491 = math.exp %490 : vector<16x1xf32>
    %492 = arith.subf %481, %487 : vector<16x1xf32>
    %493 = math.exp %492 : vector<16x1xf32>
    %494 = arith.subf %482, %487 : vector<16x1xf32>
    %495 = math.exp %494 : vector<16x1xf32>
    %496 = arith.subf %483, %487 : vector<16x1xf32>
    %497 = math.exp %496 : vector<16x1xf32>
    %498 = arith.addf %489, %491 : vector<16x1xf32>
    %499 = arith.addf %498, %493 : vector<16x1xf32>
    %500 = arith.addf %499, %495 : vector<16x1xf32>
    %501 = arith.addf %500, %497 : vector<16x1xf32>
    %cst_85 = arith.constant 1.000000e+00 : f32
    %502 = vector.broadcast %cst_85 : f32 to vector<16x1xf32>
    %503 = arith.divf %502, %501 : vector<16x1xf32>
    %504 = arith.mulf %489, %503 : vector<16x1xf32>
    %505 = vector.broadcast %504 : vector<16x1xf32> to vector<16x8xf32>
    %506 = arith.mulf %505, %474 : vector<16x8xf32>
    %507 = arith.mulf %491, %503 : vector<16x1xf32>
    %508 = vector.broadcast %507 : vector<16x1xf32> to vector<16x8xf32>
    %509 = arith.mulf %508, %475 : vector<16x8xf32>
    %510 = arith.addf %506, %509 : vector<16x8xf32>
    %511 = arith.mulf %493, %503 : vector<16x1xf32>
    %512 = vector.broadcast %511 : vector<16x1xf32> to vector<16x8xf32>
    %513 = arith.mulf %512, %476 : vector<16x8xf32>
    %514 = arith.addf %510, %513 : vector<16x8xf32>
    %515 = arith.mulf %495, %503 : vector<16x1xf32>
    %516 = vector.broadcast %515 : vector<16x1xf32> to vector<16x8xf32>
    %517 = arith.mulf %516, %477 : vector<16x8xf32>
    %518 = arith.addf %514, %517 : vector<16x8xf32>
    %519 = arith.mulf %497, %503 : vector<16x1xf32>
    %520 = vector.broadcast %519 : vector<16x1xf32> to vector<16x8xf32>
    %521 = arith.mulf %520, %478 : vector<16x8xf32>
    %522 = arith.addf %518, %521 : vector<16x8xf32>
    %523 = tpu.concatenate %473, %522, %413 in 1 : vector<16x8xf32>, vector<16x8xf32>, vector<16x8xf32> -> vector<16x24xf32>
    %524 = arith.truncf %523 : vector<16x24xf32> to vector<16x24xbf16>
    %525 = arith.truncf %410 : vector<24x8xf32> to vector<24x8xbf16>
    %cst_86 = arith.constant dense<0.000000e+00> : vector<16x8xf32>
    %526 = tpu.matmul %524, %525, %cst_86 {dimension_numbers = #tpu.dot_dimension_numbers<[1], [0], [0], [1], [0, 0, 1, 1], [], []>} : vector<16x24xbf16>, vector<24x8xbf16>, vector<16x8xf32> -> vector<16x8xf32>
    %527 = vector.broadcast %411 : vector<1x8xf32> to vector<16x8xf32>
    %528 = arith.addf %526, %527 : vector<16x8xf32>
    %529 = math.tanh %528 : vector<16x8xf32>
    %530 = arith.mulf %404, %273 : vector<16x8xf32>
    %cst_87 = arith.constant 1.000000e+00 : f32
    %531 = vector.broadcast %cst_87 : f32 to vector<16x8xf32>
    %532 = arith.subf %531, %404 : vector<16x8xf32>
    %533 = arith.mulf %532, %529 : vector<16x8xf32>
    %534 = arith.addf %530, %533 : vector<16x8xf32>
    %c1_88 = arith.constant 1 : index
    %c0_89 = arith.constant 0 : index
    %c0_90 = arith.constant 0 : index
    %535 = vector.load %arg7[%c1_88, %c0_89, %c0_90] : memref<2x16x8xf32, #tpu.memory_space<vmem>>, vector<1x16x8xf32>
    %536 = vector.shape_cast %535 : vector<1x16x8xf32> to vector<16x8xf32>
    %537 = vector.shape_cast %534 : vector<16x8xf32> to vector<1x16x8xf32>
    tpu.vector_store %arg7[%c1_88, %c0_89, %c0_90], %537 {strides = array<i32>} : memref<2x16x8xf32, #tpu.memory_space<vmem>>, vector<1x16x8xf32>,
    return
  }
  func.func @transform_0(%arg0: i32) -> (i32, i32, i32) {
    %c0_i32 = arith.constant 0 : i32
    %c0_i32_0 = arith.constant 0 : i32
    %c0_i32_1 = arith.constant 0 : i32
    return %arg0, %c0_i32, %c0_i32_0 : i32, i32, i32
  }
  func.func @transform_1(%arg0: i32) -> (i32, i32, i32) {
    %c0_i32 = arith.constant 0 : i32
    %c0_i32_0 = arith.constant 0 : i32
    %c0_i32_1 = arith.constant 0 : i32
    return %arg0, %c0_i32, %c0_i32_0 : i32, i32, i32
  }
  func.func @transform_2(%arg0: i32) -> (i32, i32) {
    %c0_i32 = arith.constant 0 : i32
    %c0_i32_0 = arith.constant 0 : i32
    %c0_i32_1 = arith.constant 0 : i32
    return %c0_i32, %c0_i32_0 : i32, i32
  }
  func.func @transform_3(%arg0: i32) -> (i32, i32) {
    %c0_i32 = arith.constant 0 : i32
    %c0_i32_0 = arith.constant 0 : i32
    %c0_i32_1 = arith.constant 0 : i32
    return %c0_i32, %c0_i32_0 : i32, i32
  }
  func.func @transform_4(%arg0: i32) -> (i32, i32) {
    %c0_i32 = arith.constant 0 : i32
    %c0_i32_0 = arith.constant 0 : i32
    %c0_i32_1 = arith.constant 0 : i32
    return %c0_i32, %c0_i32_0 : i32, i32
  }
  func.func @transform_5(%arg0: i32) -> (i32, i32) {
    %c0_i32 = arith.constant 0 : i32
    %c0_i32_0 = arith.constant 0 : i32
    %c0_i32_1 = arith.constant 0 : i32
    return %c0_i32, %c0_i32_0 : i32, i32
  }
  func.func @transform_6(%arg0: i32) -> (i32, i32, i32) {
    %c0_i32 = arith.constant 0 : i32
    %c0_i32_0 = arith.constant 0 : i32
    %c0_i32_1 = arith.constant 0 : i32
    return %arg0, %c0_i32, %c0_i32_0 : i32, i32, i32
  }
}

</mosaic_0001>

<llo_original>
// kernel: tpu_custom_call.1
$region0: #{tpu_custom_call.1}
  #allocation0 [shape = 'u32[]', space=smem, size = 0x4, offset = 0x4, fixed_abs, tag = 'smem constant byte address 0x4 - core index']
  #allocation1 [shape = 'u32[144,128]{1,0:T(1,128)}', space=vmem, size = 0x12000, scoped, tag = 'internal scratch']
  %s0 = inlined_call_operand.vmem [shape: f32[2,16,2], index: 0, kind: input, shape index: {}]
  %s1 = inlined_call_operand.vmem [shape: f32[2,16,8], index: 1, kind: input, shape index: {}]
  %s2 = inlined_call_operand.vmem [shape: bf16[160,16], index: 2, kind: input, shape index: {}]
  %s3 = inlined_call_operand.vmem [shape: f32[2,24], index: 3, kind: input, shape index: {}]
  %s4 = inlined_call_operand.vmem [shape: f32[88,16], index: 4, kind: input, shape index: {}]
  %s5 = inlined_call_operand.vmem [shape: f32[56,8], index: 5, kind: input, shape index: {}]
  %s6 = inlined_call_operand.vmem [shape: f32[2,16,8], index: 6, kind: output, shape index: {}]
  %s7 = sld [smem:[#allocation0]]
  $region34: #{tpu_custom_call.1} parent=0
    _
  %s9 = ssub.s32 1, %s7
  %s10 = scalar_select 0, %s9, %s7
  // Predicated region
  $region2: #{tpu_custom_call.1} parent=0 // pred_check
    _
  $region3: #{tpu_custom_call.1} parent=0 // pred_check_branch
    %12 = sbr.rel (0) target = $region5
  $region4: #{tpu_custom_call.1} parent=0 // pred_region
    _
  $region5: #{tpu_custom_call.1} parent=0 // pred_fallthru
    _
  // Predicated region
  $region6: #{tpu_custom_call.1} parent=0 // pred_check
    _
  $region7: #{tpu_custom_call.1} parent=0 // pred_check_branch
    %14 = sbr.rel (0) target = $region9
  $region8: #{tpu_custom_call.1} parent=0 // pred_region
    _
  $region9: #{tpu_custom_call.1} parent=0 // pred_fallthru
    _
  // Predicated region
  $region10: #{tpu_custom_call.1} parent=0 // pred_check
    _
  $region11: #{tpu_custom_call.1} parent=0 // pred_check_branch
    %16 = sbr.rel (0) target = $region13
  $region12: #{tpu_custom_call.1} parent=0 // pred_region
    _
  $region13: #{tpu_custom_call.1} parent=0 // pred_fallthru
    _
  // Predicated region
  $region14: #{tpu_custom_call.1} parent=0 // pred_check
    _
  $region15: #{tpu_custom_call.1} parent=0 // pred_check_branch
    %18 = sbr.rel (0) target = $region17
  $region16: #{tpu_custom_call.1} parent=0 // pred_region
    _
  $region17: #{tpu_custom_call.1} parent=0 // pred_fallthru
    _
  // Predicated region
  $region18: #{tpu_custom_call.1} parent=0 // pred_check
    _
  $region19: #{tpu_custom_call.1} parent=0 // pred_check_branch
    %20 = sbr.rel (0) target = $region21
  $region20: #{tpu_custom_call.1} parent=0 // pred_region
    _
  $region21: #{tpu_custom_call.1} parent=0 // pred_fallthru
    _
  // Predicated region
  $region22: #{tpu_custom_call.1} parent=0 // pred_check
    _
  $region23: #{tpu_custom_call.1} parent=0 // pred_check_branch
    %22 = sbr.rel (0) target = $region25
  $region24: #{tpu_custom_call.1} parent=0 // pred_region
    _
  $region25: #{tpu_custom_call.1} parent=0 // pred_fallthru
    _
  %v24 = vld [vmem:[%s2] sm:$0xf]
  %v25 = vld [vmem:[%s2 + $0x4] sm:$0xf]
  %v26 = vld [vmem:[%s2 + $0x8] sm:$0xf]
  %v27 = vld [vmem:[%s2 + $0xc] sm:$0xf]
  %v28 = vld [vmem:[%s2 + $0x10] sm:$0xf]
  %v29 = vld [vmem:[%s2 + $0x14] sm:$0xf]
  %v30 = vld [vmem:[%s2 + $0x18] sm:$0xf]
  %v31 = vld [vmem:[%s2 + $0x1c] sm:$0xf]
  %v32 = vld [vmem:[%s2 + $0x20] sm:$0xf]
  %v33 = vld [vmem:[%s2 + $0x24] sm:$0xf]
  %v34 = vld [vmem:[%s2 + $0x28] sm:$0xf]
  %v35 = vld [vmem:[%s2 + $0x2c] sm:$0xf]
  %v36 = vld [vmem:[%s2 + $0x30] sm:$0xf]
  %v37 = vld [vmem:[%s2 + $0x34] sm:$0xf]
  %v38 = vld [vmem:[%s2 + $0x38] sm:$0xf]
  %v39 = vld [vmem:[%s2 + $0x3c] sm:$0xf]
  %v40 = vld [vmem:[%s2 + $0x40] sm:$0xf]
  %v41 = vld [vmem:[%s2 + $0x44] sm:$0xf]
  %v42 = vld [vmem:[%s2 + $0x48] sm:$0xf]
  %v43 = vld [vmem:[%s2 + $0x4c] sm:$0xf]
  %v44 = vld [vmem:[%s3] sm:$0x3]
  %v45 = vld [vmem:[%s0] sm:$0xff]
  %v46 = vld [vmem:[%s0 + $0x8] sm:$0xff]
  %v47 = vld [vmem:[%s1] sm:$0xff]
  %v48 = vld [vmem:[%s1 + $0x8] sm:$0xff]
  %vm49 = vcmask 15360
  %v51 = vsel %vm49, %v45, 0
  %v54 = vsel %vm49, %v46, 0
  %vm56 = vcmask 1041408
  %v58 = vsel %vm56, %v44, 0
  %60 = vmatprep.subr.mxu0 0.0
  %61 = vmatpush1.msra.mxu0 %v58
  %62 = vmatprep.subr.mxu0 0.0
  %63 = vmatpush1.msra.mxu0 0.0
  %64 = vmatprep.subr.mxu0 0.0
  %65 = vmatpush1.msra.mxu0 0.0
  %66 = vmatprep.subr.mxu0 0.0
  %67 = vmatpush1.msra.mxu0 0.0
  %68 = vmatprep.subr.mxu0 0.0
  %69 = vmatpush1.msra.mxu0 0.0
  %70 = vmatprep.subr.mxu0 0.0
  %71 = vmatpush1.msra.mxu0 0.0
  %72 = vmatprep.subr.mxu0 0.0
  %73 = vmatpush1.msra.mxu0 0.0
  %74 = vmatprep.subr.mxu0 0.0
  %75 = vmatpush1.msra.mxu0 0.0
  %76 = vmatprep.subr.mxu0 0.0
  %77 = vmatpush1.msra.mxu0 0.0
  %78 = vmatprep.subr.mxu0 0.0
  %79 = vmatpush1.msra.mxu0 0.0
  %80 = vmatprep.subr.mxu0 0.0
  %81 = vmatpush1.msra.mxu0 0.0
  %82 = vmatprep.subr.mxu0 0.0
  %83 = vmatpush1.msra.mxu0 0.0
  %84 = vmatprep.subr.mxu0 0.0
  %85 = vmatpush1.msra.mxu0 0.0
  %86 = vmatprep.subr.mxu0 0.0
  %87 = vmatpush1.msra.mxu0 0.0
  %88 = vmatprep.subr.mxu0 0.0
  %89 = vmatpush1.msra.mxu0 0.0
  %90 = vmatprep.subr.mxu0 0.0
  %91 = vmatpush1.msra.mxu0 0.0
  %92 = vmatprep.subr.mxu0 0.0
  %93 = vmatpush1.msra.mxu0 0.0
  %94 = vmatprep.subr.mxu0 0.0
  %95 = vmatpush1.msra.mxu0 0.0
  %96 = vmatprep.subr.mxu0 0.0
  %97 = vmatpush1.msra.mxu0 0.0
  %98 = vmatprep.subr.mxu0 0.0
  %99 = vmatpush1.msra.mxu0 0.0
  %100 = vmatprep.subr.mxu0 0.0
  %101 = vmatpush1.msra.mxu0 0.0
  %102 = vmatprep.subr.mxu0 0.0
  %103 = vmatpush1.msra.mxu0 0.0
  %104 = vmatprep.subr.mxu0 0.0
  %105 = vmatpush1.msra.mxu0 0.0
  %106 = vmatprep.subr.mxu0 0.0
  %107 = vmatpush1.msra.mxu0 0.0
  %108 = vmatprep.subr.mxu0 0.0
  %109 = vmatpush1.msra.mxu0 0.0
  %110 = vmatprep.subr.mxu0 0.0
  %111 = vmatpush1.msra.mxu0 0.0
  %112 = vmatprep.subr.mxu0 0.0
  %113 = vmatpush1.msra.mxu0 0.0
  %114 = vmatprep.subr.mxu0 0.0
  %115 = vmatpush1.msra.mxu0 0.0
  %116 = vmatprep.subr.mxu0 0.0
  %117 = vmatpush1.msra.mxu0 0.0
  %118 = vmatprep.subr.mxu0 0.0
  %119 = vmatpush1.msra.mxu0 0.0
  %120 = vmatprep.subr.mxu0 0.0
  %121 = vmatpush1.msra.mxu0 0.0
  %122 = vmatprep.subr.mxu0 0.0
  %123 = vmatpush1.msra.mxu0 0.0
  %124 = vmatprep.mubr.f32.mxu0 0.0
  %125 = vmatmul.mubr.f32.gmra.mrb[0].mxu0 %v51
  %v126 = vpop.f32.mrb[0].mxu0
  %v127 = vadd.f32 0.0, %v126
  %v128 = vpop.f32.mrb[0].mxu0
  %129 = vmatprep.mubr.f32.mxu0 0.0
  %130 = vmatmul.mubr.f32.gmra.mrb[0].mxu0 %v54
  %v131 = vpop.f32.mrb[0].mxu0
  %v132 = vadd.f32 0.0, %v131
  %v133 = vpop.f32.mrb[0].mxu0
  %134 = vdwg.mxu0
  %v135 = vld [vmem:[%s4] sm:$0xff]
  %v136 = vld [vmem:[%s4 + $0x8] sm:$0xff]
  %v137 = vld [vmem:[%s4 + $0x10] sm:$0xff]
  %v138 = vld [vmem:[%s4 + $0x18] sm:$0x1]
  %v139 = vld [vmem:[%s4 + $0x20] sm:$0xff]
  %v140 = vld [vmem:[%s4 + $0x28] sm:$0xff]
  %v141 = vld [vmem:[%s4 + $0x30] sm:$0xff]
  %v142 = vld [vmem:[%s4 + $0x38] sm:$0xff]
  %v143 = vld [vmem:[%s4 + $0x40] sm:$0xff]
  %v144 = vld [vmem:[%s4 + $0x48] sm:$0xff]
  %v145 = vld [vmem:[%s4 + $0x50] sm:$0x1]
  %vm146 = vcmask 64512
  %v148 = vsel %vm146, %v47, 0
  %v151 = vsel %vm146, %v48, 0
  %153 = vmatprep.subr.mxu0 0.0
  %154 = vmatpush1.msra.mxu0 %v135
  %155 = vmatprep.subr.mxu0 0.0
  %156 = vmatpush1.msra.mxu0 0.0
  %157 = vmatprep.subr.mxu0 0.0
  %158 = vmatpush1.msra.mxu0 0.0
  %159 = vmatprep.subr.mxu0 0.0
  %160 = vmatpush1.msra.mxu0 0.0
  %161 = vmatprep.subr.mxu0 0.0
  %162 = vmatpush1.msra.mxu0 0.0
  %163 = vmatprep.subr.mxu0 0.0
  %164 = vmatpush1.msra.mxu0 0.0
  %165 = vmatprep.subr.mxu0 0.0
  %166 = vmatpush1.msra.mxu0 0.0
  %167 = vmatprep.subr.mxu0 0.0
  %168 = vmatpush1.msra.mxu0 0.0
  %169 = vmatprep.subr.mxu0 0.0
  %170 = vmatpush1.msra.mxu0 0.0
  %171 = vmatprep.subr.mxu0 0.0
  %172 = vmatpush1.msra.mxu0 0.0
  %173 = vmatprep.subr.mxu0 0.0
  %174 = vmatpush1.msra.mxu0 0.0
  %175 = vmatprep.subr.mxu0 0.0
  %176 = vmatpush1.msra.mxu0 0.0
  %177 = vmatprep.subr.mxu0 0.0
  %178 = vmatpush1.msra.mxu0 0.0
  %179 = vmatprep.subr.mxu0 0.0
  %180 = vmatpush1.msra.mxu0 0.0
  %181 = vmatprep.subr.mxu0 0.0
  %182 = vmatpush1.msra.mxu0 0.0
  %183 = vmatprep.subr.mxu0 0.0
  %184 = vmatpush1.msra.mxu0 0.0
  %185 = vmatprep.subr.mxu0 0.0
  %186 = vmatpush1.msra.mxu0 0.0
  %187 = vmatprep.subr.mxu0 0.0
  %188 = vmatpush1.msra.mxu0 0.0
  %189 = vmatprep.subr.mxu0 0.0
  %190 = vmatpush1.msra.mxu0 0.0
  %191 = vmatprep.subr.mxu0 0.0
  %192 = vmatpush1.msra.mxu0 0.0
  %193 = vmatprep.subr.mxu0 0.0
  %194 = vmatpush1.msra.mxu0 0.0
  %195 = vmatprep.subr.mxu0 0.0
  %196 = vmatpush1.msra.mxu0 0.0
  %197 = vmatprep.subr.mxu0 0.0
  %198 = vmatpush1.msra.mxu0 0.0
  %199 = vmatprep.subr.mxu0 0.0
  %200 = vmatpush1.msra.mxu0 0.0
  %201 = vmatprep.subr.mxu0 0.0
  %202 = vmatpush1.msra.mxu0 0.0
  %203 = vmatprep.subr.mxu0 0.0
  %204 = vmatpush1.msra.mxu0 0.0
  %205 = vmatprep.subr.mxu0 0.0
  %206 = vmatpush1.msra.mxu0 0.0
  %207 = vmatprep.subr.mxu0 0.0
  %208 = vmatpush1.msra.mxu0 0.0
  %209 = vmatprep.subr.mxu0 0.0
  %210 = vmatpush1.msra.mxu0 0.0
  %211 = vmatprep.subr.mxu0 0.0
  %212 = vmatpush1.msra.mxu0 0.0
  %213 = vmatprep.subr.mxu0 0.0
  %214 = vmatpush1.msra.mxu0 0.0
  %215 = vmatprep.subr.mxu0 0.0
  %216 = vmatpush1.msra.mxu0 0.0
  %217 = vmatprep.mubr.f32.mxu0 0.0
  %218 = vmatmul.mubr.f32.gmra.mrb[0].mxu0 %v148
  %v219 = vpop.f32.mrb[0].mxu0
  %v220 = vadd.f32 0.0, %v219
  %v221 = vpop.f32.mrb[0].mxu0
  %222 = vmatprep.mubr.f32.mxu0 0.0
  %223 = vmatmul.mubr.f32.gmra.mrb[0].mxu0 %v151
  %v224 = vpop.f32.mrb[0].mxu0
  %v225 = vadd.f32 0.0, %v224
  %v226 = vpop.f32.mrb[0].mxu0
  %227 = vdwg.mxu0
  %v228 = vadd.f32 %v127, %v220
  %v229 = vadd.f32 %v132, %v225
  %v230 = vpack.c.bf16 %v229, %v228
  %v251 = vunpack.c.l.b16 %v24
  %v252 = vunpack.c.l.b16 %v25
  %v253 = vunpack.c.l.b16 %v26
  %v254 = vunpack.c.l.b16 %v27
  %v255 = vunpack.c.l.b16 %v28
  %v256 = vunpack.c.l.b16 %v29
  %v257 = vunpack.c.l.b16 %v30
  %v258 = vunpack.c.l.b16 %v31
  %v259 = vunpack.c.l.b16 %v32
  %v260 = vunpack.c.l.b16 %v33
  %v261 = vunpack.c.l.b16 %v34
  %v262 = vunpack.c.l.b16 %v35
  %v263 = vunpack.c.l.b16 %v36
  %v264 = vunpack.c.l.b16 %v37
  %v265 = vunpack.c.l.b16 %v38
  %v266 = vunpack.c.l.b16 %v39
  %v267 = vunpack.c.l.b16 %v40
  %v268 = vunpack.c.l.b16 %v41
  %v269 = vunpack.c.l.b16 %v42
  %v270 = vunpack.c.l.b16 %v43
  %v271 = vpack.c.b16 %v252, %v251
  %v272 = vpack.c.b16 %v254, %v253
  %v273 = vpack.c.b16 %v256, %v255
  %v274 = vpack.c.b16 %v258, %v257
  %v275 = vpack.c.b16 %v260, %v259
  %v276 = vpack.c.b16 %v262, %v261
  %v277 = vpack.c.b16 %v264, %v263
  %v278 = vpack.c.b16 %v266, %v265
  %v279 = vpack.c.b16 %v268, %v267
  %v280 = vpack.c.b16 %v270, %v269
  %vm281 = vcmask 130048
  %v283 = vsel %vm281, %v271, 0
  %v286 = vsel %vm281, %v272, 0
  %v289 = vsel %vm281, %v273, 0
  %v292 = vsel %vm281, %v274, 0
  %v295 = vsel %vm281, %v275, 0
  %v298 = vsel %vm281, %v276, 0
  %v301 = vsel %vm281, %v277, 0
  %v304 = vsel %vm281, %v278, 0
  %v307 = vsel %vm281, %v279, 0
  %v310 = vsel %vm281, %v280, 0
  %312 = vmatprep.subr.bf16.mxu0 0
  %313 = vmatpush1.bf16.msra.mxu0 %v230
  %314 = vmatprep.subr.bf16.mxu0 0
  %315 = vmatpush1.bf16.msra.mxu0 0
  %316 = vmatprep.subr.bf16.mxu0 0
  %317 = vmatpush1.bf16.msra.mxu0 0
  %318 = vmatprep.subr.bf16.mxu0 0
  %319 = vmatpush1.bf16.msra.mxu0 0
  %320 = vmatprep.subr.bf16.mxu0 0
  %321 = vmatpush1.bf16.msra.mxu0 0
  %322 = vmatprep.subr.bf16.mxu0 0
  %323 = vmatpush1.bf16.msra.mxu0 0
  %324 = vmatprep.subr.bf16.mxu0 0
  %325 = vmatpush1.bf16.msra.mxu0 0
  %326 = vmatprep.subr.bf16.mxu0 0
  %327 = vmatpush1.bf16.msra.mxu0 0
  %328 = vmatprep.subr.bf16.mxu0 0
  %329 = vmatpush1.bf16.msra.mxu0 0
  %330 = vmatprep.subr.bf16.mxu0 0
  %331 = vmatpush1.bf16.msra.mxu0 0
  %332 = vmatprep.subr.bf16.mxu0 0
  %333 = vmatpush1.bf16.msra.mxu0 0
  %334 = vmatprep.subr.bf16.mxu0 0
  %335 = vmatpush1.bf16.msra.mxu0 0
  %336 = vmatprep.subr.bf16.mxu0 0
  %337 = vmatpush1.bf16.msra.mxu0 0
  %338 = vmatprep.subr.bf16.mxu0 0
  %339 = vmatpush1.bf16.msra.mxu0 0
  %340 = vmatprep.subr.bf16.mxu0 0
  %341 = vmatpush1.bf16.msra.mxu0 0
  %342 = vmatprep.subr.bf16.mxu0 0
  %343 = vmatpush1.bf16.msra.mxu0 0
  %344 = vmatprep.mubr.bf16.mxu0 0
  %345 = vmatmul.mubr.bf16.gmra.mrb[0].mxu0 %v283
  %v346 = vpop.f32.mrb[0].mxu0
  %v347 = vadd.f32 0.0, %v346
  %v348 = vpop.f32.mrb[0].mxu0
  %v349 = vpop.f32.mrb[0].mxu0
  %v350 = vadd.f32 0.0, %v349
  %v351 = vpop.f32.mrb[0].mxu0
  %352 = vmatprep.mubr.bf16.mxu0 0
  %353 = vmatmul.mubr.bf16.gmra.mrb[0].mxu0 %v286
  %v354 = vpop.f32.mrb[0].mxu0
  %v355 = vadd.f32 0.0, %v354
  %v356 = vpop.f32.mrb[0].mxu0
  %v357 = vpop.f32.mrb[0].mxu0
  %v358 = vadd.f32 0.0, %v357
  %v359 = vpop.f32.mrb[0].mxu0
  %360 = vmatprep.mubr.bf16.mxu0 0
  %361 = vmatmul.mubr.bf16.gmra.mrb[0].mxu0 %v289
  %v362 = vpop.f32.mrb[0].mxu0
  %v363 = vadd.f32 0.0, %v362
  %v364 = vpop.f32.mrb[0].mxu0
  %v365 = vpop.f32.mrb[0].mxu0
  %v366 = vadd.f32 0.0, %v365
  %v367 = vpop.f32.mrb[0].mxu0
  %368 = vmatprep.mubr.bf16.mxu0 0
  %369 = vmatmul.mubr.bf16.gmra.mrb[0].mxu0 %v292
  %v370 = vpop.f32.mrb[0].mxu0
  %v371 = vadd.f32 0.0, %v370
  %v372 = vpop.f32.mrb[0].mxu0
  %v373 = vpop.f32.mrb[0].mxu0
  %v374 = vadd.f32 0.0, %v373
  %v375 = vpop.f32.mrb[0].mxu0
  %376 = vmatprep.mubr.bf16.mxu0 0
  %377 = vmatmul.mubr.bf16.gmra.mrb[0].mxu0 %v295
  %v378 = vpop.f32.mrb[0].mxu0
  %v379 = vadd.f32 0.0, %v378
  %v380 = vpop.f32.mrb[0].mxu0
  %v381 = vpop.f32.mrb[0].mxu0
  %v382 = vadd.f32 0.0, %v381
  %v383 = vpop.f32.mrb[0].mxu0
  %384 = vmatprep.mubr.bf16.mxu0 0
  %385 = vmatmul.mubr.bf16.gmra.mrb[0].mxu0 %v298
  %v386 = vpop.f32.mrb[0].mxu0
  %v387 = vadd.f32 0.0, %v386
  %v388 = vpop.f32.mrb[0].mxu0
  %v389 = vpop.f32.mrb[0].mxu0
  %v390 = vadd.f32 0.0, %v389
  %v391 = vpop.f32.mrb[0].mxu0
  %392 = vmatprep.mubr.bf16.mxu0 0
  %393 = vmatmul.mubr.bf16.gmra.mrb[0].mxu0 %v301
  %v394 = vpop.f32.mrb[0].mxu0
  %v395 = vadd.f32 0.0, %v394
  %v396 = vpop.f32.mrb[0].mxu0
  %v397 = vpop.f32.mrb[0].mxu0
  %v398 = vadd.f32 0.0, %v397
  %v399 = vpop.f32.mrb[0].mxu0
  %400 = vmatprep.mubr.bf16.mxu0 0
  %401 = vmatmul.mubr.bf16.gmra.mrb[0].mxu0 %v304
  %v402 = vpop.f32.mrb[0].mxu0
  %v403 = vadd.f32 0.0, %v402
  %v404 = vpop.f32.mrb[0].mxu0
  %v405 = vpop.f32.mrb[0].mxu0
  %v406 = vadd.f32 0.0, %v405
  %v407 = vpop.f32.mrb[0].mxu0
  %408 = vmatprep.mubr.bf16.mxu0 0
  %409 = vmatmul.mubr.bf16.gmra.mrb[0].mxu0 %v307
  %v410 = vpop.f32.mrb[0].mxu0
  %v411 = vadd.f32 0.0, %v410
  %v412 = vpop.f32.mrb[0].mxu0
  %v413 = vpop.f32.mrb[0].mxu0
  %v414 = vadd.f32 0.0, %v413
  %v415 = vpop.f32.mrb[0].mxu0
  %416 = vmatprep.mubr.bf16.mxu0 0
  %417 = vmatmul.mubr.bf16.gmra.mrb[0].mxu0 %v310
  %v418 = vpop.f32.mrb[0].mxu0
  %v419 = vadd.f32 0.0, %v418
  %v420 = vpop.f32.mrb[0].mxu0
  %v421 = vpop.f32.mrb[0].mxu0
  %v422 = vadd.f32 0.0, %v421
  %v423 = vpop.f32.mrb[0].mxu0
  %424 = vdwg.mxu0
  %v425 = vpack.c.bf16 %v350, %v347
  %v426 = vpack.c.bf16 %v358, %v355
  %v427 = vpack.c.bf16 %v366, %v363
  %v428 = vpack.c.bf16 %v374, %v371
  %v429 = vpack.c.bf16 %v382, %v379
  %v430 = vpack.c.bf16 %v390, %v387
  %v431 = vpack.c.bf16 %v398, %v395
  %v432 = vpack.c.bf16 %v406, %v403
  %v433 = vpack.c.bf16 %v414, %v411
  %v434 = vpack.c.bf16 %v422, %v419
  %v435 = vpack.c.bf16 %v137, %v136
  %v437 = vsel %vm281, %v425, 0
  %v440 = vsel %vm281, %v426, 0
  %v443 = vsel %vm281, %v427, 0
  %v446 = vsel %vm281, %v428, 0
  %v449 = vsel %vm281, %v429, 0
  %v452 = vsel %vm281, %v430, 0
  %v455 = vsel %vm281, %v431, 0
  %v458 = vsel %vm281, %v432, 0
  %v461 = vsel %vm281, %v433, 0
  %v464 = vsel %vm281, %v434, 0
  %466 = vmatprep.subr.bf16.mxu0 0
  %467 = vmatpush1.bf16.msra.mxu0 %v435
  %468 = vmatprep.subr.bf16.mxu0 0
  %469 = vmatpush1.bf16.msra.mxu0 0
  %470 = vmatprep.subr.bf16.mxu0 0
  %471 = vmatpush1.bf16.msra.mxu0 0
  %472 = vmatprep.subr.bf16.mxu0 0
  %473 = vmatpush1.bf16.msra.mxu0 0
  %474 = vmatprep.subr.bf16.mxu0 0
  %475 = vmatpush1.bf16.msra.mxu0 0
  %476 = vmatprep.subr.bf16.mxu0 0
  %477 = vmatpush1.bf16.msra.mxu0 0
  %478 = vmatprep.subr.bf16.mxu0 0
  %479 = vmatpush1.bf16.msra.mxu0 0
  %480 = vmatprep.subr.bf16.mxu0 0
  %481 = vmatpush1.bf16.msra.mxu0 0
  %482 = vmatprep.subr.bf16.mxu0 0
  %483 = vmatpush1.bf16.msra.mxu0 0
  %484 = vmatprep.subr.bf16.mxu0 0
  %485 = vmatpush1.bf16.msra.mxu0 0
  %486 = vmatprep.subr.bf16.mxu0 0
  %487 = vmatpush1.bf16.msra.mxu0 0
  %488 = vmatprep.subr.bf16.mxu0 0
  %489 = vmatpush1.bf16.msra.mxu0 0
  %490 = vmatprep.subr.bf16.mxu0 0
  %491 = vmatpush1.bf16.msra.mxu0 0
  %492 = vmatprep.subr.bf16.mxu0 0
  %493 = vmatpush1.bf16.msra.mxu0 0
  %494 = vmatprep.subr.bf16.mxu0 0
  %495 = vmatpush1.bf16.msra.mxu0 0
  %496 = vmatprep.subr.bf16.mxu0 0
  %497 = vmatpush1.bf16.msra.mxu0 0
  %498 = vmatprep.mubr.bf16.mxu0 0
  %499 = vmatmul.mubr.bf16.gmra.mrb[0].mxu0 %v437
  %v500 = vpop.f32.mrb[0].mxu0
  %v501 = vadd.f32 0.0, %v500
  %v502 = vpop.f32.mrb[0].mxu0
  %v503 = vpop.f32.mrb[0].mxu0
  %v504 = vadd.f32 0.0, %v503
  %v505 = vpop.f32.mrb[0].mxu0
  %506 = vmatprep.mubr.bf16.mxu0 0
  %507 = vmatmul.mubr.bf16.gmra.mrb[0].mxu0 %v440
  %v508 = vpop.f32.mrb[0].mxu0
  %v509 = vadd.f32 0.0, %v508
  %v510 = vpop.f32.mrb[0].mxu0
  %v511 = vpop.f32.mrb[0].mxu0
  %v512 = vadd.f32 0.0, %v511
  %v513 = vpop.f32.mrb[0].mxu0
  %514 = vmatprep.mubr.bf16.mxu0 0
  %515 = vmatmul.mubr.bf16.gmra.mrb[0].mxu0 %v443
  %v516 = vpop.f32.mrb[0].mxu0
  %v517 = vadd.f32 0.0, %v516
  %v518 = vpop.f32.mrb[0].mxu0
  %v519 = vpop.f32.mrb[0].mxu0
  %v520 = vadd.f32 0.0, %v519
  %v521 = vpop.f32.mrb[0].mxu0
  %522 = vmatprep.mubr.bf16.mxu0 0
  %523 = vmatmul.mubr.bf16.gmra.mrb[0].mxu0 %v446
  %v524 = vpop.f32.mrb[0].mxu0
  %v525 = vadd.f32 0.0, %v524
  %v526 = vpop.f32.mrb[0].mxu0
  %v527 = vpop.f32.mrb[0].mxu0
  %v528 = vadd.f32 0.0, %v527
  %v529 = vpop.f32.mrb[0].mxu0
  %530 = vmatprep.mubr.bf16.mxu0 0
  %531 = vmatmul.mubr.bf16.gmra.mrb[0].mxu0 %v449
  %v532 = vpop.f32.mrb[0].mxu0
  %v533 = vadd.f32 0.0, %v532
  %v534 = vpop.f32.mrb[0].mxu0
  %v535 = vpop.f32.mrb[0].mxu0
  %v536 = vadd.f32 0.0, %v535
  %v537 = vpop.f32.mrb[0].mxu0
  %538 = vmatprep.mubr.bf16.mxu0 0
  %539 = vmatmul.mubr.bf16.gmra.mrb[0].mxu0 %v452
  %v540 = vpop.f32.mrb[0].mxu0
  %v541 = vadd.f32 0.0, %v540
  %v542 = vpop.f32.mrb[0].mxu0
  %v543 = vpop.f32.mrb[0].mxu0
  %v544 = vadd.f32 0.0, %v543
  %v545 = vpop.f32.mrb[0].mxu0
  %546 = vmatprep.mubr.bf16.mxu0 0
  %547 = vmatmul.mubr.bf16.gmra.mrb[0].mxu0 %v455
  %v548 = vpop.f32.mrb[0].mxu0
  %v549 = vadd.f32 0.0, %v548
  %v550 = vpop.f32.mrb[0].mxu0
  %v551 = vpop.f32.mrb[0].mxu0
  %v552 = vadd.f32 0.0, %v551
  %v553 = vpop.f32.mrb[0].mxu0
  %554 = vmatprep.mubr.bf16.mxu0 0
  %555 = vmatmul.mubr.bf16.gmra.mrb[0].mxu0 %v458
  %v556 = vpop.f32.mrb[0].mxu0
  %v557 = vadd.f32 0.0, %v556
  %v558 = vpop.f32.mrb[0].mxu0
  %v559 = vpop.f32.mrb[0].mxu0
  %v560 = vadd.f32 0.0, %v559
  %v561 = vpop.f32.mrb[0].mxu0
  %562 = vmatprep.mubr.bf16.mxu0 0
  %563 = vmatmul.mubr.bf16.gmra.mrb[0].mxu0 %v461
  %v564 = vpop.f32.mrb[0].mxu0
  %v565 = vadd.f32 0.0, %v564
  %v566 = vpop.f32.mrb[0].mxu0
  %v567 = vpop.f32.mrb[0].mxu0
  %v568 = vadd.f32 0.0, %v567
  %v569 = vpop.f32.mrb[0].mxu0
  %570 = vmatprep.mubr.bf16.mxu0 0
  %571 = vmatmul.mubr.bf16.gmra.mrb[0].mxu0 %v464
  %v572 = vpop.f32.mrb[0].mxu0
  %v573 = vadd.f32 0.0, %v572
  %v574 = vpop.f32.mrb[0].mxu0
  %v575 = vpop.f32.mrb[0].mxu0
  %v576 = vadd.f32 0.0, %v575
  %v577 = vpop.f32.mrb[0].mxu0
  %578 = vdwg.mxu0
  %v579 = vmax.f32 %v501, 0.0
  %v580 = vmax.f32 %v504, 0.0
  %v581 = vmax.f32 %v509, 0.0
  %v582 = vmax.f32 %v512, 0.0
  %v583 = vmax.f32 %v517, 0.0
  %v584 = vmax.f32 %v520, 0.0
  %v585 = vmax.f32 %v525, 0.0
  %v586 = vmax.f32 %v528, 0.0
  %v587 = vmax.f32 %v533, 0.0
  %v588 = vmax.f32 %v536, 0.0
  %v589 = vmax.f32 %v541, 0.0
  %v590 = vmax.f32 %v544, 0.0
  %v591 = vmax.f32 %v549, 0.0
  %v592 = vmax.f32 %v552, 0.0
  %v593 = vmax.f32 %v557, 0.0
  %v594 = vmax.f32 %v560, 0.0
  %v595 = vmax.f32 %v565, 0.0
  %v596 = vmax.f32 %v568, 0.0
  %v597 = vmax.f32 %v573, 0.0
  %v598 = vmax.f32 %v576, 0.0
  %v599 = vlaneseq
  %v600 = vshrl.u32 %v599, 7
  %v601 = vsub.s32 0, %v600
  %v602 = vrot.slane %v138, %v601
  %v603 = vmul.f32 %v579, %v602
  %v604 = vmul.f32 %v580, %v602
  %v605 = vmul.f32 %v581, %v602
  %v606 = vmul.f32 %v582, %v602
  %v607 = vmul.f32 %v583, %v602
  %v608 = vmul.f32 %v584, %v602
  %v609 = vmul.f32 %v585, %v602
  %v610 = vmul.f32 %v586, %v602
  %v611 = vmul.f32 %v587, %v602
  %v612 = vmul.f32 %v588, %v602
  %v613 = vmul.f32 %v589, %v602
  %v614 = vmul.f32 %v590, %v602
  %v615 = vmul.f32 %v591, %v602
  %v616 = vmul.f32 %v592, %v602
  %v617 = vmul.f32 %v593, %v602
  %v618 = vmul.f32 %v594, %v602
  %v619 = vmul.f32 %v595, %v602
  %v620 = vmul.f32 %v596, %v602
  %v621 = vmul.f32 %v597, %v602
  %v622 = vmul.f32 %v598, %v602
  %v623 = vsel %vm281, %v603, 0.0
  %624 = vadd.xlane.f32.xlu0 %v623
  %v625 = vpop.xlane.xlu0 %624
  %v626 = vsel %vm281, %v604, 0.0
  %627 = vadd.xlane.f32.xlu0 %v626
  %v628 = vpop.xlane.xlu0 %627
  %v629 = vsel %vm281, %v605, 0.0
  %630 = vadd.xlane.f32.xlu0 %v629
  %v631 = vpop.xlane.xlu0 %630
  %v632 = vsel %vm281, %v606, 0.0
  %633 = vadd.xlane.f32.xlu0 %v632
  %v634 = vpop.xlane.xlu0 %633
  %v635 = vsel %vm281, %v607, 0.0
  %636 = vadd.xlane.f32.xlu0 %v635
  %v637 = vpop.xlane.xlu0 %636
  %v638 = vsel %vm281, %v608, 0.0
  %639 = vadd.xlane.f32.xlu0 %v638
  %v640 = vpop.xlane.xlu0 %639
  %v641 = vsel %vm281, %v609, 0.0
  %642 = vadd.xlane.f32.xlu0 %v641
  %v643 = vpop.xlane.xlu0 %642
  %v644 = vsel %vm281, %v610, 0.0
  %645 = vadd.xlane.f32.xlu0 %v644
  %v646 = vpop.xlane.xlu0 %645
  %v647 = vsel %vm281, %v611, 0.0
  %648 = vadd.xlane.f32.xlu0 %v647
  %v649 = vpop.xlane.xlu0 %648
  %v650 = vsel %vm281, %v612, 0.0
  %651 = vadd.xlane.f32.xlu0 %v650
  %v652 = vpop.xlane.xlu0 %651
  %v653 = vsel %vm281, %v613, 0.0
  %654 = vadd.xlane.f32.xlu0 %v653
  %v655 = vpop.xlane.xlu0 %654
  %v656 = vsel %vm281, %v614, 0.0
  %657 = vadd.xlane.f32.xlu0 %v656
  %v658 = vpop.xlane.xlu0 %657
  %v659 = vsel %vm281, %v615, 0.0
  %660 = vadd.xlane.f32.xlu0 %v659
  %v661 = vpop.xlane.xlu0 %660
  %v662 = vsel %vm281, %v616, 0.0
  %663 = vadd.xlane.f32.xlu0 %v662
  %v664 = vpop.xlane.xlu0 %663
  %v665 = vsel %vm281, %v617, 0.0
  %666 = vadd.xlane.f32.xlu0 %v665
  %v667 = vpop.xlane.xlu0 %666
  %v668 = vsel %vm281, %v618, 0.0
  %669 = vadd.xlane.f32.xlu0 %v668
  %v670 = vpop.xlane.xlu0 %669
  %v671 = vsel %vm281, %v619, 0.0
  %672 = vadd.xlane.f32.xlu0 %v671
  %v673 = vpop.xlane.xlu0 %672
  %v674 = vsel %vm281, %v620, 0.0
  %675 = vadd.xlane.f32.xlu0 %v674
  %v676 = vpop.xlane.xlu0 %675
  %v677 = vsel %vm281, %v621, 0.0
  %678 = vadd.xlane.f32.xlu0 %v677
  %v679 = vpop.xlane.xlu0 %678
  %v680 = vsel %vm281, %v622, 0.0
  %681 = vadd.xlane.f32.xlu0 %v680
  %v682 = vpop.xlane.xlu0 %681
  %v683 = vmax.f32 %v625, %v631
  %v684 = vmax.f32 %v628, %v634
  %v685 = vmax.f32 %v683, %v637
  %v686 = vmax.f32 %v684, %v640
  %v687 = vmax.f32 %v685, %v643
  %v688 = vmax.f32 %v686, %v646
  %v689 = vmax.f32 %v687, %v649
  %v690 = vmax.f32 %v688, %v652
  %v691 = vsub.f32 %v625, %v689
  %v692 = vsub.f32 %v628, %v690
  %v693 = vmul.f32 %v691, 1.442695
  %v694 = vpow.pop %v693
  %v695 = vmul.f32 %v692, 1.442695
  %v696 = vpow.pop %v695
  %v697 = vsub.f32 %v631, %v689
  %v698 = vsub.f32 %v634, %v690
  %v699 = vmul.f32 %v697, 1.442695
  %v700 = vpow.pop %v699
  %v701 = vmul.f32 %v698, 1.442695
  %v702 = vpow.pop %v701
  %v703 = vsub.f32 %v637, %v689
  %v704 = vsub.f32 %v640, %v690
  %v705 = vmul.f32 %v703, 1.442695
  %v706 = vpow.pop %v705
  %v707 = vmul.f32 %v704, 1.442695
  %v708 = vpow.pop %v707
  %v709 = vsub.f32 %v643, %v689
  %v710 = vsub.f32 %v646, %v690
  %v711 = vmul.f32 %v709, 1.442695
  %v712 = vpow.pop %v711
  %v713 = vmul.f32 %v710, 1.442695
  %v714 = vpow.pop %v713
  %v715 = vsub.f32 %v649, %v689
  %v716 = vsub.f32 %v652, %v690
  %v717 = vmul.f32 %v715, 1.442695
  %v718 = vpow.pop %v717
  %v719 = vmul.f32 %v716, 1.442695
  %v720 = vpow.pop %v719
  %v721 = vadd.f32 %v694, %v700
  %v722 = vadd.f32 %v696, %v702
  %v723 = vadd.f32 %v721, %v706
  %v724 = vadd.f32 %v722, %v708
  %v725 = vadd.f32 %v723, %v712
  %v726 = vadd.f32 %v724, %v714
  %v727 = vadd.f32 %v725, %v718
  %v728 = vadd.f32 %v726, %v720
  %v729 = vrcp.pop %v727
  %v730 = vmul.f32 1.0, %v729
  %v731 = vrcp.pop %v728
  %v732 = vmul.f32 1.0, %v731
  %v733 = vmul.f32 %v694, %v730
  %v734 = vmul.f32 %v696, %v732
  %v735 = vmul.f32 %v733, %v347
  %v736 = vmul.f32 %v734, %v350
  %v737 = vmul.f32 %v700, %v730
  %v738 = vmul.f32 %v702, %v732
  %v739 = vmul.f32 %v737, %v355
  %v740 = vmul.f32 %v738, %v358
  %v741 = vadd.f32 %v735, %v739
  %v742 = vadd.f32 %v736, %v740
  %v743 = vmul.f32 %v706, %v730
  %v744 = vmul.f32 %v708, %v732
  %v745 = vmul.f32 %v743, %v363
  %v746 = vmul.f32 %v744, %v366
  %v747 = vadd.f32 %v741, %v745
  %v748 = vadd.f32 %v742, %v746
  %v749 = vmul.f32 %v712, %v730
  %v750 = vmul.f32 %v714, %v732
  %v751 = vmul.f32 %v749, %v371
  %v752 = vmul.f32 %v750, %v374
  %v753 = vadd.f32 %v747, %v751
  %v754 = vadd.f32 %v748, %v752
  %v755 = vmul.f32 %v718, %v730
  %v756 = vmul.f32 %v720, %v732
  %v757 = vmul.f32 %v755, %v379
  %v758 = vmul.f32 %v756, %v382
  %v759 = vadd.f32 %v753, %v757
  %v760 = vadd.f32 %v754, %v758
  %v761 = vmax.f32 %v655, %v661
  %v762 = vmax.f32 %v658, %v664
  %v763 = vmax.f32 %v761, %v667
  %v764 = vmax.f32 %v762, %v670
  %v765 = vmax.f32 %v763, %v673
  %v766 = vmax.f32 %v764, %v676
  %v767 = vmax.f32 %v765, %v679
  %v768 = vmax.f32 %v766, %v682
  %v769 = vsub.f32 %v655, %v767
  %v770 = vsub.f32 %v658, %v768
  %v771 = vmul.f32 %v769, 1.442695
  %v772 = vpow.pop %v771
  %v773 = vmul.f32 %v770, 1.442695
  %v774 = vpow.pop %v773
  %v775 = vsub.f32 %v661, %v767
  %v776 = vsub.f32 %v664, %v768
  %v777 = vmul.f32 %v775, 1.442695
  %v778 = vpow.pop %v777
  %v779 = vmul.f32 %v776, 1.442695
  %v780 = vpow.pop %v779
  %v781 = vsub.f32 %v667, %v767
  %v782 = vsub.f32 %v670, %v768
  %v783 = vmul.f32 %v781, 1.442695
  %v784 = vpow.pop %v783
  %v785 = vmul.f32 %v782, 1.442695
  %v786 = vpow.pop %v785
  %v787 = vsub.f32 %v673, %v767
  %v788 = vsub.f32 %v676, %v768
  %v789 = vmul.f32 %v787, 1.442695
  %v790 = vpow.pop %v789
  %v791 = vmul.f32 %v788, 1.442695
  %v792 = vpow.pop %v791
  %v793 = vsub.f32 %v679, %v767
  %v794 = vsub.f32 %v682, %v768
  %v795 = vmul.f32 %v793, 1.442695
  %v796 = vpow.pop %v795
  %v797 = vmul.f32 %v794, 1.442695
  %v798 = vpow.pop %v797
  %v799 = vadd.f32 %v772, %v778
  %v800 = vadd.f32 %v774, %v780
  %v801 = vadd.f32 %v799, %v784
  %v802 = vadd.f32 %v800, %v786
  %v803 = vadd.f32 %v801, %v790
  %v804 = vadd.f32 %v802, %v792
  %v805 = vadd.f32 %v803, %v796
  %v806 = vadd.f32 %v804, %v798
  %v807 = vrcp.pop %v805
  %v808 = vmul.f32 1.0, %v807
  %v809 = vrcp.pop %v806
  %v810 = vmul.f32 1.0, %v809
  %v811 = vmul.f32 %v772, %v808
  %v812 = vmul.f32 %v774, %v810
  %v813 = vmul.f32 %v811, %v387
  %v814 = vmul.f32 %v812, %v390
  %v815 = vmul.f32 %v778, %v808
  %v816 = vmul.f32 %v780, %v810
  %v817 = vmul.f32 %v815, %v395
  %v818 = vmul.f32 %v816, %v398
  %v819 = vadd.f32 %v813, %v817
  %v820 = vadd.f32 %v814, %v818
  %v821 = vmul.f32 %v784, %v808
  %v822 = vmul.f32 %v786, %v810
  %v823 = vmul.f32 %v821, %v403
  %v824 = vmul.f32 %v822, %v406
  %v825 = vadd.f32 %v819, %v823
  %v826 = vadd.f32 %v820, %v824
  %v827 = vmul.f32 %v790, %v808
  %v828 = vmul.f32 %v792, %v810
  %v829 = vmul.f32 %v827, %v411
  %v830 = vmul.f32 %v828, %v414
  %v831 = vadd.f32 %v825, %v829
  %v832 = vadd.f32 %v826, %v830
  %v833 = vmul.f32 %v796, %v808
  %v834 = vmul.f32 %v798, %v810
  %v835 = vmul.f32 %v833, %v419
  %v836 = vmul.f32 %v834, %v422
  %v837 = vadd.f32 %v831, %v835
  %v838 = vadd.f32 %v832, %v836
  %841 = vrot.lane.b32.xlu0 %v837, 16
  %v842 = vpop.permute.xlu0 %841
  %843 = vrot.lane.b32.xlu0 %v838, 16
  %v844 = vpop.permute.xlu0 %843
  %849 = vrot.lane.b32.xlu0 %v228, 32
  %v850 = vpop.permute.xlu0 %849
  %851 = vrot.lane.b32.xlu0 %v229, 32
  %v852 = vpop.permute.xlu0 %851
  %v855 = vsel %vm281, %v759, %v842
  %v856 = vsel %vm281, %v760, %v844
  %vm857 = vcmask 261120
  %v858 = vsel %vm857, %v855, %v850
  %v859 = vsel %vm857, %v856, %v852
  %v860 = vpack.c.bf16 %v859, %v858
  %v861 = vpack.c.bf16 %v140, %v139
  %v862 = vpack.c.bf16 %v142, %v141
  %v863 = vpack.c.bf16 %v144, %v143
  %v864 = vlaneseq
  %v865 = vshrl.u32 %v864, 7
  %v866 = vsub.s32 0, %v865
  %v867 = vrot.slane %v145, %v866
  %vm868 = vcmask 392192
  %v870 = vsel %vm868, %v860, 0
  %872 = vmatprep.subr.bf16.mxu0 0
  %873 = vmatpush1.bf16.msra.mxu0 %v861
  %874 = vmatprep.subr.bf16.mxu0 0
  %875 = vmatpush1.bf16.msra.mxu0 %v862
  %876 = vmatprep.subr.bf16.mxu0 0
  %877 = vmatpush1.bf16.msra.mxu0 %v863
  %878 = vmatprep.subr.bf16.mxu0 0
  %879 = vmatpush1.bf16.msra.mxu0 0
  %880 = vmatprep.subr.bf16.mxu0 0
  %881 = vmatpush1.bf16.msra.mxu0 0
  %882 = vmatprep.subr.bf16.mxu0 0
  %883 = vmatpush1.bf16.msra.mxu0 0
  %884 = vmatprep.subr.bf16.mxu0 0
  %885 = vmatpush1.bf16.msra.mxu0 0
  %886 = vmatprep.subr.bf16.mxu0 0
  %887 = vmatpush1.bf16.msra.mxu0 0
  %888 = vmatprep.subr.bf16.mxu0 0
  %889 = vmatpush1.bf16.msra.mxu0 0
  %890 = vmatprep.subr.bf16.mxu0 0
  %891 = vmatpush1.bf16.msra.mxu0 0
  %892 = vmatprep.subr.bf16.mxu0 0
  %893 = vmatpush1.bf16.msra.mxu0 0
  %894 = vmatprep.subr.bf16.mxu0 0
  %895 = vmatpush1.bf16.msra.mxu0 0
  %896 = vmatprep.subr.bf16.mxu0 0
  %897 = vmatpush1.bf16.msra.mxu0 0
  %898 = vmatprep.subr.bf16.mxu0 0
  %899 = vmatpush1.bf16.msra.mxu0 0
  %900 = vmatprep.subr.bf16.mxu0 0
  %901 = vmatpush1.bf16.msra.mxu0 0
  %902 = vmatprep.subr.bf16.mxu0 0
  %903 = vmatpush1.bf16.msra.mxu0 0
  %904 = vmatprep.mubr.bf16.mxu0 0
  %905 = vmatmul.mubr.bf16.gmra.mrb[0].mxu0 %v870
  %v906 = vpop.f32.mrb[0].mxu0
  %v907 = vadd.f32 %v867, %v906
  %v908 = vpop.f32.mrb[0].mxu0
  %v909 = vpop.f32.mrb[0].mxu0
  %v910 = vadd.f32 %v867, %v909
  %v911 = vpop.f32.mrb[0].mxu0
  %912 = vdwg.mxu0
  %v913 = vxor.u32 %v907, 2147483648
  %v914 = vxor.u32 %v910, 2147483648
  %v915 = vmul.f32 %v913, 1.442695
  %v916 = vpow.pop %v915
  %v917 = vmul.f32 %v914, 1.442695
  %v918 = vpow.pop %v917
  %v919 = vadd.f32 %v916, 1.0
  %v920 = vadd.f32 %v918, 1.0
  %v921 = vrcp.pop %v919
  %v922 = vmul.f32 1.0, %v921
  %v923 = vrcp.pop %v920
  %v924 = vmul.f32 1.0, %v923
  %v925 = vmul.f32 %v922, %v47
  %v926 = vmul.f32 %v924, %v48
  %v927 = vld [vmem:[%s5] sm:$0xff]
  %v928 = vld [vmem:[%s5 + $0x8] sm:$0xff]
  %v929 = vld [vmem:[%s5 + $0x10] sm:$0x1]
  %v930 = vld [vmem:[%s5 + $0x18] sm:$0xff]
  %v931 = vld [vmem:[%s5 + $0x20] sm:$0xff]
  %v932 = vld [vmem:[%s5 + $0x28] sm:$0xff]
  %v933 = vld [vmem:[%s5 + $0x30] sm:$0x1]
  %v935 = vsel %vm146, %v925, 0
  %v938 = vsel %vm146, %v926, 0
  %940 = vmatprep.subr.mxu0 0.0
  %941 = vmatpush1.msra.mxu0 %v927
  %942 = vmatprep.subr.mxu0 0.0
  %943 = vmatpush1.msra.mxu0 0.0
  %944 = vmatprep.subr.mxu0 0.0
  %945 = vmatpush1.msra.mxu0 0.0
  %946 = vmatprep.subr.mxu0 0.0
  %947 = vmatpush1.msra.mxu0 0.0
  %948 = vmatprep.subr.mxu0 0.0
  %949 = vmatpush1.msra.mxu0 0.0
  %950 = vmatprep.subr.mxu0 0.0
  %951 = vmatpush1.msra.mxu0 0.0
  %952 = vmatprep.subr.mxu0 0.0
  %953 = vmatpush1.msra.mxu0 0.0
  %954 = vmatprep.subr.mxu0 0.0
  %955 = vmatpush1.msra.mxu0 0.0
  %956 = vmatprep.subr.mxu0 0.0
  %957 = vmatpush1.msra.mxu0 0.0
  %958 = vmatprep.subr.mxu0 0.0
  %959 = vmatpush1.msra.mxu0 0.0
  %960 = vmatprep.subr.mxu0 0.0
  %961 = vmatpush1.msra.mxu0 0.0
  %962 = vmatprep.subr.mxu0 0.0
  %963 = vmatpush1.msra.mxu0 0.0
  %964 = vmatprep.subr.mxu0 0.0
  %965 = vmatpush1.msra.mxu0 0.0
  %966 = vmatprep.subr.mxu0 0.0
  %967 = vmatpush1.msra.mxu0 0.0
  %968 = vmatprep.subr.mxu0 0.0
  %969 = vmatpush1.msra.mxu0 0.0
  %970 = vmatprep.subr.mxu0 0.0
  %971 = vmatpush1.msra.mxu0 0.0
  %972 = vmatprep.subr.mxu0 0.0
  %973 = vmatpush1.msra.mxu0 0.0
  %974 = vmatprep.subr.mxu0 0.0
  %975 = vmatpush1.msra.mxu0 0.0
  %976 = vmatprep.subr.mxu0 0.0
  %977 = vmatpush1.msra.mxu0 0.0
  %978 = vmatprep.subr.mxu0 0.0
  %979 = vmatpush1.msra.mxu0 0.0
  %980 = vmatprep.subr.mxu0 0.0
  %981 = vmatpush1.msra.mxu0 0.0
  %982 = vmatprep.subr.mxu0 0.0
  %983 = vmatpush1.msra.mxu0 0.0
  %984 = vmatprep.subr.mxu0 0.0
  %985 = vmatpush1.msra.mxu0 0.0
  %986 = vmatprep.subr.mxu0 0.0
  %987 = vmatpush1.msra.mxu0 0.0
  %988 = vmatprep.subr.mxu0 0.0
  %989 = vmatpush1.msra.mxu0 0.0
  %990 = vmatprep.subr.mxu0 0.0
  %991 = vmatpush1.msra.mxu0 0.0
  %992 = vmatprep.subr.mxu0 0.0
  %993 = vmatpush1.msra.mxu0 0.0
  %994 = vmatprep.subr.mxu0 0.0
  %995 = vmatpush1.msra.mxu0 0.0
  %996 = vmatprep.subr.mxu0 0.0
  %997 = vmatpush1.msra.mxu0 0.0
  %998 = vmatprep.subr.mxu0 0.0
  %999 = vmatpush1.msra.mxu0 0.0
  %1000 = vmatprep.subr.mxu0 0.0
  %1001 = vmatpush1.msra.mxu0 0.0
  %1002 = vmatprep.subr.mxu0 0.0
  %1003 = vmatpush1.msra.mxu0 0.0
  %1004 = vmatprep.mubr.f32.mxu0 0.0
  %1005 = vmatmul.mubr.f32.gmra.mrb[0].mxu0 %v935
  %v1006 = vpop.f32.mrb[0].mxu0
  %v1007 = vadd.f32 0.0, %v1006
  %v1008 = vpop.f32.mrb[0].mxu0
  %1009 = vmatprep.mubr.f32.mxu0 0.0
  %1010 = vmatmul.mubr.f32.gmra.mrb[0].mxu0 %v938
  %v1011 = vpop.f32.mrb[0].mxu0
  %v1012 = vadd.f32 0.0, %v1011
  %v1013 = vpop.f32.mrb[0].mxu0
  %1014 = vdwg.mxu0
  %1017 = vrot.lane.b32.xlu0 %v1007, 16
  %v1018 = vpop.permute.xlu0 %1017
  %1019 = vrot.lane.b32.xlu0 %v1012, 16
  %v1020 = vpop.permute.xlu0 %1019
  %v1023 = vadd.f32 %v127, %v1018
  %v1024 = vadd.f32 %v132, %v1020
  %v1025 = vpack.c.bf16 %v1024, %v1023
  %1027 = vrot.lane.b32.xlu0 %v1025, 112
  %v1028 = vpop.permute.xlu0 %1027
  %1030 = vmatprep.subr.bf16.mxu0 0
  %1031 = vmatpush1.bf16.msra.mxu0 %v1028
  %1032 = vmatprep.subr.bf16.mxu0 0
  %1033 = vmatpush1.bf16.msra.mxu0 0
  %1034 = vmatprep.subr.bf16.mxu0 0
  %1035 = vmatpush1.bf16.msra.mxu0 0
  %1036 = vmatprep.subr.bf16.mxu0 0
  %1037 = vmatpush1.bf16.msra.mxu0 0
  %1038 = vmatprep.subr.bf16.mxu0 0
  %1039 = vmatpush1.bf16.msra.mxu0 0
  %1040 = vmatprep.subr.bf16.mxu0 0
  %1041 = vmatpush1.bf16.msra.mxu0 0
  %1042 = vmatprep.subr.bf16.mxu0 0
  %1043 = vmatpush1.bf16.msra.mxu0 0
  %1044 = vmatprep.subr.bf16.mxu0 0
  %1045 = vmatpush1.bf16.msra.mxu0 0
  %1046 = vmatprep.subr.bf16.mxu0 0
  %1047 = vmatpush1.bf16.msra.mxu0 0
  %1048 = vmatprep.subr.bf16.mxu0 0
  %1049 = vmatpush1.bf16.msra.mxu0 0
  %1050 = vmatprep.subr.bf16.mxu0 0
  %1051 = vmatpush1.bf16.msra.mxu0 0
  %1052 = vmatprep.subr.bf16.mxu0 0
  %1053 = vmatpush1.bf16.msra.mxu0 0
  %1054 = vmatprep.subr.bf16.mxu0 0
  %1055 = vmatpush1.bf16.msra.mxu0 0
  %1056 = vmatprep.subr.bf16.mxu0 0
  %1057 = vmatpush1.bf16.msra.mxu0 0
  %1058 = vmatprep.subr.bf16.mxu0 0
  %1059 = vmatpush1.bf16.msra.mxu0 0
  %1060 = vmatprep.subr.bf16.mxu0 0
  %1061 = vmatpush1.bf16.msra.mxu0 0
  %1062 = vmatprep.mubr.bf16.mxu0 0
  %1063 = vmatmul.mubr.bf16.gmra.mrb[0].mxu0 %v283
  %v1064 = vpop.f32.mrb[0].mxu0
  %v1065 = vadd.f32 0.0, %v1064
  %v1066 = vpop.f32.mrb[0].mxu0
  %v1067 = vpop.f32.mrb[0].mxu0
  %v1068 = vadd.f32 0.0, %v1067
  %v1069 = vpop.f32.mrb[0].mxu0
  %1070 = vmatprep.mubr.bf16.mxu0 0
  %1071 = vmatmul.mubr.bf16.gmra.mrb[0].mxu0 %v286
  %v1072 = vpop.f32.mrb[0].mxu0
  %v1073 = vadd.f32 0.0, %v1072
  %v1074 = vpop.f32.mrb[0].mxu0
  %v1075 = vpop.f32.mrb[0].mxu0
  %v1076 = vadd.f32 0.0, %v1075
  %v1077 = vpop.f32.mrb[0].mxu0
  %1078 = vmatprep.mubr.bf16.mxu0 0
  %1079 = vmatmul.mubr.bf16.gmra.mrb[0].mxu0 %v289
  %v1080 = vpop.f32.mrb[0].mxu0
  %v1081 = vadd.f32 0.0, %v1080
  %v1082 = vpop.f32.mrb[0].mxu0
  %v1083 = vpop.f32.mrb[0].mxu0
  %v1084 = vadd.f32 0.0, %v1083
  %v1085 = vpop.f32.mrb[0].mxu0
  %1086 = vmatprep.mubr.bf16.mxu0 0
  %1087 = vmatmul.mubr.bf16.gmra.mrb[0].mxu0 %v292
  %v1088 = vpop.f32.mrb[0].mxu0
  %v1089 = vadd.f32 0.0, %v1088
  %v1090 = vpop.f32.mrb[0].mxu0
  %v1091 = vpop.f32.mrb[0].mxu0
  %v1092 = vadd.f32 0.0, %v1091
  %v1093 = vpop.f32.mrb[0].mxu0
  %1094 = vmatprep.mubr.bf16.mxu0 0
  %1095 = vmatmul.mubr.bf16.gmra.mrb[0].mxu0 %v295
  %v1096 = vpop.f32.mrb[0].mxu0
  %v1097 = vadd.f32 0.0, %v1096
  %v1098 = vpop.f32.mrb[0].mxu0
  %v1099 = vpop.f32.mrb[0].mxu0
  %v1100 = vadd.f32 0.0, %v1099
  %v1101 = vpop.f32.mrb[0].mxu0
  %1102 = vmatprep.mubr.bf16.mxu0 0
  %1103 = vmatmul.mubr.bf16.gmra.mrb[0].mxu0 %v298
  %v1104 = vpop.f32.mrb[0].mxu0
  %v1105 = vadd.f32 0.0, %v1104
  %v1106 = vpop.f32.mrb[0].mxu0
  %v1107 = vpop.f32.mrb[0].mxu0
  %v1108 = vadd.f32 0.0, %v1107
  %v1109 = vpop.f32.mrb[0].mxu0
  %1110 = vmatprep.mubr.bf16.mxu0 0
  %1111 = vmatmul.mubr.bf16.gmra.mrb[0].mxu0 %v301
  %v1112 = vpop.f32.mrb[0].mxu0
  %v1113 = vadd.f32 0.0, %v1112
  %v1114 = vpop.f32.mrb[0].mxu0
  %v1115 = vpop.f32.mrb[0].mxu0
  %v1116 = vadd.f32 0.0, %v1115
  %v1117 = vpop.f32.mrb[0].mxu0
  %1118 = vmatprep.mubr.bf16.mxu0 0
  %1119 = vmatmul.mubr.bf16.gmra.mrb[0].mxu0 %v304
  %v1120 = vpop.f32.mrb[0].mxu0
  %v1121 = vadd.f32 0.0, %v1120
  %v1122 = vpop.f32.mrb[0].mxu0
  %v1123 = vpop.f32.mrb[0].mxu0
  %v1124 = vadd.f32 0.0, %v1123
  %v1125 = vpop.f32.mrb[0].mxu0
  %1126 = vmatprep.mubr.bf16.mxu0 0
  %1127 = vmatmul.mubr.bf16.gmra.mrb[0].mxu0 %v307
  %v1128 = vpop.f32.mrb[0].mxu0
  %v1129 = vadd.f32 0.0, %v1128
  %v1130 = vpop.f32.mrb[0].mxu0
  %v1131 = vpop.f32.mrb[0].mxu0
  %v1132 = vadd.f32 0.0, %v1131
  %v1133 = vpop.f32.mrb[0].mxu0
  %1134 = vmatprep.mubr.bf16.mxu0 0
  %1135 = vmatmul.mubr.bf16.gmra.mrb[0].mxu0 %v310
  %v1136 = vpop.f32.mrb[0].mxu0
  %v1137 = vadd.f32 0.0, %v1136
  %v1138 = vpop.f32.mrb[0].mxu0
  %v1139 = vpop.f32.mrb[0].mxu0
  %v1140 = vadd.f32 0.0, %v1139
  %v1141 = vpop.f32.mrb[0].mxu0
  %1142 = vdwg.mxu0
  %v1143 = vpack.c.bf16 %v1068, %v1065
  %v1144 = vpack.c.bf16 %v1076, %v1073
  %v1145 = vpack.c.bf16 %v1084, %v1081
  %v1146 = vpack.c.bf16 %v1092, %v1089
  %v1147 = vpack.c.bf16 %v1100, %v1097
  %v1148 = vpack.c.bf16 %v1108, %v1105
  %v1149 = vpack.c.bf16 %v1116, %v1113
  %v1150 = vpack.c.bf16 %v1124, %v1121
  %v1151 = vpack.c.bf16 %v1132, %v1129
  %v1152 = vpack.c.bf16 %v1140, %v1137
  %v1153 = vpack.c.bf16 %v928, %v928
  %v1155 = vsel %vm146, %v1143, 0
  %v1158 = vsel %vm146, %v1144, 0
  %v1161 = vsel %vm146, %v1145, 0
  %v1164 = vsel %vm146, %v1146, 0
  %v1167 = vsel %vm146, %v1147, 0
  %v1170 = vsel %vm146, %v1148, 0
  %v1173 = vsel %vm146, %v1149, 0
  %v1176 = vsel %vm146, %v1150, 0
  %v1179 = vsel %vm146, %v1151, 0
  %v1182 = vsel %vm146, %v1152, 0
  %vm1184 = vcmask 1043456
  %v1186 = vsel %vm1184, %v1153, 0
  %1188 = vmatprep.subr.bf16.mxu0 0
  %1189 = vmatpush1.bf16.msra.mxu0 %v1186
  %1190 = vmatprep.subr.bf16.mxu0 0
  %1191 = vmatpush1.bf16.msra.mxu0 0
  %1192 = vmatprep.subr.bf16.mxu0 0
  %1193 = vmatpush1.bf16.msra.mxu0 0
  %1194 = vmatprep.subr.bf16.mxu0 0
  %1195 = vmatpush1.bf16.msra.mxu0 0
  %1196 = vmatprep.subr.bf16.mxu0 0
  %1197 = vmatpush1.bf16.msra.mxu0 0
  %1198 = vmatprep.subr.bf16.mxu0 0
  %1199 = vmatpush1.bf16.msra.mxu0 0
  %1200 = vmatprep.subr.bf16.mxu0 0
  %1201 = vmatpush1.bf16.msra.mxu0 0
  %1202 = vmatprep.subr.bf16.mxu0 0
  %1203 = vmatpush1.bf16.msra.mxu0 0
  %1204 = vmatprep.subr.bf16.mxu0 0
  %1205 = vmatpush1.bf16.msra.mxu0 0
  %1206 = vmatprep.subr.bf16.mxu0 0
  %1207 = vmatpush1.bf16.msra.mxu0 0
  %1208 = vmatprep.subr.bf16.mxu0 0
  %1209 = vmatpush1.bf16.msra.mxu0 0
  %1210 = vmatprep.subr.bf16.mxu0 0
  %1211 = vmatpush1.bf16.msra.mxu0 0
  %1212 = vmatprep.subr.bf16.mxu0 0
  %1213 = vmatpush1.bf16.msra.mxu0 0
  %1214 = vmatprep.subr.bf16.mxu0 0
  %1215 = vmatpush1.bf16.msra.mxu0 0
  %1216 = vmatprep.subr.bf16.mxu0 0
  %1217 = vmatpush1.bf16.msra.mxu0 0
  %1218 = vmatprep.subr.bf16.mxu0 0
  %1219 = vmatpush1.bf16.msra.mxu0 0
  %1220 = vmatprep.mubr.bf16.mxu0 0
  %1221 = vmatmul.mubr.bf16.gmra.mrb[0].mxu0 %v1155
  %v1222 = vpop.f32.mrb[0].mxu0
  %v1223 = vadd.f32 0.0, %v1222
  %v1224 = vpop.f32.mrb[0].mxu0
  %v1225 = vpop.f32.mrb[0].mxu0
  %v1226 = vadd.f32 0.0, %v1225
  %v1227 = vpop.f32.mrb[0].mxu0
  %1228 = vmatprep.mubr.bf16.mxu0 0
  %1229 = vmatmul.mubr.bf16.gmra.mrb[0].mxu0 %v1158
  %v1230 = vpop.f32.mrb[0].mxu0
  %v1231 = vadd.f32 0.0, %v1230
  %v1232 = vpop.f32.mrb[0].mxu0
  %v1233 = vpop.f32.mrb[0].mxu0
  %v1234 = vadd.f32 0.0, %v1233
  %v1235 = vpop.f32.mrb[0].mxu0
  %1236 = vmatprep.mubr.bf16.mxu0 0
  %1237 = vmatmul.mubr.bf16.gmra.mrb[0].mxu0 %v1161
  %v1238 = vpop.f32.mrb[0].mxu0
  %v1239 = vadd.f32 0.0, %v1238
  %v1240 = vpop.f32.mrb[0].mxu0
  %v1241 = vpop.f32.mrb[0].mxu0
  %v1242 = vadd.f32 0.0, %v1241
  %v1243 = vpop.f32.mrb[0].mxu0
  %1244 = vmatprep.mubr.bf16.mxu0 0
  %1245 = vmatmul.mubr.bf16.gmra.mrb[0].mxu0 %v1164
  %v1246 = vpop.f32.mrb[0].mxu0
  %v1247 = vadd.f32 0.0, %v1246
  %v1248 = vpop.f32.mrb[0].mxu0
  %v1249 = vpop.f32.mrb[0].mxu0
  %v1250 = vadd.f32 0.0, %v1249
  %v1251 = vpop.f32.mrb[0].mxu0
  %1252 = vmatprep.mubr.bf16.mxu0 0
  %1253 = vmatmul.mubr.bf16.gmra.mrb[0].mxu0 %v1167
  %v1254 = vpop.f32.mrb[0].mxu0
  %v1255 = vadd.f32 0.0, %v1254
  %v1256 = vpop.f32.mrb[0].mxu0
  %v1257 = vpop.f32.mrb[0].mxu0
  %v1258 = vadd.f32 0.0, %v1257
  %v1259 = vpop.f32.mrb[0].mxu0
  %1260 = vmatprep.mubr.bf16.mxu0 0
  %1261 = vmatmul.mubr.bf16.gmra.mrb[0].mxu0 %v1170
  %v1262 = vpop.f32.mrb[0].mxu0
  %v1263 = vadd.f32 0.0, %v1262
  %v1264 = vpop.f32.mrb[0].mxu0
  %v1265 = vpop.f32.mrb[0].mxu0
  %v1266 = vadd.f32 0.0, %v1265
  %v1267 = vpop.f32.mrb[0].mxu0
  %1268 = vmatprep.mubr.bf16.mxu0 0
  %1269 = vmatmul.mubr.bf16.gmra.mrb[0].mxu0 %v1173
  %v1270 = vpop.f32.mrb[0].mxu0
  %v1271 = vadd.f32 0.0, %v1270
  %v1272 = vpop.f32.mrb[0].mxu0
  %v1273 = vpop.f32.mrb[0].mxu0
  %v1274 = vadd.f32 0.0, %v1273
  %v1275 = vpop.f32.mrb[0].mxu0
  %1276 = vmatprep.mubr.bf16.mxu0 0
  %1277 = vmatmul.mubr.bf16.gmra.mrb[0].mxu0 %v1176
  %v1278 = vpop.f32.mrb[0].mxu0
  %v1279 = vadd.f32 0.0, %v1278
  %v1280 = vpop.f32.mrb[0].mxu0
  %v1281 = vpop.f32.mrb[0].mxu0
  %v1282 = vadd.f32 0.0, %v1281
  %v1283 = vpop.f32.mrb[0].mxu0
  %1284 = vmatprep.mubr.bf16.mxu0 0
  %1285 = vmatmul.mubr.bf16.gmra.mrb[0].mxu0 %v1179
  %v1286 = vpop.f32.mrb[0].mxu0
  %v1287 = vadd.f32 0.0, %v1286
  %v1288 = vpop.f32.mrb[0].mxu0
  %v1289 = vpop.f32.mrb[0].mxu0
  %v1290 = vadd.f32 0.0, %v1289
  %v1291 = vpop.f32.mrb[0].mxu0
  %1292 = vmatprep.mubr.bf16.mxu0 0
  %1293 = vmatmul.mubr.bf16.gmra.mrb[0].mxu0 %v1182
  %v1294 = vpop.f32.mrb[0].mxu0
  %v1295 = vadd.f32 0.0, %v1294
  %v1296 = vpop.f32.mrb[0].mxu0
  %v1297 = vpop.f32.mrb[0].mxu0
  %v1298 = vadd.f32 0.0, %v1297
  %v1299 = vpop.f32.mrb[0].mxu0
  %1300 = vdwg.mxu0
  %v1301 = vmax.f32 %v1223, 0.0
  %v1302 = vmax.f32 %v1226, 0.0
  %v1303 = vmax.f32 %v1231, 0.0
  %v1304 = vmax.f32 %v1234, 0.0
  %v1305 = vmax.f32 %v1239, 0.0
  %v1306 = vmax.f32 %v1242, 0.0
  %v1307 = vmax.f32 %v1247, 0.0
  %v1308 = vmax.f32 %v1250, 0.0
  %v1309 = vmax.f32 %v1255, 0.0
  %v1310 = vmax.f32 %v1258, 0.0
  %v1311 = vmax.f32 %v1263, 0.0
  %v1312 = vmax.f32 %v1266, 0.0
  %v1313 = vmax.f32 %v1271, 0.0
  %v1314 = vmax.f32 %v1274, 0.0
  %v1315 = vmax.f32 %v1279, 0.0
  %v1316 = vmax.f32 %v1282, 0.0
  %v1317 = vmax.f32 %v1287, 0.0
  %v1318 = vmax.f32 %v1290, 0.0
  %v1319 = vmax.f32 %v1295, 0.0
  %v1320 = vmax.f32 %v1298, 0.0
  %v1321 = vlaneseq
  %v1322 = vshrl.u32 %v1321, 7
  %v1323 = vsub.s32 0, %v1322
  %v1324 = vrot.slane %v929, %v1323
  %v1325 = vmul.f32 %v1301, %v1324
  %v1326 = vmul.f32 %v1302, %v1324
  %v1327 = vmul.f32 %v1303, %v1324
  %v1328 = vmul.f32 %v1304, %v1324
  %v1329 = vmul.f32 %v1305, %v1324
  %v1330 = vmul.f32 %v1306, %v1324
  %v1331 = vmul.f32 %v1307, %v1324
  %v1332 = vmul.f32 %v1308, %v1324
  %v1333 = vmul.f32 %v1309, %v1324
  %v1334 = vmul.f32 %v1310, %v1324
  %v1335 = vmul.f32 %v1311, %v1324
  %v1336 = vmul.f32 %v1312, %v1324
  %v1337 = vmul.f32 %v1313, %v1324
  %v1338 = vmul.f32 %v1314, %v1324
  %v1339 = vmul.f32 %v1315, %v1324
  %v1340 = vmul.f32 %v1316, %v1324
  %v1341 = vmul.f32 %v1317, %v1324
  %v1342 = vmul.f32 %v1318, %v1324
  %v1343 = vmul.f32 %v1319, %v1324
  %v1344 = vmul.f32 %v1320, %v1324
  %v1345 = vsel %vm146, %v1325, 0.0
  %1346 = vadd.xlane.f32.xlu0 %v1345
  %v1347 = vpop.xlane.xlu0 %1346
  %v1348 = vsel %vm146, %v1326, 0.0
  %1349 = vadd.xlane.f32.xlu0 %v1348
  %v1350 = vpop.xlane.xlu0 %1349
  %v1351 = vsel %vm146, %v1327, 0.0
  %1352 = vadd.xlane.f32.xlu0 %v1351
  %v1353 = vpop.xlane.xlu0 %1352
  %v1354 = vsel %vm146, %v1328, 0.0
  %1355 = vadd.xlane.f32.xlu0 %v1354
  %v1356 = vpop.xlane.xlu0 %1355
  %v1357 = vsel %vm146, %v1329, 0.0
  %1358 = vadd.xlane.f32.xlu0 %v1357
  %v1359 = vpop.xlane.xlu0 %1358
  %v1360 = vsel %vm146, %v1330, 0.0
  %1361 = vadd.xlane.f32.xlu0 %v1360
  %v1362 = vpop.xlane.xlu0 %1361
  %v1363 = vsel %vm146, %v1331, 0.0
  %1364 = vadd.xlane.f32.xlu0 %v1363
  %v1365 = vpop.xlane.xlu0 %1364
  %v1366 = vsel %vm146, %v1332, 0.0
  %1367 = vadd.xlane.f32.xlu0 %v1366
  %v1368 = vpop.xlane.xlu0 %1367
  %v1369 = vsel %vm146, %v1333, 0.0
  %1370 = vadd.xlane.f32.xlu0 %v1369
  %v1371 = vpop.xlane.xlu0 %1370
  %v1372 = vsel %vm146, %v1334, 0.0
  %1373 = vadd.xlane.f32.xlu0 %v1372
  %v1374 = vpop.xlane.xlu0 %1373
  %v1375 = vsel %vm146, %v1335, 0.0
  %1376 = vadd.xlane.f32.xlu0 %v1375
  %v1377 = vpop.xlane.xlu0 %1376
  %v1378 = vsel %vm146, %v1336, 0.0
  %1379 = vadd.xlane.f32.xlu0 %v1378
  %v1380 = vpop.xlane.xlu0 %1379
  %v1381 = vsel %vm146, %v1337, 0.0
  %1382 = vadd.xlane.f32.xlu0 %v1381
  %v1383 = vpop.xlane.xlu0 %1382
  %v1384 = vsel %vm146, %v1338, 0.0
  %1385 = vadd.xlane.f32.xlu0 %v1384
  %v1386 = vpop.xlane.xlu0 %1385
  %v1387 = vsel %vm146, %v1339, 0.0
  %1388 = vadd.xlane.f32.xlu0 %v1387
  %v1389 = vpop.xlane.xlu0 %1388
  %v1390 = vsel %vm146, %v1340, 0.0
  %1391 = vadd.xlane.f32.xlu0 %v1390
  %v1392 = vpop.xlane.xlu0 %1391
  %v1393 = vsel %vm146, %v1341, 0.0
  %1394 = vadd.xlane.f32.xlu0 %v1393
  %v1395 = vpop.xlane.xlu0 %1394
  %v1396 = vsel %vm146, %v1342, 0.0
  %1397 = vadd.xlane.f32.xlu0 %v1396
  %v1398 = vpop.xlane.xlu0 %1397
  %v1399 = vsel %vm146, %v1343, 0.0
  %1400 = vadd.xlane.f32.xlu0 %v1399
  %v1401 = vpop.xlane.xlu0 %1400
  %v1402 = vsel %vm146, %v1344, 0.0
  %1403 = vadd.xlane.f32.xlu0 %v1402
  %v1404 = vpop.xlane.xlu0 %1403
  %v1405 = vmax.f32 %v1347, %v1353
  %v1406 = vmax.f32 %v1350, %v1356
  %v1407 = vmax.f32 %v1405, %v1359
  %v1408 = vmax.f32 %v1406, %v1362
  %v1409 = vmax.f32 %v1407, %v1365
  %v1410 = vmax.f32 %v1408, %v1368
  %v1411 = vmax.f32 %v1409, %v1371
  %v1412 = vmax.f32 %v1410, %v1374
  %v1413 = vsub.f32 %v1347, %v1411
  %v1414 = vsub.f32 %v1350, %v1412
  %v1415 = vmul.f32 %v1413, 1.442695
  %v1416 = vpow.pop %v1415
  %v1417 = vmul.f32 %v1414, 1.442695
  %v1418 = vpow.pop %v1417
  %v1419 = vsub.f32 %v1353, %v1411
  %v1420 = vsub.f32 %v1356, %v1412
  %v1421 = vmul.f32 %v1419, 1.442695
  %v1422 = vpow.pop %v1421
  %v1423 = vmul.f32 %v1420, 1.442695
  %v1424 = vpow.pop %v1423
  %v1425 = vsub.f32 %v1359, %v1411
  %v1426 = vsub.f32 %v1362, %v1412
  %v1427 = vmul.f32 %v1425, 1.442695
  %v1428 = vpow.pop %v1427
  %v1429 = vmul.f32 %v1426, 1.442695
  %v1430 = vpow.pop %v1429
  %v1431 = vsub.f32 %v1365, %v1411
  %v1432 = vsub.f32 %v1368, %v1412
  %v1433 = vmul.f32 %v1431, 1.442695
  %v1434 = vpow.pop %v1433
  %v1435 = vmul.f32 %v1432, 1.442695
  %v1436 = vpow.pop %v1435
  %v1437 = vsub.f32 %v1371, %v1411
  %v1438 = vsub.f32 %v1374, %v1412
  %v1439 = vmul.f32 %v1437, 1.442695
  %v1440 = vpow.pop %v1439
  %v1441 = vmul.f32 %v1438, 1.442695
  %v1442 = vpow.pop %v1441
  %v1443 = vadd.f32 %v1416, %v1422
  %v1444 = vadd.f32 %v1418, %v1424
  %v1445 = vadd.f32 %v1443, %v1428
  %v1446 = vadd.f32 %v1444, %v1430
  %v1447 = vadd.f32 %v1445, %v1434
  %v1448 = vadd.f32 %v1446, %v1436
  %v1449 = vadd.f32 %v1447, %v1440
  %v1450 = vadd.f32 %v1448, %v1442
  %v1451 = vrcp.pop %v1449
  %v1452 = vmul.f32 1.0, %v1451
  %v1453 = vrcp.pop %v1450
  %v1454 = vmul.f32 1.0, %v1453
  %v1455 = vmul.f32 %v1416, %v1452
  %v1456 = vmul.f32 %v1418, %v1454
  %v1457 = vmul.f32 %v1455, %v1065
  %v1458 = vmul.f32 %v1456, %v1068
  %v1459 = vmul.f32 %v1422, %v1452
  %v1460 = vmul.f32 %v1424, %v1454
  %v1461 = vmul.f32 %v1459, %v1073
  %v1462 = vmul.f32 %v1460, %v1076
  %v1463 = vadd.f32 %v1457, %v1461
  %v1464 = vadd.f32 %v1458, %v1462
  %v1465 = vmul.f32 %v1428, %v1452
  %v1466 = vmul.f32 %v1430, %v1454
  %v1467 = vmul.f32 %v1465, %v1081
  %v1468 = vmul.f32 %v1466, %v1084
  %v1469 = vadd.f32 %v1463, %v1467
  %v1470 = vadd.f32 %v1464, %v1468
  %v1471 = vmul.f32 %v1434, %v1452
  %v1472 = vmul.f32 %v1436, %v1454
  %v1473 = vmul.f32 %v1471, %v1089
  %v1474 = vmul.f32 %v1472, %v1092
  %v1475 = vadd.f32 %v1469, %v1473
  %v1476 = vadd.f32 %v1470, %v1474
  %v1477 = vmul.f32 %v1440, %v1452
  %v1478 = vmul.f32 %v1442, %v1454
  %v1479 = vmul.f32 %v1477, %v1097
  %v1480 = vmul.f32 %v1478, %v1100
  %v1481 = vadd.f32 %v1475, %v1479
  %v1482 = vadd.f32 %v1476, %v1480
  %v1483 = vmax.f32 %v1377, %v1383
  %v1484 = vmax.f32 %v1380, %v1386
  %v1485 = vmax.f32 %v1483, %v1389
  %v1486 = vmax.f32 %v1484, %v1392
  %v1487 = vmax.f32 %v1485, %v1395
  %v1488 = vmax.f32 %v1486, %v1398
  %v1489 = vmax.f32 %v1487, %v1401
  %v1490 = vmax.f32 %v1488, %v1404
  %v1491 = vsub.f32 %v1377, %v1489
  %v1492 = vsub.f32 %v1380, %v1490
  %v1493 = vmul.f32 %v1491, 1.442695
  %v1494 = vpow.pop %v1493
  %v1495 = vmul.f32 %v1492, 1.442695
  %v1496 = vpow.pop %v1495
  %v1497 = vsub.f32 %v1383, %v1489
  %v1498 = vsub.f32 %v1386, %v1490
  %v1499 = vmul.f32 %v1497, 1.442695
  %v1500 = vpow.pop %v1499
  %v1501 = vmul.f32 %v1498, 1.442695
  %v1502 = vpow.pop %v1501
  %v1503 = vsub.f32 %v1389, %v1489
  %v1504 = vsub.f32 %v1392, %v1490
  %v1505 = vmul.f32 %v1503, 1.442695
  %v1506 = vpow.pop %v1505
  %v1507 = vmul.f32 %v1504, 1.442695
  %v1508 = vpow.pop %v1507
  %v1509 = vsub.f32 %v1395, %v1489
  %v1510 = vsub.f32 %v1398, %v1490
  %v1511 = vmul.f32 %v1509, 1.442695
  %v1512 = vpow.pop %v1511
  %v1513 = vmul.f32 %v1510, 1.442695
  %v1514 = vpow.pop %v1513
  %v1515 = vsub.f32 %v1401, %v1489
  %v1516 = vsub.f32 %v1404, %v1490
  %v1517 = vmul.f32 %v1515, 1.442695
  %v1518 = vpow.pop %v1517
  %v1519 = vmul.f32 %v1516, 1.442695
  %v1520 = vpow.pop %v1519
  %v1521 = vadd.f32 %v1494, %v1500
  %v1522 = vadd.f32 %v1496, %v1502
  %v1523 = vadd.f32 %v1521, %v1506
  %v1524 = vadd.f32 %v1522, %v1508
  %v1525 = vadd.f32 %v1523, %v1512
  %v1526 = vadd.f32 %v1524, %v1514
  %v1527 = vadd.f32 %v1525, %v1518
  %v1528 = vadd.f32 %v1526, %v1520
  %v1529 = vrcp.pop %v1527
  %v1530 = vmul.f32 1.0, %v1529
  %v1531 = vrcp.pop %v1528
  %v1532 = vmul.f32 1.0, %v1531
  %v1533 = vmul.f32 %v1494, %v1530
  %v1534 = vmul.f32 %v1496, %v1532
  %v1535 = vmul.f32 %v1533, %v1105
  %v1536 = vmul.f32 %v1534, %v1108
  %v1537 = vmul.f32 %v1500, %v1530
  %v1538 = vmul.f32 %v1502, %v1532
  %v1539 = vmul.f32 %v1537, %v1113
  %v1540 = vmul.f32 %v1538, %v1116
  %v1541 = vadd.f32 %v1535, %v1539
  %v1542 = vadd.f32 %v1536, %v1540
  %v1543 = vmul.f32 %v1506, %v1530
  %v1544 = vmul.f32 %v1508, %v1532
  %v1545 = vmul.f32 %v1543, %v1121
  %v1546 = vmul.f32 %v1544, %v1124
  %v1547 = vadd.f32 %v1541, %v1545
  %v1548 = vadd.f32 %v1542, %v1546
  %v1549 = vmul.f32 %v1512, %v1530
  %v1550 = vmul.f32 %v1514, %v1532
  %v1551 = vmul.f32 %v1549, %v1129
  %v1552 = vmul.f32 %v1550, %v1132
  %v1553 = vadd.f32 %v1547, %v1551
  %v1554 = vadd.f32 %v1548, %v1552
  %v1555 = vmul.f32 %v1518, %v1530
  %v1556 = vmul.f32 %v1520, %v1532
  %v1557 = vmul.f32 %v1555, %v1137
  %v1558 = vmul.f32 %v1556, %v1140
  %v1559 = vadd.f32 %v1553, %v1557
  %v1560 = vadd.f32 %v1554, %v1558
  %1563 = vrot.lane.b32.xlu0 %v1559, 8
  %v1564 = vpop.permute.xlu0 %1563
  %1565 = vrot.lane.b32.xlu0 %v1560, 8
  %v1566 = vpop.permute.xlu0 %1565
  %v1569 = vsel %vm146, %v1481, %v1564
  %v1570 = vsel %vm146, %v1482, %v1566
  %v1571 = vsel %vm281, %v1569, %v1023
  %v1572 = vsel %vm281, %v1570, %v1024
  %v1573 = vpack.c.bf16 %v1572, %v1571
  %v1574 = vpack.c.bf16 %v931, %v930
  %v1575 = vpack.c.bf16 %v932, %v932
  %v1576 = vlaneseq
  %v1577 = vshrl.u32 %v1576, 7
  %v1578 = vsub.s32 0, %v1577
  %v1579 = vrot.slane %v933, %v1578
  %vm1580 = vcmask 195584
  %v1582 = vsel %vm1580, %v1573, 0
  %v1585 = vsel %vm1184, %v1575, 0
  %1587 = vmatprep.subr.bf16.mxu0 0
  %1588 = vmatpush1.bf16.msra.mxu0 %v1574
  %1589 = vmatprep.subr.bf16.mxu0 0
  %1590 = vmatpush1.bf16.msra.mxu0 %v1585
  %1591 = vmatprep.subr.bf16.mxu0 0
  %1592 = vmatpush1.bf16.msra.mxu0 0
  %1593 = vmatprep.subr.bf16.mxu0 0
  %1594 = vmatpush1.bf16.msra.mxu0 0
  %1595 = vmatprep.subr.bf16.mxu0 0
  %1596 = vmatpush1.bf16.msra.mxu0 0
  %1597 = vmatprep.subr.bf16.mxu0 0
  %1598 = vmatpush1.bf16.msra.mxu0 0
  %1599 = vmatprep.subr.bf16.mxu0 0
  %1600 = vmatpush1.bf16.msra.mxu0 0
  %1601 = vmatprep.subr.bf16.mxu0 0
  %1602 = vmatpush1.bf16.msra.mxu0 0
  %1603 = vmatprep.subr.bf16.mxu0 0
  %1604 = vmatpush1.bf16.msra.mxu0 0
  %1605 = vmatprep.subr.bf16.mxu0 0
  %1606 = vmatpush1.bf16.msra.mxu0 0
  %1607 = vmatprep.subr.bf16.mxu0 0
  %1608 = vmatpush1.bf16.msra.mxu0 0
  %1609 = vmatprep.subr.bf16.mxu0 0
  %1610 = vmatpush1.bf16.msra.mxu0 0
  %1611 = vmatprep.subr.bf16.mxu0 0
  %1612 = vmatpush1.bf16.msra.mxu0 0
  %1613 = vmatprep.subr.bf16.mxu0 0
  %1614 = vmatpush1.bf16.msra.mxu0 0
  %1615 = vmatprep.subr.bf16.mxu0 0
  %1616 = vmatpush1.bf16.msra.mxu0 0
  %1617 = vmatprep.subr.bf16.mxu0 0
  %1618 = vmatpush1.bf16.msra.mxu0 0
  %1619 = vmatprep.mubr.bf16.mxu0 0
  %1620 = vmatmul.mubr.bf16.gmra.mrb[0].mxu0 %v1582
  %v1621 = vpop.f32.mrb[0].mxu0
  %v1622 = vadd.f32 %v1579, %v1621
  %v1623 = vpop.f32.mrb[0].mxu0
  %v1624 = vpop.f32.mrb[0].mxu0
  %v1625 = vadd.f32 %v1579, %v1624
  %v1626 = vpop.f32.mrb[0].mxu0
  %1627 = vdwg.mxu0
  %v1628 = vtanh.pop %v1622
  %v1629 = vtanh.pop %v1625
  %1630 = vrot.lane.b32.xlu0 %v47, 8
  %v1631 = vpop.permute.xlu0 %1630
  %1632 = vrot.lane.b32.xlu0 %v48, 8
  %v1633 = vpop.permute.xlu0 %1632
  %v1636 = vmul.f32 %v922, %v1631
  %v1637 = vmul.f32 %v924, %v1633
  %v1638 = vsub.f32 1.0, %v922
  %v1639 = vsub.f32 1.0, %v924
  %1642 = vrot.lane.b32.xlu0 %v1628, 8
  %v1643 = vpop.permute.xlu0 %1642
  %1644 = vrot.lane.b32.xlu0 %v1629, 8
  %v1645 = vpop.permute.xlu0 %1644
  %v1648 = vmul.f32 %v1638, %v1643
  %v1649 = vmul.f32 %v1639, %v1645
  %v1650 = vadd.f32 %v1636, %v1648
  %v1651 = vadd.f32 %v1637, %v1649
  %1654 = vrot.lane.b32.xlu0 %v1650, 120
  %v1655 = vpop.permute.xlu0 %1654
  %1656 = vrot.lane.b32.xlu0 %v1651, 120
  %v1657 = vpop.permute.xlu0 %1656
  %1660 = vst.msk [vmem:[%s6] sm:$0xff] %vm146, %v1655
  %1661 = vst.msk [vmem:[%s6 + $0x8] sm:$0xff] %vm146, %v1657
  %s1662 = scalar_lea.vmem %s0, 16
  %v1663 = vld [vmem:[%s1662] sm:$0xff]
  %v1664 = vld [vmem:[%s1662 + $0x8] sm:$0xff]
  %s1665 = scalar_lea.vmem %s1, 16
  %v1666 = vld [vmem:[%s1665] sm:$0xff]
  %v1667 = vld [vmem:[%s1665 + $0x8] sm:$0xff]
  %v1669 = vsel %vm49, %v1663, 0
  %v1672 = vsel %vm49, %v1664, 0
  %1674 = vmatprep.subr.mxu0 0.0
  %1675 = vmatpush1.msra.mxu0 %v58
  %1676 = vmatprep.subr.mxu0 0.0
  %1677 = vmatpush1.msra.mxu0 0.0
  %1678 = vmatprep.subr.mxu0 0.0
  %1679 = vmatpush1.msra.mxu0 0.0
  %1680 = vmatprep.subr.mxu0 0.0
  %1681 = vmatpush1.msra.mxu0 0.0
  %1682 = vmatprep.subr.mxu0 0.0
  %1683 = vmatpush1.msra.mxu0 0.0
  %1684 = vmatprep.subr.mxu0 0.0
  %1685 = vmatpush1.msra.mxu0 0.0
  %1686 = vmatprep.subr.mxu0 0.0
  %1687 = vmatpush1.msra.mxu0 0.0
  %1688 = vmatprep.subr.mxu0 0.0
  %1689 = vmatpush1.msra.mxu0 0.0
  %1690 = vmatprep.subr.mxu0 0.0
  %1691 = vmatpush1.msra.mxu0 0.0
  %1692 = vmatprep.subr.mxu0 0.0
  %1693 = vmatpush1.msra.mxu0 0.0
  %1694 = vmatprep.subr.mxu0 0.0
  %1695 = vmatpush1.msra.mxu0 0.0
  %1696 = vmatprep.subr.mxu0 0.0
  %1697 = vmatpush1.msra.mxu0 0.0
  %1698 = vmatprep.subr.mxu0 0.0
  %1699 = vmatpush1.msra.mxu0 0.0
  %1700 = vmatprep.subr.mxu0 0.0
  %1701 = vmatpush1.msra.mxu0 0.0
  %1702 = vmatprep.subr.mxu0 0.0
  %1703 = vmatpush1.msra.mxu0 0.0
  %1704 = vmatprep.subr.mxu0 0.0
  %1705 = vmatpush1.msra.mxu0 0.0
  %1706 = vmatprep.subr.mxu0 0.0
  %1707 = vmatpush1.msra.mxu0 0.0
  %1708 = vmatprep.subr.mxu0 0.0
  %1709 = vmatpush1.msra.mxu0 0.0
  %1710 = vmatprep.subr.mxu0 0.0
  %1711 = vmatpush1.msra.mxu0 0.0
  %1712 = vmatprep.subr.mxu0 0.0
  %1713 = vmatpush1.msra.mxu0 0.0
  %1714 = vmatprep.subr.mxu0 0.0
  %1715 = vmatpush1.msra.mxu0 0.0
  %1716 = vmatprep.subr.mxu0 0.0
  %1717 = vmatpush1.msra.mxu0 0.0
  %1718 = vmatprep.subr.mxu0 0.0
  %1719 = vmatpush1.msra.mxu0 0.0
  %1720 = vmatprep.subr.mxu0 0.0
  %1721 = vmatpush1.msra.mxu0 0.0
  %1722 = vmatprep.subr.mxu0 0.0
  %1723 = vmatpush1.msra.mxu0 0.0
  %1724 = vmatprep.subr.mxu0 0.0
  %1725 = vmatpush1.msra.mxu0 0.0
  %1726 = vmatprep.subr.mxu0 0.0
  %1727 = vmatpush1.msra.mxu0 0.0
  %1728 = vmatprep.subr.mxu0 0.0
  %1729 = vmatpush1.msra.mxu0 0.0
  %1730 = vmatprep.subr.mxu0 0.0
  %1731 = vmatpush1.msra.mxu0 0.0
  %1732 = vmatprep.subr.mxu0 0.0
  %1733 = vmatpush1.msra.mxu0 0.0
  %1734 = vmatprep.subr.mxu0 0.0
  %1735 = vmatpush1.msra.mxu0 0.0
  %1736 = vmatprep.subr.mxu0 0.0
  %1737 = vmatpush1.msra.mxu0 0.0
  %1738 = vmatprep.mubr.f32.mxu0 0.0
  %1739 = vmatmul.mubr.f32.gmra.mrb[0].mxu0 %v1669
  %v1740 = vpop.f32.mrb[0].mxu0
  %v1741 = vadd.f32 0.0, %v1740
  %v1742 = vpop.f32.mrb[0].mxu0
  %1743 = vmatprep.mubr.f32.mxu0 0.0
  %1744 = vmatmul.mubr.f32.gmra.mrb[0].mxu0 %v1672
  %v1745 = vpop.f32.mrb[0].mxu0
  %v1746 = vadd.f32 0.0, %v1745
  %v1747 = vpop.f32.mrb[0].mxu0
  %1748 = vdwg.mxu0
  %v1749 = vld [vmem:[%s4] sm:$0xff]
  %v1750 = vld [vmem:[%s4 + $0x8] sm:$0xff]
  %v1751 = vld [vmem:[%s4 + $0x10] sm:$0xff]
  %v1752 = vld [vmem:[%s4 + $0x18] sm:$0x1]
  %v1753 = vld [vmem:[%s4 + $0x20] sm:$0xff]
  %v1754 = vld [vmem:[%s4 + $0x28] sm:$0xff]
  %v1755 = vld [vmem:[%s4 + $0x30] sm:$0xff]
  %v1756 = vld [vmem:[%s4 + $0x38] sm:$0xff]
  %v1757 = vld [vmem:[%s4 + $0x40] sm:$0xff]
  %v1758 = vld [vmem:[%s4 + $0x48] sm:$0xff]
  %v1759 = vld [vmem:[%s4 + $0x50] sm:$0x1]
  %v1761 = vsel %vm146, %v1666, 0
  %v1764 = vsel %vm146, %v1667, 0
  %1766 = vmatprep.subr.mxu0 0.0
  %1767 = vmatpush1.msra.mxu0 %v1749
  %1768 = vmatprep.subr.mxu0 0.0
  %1769 = vmatpush1.msra.mxu0 0.0
  %1770 = vmatprep.subr.mxu0 0.0
  %1771 = vmatpush1.msra.mxu0 0.0
  %1772 = vmatprep.subr.mxu0 0.0
  %1773 = vmatpush1.msra.mxu0 0.0
  %1774 = vmatprep.subr.mxu0 0.0
  %1775 = vmatpush1.msra.mxu0 0.0
  %1776 = vmatprep.subr.mxu0 0.0
  %1777 = vmatpush1.msra.mxu0 0.0
  %1778 = vmatprep.subr.mxu0 0.0
  %1779 = vmatpush1.msra.mxu0 0.0
  %1780 = vmatprep.subr.mxu0 0.0
  %1781 = vmatpush1.msra.mxu0 0.0
  %1782 = vmatprep.subr.mxu0 0.0
  %1783 = vmatpush1.msra.mxu0 0.0
  %1784 = vmatprep.subr.mxu0 0.0
  %1785 = vmatpush1.msra.mxu0 0.0
  %1786 = vmatprep.subr.mxu0 0.0
  %1787 = vmatpush1.msra.mxu0 0.0
  %1788 = vmatprep.subr.mxu0 0.0
  %1789 = vmatpush1.msra.mxu0 0.0
  %1790 = vmatprep.subr.mxu0 0.0
  %1791 = vmatpush1.msra.mxu0 0.0
  %1792 = vmatprep.subr.mxu0 0.0
  %1793 = vmatpush1.msra.mxu0 0.0
  %1794 = vmatprep.subr.mxu0 0.0
  %1795 = vmatpush1.msra.mxu0 0.0
  %1796 = vmatprep.subr.mxu0 0.0
  %1797 = vmatpush1.msra.mxu0 0.0
  %1798 = vmatprep.subr.mxu0 0.0
  %1799 = vmatpush1.msra.mxu0 0.0
  %1800 = vmatprep.subr.mxu0 0.0
  %1801 = vmatpush1.msra.mxu0 0.0
  %1802 = vmatprep.subr.mxu0 0.0
  %1803 = vmatpush1.msra.mxu0 0.0
  %1804 = vmatprep.subr.mxu0 0.0
  %1805 = vmatpush1.msra.mxu0 0.0
  %1806 = vmatprep.subr.mxu0 0.0
  %1807 = vmatpush1.msra.mxu0 0.0
  %1808 = vmatprep.subr.mxu0 0.0
  %1809 = vmatpush1.msra.mxu0 0.0
  %1810 = vmatprep.subr.mxu0 0.0
  %1811 = vmatpush1.msra.mxu0 0.0
  %1812 = vmatprep.subr.mxu0 0.0
  %1813 = vmatpush1.msra.mxu0 0.0
  %1814 = vmatprep.subr.mxu0 0.0
  %1815 = vmatpush1.msra.mxu0 0.0
  %1816 = vmatprep.subr.mxu0 0.0
  %1817 = vmatpush1.msra.mxu0 0.0
  %1818 = vmatprep.subr.mxu0 0.0
  %1819 = vmatpush1.msra.mxu0 0.0
  %1820 = vmatprep.subr.mxu0 0.0
  %1821 = vmatpush1.msra.mxu0 0.0
  %1822 = vmatprep.subr.mxu0 0.0
  %1823 = vmatpush1.msra.mxu0 0.0
  %1824 = vmatprep.subr.mxu0 0.0
  %1825 = vmatpush1.msra.mxu0 0.0
  %1826 = vmatprep.subr.mxu0 0.0
  %1827 = vmatpush1.msra.mxu0 0.0
  %1828 = vmatprep.subr.mxu0 0.0
  %1829 = vmatpush1.msra.mxu0 0.0
  %1830 = vmatprep.mubr.f32.mxu0 0.0
  %1831 = vmatmul.mubr.f32.gmra.mrb[0].mxu0 %v1761
  %v1832 = vpop.f32.mrb[0].mxu0
  %v1833 = vadd.f32 0.0, %v1832
  %v1834 = vpop.f32.mrb[0].mxu0
  %1835 = vmatprep.mubr.f32.mxu0 0.0
  %1836 = vmatmul.mubr.f32.gmra.mrb[0].mxu0 %v1764
  %v1837 = vpop.f32.mrb[0].mxu0
  %v1838 = vadd.f32 0.0, %v1837
  %v1839 = vpop.f32.mrb[0].mxu0
  %1840 = vdwg.mxu0
  %v1841 = vadd.f32 %v1741, %v1833
  %v1842 = vadd.f32 %v1746, %v1838
  %v1843 = vpack.c.bf16 %v1842, %v1841
  %1844 = vmatprep.subr.bf16.mxu0 0
  %1845 = vmatpush1.bf16.msra.mxu0 %v1843
  %1846 = vmatprep.subr.bf16.mxu0 0
  %1847 = vmatpush1.bf16.msra.mxu0 0
  %1848 = vmatprep.subr.bf16.mxu0 0
  %1849 = vmatpush1.bf16.msra.mxu0 0
  %1850 = vmatprep.subr.bf16.mxu0 0
  %1851 = vmatpush1.bf16.msra.mxu0 0
  %1852 = vmatprep.subr.bf16.mxu0 0
  %1853 = vmatpush1.bf16.msra.mxu0 0
  %1854 = vmatprep.subr.bf16.mxu0 0
  %1855 = vmatpush1.bf16.msra.mxu0 0
  %1856 = vmatprep.subr.bf16.mxu0 0
  %1857 = vmatpush1.bf16.msra.mxu0 0
  %1858 = vmatprep.subr.bf16.mxu0 0
  %1859 = vmatpush1.bf16.msra.mxu0 0
  %1860 = vmatprep.subr.bf16.mxu0 0
  %1861 = vmatpush1.bf16.msra.mxu0 0
  %1862 = vmatprep.subr.bf16.mxu0 0
  %1863 = vmatpush1.bf16.msra.mxu0 0
  %1864 = vmatprep.subr.bf16.mxu0 0
  %1865 = vmatpush1.bf16.msra.mxu0 0
  %1866 = vmatprep.subr.bf16.mxu0 0
  %1867 = vmatpush1.bf16.msra.mxu0 0
  %1868 = vmatprep.subr.bf16.mxu0 0
  %1869 = vmatpush1.bf16.msra.mxu0 0
  %1870 = vmatprep.subr.bf16.mxu0 0
  %1871 = vmatpush1.bf16.msra.mxu0 0
  %1872 = vmatprep.subr.bf16.mxu0 0
  %1873 = vmatpush1.bf16.msra.mxu0 0
  %1874 = vmatprep.subr.bf16.mxu0 0
  %1875 = vmatpush1.bf16.msra.mxu0 0
  %1876 = vmatprep.mubr.bf16.mxu0 0
  %1877 = vmatmul.mubr.bf16.gmra.mrb[0].mxu0 %v283
  %v1878 = vpop.f32.mrb[0].mxu0
  %v1879 = vadd.f32 0.0, %v1878
  %v1880 = vpop.f32.mrb[0].mxu0
  %v1881 = vpop.f32.mrb[0].mxu0
  %v1882 = vadd.f32 0.0, %v1881
  %v1883 = vpop.f32.mrb[0].mxu0
  %1884 = vmatprep.mubr.bf16.mxu0 0
  %1885 = vmatmul.mubr.bf16.gmra.mrb[0].mxu0 %v286
  %v1886 = vpop.f32.mrb[0].mxu0
  %v1887 = vadd.f32 0.0, %v1886
  %v1888 = vpop.f32.mrb[0].mxu0
  %v1889 = vpop.f32.mrb[0].mxu0
  %v1890 = vadd.f32 0.0, %v1889
  %v1891 = vpop.f32.mrb[0].mxu0
  %1892 = vmatprep.mubr.bf16.mxu0 0
  %1893 = vmatmul.mubr.bf16.gmra.mrb[0].mxu0 %v289
  %v1894 = vpop.f32.mrb[0].mxu0
  %v1895 = vadd.f32 0.0, %v1894
  %v1896 = vpop.f32.mrb[0].mxu0
  %v1897 = vpop.f32.mrb[0].mxu0
  %v1898 = vadd.f32 0.0, %v1897
  %v1899 = vpop.f32.mrb[0].mxu0
  %1900 = vmatprep.mubr.bf16.mxu0 0
  %1901 = vmatmul.mubr.bf16.gmra.mrb[0].mxu0 %v292
  %v1902 = vpop.f32.mrb[0].mxu0
  %v1903 = vadd.f32 0.0, %v1902
  %v1904 = vpop.f32.mrb[0].mxu0
  %v1905 = vpop.f32.mrb[0].mxu0
  %v1906 = vadd.f32 0.0, %v1905
  %v1907 = vpop.f32.mrb[0].mxu0
  %1908 = vmatprep.mubr.bf16.mxu0 0
  %1909 = vmatmul.mubr.bf16.gmra.mrb[0].mxu0 %v295
  %v1910 = vpop.f32.mrb[0].mxu0
  %v1911 = vadd.f32 0.0, %v1910
  %v1912 = vpop.f32.mrb[0].mxu0
  %v1913 = vpop.f32.mrb[0].mxu0
  %v1914 = vadd.f32 0.0, %v1913
  %v1915 = vpop.f32.mrb[0].mxu0
  %1916 = vmatprep.mubr.bf16.mxu0 0
  %1917 = vmatmul.mubr.bf16.gmra.mrb[0].mxu0 %v298
  %v1918 = vpop.f32.mrb[0].mxu0
  %v1919 = vadd.f32 0.0, %v1918
  %v1920 = vpop.f32.mrb[0].mxu0
  %v1921 = vpop.f32.mrb[0].mxu0
  %v1922 = vadd.f32 0.0, %v1921
  %v1923 = vpop.f32.mrb[0].mxu0
  %1924 = vmatprep.mubr.bf16.mxu0 0
  %1925 = vmatmul.mubr.bf16.gmra.mrb[0].mxu0 %v301
  %v1926 = vpop.f32.mrb[0].mxu0
  %v1927 = vadd.f32 0.0, %v1926
  %v1928 = vpop.f32.mrb[0].mxu0
  %v1929 = vpop.f32.mrb[0].mxu0
  %v1930 = vadd.f32 0.0, %v1929
  %v1931 = vpop.f32.mrb[0].mxu0
  %1932 = vmatprep.mubr.bf16.mxu0 0
  %1933 = vmatmul.mubr.bf16.gmra.mrb[0].mxu0 %v304
  %v1934 = vpop.f32.mrb[0].mxu0
  %v1935 = vadd.f32 0.0, %v1934
  %v1936 = vpop.f32.mrb[0].mxu0
  %v1937 = vpop.f32.mrb[0].mxu0
  %v1938 = vadd.f32 0.0, %v1937
  %v1939 = vpop.f32.mrb[0].mxu0
  %1940 = vmatprep.mubr.bf16.mxu0 0
  %1941 = vmatmul.mubr.bf16.gmra.mrb[0].mxu0 %v307
  %v1942 = vpop.f32.mrb[0].mxu0
  %v1943 = vadd.f32 0.0, %v1942
  %v1944 = vpop.f32.mrb[0].mxu0
  %v1945 = vpop.f32.mrb[0].mxu0
  %v1946 = vadd.f32 0.0, %v1945
  %v1947 = vpop.f32.mrb[0].mxu0
  %1948 = vmatprep.mubr.bf16.mxu0 0
  %1949 = vmatmul.mubr.bf16.gmra.mrb[0].mxu0 %v310
  %v1950 = vpop.f32.mrb[0].mxu0
  %v1951 = vadd.f32 0.0, %v1950
  %v1952 = vpop.f32.mrb[0].mxu0
  %v1953 = vpop.f32.mrb[0].mxu0
  %v1954 = vadd.f32 0.0, %v1953
  %v1955 = vpop.f32.mrb[0].mxu0
  %1956 = vdwg.mxu0
  %v1957 = vpack.c.bf16 %v1882, %v1879
  %v1958 = vpack.c.bf16 %v1890, %v1887
  %v1959 = vpack.c.bf16 %v1898, %v1895
  %v1960 = vpack.c.bf16 %v1906, %v1903
  %v1961 = vpack.c.bf16 %v1914, %v1911
  %v1962 = vpack.c.bf16 %v1922, %v1919
  %v1963 = vpack.c.bf16 %v1930, %v1927
  %v1964 = vpack.c.bf16 %v1938, %v1935
  %v1965 = vpack.c.bf16 %v1946, %v1943
  %v1966 = vpack.c.bf16 %v1954, %v1951
  %v1967 = vpack.c.bf16 %v1751, %v1750
  %v1969 = vsel %vm281, %v1957, 0
  %v1972 = vsel %vm281, %v1958, 0
  %v1975 = vsel %vm281, %v1959, 0
  %v1978 = vsel %vm281, %v1960, 0
  %v1981 = vsel %vm281, %v1961, 0
  %v1984 = vsel %vm281, %v1962, 0
  %v1987 = vsel %vm281, %v1963, 0
  %v1990 = vsel %vm281, %v1964, 0
  %v1993 = vsel %vm281, %v1965, 0
  %v1996 = vsel %vm281, %v1966, 0
  %1998 = vmatprep.subr.bf16.mxu0 0
  %1999 = vmatpush1.bf16.msra.mxu0 %v1967
  %2000 = vmatprep.subr.bf16.mxu0 0
  %2001 = vmatpush1.bf16.msra.mxu0 0
  %2002 = vmatprep.subr.bf16.mxu0 0
  %2003 = vmatpush1.bf16.msra.mxu0 0
  %2004 = vmatprep.subr.bf16.mxu0 0
  %2005 = vmatpush1.bf16.msra.mxu0 0
  %2006 = vmatprep.subr.bf16.mxu0 0
  %2007 = vmatpush1.bf16.msra.mxu0 0
  %2008 = vmatprep.subr.bf16.mxu0 0
  %2009 = vmatpush1.bf16.msra.mxu0 0
  %2010 = vmatprep.subr.bf16.mxu0 0
  %2011 = vmatpush1.bf16.msra.mxu0 0
  %2012 = vmatprep.subr.bf16.mxu0 0
  %2013 = vmatpush1.bf16.msra.mxu0 0
  %2014 = vmatprep.subr.bf16.mxu0 0
  %2015 = vmatpush1.bf16.msra.mxu0 0
  %2016 = vmatprep.subr.bf16.mxu0 0
  %2017 = vmatpush1.bf16.msra.mxu0 0
  %2018 = vmatprep.subr.bf16.mxu0 0
  %2019 = vmatpush1.bf16.msra.mxu0 0
  %2020 = vmatprep.subr.bf16.mxu0 0
  %2021 = vmatpush1.bf16.msra.mxu0 0
  %2022 = vmatprep.subr.bf16.mxu0 0
  %2023 = vmatpush1.bf16.msra.mxu0 0
  %2024 = vmatprep.subr.bf16.mxu0 0
  %2025 = vmatpush1.bf16.msra.mxu0 0
  %2026 = vmatprep.subr.bf16.mxu0 0
  %2027 = vmatpush1.bf16.msra.mxu0 0
  %2028 = vmatprep.subr.bf16.mxu0 0
  %2029 = vmatpush1.bf16.msra.mxu0 0
  %2030 = vmatprep.mubr.bf16.mxu0 0
  %2031 = vmatmul.mubr.bf16.gmra.mrb[0].mxu0 %v1969
  %v2032 = vpop.f32.mrb[0].mxu0
  %v2033 = vadd.f32 0.0, %v2032
  %v2034 = vpop.f32.mrb[0].mxu0
  %v2035 = vpop.f32.mrb[0].mxu0
  %v2036 = vadd.f32 0.0, %v2035
  %v2037 = vpop.f32.mrb[0].mxu0
  %2038 = vmatprep.mubr.bf16.mxu0 0
  %2039 = vmatmul.mubr.bf16.gmra.mrb[0].mxu0 %v1972
  %v2040 = vpop.f32.mrb[0].mxu0
  %v2041 = vadd.f32 0.0, %v2040
  %v2042 = vpop.f32.mrb[0].mxu0
  %v2043 = vpop.f32.mrb[0].mxu0
  %v2044 = vadd.f32 0.0, %v2043
  %v2045 = vpop.f32.mrb[0].mxu0
  %2046 = vmatprep.mubr.bf16.mxu0 0
  %2047 = vmatmul.mubr.bf16.gmra.mrb[0].mxu0 %v1975
  %v2048 = vpop.f32.mrb[0].mxu0
  %v2049 = vadd.f32 0.0, %v2048
  %v2050 = vpop.f32.mrb[0].mxu0
  %v2051 = vpop.f32.mrb[0].mxu0
  %v2052 = vadd.f32 0.0, %v2051
  %v2053 = vpop.f32.mrb[0].mxu0
  %2054 = vmatprep.mubr.bf16.mxu0 0
  %2055 = vmatmul.mubr.bf16.gmra.mrb[0].mxu0 %v1978
  %v2056 = vpop.f32.mrb[0].mxu0
  %v2057 = vadd.f32 0.0, %v2056
  %v2058 = vpop.f32.mrb[0].mxu0
  %v2059 = vpop.f32.mrb[0].mxu0
  %v2060 = vadd.f32 0.0, %v2059
  %v2061 = vpop.f32.mrb[0].mxu0
  %2062 = vmatprep.mubr.bf16.mxu0 0
  %2063 = vmatmul.mubr.bf16.gmra.mrb[0].mxu0 %v1981
  %v2064 = vpop.f32.mrb[0].mxu0
  %v2065 = vadd.f32 0.0, %v2064
  %v2066 = vpop.f32.mrb[0].mxu0
  %v2067 = vpop.f32.mrb[0].mxu0
  %v2068 = vadd.f32 0.0, %v2067
  %v2069 = vpop.f32.mrb[0].mxu0
  %2070 = vmatprep.mubr.bf16.mxu0 0
  %2071 = vmatmul.mubr.bf16.gmra.mrb[0].mxu0 %v1984
  %v2072 = vpop.f32.mrb[0].mxu0
  %v2073 = vadd.f32 0.0, %v2072
  %v2074 = vpop.f32.mrb[0].mxu0
  %v2075 = vpop.f32.mrb[0].mxu0
  %v2076 = vadd.f32 0.0, %v2075
  %v2077 = vpop.f32.mrb[0].mxu0
  %2078 = vmatprep.mubr.bf16.mxu0 0
  %2079 = vmatmul.mubr.bf16.gmra.mrb[0].mxu0 %v1987
  %v2080 = vpop.f32.mrb[0].mxu0
  %v2081 = vadd.f32 0.0, %v2080
  %v2082 = vpop.f32.mrb[0].mxu0
  %v2083 = vpop.f32.mrb[0].mxu0
  %v2084 = vadd.f32 0.0, %v2083
  %v2085 = vpop.f32.mrb[0].mxu0
  %2086 = vmatprep.mubr.bf16.mxu0 0
  %2087 = vmatmul.mubr.bf16.gmra.mrb[0].mxu0 %v1990
  %v2088 = vpop.f32.mrb[0].mxu0
  %v2089 = vadd.f32 0.0, %v2088
  %v2090 = vpop.f32.mrb[0].mxu0
  %v2091 = vpop.f32.mrb[0].mxu0
  %v2092 = vadd.f32 0.0, %v2091
  %v2093 = vpop.f32.mrb[0].mxu0
  %2094 = vmatprep.mubr.bf16.mxu0 0
  %2095 = vmatmul.mubr.bf16.gmra.mrb[0].mxu0 %v1993
  %v2096 = vpop.f32.mrb[0].mxu0
  %v2097 = vadd.f32 0.0, %v2096
  %v2098 = vpop.f32.mrb[0].mxu0
  %v2099 = vpop.f32.mrb[0].mxu0
  %v2100 = vadd.f32 0.0, %v2099
  %v2101 = vpop.f32.mrb[0].mxu0
  %2102 = vmatprep.mubr.bf16.mxu0 0
  %2103 = vmatmul.mubr.bf16.gmra.mrb[0].mxu0 %v1996
  %v2104 = vpop.f32.mrb[0].mxu0
  %v2105 = vadd.f32 0.0, %v2104
  %v2106 = vpop.f32.mrb[0].mxu0
  %v2107 = vpop.f32.mrb[0].mxu0
  %v2108 = vadd.f32 0.0, %v2107
  %v2109 = vpop.f32.mrb[0].mxu0
  %2110 = vdwg.mxu0
  %v2111 = vmax.f32 %v2033, 0.0
  %v2112 = vmax.f32 %v2036, 0.0
  %v2113 = vmax.f32 %v2041, 0.0
  %v2114 = vmax.f32 %v2044, 0.0
  %v2115 = vmax.f32 %v2049, 0.0
  %v2116 = vmax.f32 %v2052, 0.0
  %v2117 = vmax.f32 %v2057, 0.0
  %v2118 = vmax.f32 %v2060, 0.0
  %v2119 = vmax.f32 %v2065, 0.0
  %v2120 = vmax.f32 %v2068, 0.0
  %v2121 = vmax.f32 %v2073, 0.0
  %v2122 = vmax.f32 %v2076, 0.0
  %v2123 = vmax.f32 %v2081, 0.0
  %v2124 = vmax.f32 %v2084, 0.0
  %v2125 = vmax.f32 %v2089, 0.0
  %v2126 = vmax.f32 %v2092, 0.0
  %v2127 = vmax.f32 %v2097, 0.0
  %v2128 = vmax.f32 %v2100, 0.0
  %v2129 = vmax.f32 %v2105, 0.0
  %v2130 = vmax.f32 %v2108, 0.0
  %v2131 = vlaneseq
  %v2132 = vshrl.u32 %v2131, 7
  %v2133 = vsub.s32 0, %v2132
  %v2134 = vrot.slane %v1752, %v2133
  %v2135 = vmul.f32 %v2111, %v2134
  %v2136 = vmul.f32 %v2112, %v2134
  %v2137 = vmul.f32 %v2113, %v2134
  %v2138 = vmul.f32 %v2114, %v2134
  %v2139 = vmul.f32 %v2115, %v2134
  %v2140 = vmul.f32 %v2116, %v2134
  %v2141 = vmul.f32 %v2117, %v2134
  %v2142 = vmul.f32 %v2118, %v2134
  %v2143 = vmul.f32 %v2119, %v2134
  %v2144 = vmul.f32 %v2120, %v2134
  %v2145 = vmul.f32 %v2121, %v2134
  %v2146 = vmul.f32 %v2122, %v2134
  %v2147 = vmul.f32 %v2123, %v2134
  %v2148 = vmul.f32 %v2124, %v2134
  %v2149 = vmul.f32 %v2125, %v2134
  %v2150 = vmul.f32 %v2126, %v2134
  %v2151 = vmul.f32 %v2127, %v2134
  %v2152 = vmul.f32 %v2128, %v2134
  %v2153 = vmul.f32 %v2129, %v2134
  %v2154 = vmul.f32 %v2130, %v2134
  %v2155 = vsel %vm281, %v2135, 0.0
  %2156 = vadd.xlane.f32.xlu0 %v2155
  %v2157 = vpop.xlane.xlu0 %2156
  %v2158 = vsel %vm281, %v2136, 0.0
  %2159 = vadd.xlane.f32.xlu0 %v2158
  %v2160 = vpop.xlane.xlu0 %2159
  %v2161 = vsel %vm281, %v2137, 0.0
  %2162 = vadd.xlane.f32.xlu0 %v2161
  %v2163 = vpop.xlane.xlu0 %2162
  %v2164 = vsel %vm281, %v2138, 0.0
  %2165 = vadd.xlane.f32.xlu0 %v2164
  %v2166 = vpop.xlane.xlu0 %2165
  %v2167 = vsel %vm281, %v2139, 0.0
  %2168 = vadd.xlane.f32.xlu0 %v2167
  %v2169 = vpop.xlane.xlu0 %2168
  %v2170 = vsel %vm281, %v2140, 0.0
  %2171 = vadd.xlane.f32.xlu0 %v2170
  %v2172 = vpop.xlane.xlu0 %2171
  %v2173 = vsel %vm281, %v2141, 0.0
  %2174 = vadd.xlane.f32.xlu0 %v2173
  %v2175 = vpop.xlane.xlu0 %2174
  %v2176 = vsel %vm281, %v2142, 0.0
  %2177 = vadd.xlane.f32.xlu0 %v2176
  %v2178 = vpop.xlane.xlu0 %2177
  %v2179 = vsel %vm281, %v2143, 0.0
  %2180 = vadd.xlane.f32.xlu0 %v2179
  %v2181 = vpop.xlane.xlu0 %2180
  %v2182 = vsel %vm281, %v2144, 0.0
  %2183 = vadd.xlane.f32.xlu0 %v2182
  %v2184 = vpop.xlane.xlu0 %2183
  %v2185 = vsel %vm281, %v2145, 0.0
  %2186 = vadd.xlane.f32.xlu0 %v2185
  %v2187 = vpop.xlane.xlu0 %2186
  %v2188 = vsel %vm281, %v2146, 0.0
  %2189 = vadd.xlane.f32.xlu0 %v2188
  %v2190 = vpop.xlane.xlu0 %2189
  %v2191 = vsel %vm281, %v2147, 0.0
  %2192 = vadd.xlane.f32.xlu0 %v2191
  %v2193 = vpop.xlane.xlu0 %2192
  %v2194 = vsel %vm281, %v2148, 0.0
  %2195 = vadd.xlane.f32.xlu0 %v2194
  %v2196 = vpop.xlane.xlu0 %2195
  %v2197 = vsel %vm281, %v2149, 0.0
  %2198 = vadd.xlane.f32.xlu0 %v2197
  %v2199 = vpop.xlane.xlu0 %2198
  %v2200 = vsel %vm281, %v2150, 0.0
  %2201 = vadd.xlane.f32.xlu0 %v2200
  %v2202 = vpop.xlane.xlu0 %2201
  %v2203 = vsel %vm281, %v2151, 0.0
  %2204 = vadd.xlane.f32.xlu0 %v2203
  %v2205 = vpop.xlane.xlu0 %2204
  %v2206 = vsel %vm281, %v2152, 0.0
  %2207 = vadd.xlane.f32.xlu0 %v2206
  %v2208 = vpop.xlane.xlu0 %2207
  %v2209 = vsel %vm281, %v2153, 0.0
  %2210 = vadd.xlane.f32.xlu0 %v2209
  %v2211 = vpop.xlane.xlu0 %2210
  %v2212 = vsel %vm281, %v2154, 0.0
  %2213 = vadd.xlane.f32.xlu0 %v2212
  %v2214 = vpop.xlane.xlu0 %2213
  %v2215 = vmax.f32 %v2157, %v2163
  %v2216 = vmax.f32 %v2160, %v2166
  %v2217 = vmax.f32 %v2215, %v2169
  %v2218 = vmax.f32 %v2216, %v2172
  %v2219 = vmax.f32 %v2217, %v2175
  %v2220 = vmax.f32 %v2218, %v2178
  %v2221 = vmax.f32 %v2219, %v2181
  %v2222 = vmax.f32 %v2220, %v2184
  %v2223 = vsub.f32 %v2157, %v2221
  %v2224 = vsub.f32 %v2160, %v2222
  %v2225 = vmul.f32 %v2223, 1.442695
  %v2226 = vpow.pop %v2225
  %v2227 = vmul.f32 %v2224, 1.442695
  %v2228 = vpow.pop %v2227
  %v2229 = vsub.f32 %v2163, %v2221
  %v2230 = vsub.f32 %v2166, %v2222
  %v2231 = vmul.f32 %v2229, 1.442695
  %v2232 = vpow.pop %v2231
  %v2233 = vmul.f32 %v2230, 1.442695
  %v2234 = vpow.pop %v2233
  %v2235 = vsub.f32 %v2169, %v2221
  %v2236 = vsub.f32 %v2172, %v2222
  %v2237 = vmul.f32 %v2235, 1.442695
  %v2238 = vpow.pop %v2237
  %v2239 = vmul.f32 %v2236, 1.442695
  %v2240 = vpow.pop %v2239
  %v2241 = vsub.f32 %v2175, %v2221
  %v2242 = vsub.f32 %v2178, %v2222
  %v2243 = vmul.f32 %v2241, 1.442695
  %v2244 = vpow.pop %v2243
  %v2245 = vmul.f32 %v2242, 1.442695
  %v2246 = vpow.pop %v2245
  %v2247 = vsub.f32 %v2181, %v2221
  %v2248 = vsub.f32 %v2184, %v2222
  %v2249 = vmul.f32 %v2247, 1.442695
  %v2250 = vpow.pop %v2249
  %v2251 = vmul.f32 %v2248, 1.442695
  %v2252 = vpow.pop %v2251
  %v2253 = vadd.f32 %v2226, %v2232
  %v2254 = vadd.f32 %v2228, %v2234
  %v2255 = vadd.f32 %v2253, %v2238
  %v2256 = vadd.f32 %v2254, %v2240
  %v2257 = vadd.f32 %v2255, %v2244
  %v2258 = vadd.f32 %v2256, %v2246
  %v2259 = vadd.f32 %v2257, %v2250
  %v2260 = vadd.f32 %v2258, %v2252
  %v2261 = vrcp.pop %v2259
  %v2262 = vmul.f32 1.0, %v2261
  %v2263 = vrcp.pop %v2260
  %v2264 = vmul.f32 1.0, %v2263
  %v2265 = vmul.f32 %v2226, %v2262
  %v2266 = vmul.f32 %v2228, %v2264
  %v2267 = vmul.f32 %v2265, %v1879
  %v2268 = vmul.f32 %v2266, %v1882
  %v2269 = vmul.f32 %v2232, %v2262
  %v2270 = vmul.f32 %v2234, %v2264
  %v2271 = vmul.f32 %v2269, %v1887
  %v2272 = vmul.f32 %v2270, %v1890
  %v2273 = vadd.f32 %v2267, %v2271
  %v2274 = vadd.f32 %v2268, %v2272
  %v2275 = vmul.f32 %v2238, %v2262
  %v2276 = vmul.f32 %v2240, %v2264
  %v2277 = vmul.f32 %v2275, %v1895
  %v2278 = vmul.f32 %v2276, %v1898
  %v2279 = vadd.f32 %v2273, %v2277
  %v2280 = vadd.f32 %v2274, %v2278
  %v2281 = vmul.f32 %v2244, %v2262
  %v2282 = vmul.f32 %v2246, %v2264
  %v2283 = vmul.f32 %v2281, %v1903
  %v2284 = vmul.f32 %v2282, %v1906
  %v2285 = vadd.f32 %v2279, %v2283
  %v2286 = vadd.f32 %v2280, %v2284
  %v2287 = vmul.f32 %v2250, %v2262
  %v2288 = vmul.f32 %v2252, %v2264
  %v2289 = vmul.f32 %v2287, %v1911
  %v2290 = vmul.f32 %v2288, %v1914
  %v2291 = vadd.f32 %v2285, %v2289
  %v2292 = vadd.f32 %v2286, %v2290
  %v2293 = vmax.f32 %v2187, %v2193
  %v2294 = vmax.f32 %v2190, %v2196
  %v2295 = vmax.f32 %v2293, %v2199
  %v2296 = vmax.f32 %v2294, %v2202
  %v2297 = vmax.f32 %v2295, %v2205
  %v2298 = vmax.f32 %v2296, %v2208
  %v2299 = vmax.f32 %v2297, %v2211
  %v2300 = vmax.f32 %v2298, %v2214
  %v2301 = vsub.f32 %v2187, %v2299
  %v2302 = vsub.f32 %v2190, %v2300
  %v2303 = vmul.f32 %v2301, 1.442695
  %v2304 = vpow.pop %v2303
  %v2305 = vmul.f32 %v2302, 1.442695
  %v2306 = vpow.pop %v2305
  %v2307 = vsub.f32 %v2193, %v2299
  %v2308 = vsub.f32 %v2196, %v2300
  %v2309 = vmul.f32 %v2307, 1.442695
  %v2310 = vpow.pop %v2309
  %v2311 = vmul.f32 %v2308, 1.442695
  %v2312 = vpow.pop %v2311
  %v2313 = vsub.f32 %v2199, %v2299
  %v2314 = vsub.f32 %v2202, %v2300
  %v2315 = vmul.f32 %v2313, 1.442695
  %v2316 = vpow.pop %v2315
  %v2317 = vmul.f32 %v2314, 1.442695
  %v2318 = vpow.pop %v2317
  %v2319 = vsub.f32 %v2205, %v2299
  %v2320 = vsub.f32 %v2208, %v2300
  %v2321 = vmul.f32 %v2319, 1.442695
  %v2322 = vpow.pop %v2321
  %v2323 = vmul.f32 %v2320, 1.442695
  %v2324 = vpow.pop %v2323
  %v2325 = vsub.f32 %v2211, %v2299
  %v2326 = vsub.f32 %v2214, %v2300
  %v2327 = vmul.f32 %v2325, 1.442695
  %v2328 = vpow.pop %v2327
  %v2329 = vmul.f32 %v2326, 1.442695
  %v2330 = vpow.pop %v2329
  %v2331 = vadd.f32 %v2304, %v2310
  %v2332 = vadd.f32 %v2306, %v2312
  %v2333 = vadd.f32 %v2331, %v2316
  %v2334 = vadd.f32 %v2332, %v2318
  %v2335 = vadd.f32 %v2333, %v2322
  %v2336 = vadd.f32 %v2334, %v2324
  %v2337 = vadd.f32 %v2335, %v2328
  %v2338 = vadd.f32 %v2336, %v2330
  %v2339 = vrcp.pop %v2337
  %v2340 = vmul.f32 1.0, %v2339
  %v2341 = vrcp.pop %v2338
  %v2342 = vmul.f32 1.0, %v2341
  %v2343 = vmul.f32 %v2304, %v2340
  %v2344 = vmul.f32 %v2306, %v2342
  %v2345 = vmul.f32 %v2343, %v1919
  %v2346 = vmul.f32 %v2344, %v1922
  %v2347 = vmul.f32 %v2310, %v2340
  %v2348 = vmul.f32 %v2312, %v2342
  %v2349 = vmul.f32 %v2347, %v1927
  %v2350 = vmul.f32 %v2348, %v1930
  %v2351 = vadd.f32 %v2345, %v2349
  %v2352 = vadd.f32 %v2346, %v2350
  %v2353 = vmul.f32 %v2316, %v2340
  %v2354 = vmul.f32 %v2318, %v2342
  %v2355 = vmul.f32 %v2353, %v1935
  %v2356 = vmul.f32 %v2354, %v1938
  %v2357 = vadd.f32 %v2351, %v2355
  %v2358 = vadd.f32 %v2352, %v2356
  %v2359 = vmul.f32 %v2322, %v2340
  %v2360 = vmul.f32 %v2324, %v2342
  %v2361 = vmul.f32 %v2359, %v1943
  %v2362 = vmul.f32 %v2360, %v1946
  %v2363 = vadd.f32 %v2357, %v2361
  %v2364 = vadd.f32 %v2358, %v2362
  %v2365 = vmul.f32 %v2328, %v2340
  %v2366 = vmul.f32 %v2330, %v2342
  %v2367 = vmul.f32 %v2365, %v1951
  %v2368 = vmul.f32 %v2366, %v1954
  %v2369 = vadd.f32 %v2363, %v2367
  %v2370 = vadd.f32 %v2364, %v2368
  %2373 = vrot.lane.b32.xlu0 %v2369, 16
  %v2374 = vpop.permute.xlu0 %2373
  %2375 = vrot.lane.b32.xlu0 %v2370, 16
  %v2376 = vpop.permute.xlu0 %2375
  %2381 = vrot.lane.b32.xlu0 %v1841, 32
  %v2382 = vpop.permute.xlu0 %2381
  %2383 = vrot.lane.b32.xlu0 %v1842, 32
  %v2384 = vpop.permute.xlu0 %2383
  %v2387 = vsel %vm281, %v2291, %v2374
  %v2388 = vsel %vm281, %v2292, %v2376
  %v2389 = vsel %vm857, %v2387, %v2382
  %v2390 = vsel %vm857, %v2388, %v2384
  %v2391 = vpack.c.bf16 %v2390, %v2389
  %v2392 = vpack.c.bf16 %v1754, %v1753
  %v2393 = vpack.c.bf16 %v1756, %v1755
  %v2394 = vpack.c.bf16 %v1758, %v1757
  %v2395 = vlaneseq
  %v2396 = vshrl.u32 %v2395, 7
  %v2397 = vsub.s32 0, %v2396
  %v2398 = vrot.slane %v1759, %v2397
  %v2400 = vsel %vm868, %v2391, 0
  %2402 = vmatprep.subr.bf16.mxu0 0
  %2403 = vmatpush1.bf16.msra.mxu0 %v2392
  %2404 = vmatprep.subr.bf16.mxu0 0
  %2405 = vmatpush1.bf16.msra.mxu0 %v2393
  %2406 = vmatprep.subr.bf16.mxu0 0
  %2407 = vmatpush1.bf16.msra.mxu0 %v2394
  %2408 = vmatprep.subr.bf16.mxu0 0
  %2409 = vmatpush1.bf16.msra.mxu0 0
  %2410 = vmatprep.subr.bf16.mxu0 0
  %2411 = vmatpush1.bf16.msra.mxu0 0
  %2412 = vmatprep.subr.bf16.mxu0 0
  %2413 = vmatpush1.bf16.msra.mxu0 0
  %2414 = vmatprep.subr.bf16.mxu0 0
  %2415 = vmatpush1.bf16.msra.mxu0 0
  %2416 = vmatprep.subr.bf16.mxu0 0
  %2417 = vmatpush1.bf16.msra.mxu0 0
  %2418 = vmatprep.subr.bf16.mxu0 0
  %2419 = vmatpush1.bf16.msra.mxu0 0
  %2420 = vmatprep.subr.bf16.mxu0 0
  %2421 = vmatpush1.bf16.msra.mxu0 0
  %2422 = vmatprep.subr.bf16.mxu0 0
  %2423 = vmatpush1.bf16.msra.mxu0 0
  %2424 = vmatprep.subr.bf16.mxu0 0
  %2425 = vmatpush1.bf16.msra.mxu0 0
  %2426 = vmatprep.subr.bf16.mxu0 0
  %2427 = vmatpush1.bf16.msra.mxu0 0
  %2428 = vmatprep.subr.bf16.mxu0 0
  %2429 = vmatpush1.bf16.msra.mxu0 0
  %2430 = vmatprep.subr.bf16.mxu0 0
  %2431 = vmatpush1.bf16.msra.mxu0 0
  %2432 = vmatprep.subr.bf16.mxu0 0
  %2433 = vmatpush1.bf16.msra.mxu0 0
  %2434 = vmatprep.mubr.bf16.mxu0 0
  %2435 = vmatmul.mubr.bf16.gmra.mrb[0].mxu0 %v2400
  %v2436 = vpop.f32.mrb[0].mxu0
  %v2437 = vadd.f32 %v2398, %v2436
  %v2438 = vpop.f32.mrb[0].mxu0
  %v2439 = vpop.f32.mrb[0].mxu0
  %v2440 = vadd.f32 %v2398, %v2439
  %v2441 = vpop.f32.mrb[0].mxu0
  %2442 = vdwg.mxu0
  %v2443 = vxor.u32 %v2437, 2147483648
  %v2444 = vxor.u32 %v2440, 2147483648
  %v2445 = vmul.f32 %v2443, 1.442695
  %v2446 = vpow.pop %v2445
  %v2447 = vmul.f32 %v2444, 1.442695
  %v2448 = vpow.pop %v2447
  %v2449 = vadd.f32 %v2446, 1.0
  %v2450 = vadd.f32 %v2448, 1.0
  %v2451 = vrcp.pop %v2449
  %v2452 = vmul.f32 1.0, %v2451
  %v2453 = vrcp.pop %v2450
  %v2454 = vmul.f32 1.0, %v2453
  %v2455 = vmul.f32 %v2452, %v1666
  %v2456 = vmul.f32 %v2454, %v1667
  %v2457 = vld [vmem:[%s5] sm:$0xff]
  %v2458 = vld [vmem:[%s5 + $0x8] sm:$0xff]
  %v2459 = vld [vmem:[%s5 + $0x10] sm:$0x1]
  %v2460 = vld [vmem:[%s5 + $0x18] sm:$0xff]
  %v2461 = vld [vmem:[%s5 + $0x20] sm:$0xff]
  %v2462 = vld [vmem:[%s5 + $0x28] sm:$0xff]
  %v2463 = vld [vmem:[%s5 + $0x30] sm:$0x1]
  %v2465 = vsel %vm146, %v2455, 0
  %v2468 = vsel %vm146, %v2456, 0
  %2470 = vmatprep.subr.mxu0 0.0
  %2471 = vmatpush1.msra.mxu0 %v2457
  %2472 = vmatprep.subr.mxu0 0.0
  %2473 = vmatpush1.msra.mxu0 0.0
  %2474 = vmatprep.subr.mxu0 0.0
  %2475 = vmatpush1.msra.mxu0 0.0
  %2476 = vmatprep.subr.mxu0 0.0
  %2477 = vmatpush1.msra.mxu0 0.0
  %2478 = vmatprep.subr.mxu0 0.0
  %2479 = vmatpush1.msra.mxu0 0.0
  %2480 = vmatprep.subr.mxu0 0.0
  %2481 = vmatpush1.msra.mxu0 0.0
  %2482 = vmatprep.subr.mxu0 0.0
  %2483 = vmatpush1.msra.mxu0 0.0
  %2484 = vmatprep.subr.mxu0 0.0
  %2485 = vmatpush1.msra.mxu0 0.0
  %2486 = vmatprep.subr.mxu0 0.0
  %2487 = vmatpush1.msra.mxu0 0.0
  %2488 = vmatprep.subr.mxu0 0.0
  %2489 = vmatpush1.msra.mxu0 0.0
  %2490 = vmatprep.subr.mxu0 0.0
  %2491 = vmatpush1.msra.mxu0 0.0
  %2492 = vmatprep.subr.mxu0 0.0
  %2493 = vmatpush1.msra.mxu0 0.0
  %2494 = vmatprep.subr.mxu0 0.0
  %2495 = vmatpush1.msra.mxu0 0.0
  %2496 = vmatprep.subr.mxu0 0.0
  %2497 = vmatpush1.msra.mxu0 0.0
  %2498 = vmatprep.subr.mxu0 0.0
  %2499 = vmatpush1.msra.mxu0 0.0
  %2500 = vmatprep.subr.mxu0 0.0
  %2501 = vmatpush1.msra.mxu0 0.0
  %2502 = vmatprep.subr.mxu0 0.0
  %2503 = vmatpush1.msra.mxu0 0.0
  %2504 = vmatprep.subr.mxu0 0.0
  %2505 = vmatpush1.msra.mxu0 0.0
  %2506 = vmatprep.subr.mxu0 0.0
  %2507 = vmatpush1.msra.mxu0 0.0
  %2508 = vmatprep.subr.mxu0 0.0
  %2509 = vmatpush1.msra.mxu0 0.0
  %2510 = vmatprep.subr.mxu0 0.0
  %2511 = vmatpush1.msra.mxu0 0.0
  %2512 = vmatprep.subr.mxu0 0.0
  %2513 = vmatpush1.msra.mxu0 0.0
  %2514 = vmatprep.subr.mxu0 0.0
  %2515 = vmatpush1.msra.mxu0 0.0
  %2516 = vmatprep.subr.mxu0 0.0
  %2517 = vmatpush1.msra.mxu0 0.0
  %2518 = vmatprep.subr.mxu0 0.0
  %2519 = vmatpush1.msra.mxu0 0.0
  %2520 = vmatprep.subr.mxu0 0.0
  %2521 = vmatpush1.msra.mxu0 0.0
  %2522 = vmatprep.subr.mxu0 0.0
  %2523 = vmatpush1.msra.mxu0 0.0
  %2524 = vmatprep.subr.mxu0 0.0
  %2525 = vmatpush1.msra.mxu0 0.0
  %2526 = vmatprep.subr.mxu0 0.0
  %2527 = vmatpush1.msra.mxu0 0.0
  %2528 = vmatprep.subr.mxu0 0.0
  %2529 = vmatpush1.msra.mxu0 0.0
  %2530 = vmatprep.subr.mxu0 0.0
  %2531 = vmatpush1.msra.mxu0 0.0
  %2532 = vmatprep.subr.mxu0 0.0
  %2533 = vmatpush1.msra.mxu0 0.0
  %2534 = vmatprep.mubr.f32.mxu0 0.0
  %2535 = vmatmul.mubr.f32.gmra.mrb[0].mxu0 %v2465
  %v2536 = vpop.f32.mrb[0].mxu0
  %v2537 = vadd.f32 0.0, %v2536
  %v2538 = vpop.f32.mrb[0].mxu0
  %2539 = vmatprep.mubr.f32.mxu0 0.0
  %2540 = vmatmul.mubr.f32.gmra.mrb[0].mxu0 %v2468
  %v2541 = vpop.f32.mrb[0].mxu0
  %v2542 = vadd.f32 0.0, %v2541
  %v2543 = vpop.f32.mrb[0].mxu0
  %2544 = vdwg.mxu0
  %2547 = vrot.lane.b32.xlu0 %v2537, 16
  %v2548 = vpop.permute.xlu0 %2547
  %2549 = vrot.lane.b32.xlu0 %v2542, 16
  %v2550 = vpop.permute.xlu0 %2549
  %v2553 = vadd.f32 %v1741, %v2548
  %v2554 = vadd.f32 %v1746, %v2550
  %v2555 = vpack.c.bf16 %v2554, %v2553
  %2557 = vrot.lane.b32.xlu0 %v2555, 112
  %v2558 = vpop.permute.xlu0 %2557
  %2560 = vmatprep.subr.bf16.mxu0 0
  %2561 = vmatpush1.bf16.msra.mxu0 %v2558
  %2562 = vmatprep.subr.bf16.mxu0 0
  %2563 = vmatpush1.bf16.msra.mxu0 0
  %2564 = vmatprep.subr.bf16.mxu0 0
  %2565 = vmatpush1.bf16.msra.mxu0 0
  %2566 = vmatprep.subr.bf16.mxu0 0
  %2567 = vmatpush1.bf16.msra.mxu0 0
  %2568 = vmatprep.subr.bf16.mxu0 0
  %2569 = vmatpush1.bf16.msra.mxu0 0
  %2570 = vmatprep.subr.bf16.mxu0 0
  %2571 = vmatpush1.bf16.msra.mxu0 0
  %2572 = vmatprep.subr.bf16.mxu0 0
  %2573 = vmatpush1.bf16.msra.mxu0 0
  %2574 = vmatprep.subr.bf16.mxu0 0
  %2575 = vmatpush1.bf16.msra.mxu0 0
  %2576 = vmatprep.subr.bf16.mxu0 0
  %2577 = vmatpush1.bf16.msra.mxu0 0
  %2578 = vmatprep.subr.bf16.mxu0 0
  %2579 = vmatpush1.bf16.msra.mxu0 0
  %2580 = vmatprep.subr.bf16.mxu0 0
  %2581 = vmatpush1.bf16.msra.mxu0 0
  %2582 = vmatprep.subr.bf16.mxu0 0
  %2583 = vmatpush1.bf16.msra.mxu0 0
  %2584 = vmatprep.subr.bf16.mxu0 0
  %2585 = vmatpush1.bf16.msra.mxu0 0
  %2586 = vmatprep.subr.bf16.mxu0 0
  %2587 = vmatpush1.bf16.msra.mxu0 0
  %2588 = vmatprep.subr.bf16.mxu0 0
  %2589 = vmatpush1.bf16.msra.mxu0 0
  %2590 = vmatprep.subr.bf16.mxu0 0
  %2591 = vmatpush1.bf16.msra.mxu0 0
  %2592 = vmatprep.mubr.bf16.mxu0 0
  %2593 = vmatmul.mubr.bf16.gmra.mrb[0].mxu0 %v283
  %v2594 = vpop.f32.mrb[0].mxu0
  %v2595 = vadd.f32 0.0, %v2594
  %v2596 = vpop.f32.mrb[0].mxu0
  %v2597 = vpop.f32.mrb[0].mxu0
  %v2598 = vadd.f32 0.0, %v2597
  %v2599 = vpop.f32.mrb[0].mxu0
  %2600 = vmatprep.mubr.bf16.mxu0 0
  %2601 = vmatmul.mubr.bf16.gmra.mrb[0].mxu0 %v286
  %v2602 = vpop.f32.mrb[0].mxu0
  %v2603 = vadd.f32 0.0, %v2602
  %v2604 = vpop.f32.mrb[0].mxu0
  %v2605 = vpop.f32.mrb[0].mxu0
  %v2606 = vadd.f32 0.0, %v2605
  %v2607 = vpop.f32.mrb[0].mxu0
  %2608 = vmatprep.mubr.bf16.mxu0 0
  %2609 = vmatmul.mubr.bf16.gmra.mrb[0].mxu0 %v289
  %v2610 = vpop.f32.mrb[0].mxu0
  %v2611 = vadd.f32 0.0, %v2610
  %v2612 = vpop.f32.mrb[0].mxu0
  %v2613 = vpop.f32.mrb[0].mxu0
  %v2614 = vadd.f32 0.0, %v2613
  %v2615 = vpop.f32.mrb[0].mxu0
  %2616 = vmatprep.mubr.bf16.mxu0 0
  %2617 = vmatmul.mubr.bf16.gmra.mrb[0].mxu0 %v292
  %v2618 = vpop.f32.mrb[0].mxu0
  %v2619 = vadd.f32 0.0, %v2618
  %v2620 = vpop.f32.mrb[0].mxu0
  %v2621 = vpop.f32.mrb[0].mxu0
  %v2622 = vadd.f32 0.0, %v2621
  %v2623 = vpop.f32.mrb[0].mxu0
  %2624 = vmatprep.mubr.bf16.mxu0 0
  %2625 = vmatmul.mubr.bf16.gmra.mrb[0].mxu0 %v295
  %v2626 = vpop.f32.mrb[0].mxu0
  %v2627 = vadd.f32 0.0, %v2626
  %v2628 = vpop.f32.mrb[0].mxu0
  %v2629 = vpop.f32.mrb[0].mxu0
  %v2630 = vadd.f32 0.0, %v2629
  %v2631 = vpop.f32.mrb[0].mxu0
  %2632 = vmatprep.mubr.bf16.mxu0 0
  %2633 = vmatmul.mubr.bf16.gmra.mrb[0].mxu0 %v298
  %v2634 = vpop.f32.mrb[0].mxu0
  %v2635 = vadd.f32 0.0, %v2634
  %v2636 = vpop.f32.mrb[0].mxu0
  %v2637 = vpop.f32.mrb[0].mxu0
  %v2638 = vadd.f32 0.0, %v2637
  %v2639 = vpop.f32.mrb[0].mxu0
  %2640 = vmatprep.mubr.bf16.mxu0 0
  %2641 = vmatmul.mubr.bf16.gmra.mrb[0].mxu0 %v301
  %v2642 = vpop.f32.mrb[0].mxu0
  %v2643 = vadd.f32 0.0, %v2642
  %v2644 = vpop.f32.mrb[0].mxu0
  %v2645 = vpop.f32.mrb[0].mxu0
  %v2646 = vadd.f32 0.0, %v2645
  %v2647 = vpop.f32.mrb[0].mxu0
  %2648 = vmatprep.mubr.bf16.mxu0 0
  %2649 = vmatmul.mubr.bf16.gmra.mrb[0].mxu0 %v304
  %v2650 = vpop.f32.mrb[0].mxu0
  %v2651 = vadd.f32 0.0, %v2650
  %v2652 = vpop.f32.mrb[0].mxu0
  %v2653 = vpop.f32.mrb[0].mxu0
  %v2654 = vadd.f32 0.0, %v2653
  %v2655 = vpop.f32.mrb[0].mxu0
  %2656 = vmatprep.mubr.bf16.mxu0 0
  %2657 = vmatmul.mubr.bf16.gmra.mrb[0].mxu0 %v307
  %v2658 = vpop.f32.mrb[0].mxu0
  %v2659 = vadd.f32 0.0, %v2658
  %v2660 = vpop.f32.mrb[0].mxu0
  %v2661 = vpop.f32.mrb[0].mxu0
  %v2662 = vadd.f32 0.0, %v2661
  %v2663 = vpop.f32.mrb[0].mxu0
  %2664 = vmatprep.mubr.bf16.mxu0 0
  %2665 = vmatmul.mubr.bf16.gmra.mrb[0].mxu0 %v310
  %v2666 = vpop.f32.mrb[0].mxu0
  %v2667 = vadd.f32 0.0, %v2666
  %v2668 = vpop.f32.mrb[0].mxu0
  %v2669 = vpop.f32.mrb[0].mxu0
  %v2670 = vadd.f32 0.0, %v2669
  %v2671 = vpop.f32.mrb[0].mxu0
  %2672 = vdwg.mxu0
  %v2673 = vpack.c.bf16 %v2598, %v2595
  %v2674 = vpack.c.bf16 %v2606, %v2603
  %v2675 = vpack.c.bf16 %v2614, %v2611
  %v2676 = vpack.c.bf16 %v2622, %v2619
  %v2677 = vpack.c.bf16 %v2630, %v2627
  %v2678 = vpack.c.bf16 %v2638, %v2635
  %v2679 = vpack.c.bf16 %v2646, %v2643
  %v2680 = vpack.c.bf16 %v2654, %v2651
  %v2681 = vpack.c.bf16 %v2662, %v2659
  %v2682 = vpack.c.bf16 %v2670, %v2667
  %v2683 = vpack.c.bf16 %v2458, %v2458
  %v2685 = vsel %vm146, %v2673, 0
  %v2688 = vsel %vm146, %v2674, 0
  %v2691 = vsel %vm146, %v2675, 0
  %v2694 = vsel %vm146, %v2676, 0
  %v2697 = vsel %vm146, %v2677, 0
  %v2700 = vsel %vm146, %v2678, 0
  %v2703 = vsel %vm146, %v2679, 0
  %v2706 = vsel %vm146, %v2680, 0
  %v2709 = vsel %vm146, %v2681, 0
  %v2712 = vsel %vm146, %v2682, 0
  %v2715 = vsel %vm1184, %v2683, 0
  %2717 = vmatprep.subr.bf16.mxu0 0
  %2718 = vmatpush1.bf16.msra.mxu0 %v2715
  %2719 = vmatprep.subr.bf16.mxu0 0
  %2720 = vmatpush1.bf16.msra.mxu0 0
  %2721 = vmatprep.subr.bf16.mxu0 0
  %2722 = vmatpush1.bf16.msra.mxu0 0
  %2723 = vmatprep.subr.bf16.mxu0 0
  %2724 = vmatpush1.bf16.msra.mxu0 0
  %2725 = vmatprep.subr.bf16.mxu0 0
  %2726 = vmatpush1.bf16.msra.mxu0 0
  %2727 = vmatprep.subr.bf16.mxu0 0
  %2728 = vmatpush1.bf16.msra.mxu0 0
  %2729 = vmatprep.subr.bf16.mxu0 0
  %2730 = vmatpush1.bf16.msra.mxu0 0
  %2731 = vmatprep.subr.bf16.mxu0 0
  %2732 = vmatpush1.bf16.msra.mxu0 0
  %2733 = vmatprep.subr.bf16.mxu0 0
  %2734 = vmatpush1.bf16.msra.mxu0 0
  %2735 = vmatprep.subr.bf16.mxu0 0
  %2736 = vmatpush1.bf16.msra.mxu0 0
  %2737 = vmatprep.subr.bf16.mxu0 0
  %2738 = vmatpush1.bf16.msra.mxu0 0
  %2739 = vmatprep.subr.bf16.mxu0 0
  %2740 = vmatpush1.bf16.msra.mxu0 0
  %2741 = vmatprep.subr.bf16.mxu0 0
  %2742 = vmatpush1.bf16.msra.mxu0 0
  %2743 = vmatprep.subr.bf16.mxu0 0
  %2744 = vmatpush1.bf16.msra.mxu0 0
  %2745 = vmatprep.subr.bf16.mxu0 0
  %2746 = vmatpush1.bf16.msra.mxu0 0
  %2747 = vmatprep.subr.bf16.mxu0 0
  %2748 = vmatpush1.bf16.msra.mxu0 0
  %2749 = vmatprep.mubr.bf16.mxu0 0
  %2750 = vmatmul.mubr.bf16.gmra.mrb[0].mxu0 %v2685
  %v2751 = vpop.f32.mrb[0].mxu0
  %v2752 = vadd.f32 0.0, %v2751
  %v2753 = vpop.f32.mrb[0].mxu0
  %v2754 = vpop.f32.mrb[0].mxu0
  %v2755 = vadd.f32 0.0, %v2754
  %v2756 = vpop.f32.mrb[0].mxu0
  %2757 = vmatprep.mubr.bf16.mxu0 0
  %2758 = vmatmul.mubr.bf16.gmra.mrb[0].mxu0 %v2688
  %v2759 = vpop.f32.mrb[0].mxu0
  %v2760 = vadd.f32 0.0, %v2759
  %v2761 = vpop.f32.mrb[0].mxu0
  %v2762 = vpop.f32.mrb[0].mxu0
  %v2763 = vadd.f32 0.0, %v2762
  %v2764 = vpop.f32.mrb[0].mxu0
  %2765 = vmatprep.mubr.bf16.mxu0 0
  %2766 = vmatmul.mubr.bf16.gmra.mrb[0].mxu0 %v2691
  %v2767 = vpop.f32.mrb[0].mxu0
  %v2768 = vadd.f32 0.0, %v2767
  %v2769 = vpop.f32.mrb[0].mxu0
  %v2770 = vpop.f32.mrb[0].mxu0
  %v2771 = vadd.f32 0.0, %v2770
  %v2772 = vpop.f32.mrb[0].mxu0
  %2773 = vmatprep.mubr.bf16.mxu0 0
  %2774 = vmatmul.mubr.bf16.gmra.mrb[0].mxu0 %v2694
  %v2775 = vpop.f32.mrb[0].mxu0
  %v2776 = vadd.f32 0.0, %v2775
  %v2777 = vpop.f32.mrb[0].mxu0
  %v2778 = vpop.f32.mrb[0].mxu0
  %v2779 = vadd.f32 0.0, %v2778
  %v2780 = vpop.f32.mrb[0].mxu0
  %2781 = vmatprep.mubr.bf16.mxu0 0
  %2782 = vmatmul.mubr.bf16.gmra.mrb[0].mxu0 %v2697
  %v2783 = vpop.f32.mrb[0].mxu0
  %v2784 = vadd.f32 0.0, %v2783
  %v2785 = vpop.f32.mrb[0].mxu0
  %v2786 = vpop.f32.mrb[0].mxu0
  %v2787 = vadd.f32 0.0, %v2786
  %v2788 = vpop.f32.mrb[0].mxu0
  %2789 = vmatprep.mubr.bf16.mxu0 0
  %2790 = vmatmul.mubr.bf16.gmra.mrb[0].mxu0 %v2700
  %v2791 = vpop.f32.mrb[0].mxu0
  %v2792 = vadd.f32 0.0, %v2791
  %v2793 = vpop.f32.mrb[0].mxu0
  %v2794 = vpop.f32.mrb[0].mxu0
  %v2795 = vadd.f32 0.0, %v2794
  %v2796 = vpop.f32.mrb[0].mxu0
  %2797 = vmatprep.mubr.bf16.mxu0 0
  %2798 = vmatmul.mubr.bf16.gmra.mrb[0].mxu0 %v2703
  %v2799 = vpop.f32.mrb[0].mxu0
  %v2800 = vadd.f32 0.0, %v2799
  %v2801 = vpop.f32.mrb[0].mxu0
  %v2802 = vpop.f32.mrb[0].mxu0
  %v2803 = vadd.f32 0.0, %v2802
  %v2804 = vpop.f32.mrb[0].mxu0
  %2805 = vmatprep.mubr.bf16.mxu0 0
  %2806 = vmatmul.mubr.bf16.gmra.mrb[0].mxu0 %v2706
  %v2807 = vpop.f32.mrb[0].mxu0
  %v2808 = vadd.f32 0.0, %v2807
  %v2809 = vpop.f32.mrb[0].mxu0
  %v2810 = vpop.f32.mrb[0].mxu0
  %v2811 = vadd.f32 0.0, %v2810
  %v2812 = vpop.f32.mrb[0].mxu0
  %2813 = vmatprep.mubr.bf16.mxu0 0
  %2814 = vmatmul.mubr.bf16.gmra.mrb[0].mxu0 %v2709
  %v2815 = vpop.f32.mrb[0].mxu0
  %v2816 = vadd.f32 0.0, %v2815
  %v2817 = vpop.f32.mrb[0].mxu0
  %v2818 = vpop.f32.mrb[0].mxu0
  %v2819 = vadd.f32 0.0, %v2818
  %v2820 = vpop.f32.mrb[0].mxu0
  %2821 = vmatprep.mubr.bf16.mxu0 0
  %2822 = vmatmul.mubr.bf16.gmra.mrb[0].mxu0 %v2712
  %v2823 = vpop.f32.mrb[0].mxu0
  %v2824 = vadd.f32 0.0, %v2823
  %v2825 = vpop.f32.mrb[0].mxu0
  %v2826 = vpop.f32.mrb[0].mxu0
  %v2827 = vadd.f32 0.0, %v2826
  %v2828 = vpop.f32.mrb[0].mxu0
  %2829 = vdwg.mxu0
  %v2830 = vmax.f32 %v2752, 0.0
  %v2831 = vmax.f32 %v2755, 0.0
  %v2832 = vmax.f32 %v2760, 0.0
  %v2833 = vmax.f32 %v2763, 0.0
  %v2834 = vmax.f32 %v2768, 0.0
  %v2835 = vmax.f32 %v2771, 0.0
  %v2836 = vmax.f32 %v2776, 0.0
  %v2837 = vmax.f32 %v2779, 0.0
  %v2838 = vmax.f32 %v2784, 0.0
  %v2839 = vmax.f32 %v2787, 0.0
  %v2840 = vmax.f32 %v2792, 0.0
  %v2841 = vmax.f32 %v2795, 0.0
  %v2842 = vmax.f32 %v2800, 0.0
  %v2843 = vmax.f32 %v2803, 0.0
  %v2844 = vmax.f32 %v2808, 0.0
  %v2845 = vmax.f32 %v2811, 0.0
  %v2846 = vmax.f32 %v2816, 0.0
  %v2847 = vmax.f32 %v2819, 0.0
  %v2848 = vmax.f32 %v2824, 0.0
  %v2849 = vmax.f32 %v2827, 0.0
  %v2850 = vlaneseq
  %v2851 = vshrl.u32 %v2850, 7
  %v2852 = vsub.s32 0, %v2851
  %v2853 = vrot.slane %v2459, %v2852
  %v2854 = vmul.f32 %v2830, %v2853
  %v2855 = vmul.f32 %v2831, %v2853
  %v2856 = vmul.f32 %v2832, %v2853
  %v2857 = vmul.f32 %v2833, %v2853
  %v2858 = vmul.f32 %v2834, %v2853
  %v2859 = vmul.f32 %v2835, %v2853
  %v2860 = vmul.f32 %v2836, %v2853
  %v2861 = vmul.f32 %v2837, %v2853
  %v2862 = vmul.f32 %v2838, %v2853
  %v2863 = vmul.f32 %v2839, %v2853
  %v2864 = vmul.f32 %v2840, %v2853
  %v2865 = vmul.f32 %v2841, %v2853
  %v2866 = vmul.f32 %v2842, %v2853
  %v2867 = vmul.f32 %v2843, %v2853
  %v2868 = vmul.f32 %v2844, %v2853
  %v2869 = vmul.f32 %v2845, %v2853
  %v2870 = vmul.f32 %v2846, %v2853
  %v2871 = vmul.f32 %v2847, %v2853
  %v2872 = vmul.f32 %v2848, %v2853
  %v2873 = vmul.f32 %v2849, %v2853
  %v2874 = vsel %vm146, %v2854, 0.0
  %2875 = vadd.xlane.f32.xlu0 %v2874
  %v2876 = vpop.xlane.xlu0 %2875
  %v2877 = vsel %vm146, %v2855, 0.0
  %2878 = vadd.xlane.f32.xlu0 %v2877
  %v2879 = vpop.xlane.xlu0 %2878
  %v2880 = vsel %vm146, %v2856, 0.0
  %2881 = vadd.xlane.f32.xlu0 %v2880
  %v2882 = vpop.xlane.xlu0 %2881
  %v2883 = vsel %vm146, %v2857, 0.0
  %2884 = vadd.xlane.f32.xlu0 %v2883
  %v2885 = vpop.xlane.xlu0 %2884
  %v2886 = vsel %vm146, %v2858, 0.0
  %2887 = vadd.xlane.f32.xlu0 %v2886
  %v2888 = vpop.xlane.xlu0 %2887
  %v2889 = vsel %vm146, %v2859, 0.0
  %2890 = vadd.xlane.f32.xlu0 %v2889
  %v2891 = vpop.xlane.xlu0 %2890
  %v2892 = vsel %vm146, %v2860, 0.0
  %2893 = vadd.xlane.f32.xlu0 %v2892
  %v2894 = vpop.xlane.xlu0 %2893
  %v2895 = vsel %vm146, %v2861, 0.0
  %2896 = vadd.xlane.f32.xlu0 %v2895
  %v2897 = vpop.xlane.xlu0 %2896
  %v2898 = vsel %vm146, %v2862, 0.0
  %2899 = vadd.xlane.f32.xlu0 %v2898
  %v2900 = vpop.xlane.xlu0 %2899
  %v2901 = vsel %vm146, %v2863, 0.0
  %2902 = vadd.xlane.f32.xlu0 %v2901
  %v2903 = vpop.xlane.xlu0 %2902
  %v2904 = vsel %vm146, %v2864, 0.0
  %2905 = vadd.xlane.f32.xlu0 %v2904
  %v2906 = vpop.xlane.xlu0 %2905
  %v2907 = vsel %vm146, %v2865, 0.0
  %2908 = vadd.xlane.f32.xlu0 %v2907
  %v2909 = vpop.xlane.xlu0 %2908
  %v2910 = vsel %vm146, %v2866, 0.0
  %2911 = vadd.xlane.f32.xlu0 %v2910
  %v2912 = vpop.xlane.xlu0 %2911
  %v2913 = vsel %vm146, %v2867, 0.0
  %2914 = vadd.xlane.f32.xlu0 %v2913
  %v2915 = vpop.xlane.xlu0 %2914
  %v2916 = vsel %vm146, %v2868, 0.0
  %2917 = vadd.xlane.f32.xlu0 %v2916
  %v2918 = vpop.xlane.xlu0 %2917
  %v2919 = vsel %vm146, %v2869, 0.0
  %2920 = vadd.xlane.f32.xlu0 %v2919
  %v2921 = vpop.xlane.xlu0 %2920
  %v2922 = vsel %vm146, %v2870, 0.0
  %2923 = vadd.xlane.f32.xlu0 %v2922
  %v2924 = vpop.xlane.xlu0 %2923
  %v2925 = vsel %vm146, %v2871, 0.0
  %2926 = vadd.xlane.f32.xlu0 %v2925
  %v2927 = vpop.xlane.xlu0 %2926
  %v2928 = vsel %vm146, %v2872, 0.0
  %2929 = vadd.xlane.f32.xlu0 %v2928
  %v2930 = vpop.xlane.xlu0 %2929
  %v2931 = vsel %vm146, %v2873, 0.0
  %2932 = vadd.xlane.f32.xlu0 %v2931
  %v2933 = vpop.xlane.xlu0 %2932
  %v2934 = vmax.f32 %v2876, %v2882
  %v2935 = vmax.f32 %v2879, %v2885
  %v2936 = vmax.f32 %v2934, %v2888
  %v2937 = vmax.f32 %v2935, %v2891
  %v2938 = vmax.f32 %v2936, %v2894
  %v2939 = vmax.f32 %v2937, %v2897
  %v2940 = vmax.f32 %v2938, %v2900
  %v2941 = vmax.f32 %v2939, %v2903
  %v2942 = vsub.f32 %v2876, %v2940
  %v2943 = vsub.f32 %v2879, %v2941
  %v2944 = vmul.f32 %v2942, 1.442695
  %v2945 = vpow.pop %v2944
  %v2946 = vmul.f32 %v2943, 1.442695
  %v2947 = vpow.pop %v2946
  %v2948 = vsub.f32 %v2882, %v2940
  %v2949 = vsub.f32 %v2885, %v2941
  %v2950 = vmul.f32 %v2948, 1.442695
  %v2951 = vpow.pop %v2950
  %v2952 = vmul.f32 %v2949, 1.442695
  %v2953 = vpow.pop %v2952
  %v2954 = vsub.f32 %v2888, %v2940
  %v2955 = vsub.f32 %v2891, %v2941
  %v2956 = vmul.f32 %v2954, 1.442695
  %v2957 = vpow.pop %v2956
  %v2958 = vmul.f32 %v2955, 1.442695
  %v2959 = vpow.pop %v2958
  %v2960 = vsub.f32 %v2894, %v2940
  %v2961 = vsub.f32 %v2897, %v2941
  %v2962 = vmul.f32 %v2960, 1.442695
  %v2963 = vpow.pop %v2962
  %v2964 = vmul.f32 %v2961, 1.442695
  %v2965 = vpow.pop %v2964
  %v2966 = vsub.f32 %v2900, %v2940
  %v2967 = vsub.f32 %v2903, %v2941
  %v2968 = vmul.f32 %v2966, 1.442695
  %v2969 = vpow.pop %v2968
  %v2970 = vmul.f32 %v2967, 1.442695
  %v2971 = vpow.pop %v2970
  %v2972 = vadd.f32 %v2945, %v2951
  %v2973 = vadd.f32 %v2947, %v2953
  %v2974 = vadd.f32 %v2972, %v2957
  %v2975 = vadd.f32 %v2973, %v2959
  %v2976 = vadd.f32 %v2974, %v2963
  %v2977 = vadd.f32 %v2975, %v2965
  %v2978 = vadd.f32 %v2976, %v2969
  %v2979 = vadd.f32 %v2977, %v2971
  %v2980 = vrcp.pop %v2978
  %v2981 = vmul.f32 1.0, %v2980
  %v2982 = vrcp.pop %v2979
  %v2983 = vmul.f32 1.0, %v2982
  %v2984 = vmul.f32 %v2945, %v2981
  %v2985 = vmul.f32 %v2947, %v2983
  %v2986 = vmul.f32 %v2984, %v2595
  %v2987 = vmul.f32 %v2985, %v2598
  %v2988 = vmul.f32 %v2951, %v2981
  %v2989 = vmul.f32 %v2953, %v2983
  %v2990 = vmul.f32 %v2988, %v2603
  %v2991 = vmul.f32 %v2989, %v2606
  %v2992 = vadd.f32 %v2986, %v2990
  %v2993 = vadd.f32 %v2987, %v2991
  %v2994 = vmul.f32 %v2957, %v2981
  %v2995 = vmul.f32 %v2959, %v2983
  %v2996 = vmul.f32 %v2994, %v2611
  %v2997 = vmul.f32 %v2995, %v2614
  %v2998 = vadd.f32 %v2992, %v2996
  %v2999 = vadd.f32 %v2993, %v2997
  %v3000 = vmul.f32 %v2963, %v2981
  %v3001 = vmul.f32 %v2965, %v2983
  %v3002 = vmul.f32 %v3000, %v2619
  %v3003 = vmul.f32 %v3001, %v2622
  %v3004 = vadd.f32 %v2998, %v3002
  %v3005 = vadd.f32 %v2999, %v3003
  %v3006 = vmul.f32 %v2969, %v2981
  %v3007 = vmul.f32 %v2971, %v2983
  %v3008 = vmul.f32 %v3006, %v2627
  %v3009 = vmul.f32 %v3007, %v2630
  %v3010 = vadd.f32 %v3004, %v3008
  %v3011 = vadd.f32 %v3005, %v3009
  %v3012 = vmax.f32 %v2906, %v2912
  %v3013 = vmax.f32 %v2909, %v2915
  %v3014 = vmax.f32 %v3012, %v2918
  %v3015 = vmax.f32 %v3013, %v2921
  %v3016 = vmax.f32 %v3014, %v2924
  %v3017 = vmax.f32 %v3015, %v2927
  %v3018 = vmax.f32 %v3016, %v2930
  %v3019 = vmax.f32 %v3017, %v2933
  %v3020 = vsub.f32 %v2906, %v3018
  %v3021 = vsub.f32 %v2909, %v3019
  %v3022 = vmul.f32 %v3020, 1.442695
  %v3023 = vpow.pop %v3022
  %v3024 = vmul.f32 %v3021, 1.442695
  %v3025 = vpow.pop %v3024
  %v3026 = vsub.f32 %v2912, %v3018
  %v3027 = vsub.f32 %v2915, %v3019
  %v3028 = vmul.f32 %v3026, 1.442695
  %v3029 = vpow.pop %v3028
  %v3030 = vmul.f32 %v3027, 1.442695
  %v3031 = vpow.pop %v3030
  %v3032 = vsub.f32 %v2918, %v3018
  %v3033 = vsub.f32 %v2921, %v3019
  %v3034 = vmul.f32 %v3032, 1.442695
  %v3035 = vpow.pop %v3034
  %v3036 = vmul.f32 %v3033, 1.442695
  %v3037 = vpow.pop %v3036
  %v3038 = vsub.f32 %v2924, %v3018
  %v3039 = vsub.f32 %v2927, %v3019
  %v3040 = vmul.f32 %v3038, 1.442695
  %v3041 = vpow.pop %v3040
  %v3042 = vmul.f32 %v3039, 1.442695
  %v3043 = vpow.pop %v3042
  %v3044 = vsub.f32 %v2930, %v3018
  %v3045 = vsub.f32 %v2933, %v3019
  %v3046 = vmul.f32 %v3044, 1.442695
  %v3047 = vpow.pop %v3046
  %v3048 = vmul.f32 %v3045, 1.442695
  %v3049 = vpow.pop %v3048
  %v3050 = vadd.f32 %v3023, %v3029
  %v3051 = vadd.f32 %v3025, %v3031
  %v3052 = vadd.f32 %v3050, %v3035
  %v3053 = vadd.f32 %v3051, %v3037
  %v3054 = vadd.f32 %v3052, %v3041
  %v3055 = vadd.f32 %v3053, %v3043
  %v3056 = vadd.f32 %v3054, %v3047
  %v3057 = vadd.f32 %v3055, %v3049
  %v3058 = vrcp.pop %v3056
  %v3059 = vmul.f32 1.0, %v3058
  %v3060 = vrcp.pop %v3057
  %v3061 = vmul.f32 1.0, %v3060
  %v3062 = vmul.f32 %v3023, %v3059
  %v3063 = vmul.f32 %v3025, %v3061
  %v3064 = vmul.f32 %v3062, %v2635
  %v3065 = vmul.f32 %v3063, %v2638
  %v3066 = vmul.f32 %v3029, %v3059
  %v3067 = vmul.f32 %v3031, %v3061
  %v3068 = vmul.f32 %v3066, %v2643
  %v3069 = vmul.f32 %v3067, %v2646
  %v3070 = vadd.f32 %v3064, %v3068
  %v3071 = vadd.f32 %v3065, %v3069
  %v3072 = vmul.f32 %v3035, %v3059
  %v3073 = vmul.f32 %v3037, %v3061
  %v3074 = vmul.f32 %v3072, %v2651
  %v3075 = vmul.f32 %v3073, %v2654
  %v3076 = vadd.f32 %v3070, %v3074
  %v3077 = vadd.f32 %v3071, %v3075
  %v3078 = vmul.f32 %v3041, %v3059
  %v3079 = vmul.f32 %v3043, %v3061
  %v3080 = vmul.f32 %v3078, %v2659
  %v3081 = vmul.f32 %v3079, %v2662
  %v3082 = vadd.f32 %v3076, %v3080
  %v3083 = vadd.f32 %v3077, %v3081
  %v3084 = vmul.f32 %v3047, %v3059
  %v3085 = vmul.f32 %v3049, %v3061
  %v3086 = vmul.f32 %v3084, %v2667
  %v3087 = vmul.f32 %v3085, %v2670
  %v3088 = vadd.f32 %v3082, %v3086
  %v3089 = vadd.f32 %v3083, %v3087
  %3092 = vrot.lane.b32.xlu0 %v3088, 8
  %v3093 = vpop.permute.xlu0 %3092
  %3094 = vrot.lane.b32.xlu0 %v3089, 8
  %v3095 = vpop.permute.xlu0 %3094
  %v3098 = vsel %vm146, %v3010, %v3093
  %v3099 = vsel %vm146, %v3011, %v3095
  %v3100 = vsel %vm281, %v3098, %v2553
  %v3101 = vsel %vm281, %v3099, %v2554
  %v3102 = vpack.c.bf16 %v3101, %v3100
  %v3103 = vpack.c.bf16 %v2461, %v2460
  %v3104 = vpack.c.bf16 %v2462, %v2462
  %v3105 = vlaneseq
  %v3106 = vshrl.u32 %v3105, 7
  %v3107 = vsub.s32 0, %v3106
  %v3108 = vrot.slane %v2463, %v3107
  %v3110 = vsel %vm1580, %v3102, 0
  %v3113 = vsel %vm1184, %v3104, 0
  %3115 = vmatprep.subr.bf16.mxu0 0
  %3116 = vmatpush1.bf16.msra.mxu0 %v3103
  %3117 = vmatprep.subr.bf16.mxu0 0
  %3118 = vmatpush1.bf16.msra.mxu0 %v3113
  %3119 = vmatprep.subr.bf16.mxu0 0
  %3120 = vmatpush1.bf16.msra.mxu0 0
  %3121 = vmatprep.subr.bf16.mxu0 0
  %3122 = vmatpush1.bf16.msra.mxu0 0
  %3123 = vmatprep.subr.bf16.mxu0 0
  %3124 = vmatpush1.bf16.msra.mxu0 0
  %3125 = vmatprep.subr.bf16.mxu0 0
  %3126 = vmatpush1.bf16.msra.mxu0 0
  %3127 = vmatprep.subr.bf16.mxu0 0
  %3128 = vmatpush1.bf16.msra.mxu0 0
  %3129 = vmatprep.subr.bf16.mxu0 0
  %3130 = vmatpush1.bf16.msra.mxu0 0
  %3131 = vmatprep.subr.bf16.mxu0 0
  %3132 = vmatpush1.bf16.msra.mxu0 0
  %3133 = vmatprep.subr.bf16.mxu0 0
  %3134 = vmatpush1.bf16.msra.mxu0 0
  %3135 = vmatprep.subr.bf16.mxu0 0
  %3136 = vmatpush1.bf16.msra.mxu0 0
  %3137 = vmatprep.subr.bf16.mxu0 0
  %3138 = vmatpush1.bf16.msra.mxu0 0
  %3139 = vmatprep.subr.bf16.mxu0 0
  %3140 = vmatpush1.bf16.msra.mxu0 0
  %3141 = vmatprep.subr.bf16.mxu0 0
  %3142 = vmatpush1.bf16.msra.mxu0 0
  %3143 = vmatprep.subr.bf16.mxu0 0
  %3144 = vmatpush1.bf16.msra.mxu0 0
  %3145 = vmatprep.subr.bf16.mxu0 0
  %3146 = vmatpush1.bf16.msra.mxu0 0
  %3147 = vmatprep.mubr.bf16.mxu0 0
  %3148 = vmatmul.mubr.bf16.gmra.mrb[0].mxu0 %v3110
  %v3149 = vpop.f32.mrb[0].mxu0
  %v3150 = vadd.f32 %v3108, %v3149
  %v3151 = vpop.f32.mrb[0].mxu0
  %v3152 = vpop.f32.mrb[0].mxu0
  %v3153 = vadd.f32 %v3108, %v3152
  %v3154 = vpop.f32.mrb[0].mxu0
  %3155 = vdwg.mxu0
  %v3156 = vtanh.pop %v3150
  %v3157 = vtanh.pop %v3153
  %3158 = vrot.lane.b32.xlu0 %v1666, 8
  %v3159 = vpop.permute.xlu0 %3158
  %3160 = vrot.lane.b32.xlu0 %v1667, 8
  %v3161 = vpop.permute.xlu0 %3160
  %v3164 = vmul.f32 %v2452, %v3159
  %v3165 = vmul.f32 %v2454, %v3161
  %v3166 = vsub.f32 1.0, %v2452
  %v3167 = vsub.f32 1.0, %v2454
  %3170 = vrot.lane.b32.xlu0 %v3156, 8
  %v3171 = vpop.permute.xlu0 %3170
  %3172 = vrot.lane.b32.xlu0 %v3157, 8
  %v3173 = vpop.permute.xlu0 %3172
  %v3176 = vmul.f32 %v3166, %v3171
  %v3177 = vmul.f32 %v3167, %v3173
  %v3178 = vadd.f32 %v3164, %v3176
  %v3179 = vadd.f32 %v3165, %v3177
  %3182 = vrot.lane.b32.xlu0 %v3178, 120
  %v3183 = vpop.permute.xlu0 %3182
  %3184 = vrot.lane.b32.xlu0 %v3179, 120
  %v3185 = vpop.permute.xlu0 %3184
  %s3188 = scalar_lea.vmem %s6, 16
  %3189 = vst.msk [vmem:[%s3188] sm:$0xff] %vm146, %v3183
  %3190 = vst.msk [vmem:[%s3188 + $0x8] sm:$0xff] %vm146, %v3185
  // Predicated region
  $region26: #{tpu_custom_call.1} parent=0 // pred_check
    _
  $region27: #{tpu_custom_call.1} parent=0 // pred_check_branch
    %3192 = sbr.rel (0) target = $region29
  $region28: #{tpu_custom_call.1} parent=0 // pred_region
    _
  $region29: #{tpu_custom_call.1} parent=0 // pred_fallthru
    _
  // Predicated region
  $region30: #{tpu_custom_call.1} parent=0 // pred_check
    _
  $region31: #{tpu_custom_call.1} parent=0 // pred_check_branch
    %3194 = sbr.rel (0) target = $region33
  $region32: #{tpu_custom_call.1} parent=0 // pred_region
    _
  $region33: #{tpu_custom_call.1} parent=0 // pred_fallthru
    _

// kernel: tpu_custom_call.1
$region0: #{tpu_custom_call.1}
  #allocation0 [shape = 'u32[]', space=smem, size = 0x4, offset = 0x4, fixed_abs, tag = 'smem constant byte address 0x4 - core index']
  #allocation1 [shape = 'u32[144,128]{1,0:T(1,128)}', space=vmem, size = 0x12000, scoped, tag = 'internal scratch']
  %s0 = inlined_call_operand.vmem [shape: f32[2,16,2], index: 0, kind: input, shape index: {}]
  %s1 = inlined_call_operand.vmem [shape: f32[2,16,8], index: 1, kind: input, shape index: {}]
  %s2 = inlined_call_operand.vmem [shape: bf16[160,16], index: 2, kind: input, shape index: {}]
  %s3 = inlined_call_operand.vmem [shape: f32[2,24], index: 3, kind: input, shape index: {}]
  %s4 = inlined_call_operand.vmem [shape: f32[88,16], index: 4, kind: input, shape index: {}]
  %s5 = inlined_call_operand.vmem [shape: f32[56,8], index: 5, kind: input, shape index: {}]
  %s6 = inlined_call_operand.vmem [shape: f32[2,16,8], index: 6, kind: output, shape index: {}]
  %s7 = sld [smem:[#allocation0]]
  $region34: #{tpu_custom_call.1} parent=0
    _
  %s9 = ssub.s32 1, %s7
  %s10 = scalar_select 0, %s9, %s7
  // Predicated region
  $region2: #{tpu_custom_call.1} parent=0 // pred_check
    _
  $region3: #{tpu_custom_call.1} parent=0 // pred_check_branch
    %12 = sbr.rel (0) target = $region5
  $region4: #{tpu_custom_call.1} parent=0 // pred_region
    _
  $region5: #{tpu_custom_call.1} parent=0 // pred_fallthru
    _
  // Predicated region
  $region6: #{tpu_custom_call.1} parent=0 // pred_check
    _
  $region7: #{tpu_custom_call.1} parent=0 // pred_check_branch
    %14 = sbr.rel (0) target = $region9
  $region8: #{tpu_custom_call.1} parent=0 // pred_region
    _
  $region9: #{tpu_custom_call.1} parent=0 // pred_fallthru
    _
  // Predicated region
  $region10: #{tpu_custom_call.1} parent=0 // pred_check
    _
  $region11: #{tpu_custom_call.1} parent=0 // pred_check_branch
    %16 = sbr.rel (0) target = $region13
  $region12: #{tpu_custom_call.1} parent=0 // pred_region
    _
  $region13: #{tpu_custom_call.1} parent=0 // pred_fallthru
    _
  // Predicated region
  $region14: #{tpu_custom_call.1} parent=0 // pred_check
    _
  $region15: #{tpu_custom_call.1} parent=0 // pred_check_branch
    %18 = sbr.rel (0) target = $region17
  $region16: #{tpu_custom_call.1} parent=0 // pred_region
    _
  $region17: #{tpu_custom_call.1} parent=0 // pred_fallthru
    _
  // Predicated region
  $region18: #{tpu_custom_call.1} parent=0 // pred_check
    _
  $region19: #{tpu_custom_call.1} parent=0 // pred_check_branch
    %20 = sbr.rel (0) target = $region21
  $region20: #{tpu_custom_call.1} parent=0 // pred_region
    _
  $region21: #{tpu_custom_call.1} parent=0 // pred_fallthru
    _
  // Predicated region
  $region22: #{tpu_custom_call.1} parent=0 // pred_check
    _
  $region23: #{tpu_custom_call.1} parent=0 // pred_check_branch
    %22 = sbr.rel (0) target = $region25
  $region24: #{tpu_custom_call.1} parent=0 // pred_region
    _
  $region25: #{tpu_custom_call.1} parent=0 // pred_fallthru
    _
  %v24 = vld [vmem:[%s2] sm:$0xf]
  %v25 = vld [vmem:[%s2 + $0x4] sm:$0xf]
  %v26 = vld [vmem:[%s2 + $0x8] sm:$0xf]
  %v27 = vld [vmem:[%s2 + $0xc] sm:$0xf]
  %v28 = vld [vmem:[%s2 + $0x10] sm:$0xf]
  %v29 = vld [vmem:[%s2 + $0x14] sm:$0xf]
  %v30 = vld [vmem:[%s2 + $0x18] sm:$0xf]
  %v31 = vld [vmem:[%s2 + $0x1c] sm:$0xf]
  %v32 = vld [vmem:[%s2 + $0x20] sm:$0xf]
  %v33 = vld [vmem:[%s2 + $0x24] sm:$0xf]
  %v34 = vld [vmem:[%s2 + $0x28] sm:$0xf]
  %v35 = vld [vmem:[%s2 + $0x2c] sm:$0xf]
  %v36 = vld [vmem:[%s2 + $0x30] sm:$0xf]
  %v37 = vld [vmem:[%s2 + $0x34] sm:$0xf]
  %v38 = vld [vmem:[%s2 + $0x38] sm:$0xf]
  %v39 = vld [vmem:[%s2 + $0x3c] sm:$0xf]
  %v40 = vld [vmem:[%s2 + $0x40] sm:$0xf]
  %v41 = vld [vmem:[%s2 + $0x44] sm:$0xf]
  %v42 = vld [vmem:[%s2 + $0x48] sm:$0xf]
  %v43 = vld [vmem:[%s2 + $0x4c] sm:$0xf]
  %v44 = vld [vmem:[%s3] sm:$0x3]
  %v45 = vld [vmem:[%s0] sm:$0xff]
  %v46 = vld [vmem:[%s0 + $0x8] sm:$0xff]
  %v47 = vld [vmem:[%s1] sm:$0xff]
  %v48 = vld [vmem:[%s1 + $0x8] sm:$0xff]
  %vm49 = vcmask 15360
  %v51 = vsel %vm49, %v45, 0
  %v54 = vsel %vm49, %v46, 0
  %vm56 = vcmask 1041408
  %v58 = vsel %vm56, %v44, 0
  %60 = vmatprep.subr.mxu0 0.0
  %61 = vmatpush1.msra.mxu0 %v58
  %62 = vmatprep.subr.mxu0 0.0
  %63 = vmatpush1.msra.mxu0 0.0
  %64 = vmatprep.subr.mxu0 0.0
  %65 = vmatpush1.msra.mxu0 0.0
  %66 = vmatprep.subr.mxu0 0.0
  %67 = vmatpush1.msra.mxu0 0.0
  %68 = vmatprep.subr.mxu0 0.0
  %69 = vmatpush1.msra.mxu0 0.0
  %70 = vmatprep.subr.mxu0 0.0
  %71 = vmatpush1.msra.mxu0 0.0
  %72 = vmatprep.subr.mxu0 0.0
  %73 = vmatpush1.msra.mxu0 0.0
  %74 = vmatprep.subr.mxu0 0.0
  %75 = vmatpush1.msra.mxu0 0.0
  %76 = vmatprep.subr.mxu0 0.0
  %77 = vmatpush1.msra.mxu0 0.0
  %78 = vmatprep.subr.mxu0 0.0
  %79 = vmatpush1.msra.mxu0 0.0
  %80 = vmatprep.subr.mxu0 0.0
  %81 = vmatpush1.msra.mxu0 0.0
  %82 = vmatprep.subr.mxu0 0.0
  %83 = vmatpush1.msra.mxu0 0.0
  %84 = vmatprep.subr.mxu0 0.0
  %85 = vmatpush1.msra.mxu0 0.0
  %86 = vmatprep.subr.mxu0 0.0
  %87 = vmatpush1.msra.mxu0 0.0
  %88 = vmatprep.subr.mxu0 0.0
  %89 = vmatpush1.msra.mxu0 0.0
  %90 = vmatprep.subr.mxu0 0.0
  %91 = vmatpush1.msra.mxu0 0.0
  %92 = vmatprep.subr.mxu0 0.0
  %93 = vmatpush1.msra.mxu0 0.0
  %94 = vmatprep.subr.mxu0 0.0
  %95 = vmatpush1.msra.mxu0 0.0
  %96 = vmatprep.subr.mxu0 0.0
  %97 = vmatpush1.msra.mxu0 0.0
  %98 = vmatprep.subr.mxu0 0.0
  %99 = vmatpush1.msra.mxu0 0.0
  %100 = vmatprep.subr.mxu0 0.0
  %101 = vmatpush1.msra.mxu0 0.0
  %102 = vmatprep.subr.mxu0 0.0
  %103 = vmatpush1.msra.mxu0 0.0
  %104 = vmatprep.subr.mxu0 0.0
  %105 = vmatpush1.msra.mxu0 0.0
  %106 = vmatprep.subr.mxu0 0.0
  %107 = vmatpush1.msra.mxu0 0.0
  %108 = vmatprep.subr.mxu0 0.0
  %109 = vmatpush1.msra.mxu0 0.0
  %110 = vmatprep.subr.mxu0 0.0
  %111 = vmatpush1.msra.mxu0 0.0
  %112 = vmatprep.subr.mxu0 0.0
  %113 = vmatpush1.msra.mxu0 0.0
  %114 = vmatprep.subr.mxu0 0.0
  %115 = vmatpush1.msra.mxu0 0.0
  %116 = vmatprep.subr.mxu0 0.0
  %117 = vmatpush1.msra.mxu0 0.0
  %118 = vmatprep.subr.mxu0 0.0
  %119 = vmatpush1.msra.mxu0 0.0
  %120 = vmatprep.subr.mxu0 0.0
  %121 = vmatpush1.msra.mxu0 0.0
  %122 = vmatprep.subr.mxu0 0.0
  %123 = vmatpush1.msra.mxu0 0.0
  %124 = vmatprep.mubr.f32.mxu0 0.0
  %125 = vmatmul.mubr.f32.gmra.mrb[0].mxu0 %v51
  %v126 = vpop.f32.mrb[0].mxu0
  %v127 = vadd.f32 0.0, %v126
  %v128 = vpop.f32.mrb[0].mxu0
  %129 = vmatprep.mubr.f32.mxu0 0.0
  %130 = vmatmul.mubr.f32.gmra.mrb[0].mxu0 %v54
  %v131 = vpop.f32.mrb[0].mxu0
  %v132 = vadd.f32 0.0, %v131
  %v133 = vpop.f32.mrb[0].mxu0
  %134 = vdwg.mxu0
  %v135 = vld [vmem:[%s4] sm:$0xff]
  %v136 = vld [vmem:[%s4 + $0x8] sm:$0xff]
  %v137 = vld [vmem:[%s4 + $0x10] sm:$0xff]
  %v138 = vld [vmem:[%s4 + $0x18] sm:$0x1]
  %v139 = vld [vmem:[%s4 + $0x20] sm:$0xff]
  %v140 = vld [vmem:[%s4 + $0x28] sm:$0xff]
  %v141 = vld [vmem:[%s4 + $0x30] sm:$0xff]
  %v142 = vld [vmem:[%s4 + $0x38] sm:$0xff]
  %v143 = vld [vmem:[%s4 + $0x40] sm:$0xff]
  %v144 = vld [vmem:[%s4 + $0x48] sm:$0xff]
  %v145 = vld [vmem:[%s4 + $0x50] sm:$0x1]
  %vm146 = vcmask 64512
  %v148 = vsel %vm146, %v47, 0
  %v151 = vsel %vm146, %v48, 0
  %153 = vmatprep.subr.mxu0 0.0
  %154 = vmatpush1.msra.mxu0 %v135
  %155 = vmatprep.subr.mxu0 0.0
  %156 = vmatpush1.msra.mxu0 0.0
  %157 = vmatprep.subr.mxu0 0.0
  %158 = vmatpush1.msra.mxu0 0.0
  %159 = vmatprep.subr.mxu0 0.0
  %160 = vmatpush1.msra.mxu0 0.0
  %161 = vmatprep.subr.mxu0 0.0
  %162 = vmatpush1.msra.mxu0 0.0
  %163 = vmatprep.subr.mxu0 0.0
  %164 = vmatpush1.msra.mxu0 0.0
  %165 = vmatprep.subr.mxu0 0.0
  %166 = vmatpush1.msra.mxu0 0.0
  %167 = vmatprep.subr.mxu0 0.0
  %168 = vmatpush1.msra.mxu0 0.0
  %169 = vmatprep.subr.mxu0 0.0
  %170 = vmatpush1.msra.mxu0 0.0
  %171 = vmatprep.subr.mxu0 0.0
  %172 = vmatpush1.msra.mxu0 0.0
  %173 = vmatprep.subr.mxu0 0.0
  %174 = vmatpush1.msra.mxu0 0.0
  %175 = vmatprep.subr.mxu0 0.0
  %176 = vmatpush1.msra.mxu0 0.0
  %177 = vmatprep.subr.mxu0 0.0
  %178 = vmatpush1.msra.mxu0 0.0
  %179 = vmatprep.subr.mxu0 0.0
  %180 = vmatpush1.msra.mxu0 0.0
  %181 = vmatprep.subr.mxu0 0.0
  %182 = vmatpush1.msra.mxu0 0.0
  %183 = vmatprep.subr.mxu0 0.0
  %184 = vmatpush1.msra.mxu0 0.0
  %185 = vmatprep.subr.mxu0 0.0
  %186 = vmatpush1.msra.mxu0 0.0
  %187 = vmatprep.subr.mxu0 0.0
  %188 = vmatpush1.msra.mxu0 0.0
  %189 = vmatprep.subr.mxu0 0.0
  %190 = vmatpush1.msra.mxu0 0.0
  %191 = vmatprep.subr.mxu0 0.0
  %192 = vmatpush1.msra.mxu0 0.0
  %193 = vmatprep.subr.mxu0 0.0
  %194 = vmatpush1.msra.mxu0 0.0
  %195 = vmatprep.subr.mxu0 0.0
  %196 = vmatpush1.msra.mxu0 0.0
  %197 = vmatprep.subr.mxu0 0.0
  %198 = vmatpush1.msra.mxu0 0.0
  %199 = vmatprep.subr.mxu0 0.0
  %200 = vmatpush1.msra.mxu0 0.0
  %201 = vmatprep.subr.mxu0 0.0
  %202 = vmatpush1.msra.mxu0 0.0
  %203 = vmatprep.subr.mxu0 0.0
  %204 = vmatpush1.msra.mxu0 0.0
  %205 = vmatprep.subr.mxu0 0.0
  %206 = vmatpush1.msra.mxu0 0.0
  %207 = vmatprep.subr.mxu0 0.0
  %208 = vmatpush1.msra.mxu0 0.0
  %209 = vmatprep.subr.mxu0 0.0
  %210 = vmatpush1.msra.mxu0 0.0
  %211 = vmatprep.subr.mxu0 0.0
  %212 = vmatpush1.msra.mxu0 0.0
  %213 = vmatprep.subr.mxu0 0.0
  %214 = vmatpush1.msra.mxu0 0.0
  %215 = vmatprep.subr.mxu0 0.0
  %216 = vmatpush1.msra.mxu0 0.0
  %217 = vmatprep.mubr.f32.mxu0 0.0
  %218 = vmatmul.mubr.f32.gmra.mrb[0].mxu0 %v148
  %v219 = vpop.f32.mrb[0].mxu0
  %v220 = vadd.f32 0.0, %v219
  %v221 = vpop.f32.mrb[0].mxu0
  %222 = vmatprep.mubr.f32.mxu0 0.0
  %223 = vmatmul.mubr.f32.gmra.mrb[0].mxu0 %v151
  %v224 = vpop.f32.mrb[0].mxu0
  %v225 = vadd.f32 0.0, %v224
  %v226 = vpop.f32.mrb[0].mxu0
  %227 = vdwg.mxu0
  %v228 = vadd.f32 %v127, %v220
  %v229 = vadd.f32 %v132, %v225
  %v230 = vpack.c.bf16 %v229, %v228
  %v251 = vunpack.c.l.b16 %v24
  %v252 = vunpack.c.l.b16 %v25
  %v253 = vunpack.c.l.b16 %v26
  %v254 = vunpack.c.l.b16 %v27
  %v255 = vunpack.c.l.b16 %v28
  %v256 = vunpack.c.l.b16 %v29
  %v257 = vunpack.c.l.b16 %v30
  %v258 = vunpack.c.l.b16 %v31
  %v259 = vunpack.c.l.b16 %v32
  %v260 = vunpack.c.l.b16 %v33
  %v261 = vunpack.c.l.b16 %v34
  %v262 = vunpack.c.l.b16 %v35
  %v263 = vunpack.c.l.b16 %v36
  %v264 = vunpack.c.l.b16 %v37
  %v265 = vunpack.c.l.b16 %v38
  %v266 = vunpack.c.l.b16 %v39
  %v267 = vunpack.c.l.b16 %v40
  %v268 = vunpack.c.l.b16 %v41
  %v269 = vunpack.c.l.b16 %v42
  %v270 = vunpack.c.l.b16 %v43
  %v271 = vpack.c.b16 %v252, %v251
  %v272 = vpack.c.b16 %v254, %v253
  %v273 = vpack.c.b16 %v256, %v255
  %v274 = vpack.c.b16 %v258, %v257
  %v275 = vpack.c.b16 %v260, %v259
  %v276 = vpack.c.b16 %v262, %v261
  %v277 = vpack.c.b16 %v264, %v263
  %v278 = vpack.c.b16 %v266, %v265
  %v279 = vpack.c.b16 %v268, %v267
  %v280 = vpack.c.b16 %v270, %v269
  %vm281 = vcmask 130048
  %v283 = vsel %vm281, %v271, 0
  %v286 = vsel %vm281, %v272, 0
  %v289 = vsel %vm281, %v273, 0
  %v292 = vsel %vm281, %v274, 0
  %v295 = vsel %vm281, %v275, 0
  %v298 = vsel %vm281, %v276, 0
  %v301 = vsel %vm281, %v277, 0
  %v304 = vsel %vm281, %v278, 0
  %v307 = vsel %vm281, %v279, 0
  %v310 = vsel %vm281, %v280, 0
  %312 = vmatprep.subr.bf16.mxu0 0
  %313 = vmatpush1.bf16.msra.mxu0 %v230
  %314 = vmatprep.subr.bf16.mxu0 0
  %315 = vmatpush1.bf16.msra.mxu0 0
  %316 = vmatprep.subr.bf16.mxu0 0
  %317 = vmatpush1.bf16.msra.mxu0 0
  %318 = vmatprep.subr.bf16.mxu0 0
  %319 = vmatpush1.bf16.msra.mxu0 0
  %320 = vmatprep.subr.bf16.mxu0 0
  %321 = vmatpush1.bf16.msra.mxu0 0
  %322 = vmatprep.subr.bf16.mxu0 0
  %323 = vmatpush1.bf16.msra.mxu0 0
  %324 = vmatprep.subr.bf16.mxu0 0
  %325 = vmatpush1.bf16.msra.mxu0 0
  %326 = vmatprep.subr.bf16.mxu0 0
  %327 = vmatpush1.bf16.msra.mxu0 0
  %328 = vmatprep.subr.bf16.mxu0 0
  %329 = vmatpush1.bf16.msra.mxu0 0
  %330 = vmatprep.subr.bf16.mxu0 0
  %331 = vmatpush1.bf16.msra.mxu0 0
  %332 = vmatprep.subr.bf16.mxu0 0
  %333 = vmatpush1.bf16.msra.mxu0 0
  %334 = vmatprep.subr.bf16.mxu0 0
  %335 = vmatpush1.bf16.msra.mxu0 0
  %336 = vmatprep.subr.bf16.mxu0 0
  %337 = vmatpush1.bf16.msra.mxu0 0
  %338 = vmatprep.subr.bf16.mxu0 0
  %339 = vmatpush1.bf16.msra.mxu0 0
  %340 = vmatprep.subr.bf16.mxu0 0
  %341 = vmatpush1.bf16.msra.mxu0 0
  %342 = vmatprep.subr.bf16.mxu0 0
  %343 = vmatpush1.bf16.msra.mxu0 0
  %344 = vmatprep.mubr.bf16.mxu0 0
  %345 = vmatmul.mubr.bf16.gmra.mrb[0].mxu0 %v283
  %v346 = vpop.f32.mrb[0].mxu0
  %v347 = vadd.f32 0.0, %v346
  %v348 = vpop.f32.mrb[0].mxu0
  %v349 = vpop.f32.mrb[0].mxu0
  %v350 = vadd.f32 0.0, %v349
  %v351 = vpop.f32.mrb[0].mxu0
  %352 = vmatprep.mubr.bf16.mxu0 0
  %353 = vmatmul.mubr.bf16.gmra.mrb[0].mxu0 %v286
  %v354 = vpop.f32.mrb[0].mxu0
  %v355 = vadd.f32 0.0, %v354
  %v356 = vpop.f32.mrb[0].mxu0
  %v357 = vpop.f32.mrb[0].mxu0
  %v358 = vadd.f32 0.0, %v357
  %v359 = vpop.f32.mrb[0].mxu0
  %360 = vmatprep.mubr.bf16.mxu0 0
  %361 = vmatmul.mubr.bf16.gmra.mrb[0].mxu0 %v289
  %v362 = vpop.f32.mrb[0].mxu0
  %v363 = vadd.f32 0.0, %v362
  %v364 = vpop.f32.mrb[0].mxu0
  %v365 = vpop.f32.mrb[0].mxu0
  %v366 = vadd.f32 0.0, %v365
  %v367 = vpop.f32.mrb[0].mxu0
  %368 = vmatprep.mubr.bf16.mxu0 0
  %369 = vmatmul.mubr.bf16.gmra.mrb[0].mxu0 %v292
  %v370 = vpop.f32.mrb[0].mxu0
  %v371 = vadd.f32 0.0, %v370
  %v372 = vpop.f32.mrb[0].mxu0
  %v373 = vpop.f32.mrb[0].mxu0
  %v374 = vadd.f32 0.0, %v373
  %v375 = vpop.f32.mrb[0].mxu0
  %376 = vmatprep.mubr.bf16.mxu0 0
  %377 = vmatmul.mubr.bf16.gmra.mrb[0].mxu0 %v295
  %v378 = vpop.f32.mrb[0].mxu0
  %v379 = vadd.f32 0.0, %v378
  %v380 = vpop.f32.mrb[0].mxu0
  %v381 = vpop.f32.mrb[0].mxu0
  %v382 = vadd.f32 0.0, %v381
  %v383 = vpop.f32.mrb[0].mxu0
  %384 = vmatprep.mubr.bf16.mxu0 0
  %385 = vmatmul.mubr.bf16.gmra.mrb[0].mxu0 %v298
  %v386 = vpop.f32.mrb[0].mxu0
  %v387 = vadd.f32 0.0, %v386
  %v388 = vpop.f32.mrb[0].mxu0
  %v389 = vpop.f32.mrb[0].mxu0
  %v390 = vadd.f32 0.0, %v389
  %v391 = vpop.f32.mrb[0].mxu0
  %392 = vmatprep.mubr.bf16.mxu0 0
  %393 = vmatmul.mubr.bf16.gmra.mrb[0].mxu0 %v301
  %v394 = vpop.f32.mrb[0].mxu0
  %v395 = vadd.f32 0.0, %v394
  %v396 = vpop.f32.mrb[0].mxu0
  %v397 = vpop.f32.mrb[0].mxu0
  %v398 = vadd.f32 0.0, %v397
  %v399 = vpop.f32.mrb[0].mxu0
  %400 = vmatprep.mubr.bf16.mxu0 0
  %401 = vmatmul.mubr.bf16.gmra.mrb[0].mxu0 %v304
  %v402 = vpop.f32.mrb[0].mxu0
  %v403 = vadd.f32 0.0, %v402
  %v404 = vpop.f32.mrb[0].mxu0
  %v405 = vpop.f32.mrb[0].mxu0
  %v406 = vadd.f32 0.0, %v405
  %v407 = vpop.f32.mrb[0].mxu0
  %408 = vmatprep.mubr.bf16.mxu0 0
  %409 = vmatmul.mubr.bf16.gmra.mrb[0].mxu0 %v307
  %v410 = vpop.f32.mrb[0].mxu0
  %v411 = vadd.f32 0.0, %v410
  %v412 = vpop.f32.mrb[0].mxu0
  %v413 = vpop.f32.mrb[0].mxu0
  %v414 = vadd.f32 0.0, %v413
  %v415 = vpop.f32.mrb[0].mxu0
  %416 = vmatprep.mubr.bf16.mxu0 0
  %417 = vmatmul.mubr.bf16.gmra.mrb[0].mxu0 %v310
  %v418 = vpop.f32.mrb[0].mxu0
  %v419 = vadd.f32 0.0, %v418
  %v420 = vpop.f32.mrb[0].mxu0
  %v421 = vpop.f32.mrb[0].mxu0
  %v422 = vadd.f32 0.0, %v421
  %v423 = vpop.f32.mrb[0].mxu0
  %424 = vdwg.mxu0
  %v425 = vpack.c.bf16 %v350, %v347
  %v426 = vpack.c.bf16 %v358, %v355
  %v427 = vpack.c.bf16 %v366, %v363
  %v428 = vpack.c.bf16 %v374, %v371
  %v429 = vpack.c.bf16 %v382, %v379
  %v430 = vpack.c.bf16 %v390, %v387
  %v431 = vpack.c.bf16 %v398, %v395
  %v432 = vpack.c.bf16 %v406, %v403
  %v433 = vpack.c.bf16 %v414, %v411
  %v434 = vpack.c.bf16 %v422, %v419
  %v435 = vpack.c.bf16 %v137, %v136
  %v437 = vsel %vm281, %v425, 0
  %v440 = vsel %vm281, %v426, 0
  %v443 = vsel %vm281, %v427, 0
  %v446 = vsel %vm281, %v428, 0
  %v449 = vsel %vm281, %v429, 0
  %v452 = vsel %vm281, %v430, 0
  %v455 = vsel %vm281, %v431, 0
  %v458 = vsel %vm281, %v432, 0
  %v461 = vsel %vm281, %v433, 0
  %v464 = vsel %vm281, %v434, 0
  %466 = vmatprep.subr.bf16.mxu0 0
  %467 = vmatpush1.bf16.msra.mxu0 %v435
  %468 = vmatprep.subr.bf16.mxu0 0
  %469 = vmatpush1.bf16.msra.mxu0 0
  %470 = vmatprep.subr.bf16.mxu0 0
  %471 = vmatpush1.bf16.msra.mxu0 0
  %472 = vmatprep.subr.bf16.mxu0 0
  %473 = vmatpush1.bf16.msra.mxu0 0
  %474 = vmatprep.subr.bf16.mxu0 0
  %475 = vmatpush1.bf16.msra.mxu0 0
  %476 = vmatprep.subr.bf16.mxu0 0
  %477 = vmatpush1.bf16.msra.mxu0 0
  %478 = vmatprep.subr.bf16.mxu0 0
  %479 = vmatpush1.bf16.msra.mxu0 0
  %480 = vmatprep.subr.bf16.mxu0 0
  %481 = vmatpush1.bf16.msra.mxu0 0
  %482 = vmatprep.subr.bf16.mxu0 0
  %483 = vmatpush1.bf16.msra.mxu0 0
  %484 = vmatprep.subr.bf16.mxu0 0
  %485 = vmatpush1.bf16.msra.mxu0 0
  %486 = vmatprep.subr.bf16.mxu0 0
  %487 = vmatpush1.bf16.msra.mxu0 0
  %488 = vmatprep.subr.bf16.mxu0 0
  %489 = vmatpush1.bf16.msra.mxu0 0
  %490 = vmatprep.subr.bf16.mxu0 0
  %491 = vmatpush1.bf16.msra.mxu0 0
  %492 = vmatprep.subr.bf16.mxu0 0
  %493 = vmatpush1.bf16.msra.mxu0 0
  %494 = vmatprep.subr.bf16.mxu0 0
  %495 = vmatpush1.bf16.msra.mxu0 0
  %496 = vmatprep.subr.bf16.mxu0 0
  %497 = vmatpush1.bf16.msra.mxu0 0
  %498 = vmatprep.mubr.bf16.mxu0 0
  %499 = vmatmul.mubr.bf16.gmra.mrb[0].mxu0 %v437
  %v500 = vpop.f32.mrb[0].mxu0
  %v501 = vadd.f32 0.0, %v500
  %v502 = vpop.f32.mrb[0].mxu0
  %v503 = vpop.f32.mrb[0].mxu0
  %v504 = vadd.f32 0.0, %v503
  %v505 = vpop.f32.mrb[0].mxu0
  %506 = vmatprep.mubr.bf16.mxu0 0
  %507 = vmatmul.mubr.bf16.gmra.mrb[0].mxu0 %v440
  %v508 = vpop.f32.mrb[0].mxu0
  %v509 = vadd.f32 0.0, %v508
  %v510 = vpop.f32.mrb[0].mxu0
  %v511 = vpop.f32.mrb[0].mxu0
  %v512 = vadd.f32 0.0, %v511
  %v513 = vpop.f32.mrb[0].mxu0
  %514 = vmatprep.mubr.bf16.mxu0 0
  %515 = vmatmul.mubr.bf16.gmra.mrb[0].mxu0 %v443
  %v516 = vpop.f32.mrb[0].mxu0
  %v517 = vadd.f32 0.0, %v516
  %v518 = vpop.f32.mrb[0].mxu0
  %v519 = vpop.f32.mrb[0].mxu0
  %v520 = vadd.f32 0.0, %v519
  %v521 = vpop.f32.mrb[0].mxu0
  %522 = vmatprep.mubr.bf16.mxu0 0
  %523 = vmatmul.mubr.bf16.gmra.mrb[0].mxu0 %v446
  %v524 = vpop.f32.mrb[0].mxu0
  %v525 = vadd.f32 0.0, %v524
  %v526 = vpop.f32.mrb[0].mxu0
  %v527 = vpop.f32.mrb[0].mxu0
  %v528 = vadd.f32 0.0, %v527
  %v529 = vpop.f32.mrb[0].mxu0
  %530 = vmatprep.mubr.bf16.mxu0 0
  %531 = vmatmul.mubr.bf16.gmra.mrb[0].mxu0 %v449
  %v532 = vpop.f32.mrb[0].mxu0
  %v533 = vadd.f32 0.0, %v532
  %v534 = vpop.f32.mrb[0].mxu0
  %v535 = vpop.f32.mrb[0].mxu0
  %v536 = vadd.f32 0.0, %v535
  %v537 = vpop.f32.mrb[0].mxu0
  %538 = vmatprep.mubr.bf16.mxu0 0
  %539 = vmatmul.mubr.bf16.gmra.mrb[0].mxu0 %v452
  %v540 = vpop.f32.mrb[0].mxu0
  %v541 = vadd.f32 0.0, %v540
  %v542 = vpop.f32.mrb[0].mxu0
  %v543 = vpop.f32.mrb[0].mxu0
  %v544 = vadd.f32 0.0, %v543
  %v545 = vpop.f32.mrb[0].mxu0
  %546 = vmatprep.mubr.bf16.mxu0 0
  %547 = vmatmul.mubr.bf16.gmra.mrb[0].mxu0 %v455
  %v548 = vpop.f32.mrb[0].mxu0
  %v549 = vadd.f32 0.0, %v548
  %v550 = vpop.f32.mrb[0].mxu0
  %v551 = vpop.f32.mrb[0].mxu0
  %v552 = vadd.f32 0.0, %v551
  %v553 = vpop.f32.mrb[0].mxu0
  %554 = vmatprep.mubr.bf16.mxu0 0
  %555 = vmatmul.mubr.bf16.gmra.mrb[0].mxu0 %v458
  %v556 = vpop.f32.mrb[0].mxu0
  %v557 = vadd.f32 0.0, %v556
  %v558 = vpop.f32.mrb[0].mxu0
  %v559 = vpop.f32.mrb[0].mxu0
  %v560 = vadd.f32 0.0, %v559
  %v561 = vpop.f32.mrb[0].mxu0
  %562 = vmatprep.mubr.bf16.mxu0 0
  %563 = vmatmul.mubr.bf16.gmra.mrb[0].mxu0 %v461
  %v564 = vpop.f32.mrb[0].mxu0
  %v565 = vadd.f32 0.0, %v564
  %v566 = vpop.f32.mrb[0].mxu0
  %v567 = vpop.f32.mrb[0].mxu0
  %v568 = vadd.f32 0.0, %v567
  %v569 = vpop.f32.mrb[0].mxu0
  %570 = vmatprep.mubr.bf16.mxu0 0
  %571 = vmatmul.mubr.bf16.gmra.mrb[0].mxu0 %v464
  %v572 = vpop.f32.mrb[0].mxu0
  %v573 = vadd.f32 0.0, %v572
  %v574 = vpop.f32.mrb[0].mxu0
  %v575 = vpop.f32.mrb[0].mxu0
  %v576 = vadd.f32 0.0, %v575
  %v577 = vpop.f32.mrb[0].mxu0
  %578 = vdwg.mxu0
  %v579 = vmax.f32 %v501, 0.0
  %v580 = vmax.f32 %v504, 0.0
  %v581 = vmax.f32 %v509, 0.0
  %v582 = vmax.f32 %v512, 0.0
  %v583 = vmax.f32 %v517, 0.0
  %v584 = vmax.f32 %v520, 0.0
  %v585 = vmax.f32 %v525, 0.0
  %v586 = vmax.f32 %v528, 0.0
  %v587 = vmax.f32 %v533, 0.0
  %v588 = vmax.f32 %v536, 0.0
  %v589 = vmax.f32 %v541, 0.0
  %v590 = vmax.f32 %v544, 0.0
  %v591 = vmax.f32 %v549, 0.0
  %v592 = vmax.f32 %v552, 0.0
  %v593 = vmax.f32 %v557, 0.0
  %v594 = vmax.f32 %v560, 0.0
  %v595 = vmax.f32 %v565, 0.0
  %v596 = vmax.f32 %v568, 0.0
  %v597 = vmax.f32 %v573, 0.0
  %v598 = vmax.f32 %v576, 0.0
  %v599 = vlaneseq
  %v600 = vshrl.u32 %v599, 7
  %v601 = vsub.s32 0, %v600
  %v602 = vrot.slane %v138, %v601
  %v603 = vmul.f32 %v579, %v602
  %v604 = vmul.f32 %v580, %v602
  %v605 = vmul.f32 %v581, %v602
  %v606 = vmul.f32 %v582, %v602
  %v607 = vmul.f32 %v583, %v602
  %v608 = vmul.f32 %v584, %v602
  %v609 = vmul.f32 %v585, %v602
  %v610 = vmul.f32 %v586, %v602
  %v611 = vmul.f32 %v587, %v602
  %v612 = vmul.f32 %v588, %v602
  %v613 = vmul.f32 %v589, %v602
  %v614 = vmul.f32 %v590, %v602
  %v615 = vmul.f32 %v591, %v602
  %v616 = vmul.f32 %v592, %v602
  %v617 = vmul.f32 %v593, %v602
  %v618 = vmul.f32 %v594, %v602
  %v619 = vmul.f32 %v595, %v602
  %v620 = vmul.f32 %v596, %v602
  %v621 = vmul.f32 %v597, %v602
  %v622 = vmul.f32 %v598, %v602
  %v623 = vsel %vm281, %v603, 0.0
  %624 = vadd.xlane.f32.xlu0 %v623
  %v625 = vpop.xlane.xlu0 %624
  %v626 = vsel %vm281, %v604, 0.0
  %627 = vadd.xlane.f32.xlu0 %v626
  %v628 = vpop.xlane.xlu0 %627
  %v629 = vsel %vm281, %v605, 0.0
  %630 = vadd.xlane.f32.xlu0 %v629
  %v631 = vpop.xlane.xlu0 %630
  %v632 = vsel %vm281, %v606, 0.0
  %633 = vadd.xlane.f32.xlu0 %v632
  %v634 = vpop.xlane.xlu0 %633
  %v635 = vsel %vm281, %v607, 0.0
  %636 = vadd.xlane.f32.xlu0 %v635
  %v637 = vpop.xlane.xlu0 %636
  %v638 = vsel %vm281, %v608, 0.0
  %639 = vadd.xlane.f32.xlu0 %v638
  %v640 = vpop.xlane.xlu0 %639
  %v641 = vsel %vm281, %v609, 0.0
  %642 = vadd.xlane.f32.xlu0 %v641
  %v643 = vpop.xlane.xlu0 %642
  %v644 = vsel %vm281, %v610, 0.0
  %645 = vadd.xlane.f32.xlu0 %v644
  %v646 = vpop.xlane.xlu0 %645
  %v647 = vsel %vm281, %v611, 0.0
  %648 = vadd.xlane.f32.xlu0 %v647
  %v649 = vpop.xlane.xlu0 %648
  %v650 = vsel %vm281, %v612, 0.0
  %651 = vadd.xlane.f32.xlu0 %v650
  %v652 = vpop.xlane.xlu0 %651
  %v653 = vsel %vm281, %v613, 0.0
  %654 = vadd.xlane.f32.xlu0 %v653
  %v655 = vpop.xlane.xlu0 %654
  %v656 = vsel %vm281, %v614, 0.0
  %657 = vadd.xlane.f32.xlu0 %v656
  %v658 = vpop.xlane.xlu0 %657
  %v659 = vsel %vm281, %v615, 0.0
  %660 = vadd.xlane.f32.xlu0 %v659
  %v661 = vpop.xlane.xlu0 %660
  %v662 = vsel %vm281, %v616, 0.0
  %663 = vadd.xlane.f32.xlu0 %v662
  %v664 = vpop.xlane.xlu0 %663
  %v665 = vsel %vm281, %v617, 0.0
  %666 = vadd.xlane.f32.xlu0 %v665
  %v667 = vpop.xlane.xlu0 %666
  %v668 = vsel %vm281, %v618, 0.0
  %669 = vadd.xlane.f32.xlu0 %v668
  %v670 = vpop.xlane.xlu0 %669
  %v671 = vsel %vm281, %v619, 0.0
  %672 = vadd.xlane.f32.xlu0 %v671
  %v673 = vpop.xlane.xlu0 %672
  %v674 = vsel %vm281, %v620, 0.0
  %675 = vadd.xlane.f32.xlu0 %v674
  %v676 = vpop.xlane.xlu0 %675
  %v677 = vsel %vm281, %v621, 0.0
  %678 = vadd.xlane.f32.xlu0 %v677
  %v679 = vpop.xlane.xlu0 %678
  %v680 = vsel %vm281, %v622, 0.0
  %681 = vadd.xlane.f32.xlu0 %v680
  %v682 = vpop.xlane.xlu0 %681
  %v683 = vmax.f32 %v625, %v631
  %v684 = vmax.f32 %v628, %v634
  %v685 = vmax.f32 %v683, %v637
  %v686 = vmax.f32 %v684, %v640
  %v687 = vmax.f32 %v685, %v643
  %v688 = vmax.f32 %v686, %v646
  %v689 = vmax.f32 %v687, %v649
  %v690 = vmax.f32 %v688, %v652
  %v691 = vsub.f32 %v625, %v689
  %v692 = vsub.f32 %v628, %v690
  %v693 = vmul.f32 %v691, 1.442695
  %v694 = vpow.pop %v693
  %v695 = vmul.f32 %v692, 1.442695
  %v696 = vpow.pop %v695
  %v697 = vsub.f32 %v631, %v689
  %v698 = vsub.f32 %v634, %v690
  %v699 = vmul.f32 %v697, 1.442695
  %v700 = vpow.pop %v699
  %v701 = vmul.f32 %v698, 1.442695
  %v702 = vpow.pop %v701
  %v703 = vsub.f32 %v637, %v689
  %v704 = vsub.f32 %v640, %v690
  %v705 = vmul.f32 %v703, 1.442695
  %v706 = vpow.pop %v705
  %v707 = vmul.f32 %v704, 1.442695
  %v708 = vpow.pop %v707
  %v709 = vsub.f32 %v643, %v689
  %v710 = vsub.f32 %v646, %v690
  %v711 = vmul.f32 %v709, 1.442695
  %v712 = vpow.pop %v711
  %v713 = vmul.f32 %v710, 1.442695
  %v714 = vpow.pop %v713
  %v715 = vsub.f32 %v649, %v689
  %v716 = vsub.f32 %v652, %v690
  %v717 = vmul.f32 %v715, 1.442695
  %v718 = vpow.pop %v717
  %v719 = vmul.f32 %v716, 1.442695
  %v720 = vpow.pop %v719
  %v721 = vadd.f32 %v694, %v700
  %v722 = vadd.f32 %v696, %v702
  %v723 = vadd.f32 %v721, %v706
  %v724 = vadd.f32 %v722, %v708
  %v725 = vadd.f32 %v723, %v712
  %v726 = vadd.f32 %v724, %v714
  %v727 = vadd.f32 %v725, %v718
  %v728 = vadd.f32 %v726, %v720
  %v729 = vrcp.pop %v727
  %v730 = vmul.f32 1.0, %v729
  %v731 = vrcp.pop %v728
  %v732 = vmul.f32 1.0, %v731
  %v733 = vmul.f32 %v694, %v730
  %v734 = vmul.f32 %v696, %v732
  %v735 = vmul.f32 %v733, %v347
  %v736 = vmul.f32 %v734, %v350
  %v737 = vmul.f32 %v700, %v730
  %v738 = vmul.f32 %v702, %v732
  %v739 = vmul.f32 %v737, %v355
  %v740 = vmul.f32 %v738, %v358
  %v741 = vadd.f32 %v735, %v739
  %v742 = vadd.f32 %v736, %v740
  %v743 = vmul.f32 %v706, %v730
  %v744 = vmul.f32 %v708, %v732
  %v745 = vmul.f32 %v743, %v363
  %v746 = vmul.f32 %v744, %v366
  %v747 = vadd.f32 %v741, %v745
  %v748 = vadd.f32 %v742, %v746
  %v749 = vmul.f32 %v712, %v730
  %v750 = vmul.f32 %v714, %v732
  %v751 = vmul.f32 %v749, %v371
  %v752 = vmul.f32 %v750, %v374
  %v753 = vadd.f32 %v747, %v751
  %v754 = vadd.f32 %v748, %v752
  %v755 = vmul.f32 %v718, %v730
  %v756 = vmul.f32 %v720, %v732
  %v757 = vmul.f32 %v755, %v379
  %v758 = vmul.f32 %v756, %v382
  %v759 = vadd.f32 %v753, %v757
  %v760 = vadd.f32 %v754, %v758
  %v761 = vmax.f32 %v655, %v661
  %v762 = vmax.f32 %v658, %v664
  %v763 = vmax.f32 %v761, %v667
  %v764 = vmax.f32 %v762, %v670
  %v765 = vmax.f32 %v763, %v673
  %v766 = vmax.f32 %v764, %v676
  %v767 = vmax.f32 %v765, %v679
  %v768 = vmax.f32 %v766, %v682
  %v769 = vsub.f32 %v655, %v767
  %v770 = vsub.f32 %v658, %v768
  %v771 = vmul.f32 %v769, 1.442695
  %v772 = vpow.pop %v771
  %v773 = vmul.f32 %v770, 1.442695
  %v774 = vpow.pop %v773
  %v775 = vsub.f32 %v661, %v767
  %v776 = vsub.f32 %v664, %v768
  %v777 = vmul.f32 %v775, 1.442695
  %v778 = vpow.pop %v777
  %v779 = vmul.f32 %v776, 1.442695
  %v780 = vpow.pop %v779
  %v781 = vsub.f32 %v667, %v767
  %v782 = vsub.f32 %v670, %v768
  %v783 = vmul.f32 %v781, 1.442695
  %v784 = vpow.pop %v783
  %v785 = vmul.f32 %v782, 1.442695
  %v786 = vpow.pop %v785
  %v787 = vsub.f32 %v673, %v767
  %v788 = vsub.f32 %v676, %v768
  %v789 = vmul.f32 %v787, 1.442695
  %v790 = vpow.pop %v789
  %v791 = vmul.f32 %v788, 1.442695
  %v792 = vpow.pop %v791
  %v793 = vsub.f32 %v679, %v767
  %v794 = vsub.f32 %v682, %v768
  %v795 = vmul.f32 %v793, 1.442695
  %v796 = vpow.pop %v795
  %v797 = vmul.f32 %v794, 1.442695
  %v798 = vpow.pop %v797
  %v799 = vadd.f32 %v772, %v778
  %v800 = vadd.f32 %v774, %v780
  %v801 = vadd.f32 %v799, %v784
  %v802 = vadd.f32 %v800, %v786
  %v803 = vadd.f32 %v801, %v790
  %v804 = vadd.f32 %v802, %v792
  %v805 = vadd.f32 %v803, %v796
  %v806 = vadd.f32 %v804, %v798
  %v807 = vrcp.pop %v805
  %v808 = vmul.f32 1.0, %v807
  %v809 = vrcp.pop %v806
  %v810 = vmul.f32 1.0, %v809
  %v811 = vmul.f32 %v772, %v808
  %v812 = vmul.f32 %v774, %v810
  %v813 = vmul.f32 %v811, %v387
  %v814 = vmul.f32 %v812, %v390
  %v815 = vmul.f32 %v778, %v808
  %v816 = vmul.f32 %v780, %v810
  %v817 = vmul.f32 %v815, %v395
  %v818 = vmul.f32 %v816, %v398
  %v819 = vadd.f32 %v813, %v817
  %v820 = vadd.f32 %v814, %v818
  %v821 = vmul.f32 %v784, %v808
  %v822 = vmul.f32 %v786, %v810
  %v823 = vmul.f32 %v821, %v403
  %v824 = vmul.f32 %v822, %v406
  %v825 = vadd.f32 %v819, %v823
  %v826 = vadd.f32 %v820, %v824
  %v827 = vmul.f32 %v790, %v808
  %v828 = vmul.f32 %v792, %v810
  %v829 = vmul.f32 %v827, %v411
  %v830 = vmul.f32 %v828, %v414
  %v831 = vadd.f32 %v825, %v829
  %v832 = vadd.f32 %v826, %v830
  %v833 = vmul.f32 %v796, %v808
  %v834 = vmul.f32 %v798, %v810
  %v835 = vmul.f32 %v833, %v419
  %v836 = vmul.f32 %v834, %v422
  %v837 = vadd.f32 %v831, %v835
  %v838 = vadd.f32 %v832, %v836
  %841 = vrot.lane.b32.xlu0 %v837, 16
  %v842 = vpop.permute.xlu0 %841
  %843 = vrot.lane.b32.xlu0 %v838, 16
  %v844 = vpop.permute.xlu0 %843
  %849 = vrot.lane.b32.xlu0 %v228, 32
  %v850 = vpop.permute.xlu0 %849
  %851 = vrot.lane.b32.xlu0 %v229, 32
  %v852 = vpop.permute.xlu0 %851
  %v855 = vsel %vm281, %v759, %v842
  %v856 = vsel %vm281, %v760, %v844
  %vm857 = vcmask 261120
  %v858 = vsel %vm857, %v855, %v850
  %v859 = vsel %vm857, %v856, %v852
  %v860 = vpack.c.bf16 %v859, %v858
  %v861 = vpack.c.bf16 %v140, %v139
  %v862 = vpack.c.bf16 %v142, %v141
  %v863 = vpack.c.bf16 %v144, %v143
  %v864 = vlaneseq
  %v865 = vshrl.u32 %v864, 7
  %v866 = vsub.s32 0, %v865
  %v867 = vrot.slane %v145, %v866
  %vm868 = vcmask 392192
  %v870 = vsel %vm868, %v860, 0
  %872 = vmatprep.subr.bf16.mxu0 0
  %873 = vmatpush1.bf16.msra.mxu0 %v861
  %874 = vmatprep.subr.bf16.mxu0 0
  %875 = vmatpush1.bf16.msra.mxu0 %v862
  %876 = vmatprep.subr.bf16.mxu0 0
  %877 = vmatpush1.bf16.msra.mxu0 %v863
  %878 = vmatprep.subr.bf16.mxu0 0
  %879 = vmatpush1.bf16.msra.mxu0 0
  %880 = vmatprep.subr.bf16.mxu0 0
  %881 = vmatpush1.bf16.msra.mxu0 0
  %882 = vmatprep.subr.bf16.mxu0 0
  %883 = vmatpush1.bf16.msra.mxu0 0
  %884 = vmatprep.subr.bf16.mxu0 0
  %885 = vmatpush1.bf16.msra.mxu0 0
  %886 = vmatprep.subr.bf16.mxu0 0
  %887 = vmatpush1.bf16.msra.mxu0 0
  %888 = vmatprep.subr.bf16.mxu0 0
  %889 = vmatpush1.bf16.msra.mxu0 0
  %890 = vmatprep.subr.bf16.mxu0 0
  %891 = vmatpush1.bf16.msra.mxu0 0
  %892 = vmatprep.subr.bf16.mxu0 0
  %893 = vmatpush1.bf16.msra.mxu0 0
  %894 = vmatprep.subr.bf16.mxu0 0
  %895 = vmatpush1.bf16.msra.mxu0 0
  %896 = vmatprep.subr.bf16.mxu0 0
  %897 = vmatpush1.bf16.msra.mxu0 0
  %898 = vmatprep.subr.bf16.mxu0 0
  %899 = vmatpush1.bf16.msra.mxu0 0
  %900 = vmatprep.subr.bf16.mxu0 0
  %901 = vmatpush1.bf16.msra.mxu0 0
  %902 = vmatprep.subr.bf16.mxu0 0
  %903 = vmatpush1.bf16.msra.mxu0 0
  %904 = vmatprep.mubr.bf16.mxu0 0
  %905 = vmatmul.mubr.bf16.gmra.mrb[0].mxu0 %v870
  %v906 = vpop.f32.mrb[0].mxu0
  %v907 = vadd.f32 %v867, %v906
  %v908 = vpop.f32.mrb[0].mxu0
  %v909 = vpop.f32.mrb[0].mxu0
  %v910 = vadd.f32 %v867, %v909
  %v911 = vpop.f32.mrb[0].mxu0
  %912 = vdwg.mxu0
  %v913 = vxor.u32 %v907, 2147483648
  %v914 = vxor.u32 %v910, 2147483648
  %v915 = vmul.f32 %v913, 1.442695
  %v916 = vpow.pop %v915
  %v917 = vmul.f32 %v914, 1.442695
  %v918 = vpow.pop %v917
  %v919 = vadd.f32 %v916, 1.0
  %v920 = vadd.f32 %v918, 1.0
  %v921 = vrcp.pop %v919
  %v922 = vmul.f32 1.0, %v921
  %v923 = vrcp.pop %v920
  %v924 = vmul.f32 1.0, %v923
  %v925 = vmul.f32 %v922, %v47
  %v926 = vmul.f32 %v924, %v48
  %v927 = vld [vmem:[%s5] sm:$0xff]
  %v928 = vld [vmem:[%s5 + $0x8] sm:$0xff]
  %v929 = vld [vmem:[%s5 + $0x10] sm:$0x1]
  %v930 = vld [vmem:[%s5 + $0x18] sm:$0xff]
  %v931 = vld [vmem:[%s5 + $0x20] sm:$0xff]
  %v932 = vld [vmem:[%s5 + $0x28] sm:$0xff]
  %v933 = vld [vmem:[%s5 + $0x30] sm:$0x1]
  %v935 = vsel %vm146, %v925, 0
  %v938 = vsel %vm146, %v926, 0
  %940 = vmatprep.subr.mxu0 0.0
  %941 = vmatpush1.msra.mxu0 %v927
  %942 = vmatprep.subr.mxu0 0.0
  %943 = vmatpush1.msra.mxu0 0.0
  %944 = vmatprep.subr.mxu0 0.0
  %945 = vmatpush1.msra.mxu0 0.0
  %946 = vmatprep.subr.mxu0 0.0
  %947 = vmatpush1.msra.mxu0 0.0
  %948 = vmatprep.subr.mxu0 0.0
  %949 = vmatpush1.msra.mxu0 0.0
  %950 = vmatprep.subr.mxu0 0.0
  %951 = vmatpush1.msra.mxu0 0.0
  %952 = vmatprep.subr.mxu0 0.0
  %953 = vmatpush1.msra.mxu0 0.0
  %954 = vmatprep.subr.mxu0 0.0
  %955 = vmatpush1.msra.mxu0 0.0
  %956 = vmatprep.subr.mxu0 0.0
  %957 = vmatpush1.msra.mxu0 0.0
  %958 = vmatprep.subr.mxu0 0.0
  %959 = vmatpush1.msra.mxu0 0.0
  %960 = vmatprep.subr.mxu0 0.0
  %961 = vmatpush1.msra.mxu0 0.0
  %962 = vmatprep.subr.mxu0 0.0
  %963 = vmatpush1.msra.mxu0 0.0
  %964 = vmatprep.subr.mxu0 0.0
  %965 = vmatpush1.msra.mxu0 0.0
  %966 = vmatprep.subr.mxu0 0.0
  %967 = vmatpush1.msra.mxu0 0.0
  %968 = vmatprep.subr.mxu0 0.0
  %969 = vmatpush1.msra.mxu0 0.0
  %970 = vmatprep.subr.mxu0 0.0
  %971 = vmatpush1.msra.mxu0 0.0
  %972 = vmatprep.subr.mxu0 0.0
  %973 = vmatpush1.msra.mxu0 0.0
  %974 = vmatprep.subr.mxu0 0.0
  %975 = vmatpush1.msra.mxu0 0.0
  %976 = vmatprep.subr.mxu0 0.0
  %977 = vmatpush1.msra.mxu0 0.0
  %978 = vmatprep.subr.mxu0 0.0
  %979 = vmatpush1.msra.mxu0 0.0
  %980 = vmatprep.subr.mxu0 0.0
  %981 = vmatpush1.msra.mxu0 0.0
  %982 = vmatprep.subr.mxu0 0.0
  %983 = vmatpush1.msra.mxu0 0.0
  %984 = vmatprep.subr.mxu0 0.0
  %985 = vmatpush1.msra.mxu0 0.0
  %986 = vmatprep.subr.mxu0 0.0
  %987 = vmatpush1.msra.mxu0 0.0
  %988 = vmatprep.subr.mxu0 0.0
  %989 = vmatpush1.msra.mxu0 0.0
  %990 = vmatprep.subr.mxu0 0.0
  %991 = vmatpush1.msra.mxu0 0.0
  %992 = vmatprep.subr.mxu0 0.0
  %993 = vmatpush1.msra.mxu0 0.0
  %994 = vmatprep.subr.mxu0 0.0
  %995 = vmatpush1.msra.mxu0 0.0
  %996 = vmatprep.subr.mxu0 0.0
  %997 = vmatpush1.msra.mxu0 0.0
  %998 = vmatprep.subr.mxu0 0.0
  %999 = vmatpush1.msra.mxu0 0.0
  %1000 = vmatprep.subr.mxu0 0.0
  %1001 = vmatpush1.msra.mxu0 0.0
  %1002 = vmatprep.subr.mxu0 0.0
  %1003 = vmatpush1.msra.mxu0 0.0
  %1004 = vmatprep.mubr.f32.mxu0 0.0
  %1005 = vmatmul.mubr.f32.gmra.mrb[0].mxu0 %v935
  %v1006 = vpop.f32.mrb[0].mxu0
  %v1007 = vadd.f32 0.0, %v1006
  %v1008 = vpop.f32.mrb[0].mxu0
  %1009 = vmatprep.mubr.f32.mxu0 0.0
  %1010 = vmatmul.mubr.f32.gmra.mrb[0].mxu0 %v938
  %v1011 = vpop.f32.mrb[0].mxu0
  %v1012 = vadd.f32 0.0, %v1011
  %v1013 = vpop.f32.mrb[0].mxu0
  %1014 = vdwg.mxu0
  %1017 = vrot.lane.b32.xlu0 %v1007, 16
  %v1018 = vpop.permute.xlu0 %1017
  %1019 = vrot.lane.b32.xlu0 %v1012, 16
  %v1020 = vpop.permute.xlu0 %1019
  %v1023 = vadd.f32 %v127, %v1018
  %v1024 = vadd.f32 %v132, %v1020
  %v1025 = vpack.c.bf16 %v1024, %v1023
  %1027 = vrot.lane.b32.xlu0 %v1025, 112
  %v1028 = vpop.permute.xlu0 %1027
  %1030 = vmatprep.subr.bf16.mxu0 0
  %1031 = vmatpush1.bf16.msra.mxu0 %v1028
  %1032 = vmatprep.subr.bf16.mxu0 0
  %1033 = vmatpush1.bf16.msra.mxu0 0
  %1034 = vmatprep.subr.bf16.mxu0 0
  %1035 = vmatpush1.bf16.msra.mxu0 0
  %1036 = vmatprep.subr.bf16.mxu0 0
  %1037 = vmatpush1.bf16.msra.mxu0 0
  %1038 = vmatprep.subr.bf16.mxu0 0
  %1039 = vmatpush1.bf16.msra.mxu0 0
  %1040 = vmatprep.subr.bf16.mxu0 0
  %1041 = vmatpush1.bf16.msra.mxu0 0
  %1042 = vmatprep.subr.bf16.mxu0 0
  %1043 = vmatpush1.bf16.msra.mxu0 0
  %1044 = vmatprep.subr.bf16.mxu0 0
  %1045 = vmatpush1.bf16.msra.mxu0 0
  %1046 = vmatprep.subr.bf16.mxu0 0
  %1047 = vmatpush1.bf16.msra.mxu0 0
  %1048 = vmatprep.subr.bf16.mxu0 0
  %1049 = vmatpush1.bf16.msra.mxu0 0
  %1050 = vmatprep.subr.bf16.mxu0 0
  %1051 = vmatpush1.bf16.msra.mxu0 0
  %1052 = vmatprep.subr.bf16.mxu0 0
  %1053 = vmatpush1.bf16.msra.mxu0 0
  %1054 = vmatprep.subr.bf16.mxu0 0
  %1055 = vmatpush1.bf16.msra.mxu0 0
  %1056 = vmatprep.subr.bf16.mxu0 0
  %1057 = vmatpush1.bf16.msra.mxu0 0
  %1058 = vmatprep.subr.bf16.mxu0 0
  %1059 = vmatpush1.bf16.msra.mxu0 0
  %1060 = vmatprep.subr.bf16.mxu0 0
  %1061 = vmatpush1.bf16.msra.mxu0 0
  %1062 = vmatprep.mubr.bf16.mxu0 0
  %1063 = vmatmul.mubr.bf16.gmra.mrb[0].mxu0 %v283
  %v1064 = vpop.f32.mrb[0].mxu0
  %v1065 = vadd.f32 0.0, %v1064
  %v1066 = vpop.f32.mrb[0].mxu0
  %v1067 = vpop.f32.mrb[0].mxu0
  %v1068 = vadd.f32 0.0, %v1067
  %v1069 = vpop.f32.mrb[0].mxu0
  %1070 = vmatprep.mubr.bf16.mxu0 0
  %1071 = vmatmul.mubr.bf16.gmra.mrb[0].mxu0 %v286
  %v1072 = vpop.f32.mrb[0].mxu0
  %v1073 = vadd.f32 0.0, %v1072
  %v1074 = vpop.f32.mrb[0].mxu0
  %v1075 = vpop.f32.mrb[0].mxu0
  %v1076 = vadd.f32 0.0, %v1075
  %v1077 = vpop.f32.mrb[0].mxu0
  %1078 = vmatprep.mubr.bf16.mxu0 0
  %1079 = vmatmul.mubr.bf16.gmra.mrb[0].mxu0 %v289
  %v1080 = vpop.f32.mrb[0].mxu0
  %v1081 = vadd.f32 0.0, %v1080
  %v1082 = vpop.f32.mrb[0].mxu0
  %v1083 = vpop.f32.mrb[0].mxu0
  %v1084 = vadd.f32 0.0, %v1083
  %v1085 = vpop.f32.mrb[0].mxu0
  %1086 = vmatprep.mubr.bf16.mxu0 0
  %1087 = vmatmul.mubr.bf16.gmra.mrb[0].mxu0 %v292
  %v1088 = vpop.f32.mrb[0].mxu0
  %v1089 = vadd.f32 0.0, %v1088
  %v1090 = vpop.f32.mrb[0].mxu0
  %v1091 = vpop.f32.mrb[0].mxu0
  %v1092 = vadd.f32 0.0, %v1091
  %v1093 = vpop.f32.mrb[0].mxu0
  %1094 = vmatprep.mubr.bf16.mxu0 0
  %1095 = vmatmul.mubr.bf16.gmra.mrb[0].mxu0 %v295
  %v1096 = vpop.f32.mrb[0].mxu0
  %v1097 = vadd.f32 0.0, %v1096
  %v1098 = vpop.f32.mrb[0].mxu0
  %v1099 = vpop.f32.mrb[0].mxu0
  %v1100 = vadd.f32 0.0, %v1099
  %v1101 = vpop.f32.mrb[0].mxu0
  %1102 = vmatprep.mubr.bf16.mxu0 0
  %1103 = vmatmul.mubr.bf16.gmra.mrb[0].mxu0 %v298
  %v1104 = vpop.f32.mrb[0].mxu0
  %v1105 = vadd.f32 0.0, %v1104
  %v1106 = vpop.f32.mrb[0].mxu0
  %v1107 = vpop.f32.mrb[0].mxu0
  %v1108 = vadd.f32 0.0, %v1107
  %v1109 = vpop.f32.mrb[0].mxu0
  %1110 = vmatprep.mubr.bf16.mxu0 0
  %1111 = vmatmul.mubr.bf16.gmra.mrb[0].mxu0 %v301
  %v1112 = vpop.f32.mrb[0].mxu0
  %v1113 = vadd.f32 0.0, %v1112
  %v1114 = vpop.f32.mrb[0].mxu0
  %v1115 = vpop.f32.mrb[0].mxu0
  %v1116 = vadd.f32 0.0, %v1115
  %v1117 = vpop.f32.mrb[0].mxu0
  %1118 = vmatprep.mubr.bf16.mxu0 0
  %1119 = vmatmul.mubr.bf16.gmra.mrb[0].mxu0 %v304
  %v1120 = vpop.f32.mrb[0].mxu0
  %v1121 = vadd.f32 0.0, %v1120
  %v1122 = vpop.f32.mrb[0].mxu0
  %v1123 = vpop.f32.mrb[0].mxu0
  %v1124 = vadd.f32 0.0, %v1123
  %v1125 = vpop.f32.mrb[0].mxu0
  %1126 = vmatprep.mubr.bf16.mxu0 0
  %1127 = vmatmul.mubr.bf16.gmra.mrb[0].mxu0 %v307
  %v1128 = vpop.f32.mrb[0].mxu0
  %v1129 = vadd.f32 0.0, %v1128
  %v1130 = vpop.f32.mrb[0].mxu0
  %v1131 = vpop.f32.mrb[0].mxu0
  %v1132 = vadd.f32 0.0, %v1131
  %v1133 = vpop.f32.mrb[0].mxu0
  %1134 = vmatprep.mubr.bf16.mxu0 0
  %1135 = vmatmul.mubr.bf16.gmra.mrb[0].mxu0 %v310
  %v1136 = vpop.f32.mrb[0].mxu0
  %v1137 = vadd.f32 0.0, %v1136
  %v1138 = vpop.f32.mrb[0].mxu0
  %v1139 = vpop.f32.mrb[0].mxu0
  %v1140 = vadd.f32 0.0, %v1139
  %v1141 = vpop.f32.mrb[0].mxu0
  %1142 = vdwg.mxu0
  %v1143 = vpack.c.bf16 %v1068, %v1065
  %v1144 = vpack.c.bf16 %v1076, %v1073
  %v1145 = vpack.c.bf16 %v1084, %v1081
  %v1146 = vpack.c.bf16 %v1092, %v1089
  %v1147 = vpack.c.bf16 %v1100, %v1097
  %v1148 = vpack.c.bf16 %v1108, %v1105
  %v1149 = vpack.c.bf16 %v1116, %v1113
  %v1150 = vpack.c.bf16 %v1124, %v1121
  %v1151 = vpack.c.bf16 %v1132, %v1129
  %v1152 = vpack.c.bf16 %v1140, %v1137
  %v1153 = vpack.c.bf16 %v928, %v928
  %v1155 = vsel %vm146, %v1143, 0
  %v1158 = vsel %vm146, %v1144, 0
  %v1161 = vsel %vm146, %v1145, 0
  %v1164 = vsel %vm146, %v1146, 0
  %v1167 = vsel %vm146, %v1147, 0
  %v1170 = vsel %vm146, %v1148, 0
  %v1173 = vsel %vm146, %v1149, 0
  %v1176 = vsel %vm146, %v1150, 0
  %v1179 = vsel %vm146, %v1151, 0
  %v1182 = vsel %vm146, %v1152, 0
  %vm1184 = vcmask 1043456
  %v1186 = vsel %vm1184, %v1153, 0
  %1188 = vmatprep.subr.bf16.mxu0 0
  %1189 = vmatpush1.bf16.msra.mxu0 %v1186
  %1190 = vmatprep.subr.bf16.mxu0 0
  %1191 = vmatpush1.bf16.msra.mxu0 0
  %1192 = vmatprep.subr.bf16.mxu0 0
  %1193 = vmatpush1.bf16.msra.mxu0 0
  %1194 = vmatprep.subr.bf16.mxu0 0
  %1195 = vmatpush1.bf16.msra.mxu0 0
  %1196 = vmatprep.subr.bf16.mxu0 0
  %1197 = vmatpush1.bf16.msra.mxu0 0
  %1198 = vmatprep.subr.bf16.mxu0 0
  %1199 = vmatpush1.bf16.msra.mxu0 0
  %1200 = vmatprep.subr.bf16.mxu0 0
  %1201 = vmatpush1.bf16.msra.mxu0 0
  %1202 = vmatprep.subr.bf16.mxu0 0
  %1203 = vmatpush1.bf16.msra.mxu0 0
  %1204 = vmatprep.subr.bf16.mxu0 0
  %1205 = vmatpush1.bf16.msra.mxu0 0
  %1206 = vmatprep.subr.bf16.mxu0 0
  %1207 = vmatpush1.bf16.msra.mxu0 0
  %1208 = vmatprep.subr.bf16.mxu0 0
  %1209 = vmatpush1.bf16.msra.mxu0 0
  %1210 = vmatprep.subr.bf16.mxu0 0
  %1211 = vmatpush1.bf16.msra.mxu0 0
  %1212 = vmatprep.subr.bf16.mxu0 0
  %1213 = vmatpush1.bf16.msra.mxu0 0
  %1214 = vmatprep.subr.bf16.mxu0 0
  %1215 = vmatpush1.bf16.msra.mxu0 0
  %1216 = vmatprep.subr.bf16.mxu0 0
  %1217 = vmatpush1.bf16.msra.mxu0 0
  %1218 = vmatprep.subr.bf16.mxu0 0
  %1219 = vmatpush1.bf16.msra.mxu0 0
  %1220 = vmatprep.mubr.bf16.mxu0 0
  %1221 = vmatmul.mubr.bf16.gmra.mrb[0].mxu0 %v1155
  %v1222 = vpop.f32.mrb[0].mxu0
  %v1223 = vadd.f32 0.0, %v1222
  %v1224 = vpop.f32.mrb[0].mxu0
  %v1225 = vpop.f32.mrb[0].mxu0
  %v1226 = vadd.f32 0.0, %v1225
  %v1227 = vpop.f32.mrb[0].mxu0
  %1228 = vmatprep.mubr.bf16.mxu0 0
  %1229 = vmatmul.mubr.bf16.gmra.mrb[0].mxu0 %v1158
  %v1230 = vpop.f32.mrb[0].mxu0
  %v1231 = vadd.f32 0.0, %v1230
  %v1232 = vpop.f32.mrb[0].mxu0
  %v1233 = vpop.f32.mrb[0].mxu0
  %v1234 = vadd.f32 0.0, %v1233
  %v1235 = vpop.f32.mrb[0].mxu0
  %1236 = vmatprep.mubr.bf16.mxu0 0
  %1237 = vmatmul.mubr.bf16.gmra.mrb[0].mxu0 %v1161
  %v1238 = vpop.f32.mrb[0].mxu0
  %v1239 = vadd.f32 0.0, %v1238
  %v1240 = vpop.f32.mrb[0].mxu0
  %v1241 = vpop.f32.mrb[0].mxu0
  %v1242 = vadd.f32 0.0, %v1241
  %v1243 = vpop.f32.mrb[0].mxu0
  %1244 = vmatprep.mubr.bf16.mxu0 0
  %1245 = vmatmul.mubr.bf16.gmra.mrb[0].mxu0 %v1164
  %v1246 = vpop.f32.mrb[0].mxu0
  %v1247 = vadd.f32 0.0, %v1246
  %v1248 = vpop.f32.mrb[0].mxu0
  %v1249 = vpop.f32.mrb[0].mxu0
  %v1250 = vadd.f32 0.0, %v1249
  %v1251 = vpop.f32.mrb[0].mxu0
  %1252 = vmatprep.mubr.bf16.mxu0 0
  %1253 = vmatmul.mubr.bf16.gmra.mrb[0].mxu0 %v1167
  %v1254 = vpop.f32.mrb[0].mxu0
  %v1255 = vadd.f32 0.0, %v1254
  %v1256 = vpop.f32.mrb[0].mxu0
  %v1257 = vpop.f32.mrb[0].mxu0
  %v1258 = vadd.f32 0.0, %v1257
  %v1259 = vpop.f32.mrb[0].mxu0
  %1260 = vmatprep.mubr.bf16.mxu0 0
  %1261 = vmatmul.mubr.bf16.gmra.mrb[0].mxu0 %v1170
  %v1262 = vpop.f32.mrb[0].mxu0
  %v1263 = vadd.f32 0.0, %v1262
  %v1264 = vpop.f32.mrb[0].mxu0
  %v1265 = vpop.f32.mrb[0].mxu0
  %v1266 = vadd.f32 0.0, %v1265
  %v1267 = vpop.f32.mrb[0].mxu0
  %1268 = vmatprep.mubr.bf16.mxu0 0
  %1269 = vmatmul.mubr.bf16.gmra.mrb[0].mxu0 %v1173
  %v1270 = vpop.f32.mrb[0].mxu0
  %v1271 = vadd.f32 0.0, %v1270
  %v1272 = vpop.f32.mrb[0].mxu0
  %v1273 = vpop.f32.mrb[0].mxu0
  %v1274 = vadd.f32 0.0, %v1273
  %v1275 = vpop.f32.mrb[0].mxu0
  %1276 = vmatprep.mubr.bf16.mxu0 0
  %1277 = vmatmul.mubr.bf16.gmra.mrb[0].mxu0 %v1176
  %v1278 = vpop.f32.mrb[0].mxu0
  %v1279 = vadd.f32 0.0, %v1278
  %v1280 = vpop.f32.mrb[0].mxu0
  %v1281 = vpop.f32.mrb[0].mxu0
  %v1282 = vadd.f32 0.0, %v1281
  %v1283 = vpop.f32.mrb[0].mxu0
  %1284 = vmatprep.mubr.bf16.mxu0 0
  %1285 = vmatmul.mubr.bf16.gmra.mrb[0].mxu0 %v1179
  %v1286 = vpop.f32.mrb[0].mxu0
  %v1287 = vadd.f32 0.0, %v1286
  %v1288 = vpop.f32.mrb[0].mxu0
  %v1289 = vpop.f32.mrb[0].mxu0
  %v1290 = vadd.f32 0.0, %v1289
  %v1291 = vpop.f32.mrb[0].mxu0
  %1292 = vmatprep.mubr.bf16.mxu0 0
  %1293 = vmatmul.mubr.bf16.gmra.mrb[0].mxu0 %v1182
  %v1294 = vpop.f32.mrb[0].mxu0
  %v1295 = vadd.f32 0.0, %v1294
  %v1296 = vpop.f32.mrb[0].mxu0
  %v1297 = vpop.f32.mrb[0].mxu0
  %v1298 = vadd.f32 0.0, %v1297
  %v1299 = vpop.f32.mrb[0].mxu0
  %1300 = vdwg.mxu0
  %v1301 = vmax.f32 %v1223, 0.0
  %v1302 = vmax.f32 %v1226, 0.0
  %v1303 = vmax.f32 %v1231, 0.0
  %v1304 = vmax.f32 %v1234, 0.0
  %v1305 = vmax.f32 %v1239, 0.0
  %v1306 = vmax.f32 %v1242, 0.0
  %v1307 = vmax.f32 %v1247, 0.0
  %v1308 = vmax.f32 %v1250, 0.0
  %v1309 = vmax.f32 %v1255, 0.0
  %v1310 = vmax.f32 %v1258, 0.0
  %v1311 = vmax.f32 %v1263, 0.0
  %v1312 = vmax.f32 %v1266, 0.0
  %v1313 = vmax.f32 %v1271, 0.0
  %v1314 = vmax.f32 %v1274, 0.0
  %v1315 = vmax.f32 %v1279, 0.0
  %v1316 = vmax.f32 %v1282, 0.0
  %v1317 = vmax.f32 %v1287, 0.0
  %v1318 = vmax.f32 %v1290, 0.0
  %v1319 = vmax.f32 %v1295, 0.0
  %v1320 = vmax.f32 %v1298, 0.0
  %v1321 = vlaneseq
  %v1322 = vshrl.u32 %v1321, 7
  %v1323 = vsub.s32 0, %v1322
  %v1324 = vrot.slane %v929, %v1323
  %v1325 = vmul.f32 %v1301, %v1324
  %v1326 = vmul.f32 %v1302, %v1324
  %v1327 = vmul.f32 %v1303, %v1324
  %v1328 = vmul.f32 %v1304, %v1324
  %v1329 = vmul.f32 %v1305, %v1324
  %v1330 = vmul.f32 %v1306, %v1324
  %v1331 = vmul.f32 %v1307, %v1324
  %v1332 = vmul.f32 %v1308, %v1324
  %v1333 = vmul.f32 %v1309, %v1324
  %v1334 = vmul.f32 %v1310, %v1324
  %v1335 = vmul.f32 %v1311, %v1324
  %v1336 = vmul.f32 %v1312, %v1324
  %v1337 = vmul.f32 %v1313, %v1324
  %v1338 = vmul.f32 %v1314, %v1324
  %v1339 = vmul.f32 %v1315, %v1324
  %v1340 = vmul.f32 %v1316, %v1324
  %v1341 = vmul.f32 %v1317, %v1324
  %v1342 = vmul.f32 %v1318, %v1324
  %v1343 = vmul.f32 %v1319, %v1324
  %v1344 = vmul.f32 %v1320, %v1324
  %v1345 = vsel %vm146, %v1325, 0.0
  %1346 = vadd.xlane.f32.xlu0 %v1345
  %v1347 = vpop.xlane.xlu0 %1346
  %v1348 = vsel %vm146, %v1326, 0.0
  %1349 = vadd.xlane.f32.xlu0 %v1348
  %v1350 = vpop.xlane.xlu0 %1349
  %v1351 = vsel %vm146, %v1327, 0.0
  %1352 = vadd.xlane.f32.xlu0 %v1351
  %v1353 = vpop.xlane.xlu0 %1352
  %v1354 = vsel %vm146, %v1328, 0.0
  %1355 = vadd.xlane.f32.xlu0 %v1354
  %v1356 = vpop.xlane.xlu0 %1355
  %v1357 = vsel %vm146, %v1329, 0.0
  %1358 = vadd.xlane.f32.xlu0 %v1357
  %v1359 = vpop.xlane.xlu0 %1358
  %v1360 = vsel %vm146, %v1330, 0.0
  %1361 = vadd.xlane.f32.xlu0 %v1360
  %v1362 = vpop.xlane.xlu0 %1361
  %v1363 = vsel %vm146, %v1331, 0.0
  %1364 = vadd.xlane.f32.xlu0 %v1363
  %v1365 = vpop.xlane.xlu0 %1364
  %v1366 = vsel %vm146, %v1332, 0.0
  %1367 = vadd.xlane.f32.xlu0 %v1366
  %v1368 = vpop.xlane.xlu0 %1367
  %v1369 = vsel %vm146, %v1333, 0.0
  %1370 = vadd.xlane.f32.xlu0 %v1369
  %v1371 = vpop.xlane.xlu0 %1370
  %v1372 = vsel %vm146, %v1334, 0.0
  %1373 = vadd.xlane.f32.xlu0 %v1372
  %v1374 = vpop.xlane.xlu0 %1373
  %v1375 = vsel %vm146, %v1335, 0.0
  %1376 = vadd.xlane.f32.xlu0 %v1375
  %v1377 = vpop.xlane.xlu0 %1376
  %v1378 = vsel %vm146, %v1336, 0.0
  %1379 = vadd.xlane.f32.xlu0 %v1378
  %v1380 = vpop.xlane.xlu0 %1379
  %v1381 = vsel %vm146, %v1337, 0.0
  %1382 = vadd.xlane.f32.xlu0 %v1381
  %v1383 = vpop.xlane.xlu0 %1382
  %v1384 = vsel %vm146, %v1338, 0.0
  %1385 = vadd.xlane.f32.xlu0 %v1384
  %v1386 = vpop.xlane.xlu0 %1385
  %v1387 = vsel %vm146, %v1339, 0.0
  %1388 = vadd.xlane.f32.xlu0 %v1387
  %v1389 = vpop.xlane.xlu0 %1388
  %v1390 = vsel %vm146, %v1340, 0.0
  %1391 = vadd.xlane.f32.xlu0 %v1390
  %v1392 = vpop.xlane.xlu0 %1391
  %v1393 = vsel %vm146, %v1341, 0.0
  %1394 = vadd.xlane.f32.xlu0 %v1393
  %v1395 = vpop.xlane.xlu0 %1394
  %v1396 = vsel %vm146, %v1342, 0.0
  %1397 = vadd.xlane.f32.xlu0 %v1396
  %v1398 = vpop.xlane.xlu0 %1397
  %v1399 = vsel %vm146, %v1343, 0.0
  %1400 = vadd.xlane.f32.xlu0 %v1399
  %v1401 = vpop.xlane.xlu0 %1400
  %v1402 = vsel %vm146, %v1344, 0.0
  %1403 = vadd.xlane.f32.xlu0 %v1402
  %v1404 = vpop.xlane.xlu0 %1403
  %v1405 = vmax.f32 %v1347, %v1353
  %v1406 = vmax.f32 %v1350, %v1356
  %v1407 = vmax.f32 %v1405, %v1359
  %v1408 = vmax.f32 %v1406, %v1362
  %v1409 = vmax.f32 %v1407, %v1365
  %v1410 = vmax.f32 %v1408, %v1368
  %v1411 = vmax.f32 %v1409, %v1371
  %v1412 = vmax.f32 %v1410, %v1374
  %v1413 = vsub.f32 %v1347, %v1411
  %v1414 = vsub.f32 %v1350, %v1412
  %v1415 = vmul.f32 %v1413, 1.442695
  %v1416 = vpow.pop %v1415
  %v1417 = vmul.f32 %v1414, 1.442695
  %v1418 = vpow.pop %v1417
  %v1419 = vsub.f32 %v1353, %v1411
  %v1420 = vsub.f32 %v1356, %v1412
  %v1421 = vmul.f32 %v1419, 1.442695
  %v1422 = vpow.pop %v1421
  %v1423 = vmul.f32 %v1420, 1.442695
  %v1424 = vpow.pop %v1423
  %v1425 = vsub.f32 %v1359, %v1411
  %v1426 = vsub.f32 %v1362, %v1412
  %v1427 = vmul.f32 %v1425, 1.442695
  %v1428 = vpow.pop %v1427
  %v1429 = vmul.f32 %v1426, 1.442695
  %v1430 = vpow.pop %v1429
  %v1431 = vsub.f32 %v1365, %v1411
  %v1432 = vsub.f32 %v1368, %v1412
  %v1433 = vmul.f32 %v1431, 1.442695
  %v1434 = vpow.pop %v1433
  %v1435 = vmul.f32 %v1432, 1.442695
  %v1436 = vpow.pop %v1435
  %v1437 = vsub.f32 %v1371, %v1411
  %v1438 = vsub.f32 %v1374, %v1412
  %v1439 = vmul.f32 %v1437, 1.442695
  %v1440 = vpow.pop %v1439
  %v1441 = vmul.f32 %v1438, 1.442695
  %v1442 = vpow.pop %v1441
  %v1443 = vadd.f32 %v1416, %v1422
  %v1444 = vadd.f32 %v1418, %v1424
  %v1445 = vadd.f32 %v1443, %v1428
  %v1446 = vadd.f32 %v1444, %v1430
  %v1447 = vadd.f32 %v1445, %v1434
  %v1448 = vadd.f32 %v1446, %v1436
  %v1449 = vadd.f32 %v1447, %v1440
  %v1450 = vadd.f32 %v1448, %v1442
  %v1451 = vrcp.pop %v1449
  %v1452 = vmul.f32 1.0, %v1451
  %v1453 = vrcp.pop %v1450
  %v1454 = vmul.f32 1.0, %v1453
  %v1455 = vmul.f32 %v1416, %v1452
  %v1456 = vmul.f32 %v1418, %v1454
  %v1457 = vmul.f32 %v1455, %v1065
  %v1458 = vmul.f32 %v1456, %v1068
  %v1459 = vmul.f32 %v1422, %v1452
  %v1460 = vmul.f32 %v1424, %v1454
  %v1461 = vmul.f32 %v1459, %v1073
  %v1462 = vmul.f32 %v1460, %v1076
  %v1463 = vadd.f32 %v1457, %v1461
  %v1464 = vadd.f32 %v1458, %v1462
  %v1465 = vmul.f32 %v1428, %v1452
  %v1466 = vmul.f32 %v1430, %v1454
  %v1467 = vmul.f32 %v1465, %v1081
  %v1468 = vmul.f32 %v1466, %v1084
  %v1469 = vadd.f32 %v1463, %v1467
  %v1470 = vadd.f32 %v1464, %v1468
  %v1471 = vmul.f32 %v1434, %v1452
  %v1472 = vmul.f32 %v1436, %v1454
  %v1473 = vmul.f32 %v1471, %v1089
  %v1474 = vmul.f32 %v1472, %v1092
  %v1475 = vadd.f32 %v1469, %v1473
  %v1476 = vadd.f32 %v1470, %v1474
  %v1477 = vmul.f32 %v1440, %v1452
  %v1478 = vmul.f32 %v1442, %v1454
  %v1479 = vmul.f32 %v1477, %v1097
  %v1480 = vmul.f32 %v1478, %v1100
  %v1481 = vadd.f32 %v1475, %v1479
  %v1482 = vadd.f32 %v1476, %v1480
  %v1483 = vmax.f32 %v1377, %v1383
  %v1484 = vmax.f32 %v1380, %v1386
  %v1485 = vmax.f32 %v1483, %v1389
  %v1486 = vmax.f32 %v1484, %v1392
  %v1487 = vmax.f32 %v1485, %v1395
  %v1488 = vmax.f32 %v1486, %v1398
  %v1489 = vmax.f32 %v1487, %v1401
  %v1490 = vmax.f32 %v1488, %v1404
  %v1491 = vsub.f32 %v1377, %v1489
  %v1492 = vsub.f32 %v1380, %v1490
  %v1493 = vmul.f32 %v1491, 1.442695
  %v1494 = vpow.pop %v1493
  %v1495 = vmul.f32 %v1492, 1.442695
  %v1496 = vpow.pop %v1495
  %v1497 = vsub.f32 %v1383, %v1489
  %v1498 = vsub.f32 %v1386, %v1490
  %v1499 = vmul.f32 %v1497, 1.442695
  %v1500 = vpow.pop %v1499
  %v1501 = vmul.f32 %v1498, 1.442695
  %v1502 = vpow.pop %v1501
  %v1503 = vsub.f32 %v1389, %v1489
  %v1504 = vsub.f32 %v1392, %v1490
  %v1505 = vmul.f32 %v1503, 1.442695
  %v1506 = vpow.pop %v1505
  %v1507 = vmul.f32 %v1504, 1.442695
  %v1508 = vpow.pop %v1507
  %v1509 = vsub.f32 %v1395, %v1489
  %v1510 = vsub.f32 %v1398, %v1490
  %v1511 = vmul.f32 %v1509, 1.442695
  %v1512 = vpow.pop %v1511
  %v1513 = vmul.f32 %v1510, 1.442695
  %v1514 = vpow.pop %v1513
  %v1515 = vsub.f32 %v1401, %v1489
  %v1516 = vsub.f32 %v1404, %v1490
  %v1517 = vmul.f32 %v1515, 1.442695
  %v1518 = vpow.pop %v1517
  %v1519 = vmul.f32 %v1516, 1.442695
  %v1520 = vpow.pop %v1519
  %v1521 = vadd.f32 %v1494, %v1500
  %v1522 = vadd.f32 %v1496, %v1502
  %v1523 = vadd.f32 %v1521, %v1506
  %v1524 = vadd.f32 %v1522, %v1508
  %v1525 = vadd.f32 %v1523, %v1512
  %v1526 = vadd.f32 %v1524, %v1514
  %v1527 = vadd.f32 %v1525, %v1518
  %v1528 = vadd.f32 %v1526, %v1520
  %v1529 = vrcp.pop %v1527
  %v1530 = vmul.f32 1.0, %v1529
  %v1531 = vrcp.pop %v1528
  %v1532 = vmul.f32 1.0, %v1531
  %v1533 = vmul.f32 %v1494, %v1530
  %v1534 = vmul.f32 %v1496, %v1532
  %v1535 = vmul.f32 %v1533, %v1105
  %v1536 = vmul.f32 %v1534, %v1108
  %v1537 = vmul.f32 %v1500, %v1530
  %v1538 = vmul.f32 %v1502, %v1532
  %v1539 = vmul.f32 %v1537, %v1113
  %v1540 = vmul.f32 %v1538, %v1116
  %v1541 = vadd.f32 %v1535, %v1539
  %v1542 = vadd.f32 %v1536, %v1540
  %v1543 = vmul.f32 %v1506, %v1530
  %v1544 = vmul.f32 %v1508, %v1532
  %v1545 = vmul.f32 %v1543, %v1121
  %v1546 = vmul.f32 %v1544, %v1124
  %v1547 = vadd.f32 %v1541, %v1545
  %v1548 = vadd.f32 %v1542, %v1546
  %v1549 = vmul.f32 %v1512, %v1530
  %v1550 = vmul.f32 %v1514, %v1532
  %v1551 = vmul.f32 %v1549, %v1129
  %v1552 = vmul.f32 %v1550, %v1132
  %v1553 = vadd.f32 %v1547, %v1551
  %v1554 = vadd.f32 %v1548, %v1552
  %v1555 = vmul.f32 %v1518, %v1530
  %v1556 = vmul.f32 %v1520, %v1532
  %v1557 = vmul.f32 %v1555, %v1137
  %v1558 = vmul.f32 %v1556, %v1140
  %v1559 = vadd.f32 %v1553, %v1557
  %v1560 = vadd.f32 %v1554, %v1558
  %1563 = vrot.lane.b32.xlu0 %v1559, 8
  %v1564 = vpop.permute.xlu0 %1563
  %1565 = vrot.lane.b32.xlu0 %v1560, 8
  %v1566 = vpop.permute.xlu0 %1565
  %v1569 = vsel %vm146, %v1481, %v1564
  %v1570 = vsel %vm146, %v1482, %v1566
  %v1571 = vsel %vm281, %v1569, %v1023
  %v1572 = vsel %vm281, %v1570, %v1024
  %v1573 = vpack.c.bf16 %v1572, %v1571
  %v1574 = vpack.c.bf16 %v931, %v930
  %v1575 = vpack.c.bf16 %v932, %v932
  %v1576 = vlaneseq
  %v1577 = vshrl.u32 %v1576, 7
  %v1578 = vsub.s32 0, %v1577
  %v1579 = vrot.slane %v933, %v1578
  %vm1580 = vcmask 195584
  %v1582 = vsel %vm1580, %v1573, 0
  %v1585 = vsel %vm1184, %v1575, 0
  %1587 = vmatprep.subr.bf16.mxu0 0
  %1588 = vmatpush1.bf16.msra.mxu0 %v1574
  %1589 = vmatprep.subr.bf16.mxu0 0
  %1590 = vmatpush1.bf16.msra.mxu0 %v1585
  %1591 = vmatprep.subr.bf16.mxu0 0
  %1592 = vmatpush1.bf16.msra.mxu0 0
  %1593 = vmatprep.subr.bf16.mxu0 0
  %1594 = vmatpush1.bf16.msra.mxu0 0
  %1595 = vmatprep.subr.bf16.mxu0 0
  %1596 = vmatpush1.bf16.msra.mxu0 0
  %1597 = vmatprep.subr.bf16.mxu0 0
  %1598 = vmatpush1.bf16.msra.mxu0 0
  %1599 = vmatprep.subr.bf16.mxu0 0
  %1600 = vmatpush1.bf16.msra.mxu0 0
  %1601 = vmatprep.subr.bf16.mxu0 0
  %1602 = vmatpush1.bf16.msra.mxu0 0
  %1603 = vmatprep.subr.bf16.mxu0 0
  %1604 = vmatpush1.bf16.msra.mxu0 0
  %1605 = vmatprep.subr.bf16.mxu0 0
  %1606 = vmatpush1.bf16.msra.mxu0 0
  %1607 = vmatprep.subr.bf16.mxu0 0
  %1608 = vmatpush1.bf16.msra.mxu0 0
  %1609 = vmatprep.subr.bf16.mxu0 0
  %1610 = vmatpush1.bf16.msra.mxu0 0
  %1611 = vmatprep.subr.bf16.mxu0 0
  %1612 = vmatpush1.bf16.msra.mxu0 0
  %1613 = vmatprep.subr.bf16.mxu0 0
  %1614 = vmatpush1.bf16.msra.mxu0 0
  %1615 = vmatprep.subr.bf16.mxu0 0
  %1616 = vmatpush1.bf16.msra.mxu0 0
  %1617 = vmatprep.subr.bf16.mxu0 0
  %1618 = vmatpush1.bf16.msra.mxu0 0
  %1619 = vmatprep.mubr.bf16.mxu0 0
  %1620 = vmatmul.mubr.bf16.gmra.mrb[0].mxu0 %v1582
  %v1621 = vpop.f32.mrb[0].mxu0
  %v1622 = vadd.f32 %v1579, %v1621
  %v1623 = vpop.f32.mrb[0].mxu0
  %v1624 = vpop.f32.mrb[0].mxu0
  %v1625 = vadd.f32 %v1579, %v1624
  %v1626 = vpop.f32.mrb[0].mxu0
  %1627 = vdwg.mxu0
  %v1628 = vtanh.pop %v1622
  %v1629 = vtanh.pop %v1625
  %1630 = vrot.lane.b32.xlu0 %v47, 8
  %v1631 = vpop.permute.xlu0 %1630
  %1632 = vrot.lane.b32.xlu0 %v48, 8
  %v1633 = vpop.permute.xlu0 %1632
  %v1636 = vmul.f32 %v922, %v1631
  %v1637 = vmul.f32 %v924, %v1633
  %v1638 = vsub.f32 1.0, %v922
  %v1639 = vsub.f32 1.0, %v924
  %1642 = vrot.lane.b32.xlu0 %v1628, 8
  %v1643 = vpop.permute.xlu0 %1642
  %1644 = vrot.lane.b32.xlu0 %v1629, 8
  %v1645 = vpop.permute.xlu0 %1644
  %v1648 = vmul.f32 %v1638, %v1643
  %v1649 = vmul.f32 %v1639, %v1645
  %v1650 = vadd.f32 %v1636, %v1648
  %v1651 = vadd.f32 %v1637, %v1649
  %1654 = vrot.lane.b32.xlu0 %v1650, 120
  %v1655 = vpop.permute.xlu0 %1654
  %1656 = vrot.lane.b32.xlu0 %v1651, 120
  %v1657 = vpop.permute.xlu0 %1656
  %1660 = vst.msk [vmem:[%s6] sm:$0xff] %vm146, %v1655
  %1661 = vst.msk [vmem:[%s6 + $0x8] sm:$0xff] %vm146, %v1657
  %s1662 = scalar_lea.vmem %s0, 16
  %v1663 = vld [vmem:[%s1662] sm:$0xff]
  %v1664 = vld [vmem:[%s1662 + $0x8] sm:$0xff]
  %s1665 = scalar_lea.vmem %s1, 16
  %v1666 = vld [vmem:[%s1665] sm:$0xff]
  %v1667 = vld [vmem:[%s1665 + $0x8] sm:$0xff]
  %v1669 = vsel %vm49, %v1663, 0
  %v1672 = vsel %vm49, %v1664, 0
  %1674 = vmatprep.subr.mxu0 0.0
  %1675 = vmatpush1.msra.mxu0 %v58
  %1676 = vmatprep.subr.mxu0 0.0
  %1677 = vmatpush1.msra.mxu0 0.0
  %1678 = vmatprep.subr.mxu0 0.0
  %1679 = vmatpush1.msra.mxu0 0.0
  %1680 = vmatprep.subr.mxu0 0.0
  %1681 = vmatpush1.msra.mxu0 0.0
  %1682 = vmatprep.subr.mxu0 0.0
  %1683 = vmatpush1.msra.mxu0 0.0
  %1684 = vmatprep.subr.mxu0 0.0
  %1685 = vmatpush1.msra.mxu0 0.0
  %1686 = vmatprep.subr.mxu0 0.0
  %1687 = vmatpush1.msra.mxu0 0.0
  %1688 = vmatprep.subr.mxu0 0.0
  %1689 = vmatpush1.msra.mxu0 0.0
  %1690 = vmatprep.subr.mxu0 0.0
  %1691 = vmatpush1.msra.mxu0 0.0
  %1692 = vmatprep.subr.mxu0 0.0
  %1693 = vmatpush1.msra.mxu0 0.0
  %1694 = vmatprep.subr.mxu0 0.0
  %1695 = vmatpush1.msra.mxu0 0.0
  %1696 = vmatprep.subr.mxu0 0.0
  %1697 = vmatpush1.msra.mxu0 0.0
  %1698 = vmatprep.subr.mxu0 0.0
  %1699 = vmatpush1.msra.mxu0 0.0
  %1700 = vmatprep.subr.mxu0 0.0
  %1701 = vmatpush1.msra.mxu0 0.0
  %1702 = vmatprep.subr.mxu0 0.0
  %1703 = vmatpush1.msra.mxu0 0.0
  %1704 = vmatprep.subr.mxu0 0.0
  %1705 = vmatpush1.msra.mxu0 0.0
  %1706 = vmatprep.subr.mxu0 0.0
  %1707 = vmatpush1.msra.mxu0 0.0
  %1708 = vmatprep.subr.mxu0 0.0
  %1709 = vmatpush1.msra.mxu0 0.0
  %1710 = vmatprep.subr.mxu0 0.0
  %1711 = vmatpush1.msra.mxu0 0.0
  %1712 = vmatprep.subr.mxu0 0.0
  %1713 = vmatpush1.msra.mxu0 0.0
  %1714 = vmatprep.subr.mxu0 0.0
  %1715 = vmatpush1.msra.mxu0 0.0
  %1716 = vmatprep.subr.mxu0 0.0
  %1717 = vmatpush1.msra.mxu0 0.0
  %1718 = vmatprep.subr.mxu0 0.0
  %1719 = vmatpush1.msra.mxu0 0.0
  %1720 = vmatprep.subr.mxu0 0.0
  %1721 = vmatpush1.msra.mxu0 0.0
  %1722 = vmatprep.subr.mxu0 0.0
  %1723 = vmatpush1.msra.mxu0 0.0
  %1724 = vmatprep.subr.mxu0 0.0
  %1725 = vmatpush1.msra.mxu0 0.0
  %1726 = vmatprep.subr.mxu0 0.0
  %1727 = vmatpush1.msra.mxu0 0.0
  %1728 = vmatprep.subr.mxu0 0.0
  %1729 = vmatpush1.msra.mxu0 0.0
  %1730 = vmatprep.subr.mxu0 0.0
  %1731 = vmatpush1.msra.mxu0 0.0
  %1732 = vmatprep.subr.mxu0 0.0
  %1733 = vmatpush1.msra.mxu0 0.0
  %1734 = vmatprep.subr.mxu0 0.0
  %1735 = vmatpush1.msra.mxu0 0.0
  %1736 = vmatprep.subr.mxu0 0.0
  %1737 = vmatpush1.msra.mxu0 0.0
  %1738 = vmatprep.mubr.f32.mxu0 0.0
  %1739 = vmatmul.mubr.f32.gmra.mrb[0].mxu0 %v1669
  %v1740 = vpop.f32.mrb[0].mxu0
  %v1741 = vadd.f32 0.0, %v1740
  %v1742 = vpop.f32.mrb[0].mxu0
  %1743 = vmatprep.mubr.f32.mxu0 0.0
  %1744 = vmatmul.mubr.f32.gmra.mrb[0].mxu0 %v1672
  %v1745 = vpop.f32.mrb[0].mxu0
  %v1746 = vadd.f32 0.0, %v1745
  %v1747 = vpop.f32.mrb[0].mxu0
  %1748 = vdwg.mxu0
  %v1749 = vld [vmem:[%s4] sm:$0xff]
  %v1750 = vld [vmem:[%s4 + $0x8] sm:$0xff]
  %v1751 = vld [vmem:[%s4 + $0x10] sm:$0xff]
  %v1752 = vld [vmem:[%s4 + $0x18] sm:$0x1]
  %v1753 = vld [vmem:[%s4 + $0x20] sm:$0xff]
  %v1754 = vld [vmem:[%s4 + $0x28] sm:$0xff]
  %v1755 = vld [vmem:[%s4 + $0x30] sm:$0xff]
  %v1756 = vld [vmem:[%s4 + $0x38] sm:$0xff]
  %v1757 = vld [vmem:[%s4 + $0x40] sm:$0xff]
  %v1758 = vld [vmem:[%s4 + $0x48] sm:$0xff]
  %v1759 = vld [vmem:[%s4 + $0x50] sm:$0x1]
  %v1761 = vsel %vm146, %v1666, 0
  %v1764 = vsel %vm146, %v1667, 0
  %1766 = vmatprep.subr.mxu0 0.0
  %1767 = vmatpush1.msra.mxu0 %v1749
  %1768 = vmatprep.subr.mxu0 0.0
  %1769 = vmatpush1.msra.mxu0 0.0
  %1770 = vmatprep.subr.mxu0 0.0
  %1771 = vmatpush1.msra.mxu0 0.0
  %1772 = vmatprep.subr.mxu0 0.0
  %1773 = vmatpush1.msra.mxu0 0.0
  %1774 = vmatprep.subr.mxu0 0.0
  %1775 = vmatpush1.msra.mxu0 0.0
  %1776 = vmatprep.subr.mxu0 0.0
  %1777 = vmatpush1.msra.mxu0 0.0
  %1778 = vmatprep.subr.mxu0 0.0
  %1779 = vmatpush1.msra.mxu0 0.0
  %1780 = vmatprep.subr.mxu0 0.0
  %1781 = vmatpush1.msra.mxu0 0.0
  %1782 = vmatprep.subr.mxu0 0.0
  %1783 = vmatpush1.msra.mxu0 0.0
  %1784 = vmatprep.subr.mxu0 0.0
  %1785 = vmatpush1.msra.mxu0 0.0
  %1786 = vmatprep.subr.mxu0 0.0
  %1787 = vmatpush1.msra.mxu0 0.0
  %1788 = vmatprep.subr.mxu0 0.0
  %1789 = vmatpush1.msra.mxu0 0.0
  %1790 = vmatprep.subr.mxu0 0.0
  %1791 = vmatpush1.msra.mxu0 0.0
  %1792 = vmatprep.subr.mxu0 0.0
  %1793 = vmatpush1.msra.mxu0 0.0
  %1794 = vmatprep.subr.mxu0 0.0
  %1795 = vmatpush1.msra.mxu0 0.0
  %1796 = vmatprep.subr.mxu0 0.0
  %1797 = vmatpush1.msra.mxu0 0.0
  %1798 = vmatprep.subr.mxu0 0.0
  %1799 = vmatpush1.msra.mxu0 0.0
  %1800 = vmatprep.subr.mxu0 0.0
  %1801 = vmatpush1.msra.mxu0 0.0
  %1802 = vmatprep.subr.mxu0 0.0
  %1803 = vmatpush1.msra.mxu0 0.0
  %1804 = vmatprep.subr.mxu0 0.0
  %1805 = vmatpush1.msra.mxu0 0.0
  %1806 = vmatprep.subr.mxu0 0.0
  %1807 = vmatpush1.msra.mxu0 0.0
  %1808 = vmatprep.subr.mxu0 0.0
  %1809 = vmatpush1.msra.mxu0 0.0
  %1810 = vmatprep.subr.mxu0 0.0
  %1811 = vmatpush1.msra.mxu0 0.0
  %1812 = vmatprep.subr.mxu0 0.0
  %1813 = vmatpush1.msra.mxu0 0.0
  %1814 = vmatprep.subr.mxu0 0.0
  %1815 = vmatpush1.msra.mxu0 0.0
  %1816 = vmatprep.subr.mxu0 0.0
  %1817 = vmatpush1.msra.mxu0 0.0
  %1818 = vmatprep.subr.mxu0 0.0
  %1819 = vmatpush1.msra.mxu0 0.0
  %1820 = vmatprep.subr.mxu0 0.0
  %1821 = vmatpush1.msra.mxu0 0.0
  %1822 = vmatprep.subr.mxu0 0.0
  %1823 = vmatpush1.msra.mxu0 0.0
  %1824 = vmatprep.subr.mxu0 0.0
  %1825 = vmatpush1.msra.mxu0 0.0
  %1826 = vmatprep.subr.mxu0 0.0
  %1827 = vmatpush1.msra.mxu0 0.0
  %1828 = vmatprep.subr.mxu0 0.0
  %1829 = vmatpush1.msra.mxu0 0.0
  %1830 = vmatprep.mubr.f32.mxu0 0.0
  %1831 = vmatmul.mubr.f32.gmra.mrb[0].mxu0 %v1761
  %v1832 = vpop.f32.mrb[0].mxu0
  %v1833 = vadd.f32 0.0, %v1832
  %v1834 = vpop.f32.mrb[0].mxu0
  %1835 = vmatprep.mubr.f32.mxu0 0.0
  %1836 = vmatmul.mubr.f32.gmra.mrb[0].mxu0 %v1764
  %v1837 = vpop.f32.mrb[0].mxu0
  %v1838 = vadd.f32 0.0, %v1837
  %v1839 = vpop.f32.mrb[0].mxu0
  %1840 = vdwg.mxu0
  %v1841 = vadd.f32 %v1741, %v1833
  %v1842 = vadd.f32 %v1746, %v1838
  %v1843 = vpack.c.bf16 %v1842, %v1841
  %1844 = vmatprep.subr.bf16.mxu0 0
  %1845 = vmatpush1.bf16.msra.mxu0 %v1843
  %1846 = vmatprep.subr.bf16.mxu0 0
  %1847 = vmatpush1.bf16.msra.mxu0 0
  %1848 = vmatprep.subr.bf16.mxu0 0
  %1849 = vmatpush1.bf16.msra.mxu0 0
  %1850 = vmatprep.subr.bf16.mxu0 0
  %1851 = vmatpush1.bf16.msra.mxu0 0
  %1852 = vmatprep.subr.bf16.mxu0 0
  %1853 = vmatpush1.bf16.msra.mxu0 0
  %1854 = vmatprep.subr.bf16.mxu0 0
  %1855 = vmatpush1.bf16.msra.mxu0 0
  %1856 = vmatprep.subr.bf16.mxu0 0
  %1857 = vmatpush1.bf16.msra.mxu0 0
  %1858 = vmatprep.subr.bf16.mxu0 0
  %1859 = vmatpush1.bf16.msra.mxu0 0
  %1860 = vmatprep.subr.bf16.mxu0 0
  %1861 = vmatpush1.bf16.msra.mxu0 0
  %1862 = vmatprep.subr.bf16.mxu0 0
  %1863 = vmatpush1.bf16.msra.mxu0 0
  %1864 = vmatprep.subr.bf16.mxu0 0
  %1865 = vmatpush1.bf16.msra.mxu0 0
  %1866 = vmatprep.subr.bf16.mxu0 0
  %1867 = vmatpush1.bf16.msra.mxu0 0
  %1868 = vmatprep.subr.bf16.mxu0 0
  %1869 = vmatpush1.bf16.msra.mxu0 0
  %1870 = vmatprep.subr.bf16.mxu0 0
  %1871 = vmatpush1.bf16.msra.mxu0 0
  %1872 = vmatprep.subr.bf16.mxu0 0
  %1873 = vmatpush1.bf16.msra.mxu0 0
  %1874 = vmatprep.subr.bf16.mxu0 0
  %1875 = vmatpush1.bf16.msra.mxu0 0
  %1876 = vmatprep.mubr.bf16.mxu0 0
  %1877 = vmatmul.mubr.bf16.gmra.mrb[0].mxu0 %v283
  %v1878 = vpop.f32.mrb[0].mxu0
  %v1879 = vadd.f32 0.0, %v1878
  %v1880 = vpop.f32.mrb[0].mxu0
  %v1881 = vpop.f32.mrb[0].mxu0
  %v1882 = vadd.f32 0.0, %v1881
  %v1883 = vpop.f32.mrb[0].mxu0
  %1884 = vmatprep.mubr.bf16.mxu0 0
  %1885 = vmatmul.mubr.bf16.gmra.mrb[0].mxu0 %v286
  %v1886 = vpop.f32.mrb[0].mxu0
  %v1887 = vadd.f32 0.0, %v1886
  %v1888 = vpop.f32.mrb[0].mxu0
  %v1889 = vpop.f32.mrb[0].mxu0
  %v1890 = vadd.f32 0.0, %v1889
  %v1891 = vpop.f32.mrb[0].mxu0
  %1892 = vmatprep.mubr.bf16.mxu0 0
  %1893 = vmatmul.mubr.bf16.gmra.mrb[0].mxu0 %v289
  %v1894 = vpop.f32.mrb[0].mxu0
  %v1895 = vadd.f32 0.0, %v1894
  %v1896 = vpop.f32.mrb[0].mxu0
  %v1897 = vpop.f32.mrb[0].mxu0
  %v1898 = vadd.f32 0.0, %v1897
  %v1899 = vpop.f32.mrb[0].mxu0
  %1900 = vmatprep.mubr.bf16.mxu0 0
  %1901 = vmatmul.mubr.bf16.gmra.mrb[0].mxu0 %v292
  %v1902 = vpop.f32.mrb[0].mxu0
  %v1903 = vadd.f32 0.0, %v1902
  %v1904 = vpop.f32.mrb[0].mxu0
  %v1905 = vpop.f32.mrb[0].mxu0
  %v1906 = vadd.f32 0.0, %v1905
  %v1907 = vpop.f32.mrb[0].mxu0
  %1908 = vmatprep.mubr.bf16.mxu0 0
  %1909 = vmatmul.mubr.bf16.gmra.mrb[0].mxu0 %v295
  %v1910 = vpop.f32.mrb[0].mxu0
  %v1911 = vadd.f32 0.0, %v1910
  %v1912 = vpop.f32.mrb[0].mxu0
  %v1913 = vpop.f32.mrb[0].mxu0
  %v1914 = vadd.f32 0.0, %v1913
  %v1915 = vpop.f32.mrb[0].mxu0
  %1916 = vmatprep.mubr.bf16.mxu0 0
  %1917 = vmatmul.mubr.bf16.gmra.mrb[0].mxu0 %v298
  %v1918 = vpop.f32.mrb[0].mxu0
  %v1919 = vadd.f32 0.0, %v1918
  %v1920 = vpop.f32.mrb[0].mxu0
  %v1921 = vpop.f32.mrb[0].mxu0
  %v1922 = vadd.f32 0.0, %v1921
  %v1923 = vpop.f32.mrb[0].mxu0
  %1924 = vmatprep.mubr.bf16.mxu0 0
  %1925 = vmatmul.mubr.bf16.gmra.mrb[0].mxu0 %v301
  %v1926 = vpop.f32.mrb[0].mxu0
  %v1927 = vadd.f32 0.0, %v1926
  %v1928 = vpop.f32.mrb[0].mxu0
  %v1929 = vpop.f32.mrb[0].mxu0
  %v1930 = vadd.f32 0.0, %v1929
  %v1931 = vpop.f32.mrb[0].mxu0
  %1932 = vmatprep.mubr.bf16.mxu0 0
  %1933 = vmatmul.mubr.bf16.gmra.mrb[0].mxu0 %v304
  %v1934 = vpop.f32.mrb[0].mxu0
  %v1935 = vadd.f32 0.0, %v1934
  %v1936 = vpop.f32.mrb[0].mxu0
  %v1937 = vpop.f32.mrb[0].mxu0
  %v1938 = vadd.f32 0.0, %v1937
  %v1939 = vpop.f32.mrb[0].mxu0
  %1940 = vmatprep.mubr.bf16.mxu0 0
  %1941 = vmatmul.mubr.bf16.gmra.mrb[0].mxu0 %v307
  %v1942 = vpop.f32.mrb[0].mxu0
  %v1943 = vadd.f32 0.0, %v1942
  %v1944 = vpop.f32.mrb[0].mxu0
  %v1945 = vpop.f32.mrb[0].mxu0
  %v1946 = vadd.f32 0.0, %v1945
  %v1947 = vpop.f32.mrb[0].mxu0
  %1948 = vmatprep.mubr.bf16.mxu0 0
  %1949 = vmatmul.mubr.bf16.gmra.mrb[0].mxu0 %v310
  %v1950 = vpop.f32.mrb[0].mxu0
  %v1951 = vadd.f32 0.0, %v1950
  %v1952 = vpop.f32.mrb[0].mxu0
  %v1953 = vpop.f32.mrb[0].mxu0
  %v1954 = vadd.f32 0.0, %v1953
  %v1955 = vpop.f32.mrb[0].mxu0
  %1956 = vdwg.mxu0
  %v1957 = vpack.c.bf16 %v1882, %v1879
  %v1958 = vpack.c.bf16 %v1890, %v1887
  %v1959 = vpack.c.bf16 %v1898, %v1895
  %v1960 = vpack.c.bf16 %v1906, %v1903
  %v1961 = vpack.c.bf16 %v1914, %v1911
  %v1962 = vpack.c.bf16 %v1922, %v1919
  %v1963 = vpack.c.bf16 %v1930, %v1927
  %v1964 = vpack.c.bf16 %v1938, %v1935
  %v1965 = vpack.c.bf16 %v1946, %v1943
  %v1966 = vpack.c.bf16 %v1954, %v1951
  %v1967 = vpack.c.bf16 %v1751, %v1750
  %v1969 = vsel %vm281, %v1957, 0
  %v1972 = vsel %vm281, %v1958, 0
  %v1975 = vsel %vm281, %v1959, 0
  %v1978 = vsel %vm281, %v1960, 0
  %v1981 = vsel %vm281, %v1961, 0
  %v1984 = vsel %vm281, %v1962, 0
  %v1987 = vsel %vm281, %v1963, 0
  %v1990 = vsel %vm281, %v1964, 0
  %v1993 = vsel %vm281, %v1965, 0
  %v1996 = vsel %vm281, %v1966, 0
  %1998 = vmatprep.subr.bf16.mxu0 0
  %1999 = vmatpush1.bf16.msra.mxu0 %v1967
  %2000 = vmatprep.subr.bf16.mxu0 0
  %2001 = vmatpush1.bf16.msra.mxu0 0
  %2002 = vmatprep.subr.bf16.mxu0 0
  %2003 = vmatpush1.bf16.msra.mxu0 0
  %2004 = vmatprep.subr.bf16.mxu0 0
  %2005 = vmatpush1.bf16.msra.mxu0 0
  %2006 = vmatprep.subr.bf16.mxu0 0
  %2007 = vmatpush1.bf16.msra.mxu0 0
  %2008 = vmatprep.subr.bf16.mxu0 0
  %2009 = vmatpush1.bf16.msra.mxu0 0
  %2010 = vmatprep.subr.bf16.mxu0 0
  %2011 = vmatpush1.bf16.msra.mxu0 0
  %2012 = vmatprep.subr.bf16.mxu0 0
  %2013 = vmatpush1.bf16.msra.mxu0 0
  %2014 = vmatprep.subr.bf16.mxu0 0
  %2015 = vmatpush1.bf16.msra.mxu0 0
  %2016 = vmatprep.subr.bf16.mxu0 0
  %2017 = vmatpush1.bf16.msra.mxu0 0
  %2018 = vmatprep.subr.bf16.mxu0 0
  %2019 = vmatpush1.bf16.msra.mxu0 0
  %2020 = vmatprep.subr.bf16.mxu0 0
  %2021 = vmatpush1.bf16.msra.mxu0 0
  %2022 = vmatprep.subr.bf16.mxu0 0
  %2023 = vmatpush1.bf16.msra.mxu0 0
  %2024 = vmatprep.subr.bf16.mxu0 0
  %2025 = vmatpush1.bf16.msra.mxu0 0
  %2026 = vmatprep.subr.bf16.mxu0 0
  %2027 = vmatpush1.bf16.msra.mxu0 0
  %2028 = vmatprep.subr.bf16.mxu0 0
  %2029 = vmatpush1.bf16.msra.mxu0 0
  %2030 = vmatprep.mubr.bf16.mxu0 0
  %2031 = vmatmul.mubr.bf16.gmra.mrb[0].mxu0 %v1969
  %v2032 = vpop.f32.mrb[0].mxu0
  %v2033 = vadd.f32 0.0, %v2032
  %v2034 = vpop.f32.mrb[0].mxu0
  %v2035 = vpop.f32.mrb[0].mxu0
  %v2036 = vadd.f32 0.0, %v2035
  %v2037 = vpop.f32.mrb[0].mxu0
  %2038 = vmatprep.mubr.bf16.mxu0 0
  %2039 = vmatmul.mubr.bf16.gmra.mrb[0].mxu0 %v1972
  %v2040 = vpop.f32.mrb[0].mxu0
  %v2041 = vadd.f32 0.0, %v2040
  %v2042 = vpop.f32.mrb[0].mxu0
  %v2043 = vpop.f32.mrb[0].mxu0
  %v2044 = vadd.f32 0.0, %v2043
  %v2045 = vpop.f32.mrb[0].mxu0
  %2046 = vmatprep.mubr.bf16.mxu0 0
  %2047 = vmatmul.mubr.bf16.gmra.mrb[0].mxu0 %v1975
  %v2048 = vpop.f32.mrb[0].mxu0
  %v2049 = vadd.f32 0.0, %v2048
  %v2050 = vpop.f32.mrb[0].mxu0
  %v2051 = vpop.f32.mrb[0].mxu0
  %v2052 = vadd.f32 0.0, %v2051
  %v2053 = vpop.f32.mrb[0].mxu0
  %2054 = vmatprep.mubr.bf16.mxu0 0
  %2055 = vmatmul.mubr.bf16.gmra.mrb[0].mxu0 %v1978
  %v2056 = vpop.f32.mrb[0].mxu0
  %v2057 = vadd.f32 0.0, %v2056
  %v2058 = vpop.f32.mrb[0].mxu0
  %v2059 = vpop.f32.mrb[0].mxu0
  %v2060 = vadd.f32 0.0, %v2059
  %v2061 = vpop.f32.mrb[0].mxu0
  %2062 = vmatprep.mubr.bf16.mxu0 0
  %2063 = vmatmul.mubr.bf16.gmra.mrb[0].mxu0 %v1981
  %v2064 = vpop.f32.mrb[0].mxu0
  %v2065 = vadd.f32 0.0, %v2064
  %v2066 = vpop.f32.mrb[0].mxu0
  %v2067 = vpop.f32.mrb[0].mxu0
  %v2068 = vadd.f32 0.0, %v2067
  %v2069 = vpop.f32.mrb[0].mxu0
  %2070 = vmatprep.mubr.bf16.mxu0 0
  %2071 = vmatmul.mubr.bf16.gmra.mrb[0].mxu0 %v1984
  %v2072 = vpop.f32.mrb[0].mxu0
  %v2073 = vadd.f32 0.0, %v2072
  %v2074 = vpop.f32.mrb[0].mxu0
  %v2075 = vpop.f32.mrb[0].mxu0
  %v2076 = vadd.f32 0.0, %v2075
  %v2077 = vpop.f32.mrb[0].mxu0
  %2078 = vmatprep.mubr.bf16.mxu0 0
  %2079 = vmatmul.mubr.bf16.gmra.mrb[0].mxu0 %v1987
  %v2080 = vpop.f32.mrb[0].mxu0
  %v2081 = vadd.f32 0.0, %v2080
  %v2082 = vpop.f32.mrb[0].mxu0
  %v2083 = vpop.f32.mrb[0].mxu0
  %v2084 = vadd.f32 0.0, %v2083
  %v2085 = vpop.f32.mrb[0].mxu0
  %2086 = vmatprep.mubr.bf16.mxu0 0
  %2087 = vmatmul.mubr.bf16.gmra.mrb[0].mxu0 %v1990
  %v2088 = vpop.f32.mrb[0].mxu0
  %v2089 = vadd.f32 0.0, %v2088
  %v2090 = vpop.f32.mrb[0].mxu0
  %v2091 = vpop.f32.mrb[0].mxu0
  %v2092 = vadd.f32 0.0, %v2091
  %v2093 = vpop.f32.mrb[0].mxu0
  %2094 = vmatprep.mubr.bf16.mxu0 0
  %2095 = vmatmul.mubr.bf16.gmra.mrb[0].mxu0 %v1993
  %v2096 = vpop.f32.mrb[0].mxu0
  %v2097 = vadd.f32 0.0, %v2096
  %v2098 = vpop.f32.mrb[0].mxu0
  %v2099 = vpop.f32.mrb[0].mxu0
  %v2100 = vadd.f32 0.0, %v2099
  %v2101 = vpop.f32.mrb[0].mxu0
  %2102 = vmatprep.mubr.bf16.mxu0 0
  %2103 = vmatmul.mubr.bf16.gmra.mrb[0].mxu0 %v1996
  %v2104 = vpop.f32.mrb[0].mxu0
  %v2105 = vadd.f32 0.0, %v2104
  %v2106 = vpop.f32.mrb[0].mxu0
  %v2107 = vpop.f32.mrb[0].mxu0
  %v2108 = vadd.f32 0.0, %v2107
  %v2109 = vpop.f32.mrb[0].mxu0
  %2110 = vdwg.mxu0
  %v2111 = vmax.f32 %v2033, 0.0
  %v2112 = vmax.f32 %v2036, 0.0
  %v2113 = vmax.f32 %v2041, 0.0
  %v2114 = vmax.f32 %v2044, 0.0
  %v2115 = vmax.f32 %v2049, 0.0
  %v2116 = vmax.f32 %v2052, 0.0
  %v2117 = vmax.f32 %v2057, 0.0
  %v2118 = vmax.f32 %v2060, 0.0
  %v2119 = vmax.f32 %v2065, 0.0
  %v2120 = vmax.f32 %v2068, 0.0
  %v2121 = vmax.f32 %v2073, 0.0
  %v2122 = vmax.f32 %v2076, 0.0
  %v2123 = vmax.f32 %v2081, 0.0
  %v2124 = vmax.f32 %v2084, 0.0
  %v2125 = vmax.f32 %v2089, 0.0
  %v2126 = vmax.f32 %v2092, 0.0
  %v2127 = vmax.f32 %v2097, 0.0
  %v2128 = vmax.f32 %v2100, 0.0
  %v2129 = vmax.f32 %v2105, 0.0
  %v2130 = vmax.f32 %v2108, 0.0
  %v2131 = vlaneseq
  %v2132 = vshrl.u32 %v2131, 7
  %v2133 = vsub.s32 0, %v2132
  %v2134 = vrot.slane %v1752, %v2133
  %v2135 = vmul.f32 %v2111, %v2134
  %v2136 = vmul.f32 %v2112, %v2134
  %v2137 = vmul.f32 %v2113, %v2134
  %v2138 = vmul.f32 %v2114, %v2134
  %v2139 = vmul.f32 %v2115, %v2134
  %v2140 = vmul.f32 %v2116, %v2134
  %v2141 = vmul.f32 %v2117, %v2134
  %v2142 = vmul.f32 %v2118, %v2134
  %v2143 = vmul.f32 %v2119, %v2134
  %v2144 = vmul.f32 %v2120, %v2134
  %v2145 = vmul.f32 %v2121, %v2134
  %v2146 = vmul.f32 %v2122, %v2134
  %v2147 = vmul.f32 %v2123, %v2134
  %v2148 = vmul.f32 %v2124, %v2134
  %v2149 = vmul.f32 %v2125, %v2134
  %v2150 = vmul.f32 %v2126, %v2134
  %v2151 = vmul.f32 %v2127, %v2134
  %v2152 = vmul.f32 %v2128, %v2134
  %v2153 = vmul.f32 %v2129, %v2134
  %v2154 = vmul.f32 %v2130, %v2134
  %v2155 = vsel %vm281, %v2135, 0.0
  %2156 = vadd.xlane.f32.xlu0 %v2155
  %v2157 = vpop.xlane.xlu0 %2156
  %v2158 = vsel %vm281, %v2136, 0.0
  %2159 = vadd.xlane.f32.xlu0 %v2158
  %v2160 = vpop.xlane.xlu0 %2159
  %v2161 = vsel %vm281, %v2137, 0.0
  %2162 = vadd.xlane.f32.xlu0 %v2161
  %v2163 = vpop.xlane.xlu0 %2162
  %v2164 = vsel %vm281, %v2138, 0.0
  %2165 = vadd.xlane.f32.xlu0 %v2164
  %v2166 = vpop.xlane.xlu0 %2165
  %v2167 = vsel %vm281, %v2139, 0.0
  %2168 = vadd.xlane.f32.xlu0 %v2167
  %v2169 = vpop.xlane.xlu0 %2168
  %v2170 = vsel %vm281, %v2140, 0.0
  %2171 = vadd.xlane.f32.xlu0 %v2170
  %v2172 = vpop.xlane.xlu0 %2171
  %v2173 = vsel %vm281, %v2141, 0.0
  %2174 = vadd.xlane.f32.xlu0 %v2173
  %v2175 = vpop.xlane.xlu0 %2174
  %v2176 = vsel %vm281, %v2142, 0.0
  %2177 = vadd.xlane.f32.xlu0 %v2176
  %v2178 = vpop.xlane.xlu0 %2177
  %v2179 = vsel %vm281, %v2143, 0.0
  %2180 = vadd.xlane.f32.xlu0 %v2179
  %v2181 = vpop.xlane.xlu0 %2180
  %v2182 = vsel %vm281, %v2144, 0.0
  %2183 = vadd.xlane.f32.xlu0 %v2182
  %v2184 = vpop.xlane.xlu0 %2183
  %v2185 = vsel %vm281, %v2145, 0.0
  %2186 = vadd.xlane.f32.xlu0 %v2185
  %v2187 = vpop.xlane.xlu0 %2186
  %v2188 = vsel %vm281, %v2146, 0.0
  %2189 = vadd.xlane.f32.xlu0 %v2188
  %v2190 = vpop.xlane.xlu0 %2189
  %v2191 = vsel %vm281, %v2147, 0.0
  %2192 = vadd.xlane.f32.xlu0 %v2191
  %v2193 = vpop.xlane.xlu0 %2192
  %v2194 = vsel %vm281, %v2148, 0.0
  %2195 = vadd.xlane.f32.xlu0 %v2194
  %v2196 = vpop.xlane.xlu0 %2195
  %v2197 = vsel %vm281, %v2149, 0.0
  %2198 = vadd.xlane.f32.xlu0 %v2197
  %v2199 = vpop.xlane.xlu0 %2198
  %v2200 = vsel %vm281, %v2150, 0.0
  %2201 = vadd.xlane.f32.xlu0 %v2200
  %v2202 = vpop.xlane.xlu0 %2201
  %v2203 = vsel %vm281, %v2151, 0.0
  %2204 = vadd.xlane.f32.xlu0 %v2203
  %v2205 = vpop.xlane.xlu0 %2204
  %v2206 = vsel %vm281, %v2152, 0.0
  %2207 = vadd.xlane.f32.xlu0 %v2206
  %v2208 = vpop.xlane.xlu0 %2207
  %v2209 = vsel %vm281, %v2153, 0.0
  %2210 = vadd.xlane.f32.xlu0 %v2209
  %v2211 = vpop.xlane.xlu0 %2210
  %v2212 = vsel %vm281, %v2154, 0.0
  %2213 = vadd.xlane.f32.xlu0 %v2212
  %v2214 = vpop.xlane.xlu0 %2213
  %v2215 = vmax.f32 %v2157, %v2163
  %v2216 = vmax.f32 %v2160, %v2166
  %v2217 = vmax.f32 %v2215, %v2169
  %v2218 = vmax.f32 %v2216, %v2172
  %v2219 = vmax.f32 %v2217, %v2175
  %v2220 = vmax.f32 %v2218, %v2178
  %v2221 = vmax.f32 %v2219, %v2181
  %v2222 = vmax.f32 %v2220, %v2184
  %v2223 = vsub.f32 %v2157, %v2221
  %v2224 = vsub.f32 %v2160, %v2222
  %v2225 = vmul.f32 %v2223, 1.442695
  %v2226 = vpow.pop %v2225
  %v2227 = vmul.f32 %v2224, 1.442695
  %v2228 = vpow.pop %v2227
  %v2229 = vsub.f32 %v2163, %v2221
  %v2230 = vsub.f32 %v2166, %v2222
  %v2231 = vmul.f32 %v2229, 1.442695
  %v2232 = vpow.pop %v2231
  %v2233 = vmul.f32 %v2230, 1.442695
  %v2234 = vpow.pop %v2233
  %v2235 = vsub.f32 %v2169, %v2221
  %v2236 = vsub.f32 %v2172, %v2222
  %v2237 = vmul.f32 %v2235, 1.442695
  %v2238 = vpow.pop %v2237
  %v2239 = vmul.f32 %v2236, 1.442695
  %v2240 = vpow.pop %v2239
  %v2241 = vsub.f32 %v2175, %v2221
  %v2242 = vsub.f32 %v2178, %v2222
  %v2243 = vmul.f32 %v2241, 1.442695
  %v2244 = vpow.pop %v2243
  %v2245 = vmul.f32 %v2242, 1.442695
  %v2246 = vpow.pop %v2245
  %v2247 = vsub.f32 %v2181, %v2221
  %v2248 = vsub.f32 %v2184, %v2222
  %v2249 = vmul.f32 %v2247, 1.442695
  %v2250 = vpow.pop %v2249
  %v2251 = vmul.f32 %v2248, 1.442695
  %v2252 = vpow.pop %v2251
  %v2253 = vadd.f32 %v2226, %v2232
  %v2254 = vadd.f32 %v2228, %v2234
  %v2255 = vadd.f32 %v2253, %v2238
  %v2256 = vadd.f32 %v2254, %v2240
  %v2257 = vadd.f32 %v2255, %v2244
  %v2258 = vadd.f32 %v2256, %v2246
  %v2259 = vadd.f32 %v2257, %v2250
  %v2260 = vadd.f32 %v2258, %v2252
  %v2261 = vrcp.pop %v2259
  %v2262 = vmul.f32 1.0, %v2261
  %v2263 = vrcp.pop %v2260
  %v2264 = vmul.f32 1.0, %v2263
  %v2265 = vmul.f32 %v2226, %v2262
  %v2266 = vmul.f32 %v2228, %v2264
  %v2267 = vmul.f32 %v2265, %v1879
  %v2268 = vmul.f32 %v2266, %v1882
  %v2269 = vmul.f32 %v2232, %v2262
  %v2270 = vmul.f32 %v2234, %v2264
  %v2271 = vmul.f32 %v2269, %v1887
  %v2272 = vmul.f32 %v2270, %v1890
  %v2273 = vadd.f32 %v2267, %v2271
  %v2274 = vadd.f32 %v2268, %v2272
  %v2275 = vmul.f32 %v2238, %v2262
  %v2276 = vmul.f32 %v2240, %v2264
  %v2277 = vmul.f32 %v2275, %v1895
  %v2278 = vmul.f32 %v2276, %v1898
  %v2279 = vadd.f32 %v2273, %v2277
  %v2280 = vadd.f32 %v2274, %v2278
  %v2281 = vmul.f32 %v2244, %v2262
  %v2282 = vmul.f32 %v2246, %v2264
  %v2283 = vmul.f32 %v2281, %v1903
  %v2284 = vmul.f32 %v2282, %v1906
  %v2285 = vadd.f32 %v2279, %v2283
  %v2286 = vadd.f32 %v2280, %v2284
  %v2287 = vmul.f32 %v2250, %v2262
  %v2288 = vmul.f32 %v2252, %v2264
  %v2289 = vmul.f32 %v2287, %v1911
  %v2290 = vmul.f32 %v2288, %v1914
  %v2291 = vadd.f32 %v2285, %v2289
  %v2292 = vadd.f32 %v2286, %v2290
  %v2293 = vmax.f32 %v2187, %v2193
  %v2294 = vmax.f32 %v2190, %v2196
  %v2295 = vmax.f32 %v2293, %v2199
  %v2296 = vmax.f32 %v2294, %v2202
  %v2297 = vmax.f32 %v2295, %v2205
  %v2298 = vmax.f32 %v2296, %v2208
  %v2299 = vmax.f32 %v2297, %v2211
  %v2300 = vmax.f32 %v2298, %v2214
  %v2301 = vsub.f32 %v2187, %v2299
  %v2302 = vsub.f32 %v2190, %v2300
  %v2303 = vmul.f32 %v2301, 1.442695
  %v2304 = vpow.pop %v2303
  %v2305 = vmul.f32 %v2302, 1.442695
  %v2306 = vpow.pop %v2305
  %v2307 = vsub.f32 %v2193, %v2299
  %v2308 = vsub.f32 %v2196, %v2300
  %v2309 = vmul.f32 %v2307, 1.442695
  %v2310 = vpow.pop %v2309
  %v2311 = vmul.f32 %v2308, 1.442695
  %v2312 = vpow.pop %v2311
  %v2313 = vsub.f32 %v2199, %v2299
  %v2314 = vsub.f32 %v2202, %v2300
  %v2315 = vmul.f32 %v2313, 1.442695
  %v2316 = vpow.pop %v2315
  %v2317 = vmul.f32 %v2314, 1.442695
  %v2318 = vpow.pop %v2317
  %v2319 = vsub.f32 %v2205, %v2299
  %v2320 = vsub.f32 %v2208, %v2300
  %v2321 = vmul.f32 %v2319, 1.442695
  %v2322 = vpow.pop %v2321
  %v2323 = vmul.f32 %v2320, 1.442695
  %v2324 = vpow.pop %v2323
  %v2325 = vsub.f32 %v2211, %v2299
  %v2326 = vsub.f32 %v2214, %v2300
  %v2327 = vmul.f32 %v2325, 1.442695
  %v2328 = vpow.pop %v2327
  %v2329 = vmul.f32 %v2326, 1.442695
  %v2330 = vpow.pop %v2329
  %v2331 = vadd.f32 %v2304, %v2310
  %v2332 = vadd.f32 %v2306, %v2312
  %v2333 = vadd.f32 %v2331, %v2316
  %v2334 = vadd.f32 %v2332, %v2318
  %v2335 = vadd.f32 %v2333, %v2322
  %v2336 = vadd.f32 %v2334, %v2324
  %v2337 = vadd.f32 %v2335, %v2328
  %v2338 = vadd.f32 %v2336, %v2330
  %v2339 = vrcp.pop %v2337
  %v2340 = vmul.f32 1.0, %v2339
  %v2341 = vrcp.pop %v2338
  %v2342 = vmul.f32 1.0, %v2341
  %v2343 = vmul.f32 %v2304, %v2340
  %v2344 = vmul.f32 %v2306, %v2342
  %v2345 = vmul.f32 %v2343, %v1919
  %v2346 = vmul.f32 %v2344, %v1922
  %v2347 = vmul.f32 %v2310, %v2340
  %v2348 = vmul.f32 %v2312, %v2342
  %v2349 = vmul.f32 %v2347, %v1927
  %v2350 = vmul.f32 %v2348, %v1930
  %v2351 = vadd.f32 %v2345, %v2349
  %v2352 = vadd.f32 %v2346, %v2350
  %v2353 = vmul.f32 %v2316, %v2340
  %v2354 = vmul.f32 %v2318, %v2342
  %v2355 = vmul.f32 %v2353, %v1935
  %v2356 = vmul.f32 %v2354, %v1938
  %v2357 = vadd.f32 %v2351, %v2355
  %v2358 = vadd.f32 %v2352, %v2356
  %v2359 = vmul.f32 %v2322, %v2340
  %v2360 = vmul.f32 %v2324, %v2342
  %v2361 = vmul.f32 %v2359, %v1943
  %v2362 = vmul.f32 %v2360, %v1946
  %v2363 = vadd.f32 %v2357, %v2361
  %v2364 = vadd.f32 %v2358, %v2362
  %v2365 = vmul.f32 %v2328, %v2340
  %v2366 = vmul.f32 %v2330, %v2342
  %v2367 = vmul.f32 %v2365, %v1951
  %v2368 = vmul.f32 %v2366, %v1954
  %v2369 = vadd.f32 %v2363, %v2367
  %v2370 = vadd.f32 %v2364, %v2368
  %2373 = vrot.lane.b32.xlu0 %v2369, 16
  %v2374 = vpop.permute.xlu0 %2373
  %2375 = vrot.lane.b32.xlu0 %v2370, 16
  %v2376 = vpop.permute.xlu0 %2375
  %2381 = vrot.lane.b32.xlu0 %v1841, 32
  %v2382 = vpop.permute.xlu0 %2381
  %2383 = vrot.lane.b32.xlu0 %v1842, 32
  %v2384 = vpop.permute.xlu0 %2383
  %v2387 = vsel %vm281, %v2291, %v2374
  %v2388 = vsel %vm281, %v2292, %v2376
  %v2389 = vsel %vm857, %v2387, %v2382
  %v2390 = vsel %vm857, %v2388, %v2384
  %v2391 = vpack.c.bf16 %v2390, %v2389
  %v2392 = vpack.c.bf16 %v1754, %v1753
  %v2393 = vpack.c.bf16 %v1756, %v1755
  %v2394 = vpack.c.bf16 %v1758, %v1757
  %v2395 = vlaneseq
  %v2396 = vshrl.u32 %v2395, 7
  %v2397 = vsub.s32 0, %v2396
  %v2398 = vrot.slane %v1759, %v2397
  %v2400 = vsel %vm868, %v2391, 0
  %2402 = vmatprep.subr.bf16.mxu0 0
  %2403 = vmatpush1.bf16.msra.mxu0 %v2392
  %2404 = vmatprep.subr.bf16.mxu0 0
  %2405 = vmatpush1.bf16.msra.mxu0 %v2393
  %2406 = vmatprep.subr.bf16.mxu0 0
  %2407 = vmatpush1.bf16.msra.mxu0 %v2394
  %2408 = vmatprep.subr.bf16.mxu0 0
  %2409 = vmatpush1.bf16.msra.mxu0 0
  %2410 = vmatprep.subr.bf16.mxu0 0
  %2411 = vmatpush1.bf16.msra.mxu0 0
  %2412 = vmatprep.subr.bf16.mxu0 0
  %2413 = vmatpush1.bf16.msra.mxu0 0
  %2414 = vmatprep.subr.bf16.mxu0 0
  %2415 = vmatpush1.bf16.msra.mxu0 0
  %2416 = vmatprep.subr.bf16.mxu0 0
  %2417 = vmatpush1.bf16.msra.mxu0 0
  %2418 = vmatprep.subr.bf16.mxu0 0
  %2419 = vmatpush1.bf16.msra.mxu0 0
  %2420 = vmatprep.subr.bf16.mxu0 0
  %2421 = vmatpush1.bf16.msra.mxu0 0
  %2422 = vmatprep.subr.bf16.mxu0 0
  %2423 = vmatpush1.bf16.msra.mxu0 0
  %2424 = vmatprep.subr.bf16.mxu0 0
  %2425 = vmatpush1.bf16.msra.mxu0 0
  %2426 = vmatprep.subr.bf16.mxu0 0
  %2427 = vmatpush1.bf16.msra.mxu0 0
  %2428 = vmatprep.subr.bf16.mxu0 0
  %2429 = vmatpush1.bf16.msra.mxu0 0
  %2430 = vmatprep.subr.bf16.mxu0 0
  %2431 = vmatpush1.bf16.msra.mxu0 0
  %2432 = vmatprep.subr.bf16.mxu0 0
  %2433 = vmatpush1.bf16.msra.mxu0 0
  %2434 = vmatprep.mubr.bf16.mxu0 0
  %2435 = vmatmul.mubr.bf16.gmra.mrb[0].mxu0 %v2400
  %v2436 = vpop.f32.mrb[0].mxu0
  %v2437 = vadd.f32 %v2398, %v2436
  %v2438 = vpop.f32.mrb[0].mxu0
  %v2439 = vpop.f32.mrb[0].mxu0
  %v2440 = vadd.f32 %v2398, %v2439
  %v2441 = vpop.f32.mrb[0].mxu0
  %2442 = vdwg.mxu0
  %v2443 = vxor.u32 %v2437, 2147483648
  %v2444 = vxor.u32 %v2440, 2147483648
  %v2445 = vmul.f32 %v2443, 1.442695
  %v2446 = vpow.pop %v2445
  %v2447 = vmul.f32 %v2444, 1.442695
  %v2448 = vpow.pop %v2447
  %v2449 = vadd.f32 %v2446, 1.0
  %v2450 = vadd.f32 %v2448, 1.0
  %v2451 = vrcp.pop %v2449
  %v2452 = vmul.f32 1.0, %v2451
  %v2453 = vrcp.pop %v2450
  %v2454 = vmul.f32 1.0, %v2453
  %v2455 = vmul.f32 %v2452, %v1666
  %v2456 = vmul.f32 %v2454, %v1667
  %v2457 = vld [vmem:[%s5] sm:$0xff]
  %v2458 = vld [vmem:[%s5 + $0x8] sm:$0xff]
  %v2459 = vld [vmem:[%s5 + $0x10] sm:$0x1]
  %v2460 = vld [vmem:[%s5 + $0x18] sm:$0xff]
  %v2461 = vld [vmem:[%s5 + $0x20] sm:$0xff]
  %v2462 = vld [vmem:[%s5 + $0x28] sm:$0xff]
  %v2463 = vld [vmem:[%s5 + $0x30] sm:$0x1]
  %v2465 = vsel %vm146, %v2455, 0
  %v2468 = vsel %vm146, %v2456, 0
  %2470 = vmatprep.subr.mxu0 0.0
  %2471 = vmatpush1.msra.mxu0 %v2457
  %2472 = vmatprep.subr.mxu0 0.0
  %2473 = vmatpush1.msra.mxu0 0.0
  %2474 = vmatprep.subr.mxu0 0.0
  %2475 = vmatpush1.msra.mxu0 0.0
  %2476 = vmatprep.subr.mxu0 0.0
  %2477 = vmatpush1.msra.mxu0 0.0
  %2478 = vmatprep.subr.mxu0 0.0
  %2479 = vmatpush1.msra.mxu0 0.0
  %2480 = vmatprep.subr.mxu0 0.0
  %2481 = vmatpush1.msra.mxu0 0.0
  %2482 = vmatprep.subr.mxu0 0.0
  %2483 = vmatpush1.msra.mxu0 0.0
  %2484 = vmatprep.subr.mxu0 0.0
  %2485 = vmatpush1.msra.mxu0 0.0
  %2486 = vmatprep.subr.mxu0 0.0
  %2487 = vmatpush1.msra.mxu0 0.0
  %2488 = vmatprep.subr.mxu0 0.0
  %2489 = vmatpush1.msra.mxu0 0.0
  %2490 = vmatprep.subr.mxu0 0.0
  %2491 = vmatpush1.msra.mxu0 0.0
  %2492 = vmatprep.subr.mxu0 0.0
  %2493 = vmatpush1.msra.mxu0 0.0
  %2494 = vmatprep.subr.mxu0 0.0
  %2495 = vmatpush1.msra.mxu0 0.0
  %2496 = vmatprep.subr.mxu0 0.0
  %2497 = vmatpush1.msra.mxu0 0.0
  %2498 = vmatprep.subr.mxu0 0.0
  %2499 = vmatpush1.msra.mxu0 0.0
  %2500 = vmatprep.subr.mxu0 0.0
  %2501 = vmatpush1.msra.mxu0 0.0
  %2502 = vmatprep.subr.mxu0 0.0
  %2503 = vmatpush1.msra.mxu0 0.0
  %2504 = vmatprep.subr.mxu0 0.0
  %2505 = vmatpush1.msra.mxu0 0.0
  %2506 = vmatprep.subr.mxu0 0.0
  %2507 = vmatpush1.msra.mxu0 0.0
  %2508 = vmatprep.subr.mxu0 0.0
  %2509 = vmatpush1.msra.mxu0 0.0
  %2510 = vmatprep.subr.mxu0 0.0
  %2511 = vmatpush1.msra.mxu0 0.0
  %2512 = vmatprep.subr.mxu0 0.0
  %2513 = vmatpush1.msra.mxu0 0.0
  %2514 = vmatprep.subr.mxu0 0.0
  %2515 = vmatpush1.msra.mxu0 0.0
  %2516 = vmatprep.subr.mxu0 0.0
  %2517 = vmatpush1.msra.mxu0 0.0
  %2518 = vmatprep.subr.mxu0 0.0
  %2519 = vmatpush1.msra.mxu0 0.0
  %2520 = vmatprep.subr.mxu0 0.0
  %2521 = vmatpush1.msra.mxu0 0.0
  %2522 = vmatprep.subr.mxu0 0.0
  %2523 = vmatpush1.msra.mxu0 0.0
  %2524 = vmatprep.subr.mxu0 0.0
  %2525 = vmatpush1.msra.mxu0 0.0
  %2526 = vmatprep.subr.mxu0 0.0
  %2527 = vmatpush1.msra.mxu0 0.0
  %2528 = vmatprep.subr.mxu0 0.0
  %2529 = vmatpush1.msra.mxu0 0.0
  %2530 = vmatprep.subr.mxu0 0.0
  %2531 = vmatpush1.msra.mxu0 0.0
  %2532 = vmatprep.subr.mxu0 0.0
  %2533 = vmatpush1.msra.mxu0 0.0
  %2534 = vmatprep.mubr.f32.mxu0 0.0
  %2535 = vmatmul.mubr.f32.gmra.mrb[0].mxu0 %v2465
  %v2536 = vpop.f32.mrb[0].mxu0
  %v2537 = vadd.f32 0.0, %v2536
  %v2538 = vpop.f32.mrb[0].mxu0
  %2539 = vmatprep.mubr.f32.mxu0 0.0
  %2540 = vmatmul.mubr.f32.gmra.mrb[0].mxu0 %v2468
  %v2541 = vpop.f32.mrb[0].mxu0
  %v2542 = vadd.f32 0.0, %v2541
  %v2543 = vpop.f32.mrb[0].mxu0
  %2544 = vdwg.mxu0
  %2547 = vrot.lane.b32.xlu0 %v2537, 16
  %v2548 = vpop.permute.xlu0 %2547
  %2549 = vrot.lane.b32.xlu0 %v2542, 16
  %v2550 = vpop.permute.xlu0 %2549
  %v2553 = vadd.f32 %v1741, %v2548
  %v2554 = vadd.f32 %v1746, %v2550
  %v2555 = vpack.c.bf16 %v2554, %v2553
  %2557 = vrot.lane.b32.xlu0 %v2555, 112
  %v2558 = vpop.permute.xlu0 %2557
  %2560 = vmatprep.subr.bf16.mxu0 0
  %2561 = vmatpush1.bf16.msra.mxu0 %v2558
  %2562 = vmatprep.subr.bf16.mxu0 0
  %2563 = vmatpush1.bf16.msra.mxu0 0
  %2564 = vmatprep.subr.bf16.mxu0 0
  %2565 = vmatpush1.bf16.msra.mxu0 0
  %2566 = vmatprep.subr.bf16.mxu0 0
  %2567 = vmatpush1.bf16.msra.mxu0 0
  %2568 = vmatprep.subr.bf16.mxu0 0
  %2569 = vmatpush1.bf16.msra.mxu0 0
  %2570 = vmatprep.subr.bf16.mxu0 0
  %2571 = vmatpush1.bf16.msra.mxu0 0
  %2572 = vmatprep.subr.bf16.mxu0 0
  %2573 = vmatpush1.bf16.msra.mxu0 0
  %2574 = vmatprep.subr.bf16.mxu0 0
  %2575 = vmatpush1.bf16.msra.mxu0 0
  %2576 = vmatprep.subr.bf16.mxu0 0
  %2577 = vmatpush1.bf16.msra.mxu0 0
  %2578 = vmatprep.subr.bf16.mxu0 0
  %2579 = vmatpush1.bf16.msra.mxu0 0
  %2580 = vmatprep.subr.bf16.mxu0 0
  %2581 = vmatpush1.bf16.msra.mxu0 0
  %2582 = vmatprep.subr.bf16.mxu0 0
  %2583 = vmatpush1.bf16.msra.mxu0 0
  %2584 = vmatprep.subr.bf16.mxu0 0
  %2585 = vmatpush1.bf16.msra.mxu0 0
  %2586 = vmatprep.subr.bf16.mxu0 0
  %2587 = vmatpush1.bf16.msra.mxu0 0
  %2588 = vmatprep.subr.bf16.mxu0 0
  %2589 = vmatpush1.bf16.msra.mxu0 0
  %2590 = vmatprep.subr.bf16.mxu0 0
  %2591 = vmatpush1.bf16.msra.mxu0 0
  %2592 = vmatprep.mubr.bf16.mxu0 0
  %2593 = vmatmul.mubr.bf16.gmra.mrb[0].mxu0 %v283
  %v2594 = vpop.f32.mrb[0].mxu0
  %v2595 = vadd.f32 0.0, %v2594
  %v2596 = vpop.f32.mrb[0].mxu0
  %v2597 = vpop.f32.mrb[0].mxu0
  %v2598 = vadd.f32 0.0, %v2597
  %v2599 = vpop.f32.mrb[0].mxu0
  %2600 = vmatprep.mubr.bf16.mxu0 0
  %2601 = vmatmul.mubr.bf16.gmra.mrb[0].mxu0 %v286
  %v2602 = vpop.f32.mrb[0].mxu0
  %v2603 = vadd.f32 0.0, %v2602
  %v2604 = vpop.f32.mrb[0].mxu0
  %v2605 = vpop.f32.mrb[0].mxu0
  %v2606 = vadd.f32 0.0, %v2605
  %v2607 = vpop.f32.mrb[0].mxu0
  %2608 = vmatprep.mubr.bf16.mxu0 0
  %2609 = vmatmul.mubr.bf16.gmra.mrb[0].mxu0 %v289
  %v2610 = vpop.f32.mrb[0].mxu0
  %v2611 = vadd.f32 0.0, %v2610
  %v2612 = vpop.f32.mrb[0].mxu0
  %v2613 = vpop.f32.mrb[0].mxu0
  %v2614 = vadd.f32 0.0, %v2613
  %v2615 = vpop.f32.mrb[0].mxu0
  %2616 = vmatprep.mubr.bf16.mxu0 0
  %2617 = vmatmul.mubr.bf16.gmra.mrb[0].mxu0 %v292
  %v2618 = vpop.f32.mrb[0].mxu0
  %v2619 = vadd.f32 0.0, %v2618
  %v2620 = vpop.f32.mrb[0].mxu0
  %v2621 = vpop.f32.mrb[0].mxu0
  %v2622 = vadd.f32 0.0, %v2621
  %v2623 = vpop.f32.mrb[0].mxu0
  %2624 = vmatprep.mubr.bf16.mxu0 0
  %2625 = vmatmul.mubr.bf16.gmra.mrb[0].mxu0 %v295
  %v2626 = vpop.f32.mrb[0].mxu0
  %v2627 = vadd.f32 0.0, %v2626
  %v2628 = vpop.f32.mrb[0].mxu0
  %v2629 = vpop.f32.mrb[0].mxu0
  %v2630 = vadd.f32 0.0, %v2629
  %v2631 = vpop.f32.mrb[0].mxu0
  %2632 = vmatprep.mubr.bf16.mxu0 0
  %2633 = vmatmul.mubr.bf16.gmra.mrb[0].mxu0 %v298
  %v2634 = vpop.f32.mrb[0].mxu0
  %v2635 = vadd.f32 0.0, %v2634
  %v2636 = vpop.f32.mrb[0].mxu0
  %v2637 = vpop.f32.mrb[0].mxu0
  %v2638 = vadd.f32 0.0, %v2637
  %v2639 = vpop.f32.mrb[0].mxu0
  %2640 = vmatprep.mubr.bf16.mxu0 0
  %2641 = vmatmul.mubr.bf16.gmra.mrb[0].mxu0 %v301
  %v2642 = vpop.f32.mrb[0].mxu0
  %v2643 = vadd.f32 0.0, %v2642
  %v2644 = vpop.f32.mrb[0].mxu0
  %v2645 = vpop.f32.mrb[0].mxu0
  %v2646 = vadd.f32 0.0, %v2645
  %v2647 = vpop.f32.mrb[0].mxu0
  %2648 = vmatprep.mubr.bf16.mxu0 0
  %2649 = vmatmul.mubr.bf16.gmra.mrb[0].mxu0 %v304
  %v2650 = vpop.f32.mrb[0].mxu0
  %v2651 = vadd.f32 0.0, %v2650
  %v2652 = vpop.f32.mrb[0].mxu0
  %v2653 = vpop.f32.mrb[0].mxu0
  %v2654 = vadd.f32 0.0, %v2653
  %v2655 = vpop.f32.mrb[0].mxu0
  %2656 = vmatprep.mubr.bf16.mxu0 0
  %2657 = vmatmul.mubr.bf16.gmra.mrb[0].mxu0 %v307
  %v2658 = vpop.f32.mrb[0].mxu0
  %v2659 = vadd.f32 0.0, %v2658
  %v2660 = vpop.f32.mrb[0].mxu0
  %v2661 = vpop.f32.mrb[0].mxu0
  %v2662 = vadd.f32 0.0, %v2661
  %v2663 = vpop.f32.mrb[0].mxu0
  %2664 = vmatprep.mubr.bf16.mxu0 0
  %2665 = vmatmul.mubr.bf16.gmra.mrb[0].mxu0 %v310
  %v2666 = vpop.f32.mrb[0].mxu0
  %v2667 = vadd.f32 0.0, %v2666
  %v2668 = vpop.f32.mrb[0].mxu0
  %v2669 = vpop.f32.mrb[0].mxu0
  %v2670 = vadd.f32 0.0, %v2669
  %v2671 = vpop.f32.mrb[0].mxu0
  %2672 = vdwg.mxu0
  %v2673 = vpack.c.bf16 %v2598, %v2595
  %v2674 = vpack.c.bf16 %v2606, %v2603
  %v2675 = vpack.c.bf16 %v2614, %v2611
  %v2676 = vpack.c.bf16 %v2622, %v2619
  %v2677 = vpack.c.bf16 %v2630, %v2627
  %v2678 = vpack.c.bf16 %v2638, %v2635
  %v2679 = vpack.c.bf16 %v2646, %v2643
  %v2680 = vpack.c.bf16 %v2654, %v2651
  %v2681 = vpack.c.bf16 %v2662, %v2659
  %v2682 = vpack.c.bf16 %v2670, %v2667
  %v2683 = vpack.c.bf16 %v2458, %v2458
  %v2685 = vsel %vm146, %v2673, 0
  %v2688 = vsel %vm146, %v2674, 0
  %v2691 = vsel %vm146, %v2675, 0
  %v2694 = vsel %vm146, %v2676, 0
  %v2697 = vsel %vm146, %v2677, 0
  %v2700 = vsel %vm146, %v2678, 0
  %v2703 = vsel %vm146, %v2679, 0
  %v2706 = vsel %vm146, %v2680, 0
  %v2709 = vsel %vm146, %v2681, 0
  %v2712 = vsel %vm146, %v2682, 0
  %v2715 = vsel %vm1184, %v2683, 0
  %2717 = vmatprep.subr.bf16.mxu0 0
  %2718 = vmatpush1.bf16.msra.mxu0 %v2715
  %2719 = vmatprep.subr.bf16.mxu0 0
  %2720 = vmatpush1.bf16.msra.mxu0 0
  %2721 = vmatprep.subr.bf16.mxu0 0
  %2722 = vmatpush1.bf16.msra.mxu0 0
  %2723 = vmatprep.subr.bf16.mxu0 0
  %2724 = vmatpush1.bf16.msra.mxu0 0
  %2725 = vmatprep.subr.bf16.mxu0 0
  %2726 = vmatpush1.bf16.msra.mxu0 0
  %2727 = vmatprep.subr.bf16.mxu0 0
  %2728 = vmatpush1.bf16.msra.mxu0 0
  %2729 = vmatprep.subr.bf16.mxu0 0
  %2730 = vmatpush1.bf16.msra.mxu0 0
  %2731 = vmatprep.subr.bf16.mxu0 0
  %2732 = vmatpush1.bf16.msra.mxu0 0
  %2733 = vmatprep.subr.bf16.mxu0 0
  %2734 = vmatpush1.bf16.msra.mxu0 0
  %2735 = vmatprep.subr.bf16.mxu0 0
  %2736 = vmatpush1.bf16.msra.mxu0 0
  %2737 = vmatprep.subr.bf16.mxu0 0
  %2738 = vmatpush1.bf16.msra.mxu0 0
  %2739 = vmatprep.subr.bf16.mxu0 0
  %2740 = vmatpush1.bf16.msra.mxu0 0
  %2741 = vmatprep.subr.bf16.mxu0 0
  %2742 = vmatpush1.bf16.msra.mxu0 0
  %2743 = vmatprep.subr.bf16.mxu0 0
  %2744 = vmatpush1.bf16.msra.mxu0 0
  %2745 = vmatprep.subr.bf16.mxu0 0
  %2746 = vmatpush1.bf16.msra.mxu0 0
  %2747 = vmatprep.subr.bf16.mxu0 0
  %2748 = vmatpush1.bf16.msra.mxu0 0
  %2749 = vmatprep.mubr.bf16.mxu0 0
  %2750 = vmatmul.mubr.bf16.gmra.mrb[0].mxu0 %v2685
  %v2751 = vpop.f32.mrb[0].mxu0
  %v2752 = vadd.f32 0.0, %v2751
  %v2753 = vpop.f32.mrb[0].mxu0
  %v2754 = vpop.f32.mrb[0].mxu0
  %v2755 = vadd.f32 0.0, %v2754
  %v2756 = vpop.f32.mrb[0].mxu0
  %2757 = vmatprep.mubr.bf16.mxu0 0
  %2758 = vmatmul.mubr.bf16.gmra.mrb[0].mxu0 %v2688
  %v2759 = vpop.f32.mrb[0].mxu0
  %v2760 = vadd.f32 0.0, %v2759
  %v2761 = vpop.f32.mrb[0].mxu0
  %v2762 = vpop.f32.mrb[0].mxu0
  %v2763 = vadd.f32 0.0, %v2762
  %v2764 = vpop.f32.mrb[0].mxu0
  %2765 = vmatprep.mubr.bf16.mxu0 0
  %2766 = vmatmul.mubr.bf16.gmra.mrb[0].mxu0 %v2691
  %v2767 = vpop.f32.mrb[0].mxu0
  %v2768 = vadd.f32 0.0, %v2767
  %v2769 = vpop.f32.mrb[0].mxu0
  %v2770 = vpop.f32.mrb[0].mxu0
  %v2771 = vadd.f32 0.0, %v2770
  %v2772 = vpop.f32.mrb[0].mxu0
  %2773 = vmatprep.mubr.bf16.mxu0 0
  %2774 = vmatmul.mubr.bf16.gmra.mrb[0].mxu0 %v2694
  %v2775 = vpop.f32.mrb[0].mxu0
  %v2776 = vadd.f32 0.0, %v2775
  %v2777 = vpop.f32.mrb[0].mxu0
  %v2778 = vpop.f32.mrb[0].mxu0
  %v2779 = vadd.f32 0.0, %v2778
  %v2780 = vpop.f32.mrb[0].mxu0
  %2781 = vmatprep.mubr.bf16.mxu0 0
  %2782 = vmatmul.mubr.bf16.gmra.mrb[0].mxu0 %v2697
  %v2783 = vpop.f32.mrb[0].mxu0
  %v2784 = vadd.f32 0.0, %v2783
  %v2785 = vpop.f32.mrb[0].mxu0
  %v2786 = vpop.f32.mrb[0].mxu0
  %v2787 = vadd.f32 0.0, %v2786
  %v2788 = vpop.f32.mrb[0].mxu0
  %2789 = vmatprep.mubr.bf16.mxu0 0
  %2790 = vmatmul.mubr.bf16.gmra.mrb[0].mxu0 %v2700
  %v2791 = vpop.f32.mrb[0].mxu0
  %v2792 = vadd.f32 0.0, %v2791
  %v2793 = vpop.f32.mrb[0].mxu0
  %v2794 = vpop.f32.mrb[0].mxu0
  %v2795 = vadd.f32 0.0, %v2794
  %v2796 = vpop.f32.mrb[0].mxu0
  %2797 = vmatprep.mubr.bf16.mxu0 0
  %2798 = vmatmul.mubr.bf16.gmra.mrb[0].mxu0 %v2703
  %v2799 = vpop.f32.mrb[0].mxu0
  %v2800 = vadd.f32 0.0, %v2799
  %v2801 = vpop.f32.mrb[0].mxu0
  %v2802 = vpop.f32.mrb[0].mxu0
  %v2803 = vadd.f32 0.0, %v2802
  %v2804 = vpop.f32.mrb[0].mxu0
  %2805 = vmatprep.mubr.bf16.mxu0 0
  %2806 = vmatmul.mubr.bf16.gmra.mrb[0].mxu0 %v2706
  %v2807 = vpop.f32.mrb[0].mxu0
  %v2808 = vadd.f32 0.0, %v2807
  %v2809 = vpop.f32.mrb[0].mxu0
  %v2810 = vpop.f32.mrb[0].mxu0
  %v2811 = vadd.f32 0.0, %v2810
  %v2812 = vpop.f32.mrb[0].mxu0
  %2813 = vmatprep.mubr.bf16.mxu0 0
  %2814 = vmatmul.mubr.bf16.gmra.mrb[0].mxu0 %v2709
  %v2815 = vpop.f32.mrb[0].mxu0
  %v2816 = vadd.f32 0.0, %v2815
  %v2817 = vpop.f32.mrb[0].mxu0
  %v2818 = vpop.f32.mrb[0].mxu0
  %v2819 = vadd.f32 0.0, %v2818
  %v2820 = vpop.f32.mrb[0].mxu0
  %2821 = vmatprep.mubr.bf16.mxu0 0
  %2822 = vmatmul.mubr.bf16.gmra.mrb[0].mxu0 %v2712
  %v2823 = vpop.f32.mrb[0].mxu0
  %v2824 = vadd.f32 0.0, %v2823
  %v2825 = vpop.f32.mrb[0].mxu0
  %v2826 = vpop.f32.mrb[0].mxu0
  %v2827 = vadd.f32 0.0, %v2826
  %v2828 = vpop.f32.mrb[0].mxu0
  %2829 = vdwg.mxu0
  %v2830 = vmax.f32 %v2752, 0.0
  %v2831 = vmax.f32 %v2755, 0.0
  %v2832 = vmax.f32 %v2760, 0.0
  %v2833 = vmax.f32 %v2763, 0.0
  %v2834 = vmax.f32 %v2768, 0.0
  %v2835 = vmax.f32 %v2771, 0.0
  %v2836 = vmax.f32 %v2776, 0.0
  %v2837 = vmax.f32 %v2779, 0.0
  %v2838 = vmax.f32 %v2784, 0.0
  %v2839 = vmax.f32 %v2787, 0.0
  %v2840 = vmax.f32 %v2792, 0.0
  %v2841 = vmax.f32 %v2795, 0.0
  %v2842 = vmax.f32 %v2800, 0.0
  %v2843 = vmax.f32 %v2803, 0.0
  %v2844 = vmax.f32 %v2808, 0.0
  %v2845 = vmax.f32 %v2811, 0.0
  %v2846 = vmax.f32 %v2816, 0.0
  %v2847 = vmax.f32 %v2819, 0.0
  %v2848 = vmax.f32 %v2824, 0.0
  %v2849 = vmax.f32 %v2827, 0.0
  %v2850 = vlaneseq
  %v2851 = vshrl.u32 %v2850, 7
  %v2852 = vsub.s32 0, %v2851
  %v2853 = vrot.slane %v2459, %v2852
  %v2854 = vmul.f32 %v2830, %v2853
  %v2855 = vmul.f32 %v2831, %v2853
  %v2856 = vmul.f32 %v2832, %v2853
  %v2857 = vmul.f32 %v2833, %v2853
  %v2858 = vmul.f32 %v2834, %v2853
  %v2859 = vmul.f32 %v2835, %v2853
  %v2860 = vmul.f32 %v2836, %v2853
  %v2861 = vmul.f32 %v2837, %v2853
  %v2862 = vmul.f32 %v2838, %v2853
  %v2863 = vmul.f32 %v2839, %v2853
  %v2864 = vmul.f32 %v2840, %v2853
  %v2865 = vmul.f32 %v2841, %v2853
  %v2866 = vmul.f32 %v2842, %v2853
  %v2867 = vmul.f32 %v2843, %v2853
  %v2868 = vmul.f32 %v2844, %v2853
  %v2869 = vmul.f32 %v2845, %v2853
  %v2870 = vmul.f32 %v2846, %v2853
  %v2871 = vmul.f32 %v2847, %v2853
  %v2872 = vmul.f32 %v2848, %v2853
  %v2873 = vmul.f32 %v2849, %v2853
  %v2874 = vsel %vm146, %v2854, 0.0
  %2875 = vadd.xlane.f32.xlu0 %v2874
  %v2876 = vpop.xlane.xlu0 %2875
  %v2877 = vsel %vm146, %v2855, 0.0
  %2878 = vadd.xlane.f32.xlu0 %v2877
  %v2879 = vpop.xlane.xlu0 %2878
  %v2880 = vsel %vm146, %v2856, 0.0
  %2881 = vadd.xlane.f32.xlu0 %v2880
  %v2882 = vpop.xlane.xlu0 %2881
  %v2883 = vsel %vm146, %v2857, 0.0
  %2884 = vadd.xlane.f32.xlu0 %v2883
  %v2885 = vpop.xlane.xlu0 %2884
  %v2886 = vsel %vm146, %v2858, 0.0
  %2887 = vadd.xlane.f32.xlu0 %v2886
  %v2888 = vpop.xlane.xlu0 %2887
  %v2889 = vsel %vm146, %v2859, 0.0
  %2890 = vadd.xlane.f32.xlu0 %v2889
  %v2891 = vpop.xlane.xlu0 %2890
  %v2892 = vsel %vm146, %v2860, 0.0
  %2893 = vadd.xlane.f32.xlu0 %v2892
  %v2894 = vpop.xlane.xlu0 %2893
  %v2895 = vsel %vm146, %v2861, 0.0
  %2896 = vadd.xlane.f32.xlu0 %v2895
  %v2897 = vpop.xlane.xlu0 %2896
  %v2898 = vsel %vm146, %v2862, 0.0
  %2899 = vadd.xlane.f32.xlu0 %v2898
  %v2900 = vpop.xlane.xlu0 %2899
  %v2901 = vsel %vm146, %v2863, 0.0
  %2902 = vadd.xlane.f32.xlu0 %v2901
  %v2903 = vpop.xlane.xlu0 %2902
  %v2904 = vsel %vm146, %v2864, 0.0
  %2905 = vadd.xlane.f32.xlu0 %v2904
  %v2906 = vpop.xlane.xlu0 %2905
  %v2907 = vsel %vm146, %v2865, 0.0
  %2908 = vadd.xlane.f32.xlu0 %v2907
  %v2909 = vpop.xlane.xlu0 %2908
  %v2910 = vsel %vm146, %v2866, 0.0
  %2911 = vadd.xlane.f32.xlu0 %v2910
  %v2912 = vpop.xlane.xlu0 %2911
  %v2913 = vsel %vm146, %v2867, 0.0
  %2914 = vadd.xlane.f32.xlu0 %v2913
  %v2915 = vpop.xlane.xlu0 %2914
  %v2916 = vsel %vm146, %v2868, 0.0
  %2917 = vadd.xlane.f32.xlu0 %v2916
  %v2918 = vpop.xlane.xlu0 %2917
  %v2919 = vsel %vm146, %v2869, 0.0
  %2920 = vadd.xlane.f32.xlu0 %v2919
  %v2921 = vpop.xlane.xlu0 %2920
  %v2922 = vsel %vm146, %v2870, 0.0
  %2923 = vadd.xlane.f32.xlu0 %v2922
  %v2924 = vpop.xlane.xlu0 %2923
  %v2925 = vsel %vm146, %v2871, 0.0
  %2926 = vadd.xlane.f32.xlu0 %v2925
  %v2927 = vpop.xlane.xlu0 %2926
  %v2928 = vsel %vm146, %v2872, 0.0
  %2929 = vadd.xlane.f32.xlu0 %v2928
  %v2930 = vpop.xlane.xlu0 %2929
  %v2931 = vsel %vm146, %v2873, 0.0
  %2932 = vadd.xlane.f32.xlu0 %v2931
  %v2933 = vpop.xlane.xlu0 %2932
  %v2934 = vmax.f32 %v2876, %v2882
  %v2935 = vmax.f32 %v2879, %v2885
  %v2936 = vmax.f32 %v2934, %v2888
  %v2937 = vmax.f32 %v2935, %v2891
  %v2938 = vmax.f32 %v2936, %v2894
  %v2939 = vmax.f32 %v2937, %v2897
  %v2940 = vmax.f32 %v2938, %v2900
  %v2941 = vmax.f32 %v2939, %v2903
  %v2942 = vsub.f32 %v2876, %v2940
  %v2943 = vsub.f32 %v2879, %v2941
  %v2944 = vmul.f32 %v2942, 1.442695
  %v2945 = vpow.pop %v2944
  %v2946 = vmul.f32 %v2943, 1.442695
  %v2947 = vpow.pop %v2946
  %v2948 = vsub.f32 %v2882, %v2940
  %v2949 = vsub.f32 %v2885, %v2941
  %v2950 = vmul.f32 %v2948, 1.442695
  %v2951 = vpow.pop %v2950
  %v2952 = vmul.f32 %v2949, 1.442695
  %v2953 = vpow.pop %v2952
  %v2954 = vsub.f32 %v2888, %v2940
  %v2955 = vsub.f32 %v2891, %v2941
  %v2956 = vmul.f32 %v2954, 1.442695
  %v2957 = vpow.pop %v2956
  %v2958 = vmul.f32 %v2955, 1.442695
  %v2959 = vpow.pop %v2958
  %v2960 = vsub.f32 %v2894, %v2940
  %v2961 = vsub.f32 %v2897, %v2941
  %v2962 = vmul.f32 %v2960, 1.442695
  %v2963 = vpow.pop %v2962
  %v2964 = vmul.f32 %v2961, 1.442695
  %v2965 = vpow.pop %v2964
  %v2966 = vsub.f32 %v2900, %v2940
  %v2967 = vsub.f32 %v2903, %v2941
  %v2968 = vmul.f32 %v2966, 1.442695
  %v2969 = vpow.pop %v2968
  %v2970 = vmul.f32 %v2967, 1.442695
  %v2971 = vpow.pop %v2970
  %v2972 = vadd.f32 %v2945, %v2951
  %v2973 = vadd.f32 %v2947, %v2953
  %v2974 = vadd.f32 %v2972, %v2957
  %v2975 = vadd.f32 %v2973, %v2959
  %v2976 = vadd.f32 %v2974, %v2963
  %v2977 = vadd.f32 %v2975, %v2965
  %v2978 = vadd.f32 %v2976, %v2969
  %v2979 = vadd.f32 %v2977, %v2971
  %v2980 = vrcp.pop %v2978
  %v2981 = vmul.f32 1.0, %v2980
  %v2982 = vrcp.pop %v2979
  %v2983 = vmul.f32 1.0, %v2982
  %v2984 = vmul.f32 %v2945, %v2981
  %v2985 = vmul.f32 %v2947, %v2983
  %v2986 = vmul.f32 %v2984, %v2595
  %v2987 = vmul.f32 %v2985, %v2598
  %v2988 = vmul.f32 %v2951, %v2981
  %v2989 = vmul.f32 %v2953, %v2983
  %v2990 = vmul.f32 %v2988, %v2603
  %v2991 = vmul.f32 %v2989, %v2606
  %v2992 = vadd.f32 %v2986, %v2990
  %v2993 = vadd.f32 %v2987, %v2991
  %v2994 = vmul.f32 %v2957, %v2981
  %v2995 = vmul.f32 %v2959, %v2983
  %v2996 = vmul.f32 %v2994, %v2611
  %v2997 = vmul.f32 %v2995, %v2614
  %v2998 = vadd.f32 %v2992, %v2996
  %v2999 = vadd.f32 %v2993, %v2997
  %v3000 = vmul.f32 %v2963, %v2981
  %v3001 = vmul.f32 %v2965, %v2983
  %v3002 = vmul.f32 %v3000, %v2619
  %v3003 = vmul.f32 %v3001, %v2622
  %v3004 = vadd.f32 %v2998, %v3002
  %v3005 = vadd.f32 %v2999, %v3003
  %v3006 = vmul.f32 %v2969, %v2981
  %v3007 = vmul.f32 %v2971, %v2983
  %v3008 = vmul.f32 %v3006, %v2627
  %v3009 = vmul.f32 %v3007, %v2630
  %v3010 = vadd.f32 %v3004, %v3008
  %v3011 = vadd.f32 %v3005, %v3009
  %v3012 = vmax.f32 %v2906, %v2912
  %v3013 = vmax.f32 %v2909, %v2915
  %v3014 = vmax.f32 %v3012, %v2918
  %v3015 = vmax.f32 %v3013, %v2921
  %v3016 = vmax.f32 %v3014, %v2924
  %v3017 = vmax.f32 %v3015, %v2927
  %v3018 = vmax.f32 %v3016, %v2930
  %v3019 = vmax.f32 %v3017, %v2933
  %v3020 = vsub.f32 %v2906, %v3018
  %v3021 = vsub.f32 %v2909, %v3019
  %v3022 = vmul.f32 %v3020, 1.442695
  %v3023 = vpow.pop %v3022
  %v3024 = vmul.f32 %v3021, 1.442695
  %v3025 = vpow.pop %v3024
  %v3026 = vsub.f32 %v2912, %v3018
  %v3027 = vsub.f32 %v2915, %v3019
  %v3028 = vmul.f32 %v3026, 1.442695
  %v3029 = vpow.pop %v3028
  %v3030 = vmul.f32 %v3027, 1.442695
  %v3031 = vpow.pop %v3030
  %v3032 = vsub.f32 %v2918, %v3018
  %v3033 = vsub.f32 %v2921, %v3019
  %v3034 = vmul.f32 %v3032, 1.442695
  %v3035 = vpow.pop %v3034
  %v3036 = vmul.f32 %v3033, 1.442695
  %v3037 = vpow.pop %v3036
  %v3038 = vsub.f32 %v2924, %v3018
  %v3039 = vsub.f32 %v2927, %v3019
  %v3040 = vmul.f32 %v3038, 1.442695
  %v3041 = vpow.pop %v3040
  %v3042 = vmul.f32 %v3039, 1.442695
  %v3043 = vpow.pop %v3042
  %v3044 = vsub.f32 %v2930, %v3018
  %v3045 = vsub.f32 %v2933, %v3019
  %v3046 = vmul.f32 %v3044, 1.442695
  %v3047 = vpow.pop %v3046
  %v3048 = vmul.f32 %v3045, 1.442695
  %v3049 = vpow.pop %v3048
  %v3050 = vadd.f32 %v3023, %v3029
  %v3051 = vadd.f32 %v3025, %v3031
  %v3052 = vadd.f32 %v3050, %v3035
  %v3053 = vadd.f32 %v3051, %v3037
  %v3054 = vadd.f32 %v3052, %v3041
  %v3055 = vadd.f32 %v3053, %v3043
  %v3056 = vadd.f32 %v3054, %v3047
  %v3057 = vadd.f32 %v3055, %v3049
  %v3058 = vrcp.pop %v3056
  %v3059 = vmul.f32 1.0, %v3058
  %v3060 = vrcp.pop %v3057
  %v3061 = vmul.f32 1.0, %v3060
  %v3062 = vmul.f32 %v3023, %v3059
  %v3063 = vmul.f32 %v3025, %v3061
  %v3064 = vmul.f32 %v3062, %v2635
  %v3065 = vmul.f32 %v3063, %v2638
  %v3066 = vmul.f32 %v3029, %v3059
  %v3067 = vmul.f32 %v3031, %v3061
  %v3068 = vmul.f32 %v3066, %v2643
  %v3069 = vmul.f32 %v3067, %v2646
  %v3070 = vadd.f32 %v3064, %v3068
  %v3071 = vadd.f32 %v3065, %v3069
  %v3072 = vmul.f32 %v3035, %v3059
  %v3073 = vmul.f32 %v3037, %v3061
  %v3074 = vmul.f32 %v3072, %v2651
  %v3075 = vmul.f32 %v3073, %v2654
  %v3076 = vadd.f32 %v3070, %v3074
  %v3077 = vadd.f32 %v3071, %v3075
  %v3078 = vmul.f32 %v3041, %v3059
  %v3079 = vmul.f32 %v3043, %v3061
  %v3080 = vmul.f32 %v3078, %v2659
  %v3081 = vmul.f32 %v3079, %v2662
  %v3082 = vadd.f32 %v3076, %v3080
  %v3083 = vadd.f32 %v3077, %v3081
  %v3084 = vmul.f32 %v3047, %v3059
  %v3085 = vmul.f32 %v3049, %v3061
  %v3086 = vmul.f32 %v3084, %v2667
  %v3087 = vmul.f32 %v3085, %v2670
  %v3088 = vadd.f32 %v3082, %v3086
  %v3089 = vadd.f32 %v3083, %v3087
  %3092 = vrot.lane.b32.xlu0 %v3088, 8
  %v3093 = vpop.permute.xlu0 %3092
  %3094 = vrot.lane.b32.xlu0 %v3089, 8
  %v3095 = vpop.permute.xlu0 %3094
  %v3098 = vsel %vm146, %v3010, %v3093
  %v3099 = vsel %vm146, %v3011, %v3095
  %v3100 = vsel %vm281, %v3098, %v2553
  %v3101 = vsel %vm281, %v3099, %v2554
  %v3102 = vpack.c.bf16 %v3101, %v3100
  %v3103 = vpack.c.bf16 %v2461, %v2460
  %v3104 = vpack.c.bf16 %v2462, %v2462
  %v3105 = vlaneseq
  %v3106 = vshrl.u32 %v3105, 7
  %v3107 = vsub.s32 0, %v3106
  %v3108 = vrot.slane %v2463, %v3107
  %v3110 = vsel %vm1580, %v3102, 0
  %v3113 = vsel %vm1184, %v3104, 0
  %3115 = vmatprep.subr.bf16.mxu0 0
  %3116 = vmatpush1.bf16.msra.mxu0 %v3103
  %3117 = vmatprep.subr.bf16.mxu0 0
  %3118 = vmatpush1.bf16.msra.mxu0 %v3113
  %3119 = vmatprep.subr.bf16.mxu0 0
  %3120 = vmatpush1.bf16.msra.mxu0 0
  %3121 = vmatprep.subr.bf16.mxu0 0
  %3122 = vmatpush1.bf16.msra.mxu0 0
  %3123 = vmatprep.subr.bf16.mxu0 0
  %3124 = vmatpush1.bf16.msra.mxu0 0
  %3125 = vmatprep.subr.bf16.mxu0 0
  %3126 = vmatpush1.bf16.msra.mxu0 0
  %3127 = vmatprep.subr.bf16.mxu0 0
  %3128 = vmatpush1.bf16.msra.mxu0 0
  %3129 = vmatprep.subr.bf16.mxu0 0
  %3130 = vmatpush1.bf16.msra.mxu0 0
  %3131 = vmatprep.subr.bf16.mxu0 0
  %3132 = vmatpush1.bf16.msra.mxu0 0
  %3133 = vmatprep.subr.bf16.mxu0 0
  %3134 = vmatpush1.bf16.msra.mxu0 0
  %3135 = vmatprep.subr.bf16.mxu0 0
  %3136 = vmatpush1.bf16.msra.mxu0 0
  %3137 = vmatprep.subr.bf16.mxu0 0
  %3138 = vmatpush1.bf16.msra.mxu0 0
  %3139 = vmatprep.subr.bf16.mxu0 0
  %3140 = vmatpush1.bf16.msra.mxu0 0
  %3141 = vmatprep.subr.bf16.mxu0 0
  %3142 = vmatpush1.bf16.msra.mxu0 0
  %3143 = vmatprep.subr.bf16.mxu0 0
  %3144 = vmatpush1.bf16.msra.mxu0 0
  %3145 = vmatprep.subr.bf16.mxu0 0
  %3146 = vmatpush1.bf16.msra.mxu0 0
  %3147 = vmatprep.mubr.bf16.mxu0 0
  %3148 = vmatmul.mubr.bf16.gmra.mrb[0].mxu0 %v3110
  %v3149 = vpop.f32.mrb[0].mxu0
  %v3150 = vadd.f32 %v3108, %v3149
  %v3151 = vpop.f32.mrb[0].mxu0
  %v3152 = vpop.f32.mrb[0].mxu0
  %v3153 = vadd.f32 %v3108, %v3152
  %v3154 = vpop.f32.mrb[0].mxu0
  %3155 = vdwg.mxu0
  %v3156 = vtanh.pop %v3150
  %v3157 = vtanh.pop %v3153
  %3158 = vrot.lane.b32.xlu0 %v1666, 8
  %v3159 = vpop.permute.xlu0 %3158
  %3160 = vrot.lane.b32.xlu0 %v1667, 8
  %v3161 = vpop.permute.xlu0 %3160
  %v3164 = vmul.f32 %v2452, %v3159
  %v3165 = vmul.f32 %v2454, %v3161
  %v3166 = vsub.f32 1.0, %v2452
  %v3167 = vsub.f32 1.0, %v2454
  %3170 = vrot.lane.b32.xlu0 %v3156, 8
  %v3171 = vpop.permute.xlu0 %3170
  %3172 = vrot.lane.b32.xlu0 %v3157, 8
  %v3173 = vpop.permute.xlu0 %3172
  %v3176 = vmul.f32 %v3166, %v3171
  %v3177 = vmul.f32 %v3167, %v3173
  %v3178 = vadd.f32 %v3164, %v3176
  %v3179 = vadd.f32 %v3165, %v3177
  %3182 = vrot.lane.b32.xlu0 %v3178, 120
  %v3183 = vpop.permute.xlu0 %3182
  %3184 = vrot.lane.b32.xlu0 %v3179, 120
  %v3185 = vpop.permute.xlu0 %3184
  %s3188 = scalar_lea.vmem %s6, 16
  %3189 = vst.msk [vmem:[%s3188] sm:$0xff] %vm146, %v3183
  %3190 = vst.msk [vmem:[%s3188 + $0x8] sm:$0xff] %vm146, %v3185
  // Predicated region
  $region26: #{tpu_custom_call.1} parent=0 // pred_check
    _
  $region27: #{tpu_custom_call.1} parent=0 // pred_check_branch
    %3192 = sbr.rel (0) target = $region29
  $region28: #{tpu_custom_call.1} parent=0 // pred_region
    _
  $region29: #{tpu_custom_call.1} parent=0 // pred_fallthru
    _
  // Predicated region
  $region30: #{tpu_custom_call.1} parent=0 // pred_check
    _
  $region31: #{tpu_custom_call.1} parent=0 // pred_check_branch
    %3194 = sbr.rel (0) target = $region33
  $region32: #{tpu_custom_call.1} parent=0 // pred_region
    _
  $region33: #{tpu_custom_call.1} parent=0 // pred_fallthru
    _

</llo_original>
